<compile_context>
chip_gen: v5e
topology: v5e:2x2
jax: 0.10.0
libtpu: 0.0.40
codegen_flags: <defaults>
</compile_context>

<pallas_src>
import functools

import jax
import jax.numpy as jnp
from jax import lax
from jax.experimental import pallas as pl
from jax.experimental.pallas import tpu as pltpu


def _round_up(x, m):
    return (x + m - 1) // m * m


def _lstm_tagger_kernel(x_ref,      # (TC*Bp, E)   bf16, shard/time-major embedded rows
                        m_ref,      # (TC*Bp, 1)   int32, per-row mask (1 = real token)
                        wih_ref,    # (E, 4Hp)     bf16, gate-padded W_ih^T
                        whh_ref,    # (Hp, 4Hp)    bf16, gate-padded W_hh^T
                        b_ref,      # (1, 4Hp)     f32, gate-padded b_ih + b_hh
                        wout_ref,   # (Hp, Lp)     bf16, padded hidden2tag W^T
                        bout_ref,   # (1, Lp)      f32, padded hidden2tag bias
                        o_ref,      # (TC*Bp, Lp)  logits for this chunk
                        pre_sc,     # (TC*Bp, 4Hp) f32 scratch: x @ W_ih + b
                        hall_sc,    # (TC*Bp, Hp)  f32 scratch: masked h per step
                        h_sc,       # (Bp, Hp)     f32 scratch: hidden state (persistent)
                        c_sc,       # (Bp, Hp)     f32 scratch: cell state (persistent)
                        *, unroll):
    Bp = h_sc.shape[0]
    Hp = whh_ref.shape[0]
    rows = x_ref.shape[0]
    n_outer = rows // (unroll * Bp)
    chunk = pl.program_id(1)

    # (a) init persistent recurrent state at the start of each shard's time sweep
    @pl.when(chunk == 0)
    def _():
        h_sc[...] = jnp.zeros_like(h_sc)
        c_sc[...] = jnp.zeros_like(c_sc)

    # (b) input projection hoisted out of the recurrence: ONE MXU matmul per chunk
    pre_sc[...] = (
        jnp.dot(x_ref[...], wih_ref[...], preferred_element_type=jnp.float32)
        + b_ref[...])

    # (c) serial recurrence: state lives in vregs; only h @ W_hh is on the chain.
    #     The bf16 cast of h happens once per produced h (off the matmul-issue
    #     path via the carried shadow), not on every read of the state.
    h0 = h_sc[...].astype(jnp.bfloat16)       # single scratch read + one cast per chunk
    c0 = c_sc[...]

    def outer_body(j, carry):
        h_bf, c = carry
        base = j * (unroll * Bp)
        for u in range(unroll):               # static unroll inside the visible loop
            r0 = pl.multiple_of(base + u * Bp, Bp)
            pre_t = pre_sc[pl.ds(r0, Bp), :]                                  # (Bp, 4Hp) f32
            gates = pre_t + jnp.dot(h_bf, whh_ref[...],
                                    preferred_element_type=jnp.float32)       # (Bp, 4Hp)

            # PyTorch nn.LSTM gate order i, f, g, o; each gate is 128-lane aligned.
            i_g = jax.nn.sigmoid(gates[:, 0:Hp])
            f_g = jax.nn.sigmoid(gates[:, Hp:2 * Hp])
            g_g = jnp.tanh(gates[:, 2 * Hp:3 * Hp])
            o_g = jax.nn.sigmoid(gates[:, 3 * Hp:4 * Hp])

            c_new = f_g * c + i_g * g_g
            h_new = o_g * jnp.tanh(c_new)
            h_new_bf = h_new.astype(jnp.bfloat16)

            # packed-sequence semantics: masked steps do not update the state.
            # One lane-broadcast + compare; blends are single vsel each.
            m_full = jnp.broadcast_to(m_ref[pl.ds(r0, Bp), :], (Bp, Hp)) != 0
            h_bf = jnp.where(m_full, h_new_bf, h_bf)
            c = jnp.where(m_full, c_new, c)

            # pad_packed_sequence zero-pads encoder output before hidden2tag.
            hall_sc[pl.ds(r0, Bp), :] = jnp.where(m_full, h_new,
                                                  jnp.zeros_like(h_new))
        return h_bf, c

    h_fin, c_fin = lax.fori_loop(0, n_outer, outer_body, (h0, c0))
    h_sc[...] = h_fin.astype(jnp.float32)     # single scratch write per chunk
    c_sc[...] = c_fin

    # (d) output projection hoisted out of the loop: one lane-dense MXU matmul
    o_ref[...] = (
        jnp.dot(hall_sc[...].astype(jnp.bfloat16), wout_ref[...],
                preferred_element_type=jnp.float32)
        + bout_ref[...]).astype(o_ref.dtype)


def _pack_gate_cols(w_t, H, Hp):
    """w_t: (K, 4H), columns ordered [i|f|g|o] each H wide -> (K, 4Hp) with every
    gate at a 128-aligned column offset (zeros in the padded lanes)."""
    K = w_t.shape[0]
    out = jnp.zeros((K, 4 * Hp), w_t.dtype)
    for g in range(4):
        out = out.at[:, g * Hp:g * Hp + H].set(w_t[:, g * H:(g + 1) * H])
    return out


def lstm_tagger_forward(x_ids, mask, params, *, time_chunk=32, unroll=8,
                        batch_shards=1, out_dtype=jnp.float32):
    """x_ids: (B, T) int32 token ids; mask: (B, T) {0,1}. Returns (B, T, L).

    batch_shards: set to 2 on v7x (dual TensorCore) when B is large enough that
    each shard still fills >= 8 sublanes; the shard axis is 'parallel'.
    out_dtype: jnp.bfloat16 halves logits writeback on v5e (default f32).
    """
    B, T = x_ids.shape
    E = params["embedding"].shape[1]
    H = params["w_hh"].shape[1]
    L = params["w_out"].shape[0]
    # NOTE(v6e/v7x): for non-toy sizes H >= 256 keeps the 256-wide MXU fed on the
    # hoisted projections; 128 already matches v5e's MXU, so don't over-pad here.
    Hp = _round_up(H, 128)              # lane-aligned gates / 128-wide h contraction
    Lp = _round_up(L, 128)              # lane-dense output stores

    n_sh = max(1, int(batch_shards))
    Bp = _round_up(max(1, -(-B // n_sh)), 8)      # per-shard rows: full f32 sublane tiles
    B_tot = n_sh * Bp

    # time chunk: multiple of the unroll factor and even (so TC*Bp is a multiple
    # of 16 for the bf16 x block's sublane packing)
    U = max(1, int(unroll))
    step = U if U % 2 == 0 else 2 * U
    TC = _round_up(max(1, min(int(time_chunk), T)), step)

    # per-chip VMEM budget (item 8): v7x has 64 MiB/TC, v5e/v6e 128 MiB
    try:
        vmem_cap = int(pltpu.get_tpu_info().vmem_capacity_bytes)
    except Exception:
        vmem_cap = 64 * 1024 * 1024
    budget = vmem_cap * 3 // 4
    out_bytes = jnp.dtype(out_dtype).itemsize
    w_bytes = (E * 4 * Hp + Hp * 4 * Hp + Hp * Lp) * 2 + (4 * Hp + Lp) * 4  # single-buffered

    def vmem_need(tc):
        rows = tc * Bp
        blocks = 2 * (rows * E * 2 + rows * 4 + rows * Lp * out_bytes)      # double-buffered
        scratch = rows * 4 * Hp * 4 + rows * Hp * 4 + 2 * Bp * Hp * 4
        return blocks + w_bytes + scratch

    while TC > step and vmem_need(TC) > budget:
        TC -= step
    T_pad = _round_up(T, TC)
    n_chunks = T_pad // TC
    rows_total = n_sh * T_pad * Bp
    vmem_limit = int(min(max(4 * vmem_need(TC), 32 * 1024 * 1024),
                         vmem_cap * 7 // 8))

    # embedding gather straight from a bf16 table in time-major order (no f32 x
    # ever hits HBM); shard-major row layout: row = ((s*T_pad + t)*Bp + b_in_shard)
    # TODO(synk): fuse the gather into the kernel via scalar-prefetched ids +
    # pl.Element row BlockSpec to drop this HBM pass entirely.
    emb_tab = params["embedding"].astype(jnp.bfloat16)
    emb_tm = jnp.take(emb_tab, x_ids.T, axis=0)                              # (T, B, E) bf16
    emb_tm = jnp.pad(emb_tm, ((0, T_pad - T), (0, B_tot - B), (0, 0)))
    x2 = (emb_tm.reshape(T_pad, n_sh, Bp, E)
                .transpose(1, 0, 2, 3)
                .reshape(rows_total, E))

    m_tm = jnp.pad(mask.astype(jnp.int32).T, ((0, T_pad - T), (0, B_tot - B)))
    m2 = (m_tm.reshape(T_pad, n_sh, Bp)
              .transpose(1, 0, 2)
              .reshape(rows_total, 1))

    # parameter packing: transpose, per-gate 128-aligned padding, bf16 MXU operands
    wih = _pack_gate_cols(params["w_ih"].T.astype(jnp.float32), H, Hp).astype(jnp.bfloat16)
    whh_rows = _pack_gate_cols(params["w_hh"].T.astype(jnp.float32), H, Hp)
    whh = jnp.zeros((Hp, 4 * Hp), jnp.float32).at[:H, :].set(whh_rows).astype(jnp.bfloat16)
    b_lstm = _pack_gate_cols(
        (params["b_ih"] + params["b_hh"]).astype(jnp.float32)[None, :], H, Hp)
    wout = (jnp.zeros((Hp, Lp), jnp.float32)
            .at[:H, :L].set(params["w_out"].T.astype(jnp.float32))
            .astype(jnp.bfloat16))
    bout = jnp.zeros((1, Lp), jnp.float32).at[0, :L].set(params["b_out"].astype(jnp.float32))

    # advisory cost estimate (padded work)
    flops = 2 * rows_total * (E + Hp) * 4 * Hp + 2 * rows_total * Hp * Lp
    transcendentals = 5 * rows_total * Hp
    bytes_accessed = int(x2.size * 2 + m2.size * 4 + rows_total * Lp * out_bytes
                         + wih.size * 2 + whh.size * 2 + wout.size * 2
                         + b_lstm.size * 4 + bout.size * 4)

    kernel = functools.partial(_lstm_tagger_kernel, unroll=U)
    stream = lambda s, c: (s * n_chunks + c, 0)

    def run(single_buffer_consts):
        def const_spec(shape):
            if single_buffer_consts:
                return pl.BlockSpec(shape, lambda s, c: (0,) * len(shape),
                                    pipeline_mode=pl.Buffered(1))
            return pl.BlockSpec(shape, lambda s, c: (0,) * len(shape))

        return pl.pallas_call(
            kernel,
            out_shape=jax.ShapeDtypeStruct((rows_total, Lp), out_dtype),
            grid=(n_sh, n_chunks),
            in_specs=[
                pl.BlockSpec((TC * Bp, E), stream),       # x, streamed per time chunk
                pl.BlockSpec((TC * Bp, 1), stream),       # per-row mask
                const_spec((E, 4 * Hp)),                  # W_ih   (single-buffered)
                const_spec((Hp, 4 * Hp)),                 # W_hh
                const_spec((1, 4 * Hp)),                  # b_ih + b_hh
                const_spec((Hp, Lp)),                     # W_out
                const_spec((1, Lp)),                      # b_out
            ],
            out_specs=pl.BlockSpec((TC * Bp, Lp), stream),
            scratch_shapes=[
                pltpu.VMEM((TC * Bp, 4 * Hp), jnp.float32),   # x @ W_ih + b (per chunk)
                pltpu.VMEM((TC * Bp, Hp), jnp.float32),       # masked h (per chunk)
                pltpu.VMEM((Bp, Hp), jnp.float32),            # h state (persists across chunks)
                pltpu.VMEM((Bp, Hp), jnp.float32),            # c state (persists across chunks)
            ],
            compiler_params=pltpu.CompilerParams(
                dimension_semantics=("parallel", "arbitrary"),
                vmem_limit_bytes=vmem_limit),
            cost_estimate=pl.CostEstimate(flops=flops,
                                          transcendentals=transcendentals,
                                          bytes_accessed=bytes_accessed),
        )(x2, m2, wih, whh, b_lstm, wout, bout)

    try:
        out2 = run(True)
    except Exception:
        # fallback for jax builds where BlockSpec.pipeline_mode / pl.Buffered(1)
        # is unavailable: identical kernel, default double-buffered constants.
        out2 = run(False)

    out_tm = (out2.reshape(n_sh, T_pad, Bp, Lp)
                  .transpose(1, 0, 2, 3)
                  .reshape(T_pad, B_tot, Lp)[:T, :B, :L])      # drop time/batch/label pad
    return jnp.transpose(out_tm, (1, 0, 2)).astype(jnp.float32)  # (B, T, L) batch-first


def reference_forward(x_ids, mask, params):
    """Pure-JAX f32 reference mirroring the PyTorch packed-LSTM tagger."""
    emb = jnp.take(params["embedding"], x_ids, axis=0).astype(jnp.float32)
    B, T, E = emb.shape
    H = params["w_hh"].shape[1]
    wih_t = params["w_ih"].T
    whh_t = params["w_hh"].T
    b = (params["b_ih"] + params["b_hh"])[None, :]
    m = mask.astype(jnp.float32)

    def step(carry, inp):
        h, c = carry
        x_t, m_t = inp
        gates = x_t @ wih_t + h @ whh_t + b
        i = jax.nn.sigmoid(gates[:, :H])
        f = jax.nn.sigmoid(gates[:, H:2 * H])
        g = jnp.tanh(gates[:, 2 * H:3 * H])
        o = jax.nn.sigmoid(gates[:, 3 * H:])
        c_new = f * c + i * g
        h_new = o * jnp.tanh(c_new)
        mc = m_t[:, None]
        return (mc * h_new + (1 - mc) * h, mc * c_new + (1 - mc) * c), mc * h_new

    init = (jnp.zeros((B, H), jnp.float32), jnp.zeros((B, H), jnp.float32))
    xs = (jnp.transpose(emb, (1, 0, 2)), jnp.transpose(m, (1, 0)))
    _, outs = jax.lax.scan(step, init, xs)                                   # (T, B, H)
    h_seq = jnp.transpose(outs, (1, 0, 2))                                   # (B, T, H)
    return h_seq @ params["w_out"].T + params["b_out"][None, None, :]


def make_params(key, vocab, embed_dim, hidden, labels):
    ks = jax.random.split(key, 7)
    s = 0.1
    return {
        "embedding": s * jax.random.normal(ks[0], (vocab, embed_dim), jnp.float32),
        "w_ih": s * jax.random.normal(ks[1], (4 * hidden, embed_dim), jnp.float32),
        "w_hh": s * jax.random.normal(ks[2], (4 * hidden, hidden), jnp.float32),
        "b_ih": s * jax.random.normal(ks[3], (4 * hidden,), jnp.float32),
        "b_hh": s * jax.random.normal(ks[4], (4 * hidden,), jnp.float32),
        "w_out": s * jax.random.normal(ks[5], (labels, hidden), jnp.float32),
        "b_out": s * jax.random.normal(ks[6], (labels,), jnp.float32),
    }


if __name__ == "__main__":
    B, T = 2, 16
    VOCAB, EMBED, HIDDEN, LABELS = 50, 32, 32, 16

    key = jax.random.PRNGKey(0)
    kp, kx = jax.random.split(key)
    params = make_params(kp, VOCAB, EMBED, HIDDEN, LABELS)

    x_ids = jax.random.randint(kx, (B, T), 0, VOCAB, dtype=jnp.int32)
    lengths = jnp.array([T, 11], dtype=jnp.int32)            # sorted, as pack_padded_sequence expects
    mask = (jnp.arange(T)[None, :] < lengths[:, None]).astype(jnp.int32)   # (B, T)

    logits = jax.block_until_ready(
        lstm_tagger_forward(x_ids, mask, params, time_chunk=32, unroll=8))
    ref = jax.block_until_ready(reference_forward(x_ids, mask, params))

    assert logits.shape == (B, T, LABELS)
    # bf16 matmul operands with f32 accumulation vs pure-f32 reference
    assert jnp.allclose(logits, ref, atol=1e-2, rtol=1e-2), "mismatch vs reference"
    print("KERNEL_OK")
</pallas_src>

<mosaic_0001>
module attributes {stable_mosaic.version = 11 : i64} {
  func.func @_lstm_tagger_kernel(%arg0: i32, %arg1: i32, %arg2: memref<128x32xbf16, #tpu.memory_space<vmem>>, %arg3: memref<128x1xi32, #tpu.memory_space<vmem>>, %arg4: memref<32x512xbf16, #tpu.memory_space<vmem>>, %arg5: memref<128x512xbf16, #tpu.memory_space<vmem>>, %arg6: memref<1x512xf32, #tpu.memory_space<vmem>>, %arg7: memref<128x128xbf16, #tpu.memory_space<vmem>>, %arg8: memref<1x128xf32, #tpu.memory_space<vmem>>, %arg9: memref<128x128xf32, #tpu.memory_space<vmem>>, %arg10: memref<128x512xf32, #tpu.memory_space<vmem>>, %arg11: memref<128x128xf32, #tpu.memory_space<vmem>>, %arg12: memref<8x128xf32, #tpu.memory_space<vmem>>, %arg13: memref<8x128xf32, #tpu.memory_space<vmem>>) attributes {dimension_semantics = [#tpu.dimension_semantics<parallel>, #tpu.dimension_semantics<arbitrary>], iteration_bounds = array<i64: 1, 1>, scalar_prefetch = 0 : i64, scratch_operands = 4 : i64, tpu.core_type = #tpu.core_type<tc>, window_params = [{transform_indices = @transform_0, window_bounds = array<i64: 128, 32>}, {transform_indices = @transform_1, window_bounds = array<i64: 128, 1>}, {pipeline_mode = #tpu.pipeline_mode<synchronous>, transform_indices = @transform_2, window_bounds = array<i64: 32, 512>}, {pipeline_mode = #tpu.pipeline_mode<synchronous>, transform_indices = @transform_3, window_bounds = array<i64: 128, 512>}, {pipeline_mode = #tpu.pipeline_mode<synchronous>, transform_indices = @transform_4, window_bounds = array<i64: 1, 512>}, {pipeline_mode = #tpu.pipeline_mode<synchronous>, transform_indices = @transform_5, window_bounds = array<i64: 128, 128>}, {pipeline_mode = #tpu.pipeline_mode<synchronous>, transform_indices = @transform_6, window_bounds = array<i64: 1, 128>}, {transform_indices = @transform_7, window_bounds = array<i64: 128, 128>}]} {
    %c0_i32 = arith.constant 0 : i32
    %0 = arith.cmpi eq, %arg1, %c0_i32 : i32
    %1 = arith.extui %0 : i1 to i32
    %c0_i32_0 = arith.constant 0 : i32
    %2 = arith.cmpi ne, %1, %c0_i32_0 : i32
    scf.if %2 {
      %cst_27 = arith.constant 0.000000e+00 : f32
      %26 = vector.broadcast %cst_27 : f32 to vector<8x128xf32>
      %c0_28 = arith.constant 0 : index
      %c0_29 = arith.constant 0 : index
      %27 = vector.load %arg12[%c0_28, %c0_29] : memref<8x128xf32, #tpu.memory_space<vmem>>, vector<8x128xf32>
      tpu.vector_store %arg12[%c0_28, %c0_29], %26 {strides = array<i32>} : memref<8x128xf32, #tpu.memory_space<vmem>>, vector<8x128xf32>,
      %cst_30 = arith.constant 0.000000e+00 : f32
      %28 = vector.broadcast %cst_30 : f32 to vector<8x128xf32>
      %c0_31 = arith.constant 0 : index
      %c0_32 = arith.constant 0 : index
      %29 = vector.load %arg13[%c0_31, %c0_32] : memref<8x128xf32, #tpu.memory_space<vmem>>, vector<8x128xf32>
      tpu.vector_store %arg13[%c0_31, %c0_32], %28 {strides = array<i32>} : memref<8x128xf32, #tpu.memory_space<vmem>>, vector<8x128xf32>,
    } else {
    }
    %c0 = arith.constant 0 : index
    %c0_1 = arith.constant 0 : index
    %3 = vector.load %arg2[%c0, %c0_1] : memref<128x32xbf16, #tpu.memory_space<vmem>>, vector<128x32xbf16>
    %c0_2 = arith.constant 0 : index
    %c0_3 = arith.constant 0 : index
    %4 = vector.load %arg4[%c0_2, %c0_3] : memref<32x512xbf16, #tpu.memory_space<vmem>>, vector<32x512xbf16>
    %cst = arith.constant dense<0.000000e+00> : vector<128x512xf32>
    %5 = tpu.matmul %3, %4, %cst {dimension_numbers = #tpu.dot_dimension_numbers<[1], [0], [0], [1], [0, 0, 1, 1], [], []>} : vector<128x32xbf16>, vector<32x512xbf16>, vector<128x512xf32> -> vector<128x512xf32>
    %c0_4 = arith.constant 0 : index
    %c0_5 = arith.constant 0 : index
    %6 = vector.load %arg6[%c0_4, %c0_5] : memref<1x512xf32, #tpu.memory_space<vmem>>, vector<1x512xf32>
    %7 = vector.broadcast %6 : vector<1x512xf32> to vector<128x512xf32>
    %8 = arith.addf %5, %7 : vector<128x512xf32>
    %c0_6 = arith.constant 0 : index
    %c0_7 = arith.constant 0 : index
    %9 = vector.load %arg10[%c0_6, %c0_7] : memref<128x512xf32, #tpu.memory_space<vmem>>, vector<128x512xf32>
    tpu.vector_store %arg10[%c0_6, %c0_7], %8 {strides = array<i32>} : memref<128x512xf32, #tpu.memory_space<vmem>>, vector<128x512xf32>,
    %c0_8 = arith.constant 0 : index
    %c0_9 = arith.constant 0 : index
    %10 = vector.load %arg12[%c0_8, %c0_9] : memref<8x128xf32, #tpu.memory_space<vmem>>, vector<8x128xf32>
    %11 = arith.truncf %10 : vector<8x128xf32> to vector<8x128xbf16>
    %c0_10 = arith.constant 0 : index
    %c0_11 = arith.constant 0 : index
    %12 = vector.load %arg13[%c0_10, %c0_11] : memref<8x128xf32, #tpu.memory_space<vmem>>, vector<8x128xf32>
    %c0_i32_12 = arith.constant 0 : i32
    %c2_i32 = arith.constant 2 : i32
    %13 = arith.addi %c0_i32_12, %c2_i32 : i32
    %c1_i32 = arith.constant 1 : i32
    %14:2 = scf.for %arg14 = %c0_i32_12 to %13 step %c1_i32 iter_args(%arg15 = %11, %arg16 = %12) -> (vector<8x128xbf16>, vector<8x128xf32>)  : i32 {
      %c64_i32 = arith.constant 64 : i32
      %26 = arith.muli %arg14, %c64_i32 : i32
      %c0_i32_27 = arith.constant 0 : i32
      %27 = arith.addi %26, %c0_i32_27 : i32
      %28 = tpu.assume_multiple %27, 8 : i32
      %29 = arith.index_cast %28 : i32 to index
      %c0_28 = arith.constant 0 : index
      %30 = vector.load %arg10[%29, %c0_28] : memref<128x512xf32, #tpu.memory_space<vmem>>, vector<8x512xf32>
      %c0_29 = arith.constant 0 : index
      %c0_30 = arith.constant 0 : index
      %31 = vector.load %arg5[%c0_29, %c0_30] : memref<128x512xbf16, #tpu.memory_space<vmem>>, vector<128x512xbf16>
      %cst_31 = arith.constant dense<0.000000e+00> : vector<8x512xf32>
      %32 = tpu.matmul %arg15, %31, %cst_31 {dimension_numbers = #tpu.dot_dimension_numbers<[1], [0], [0], [1], [0, 0, 1, 1], [], []>} : vector<8x128xbf16>, vector<128x512xbf16>, vector<8x512xf32> -> vector<8x512xf32>
      %33 = arith.addf %30, %32 : vector<8x512xf32>
      %34 = vector.extract_strided_slice %33 {offsets = [0, 0], sizes = [8, 128], strides = [1, 1]} : vector<8x512xf32> to vector<8x128xf32>
      %35 = arith.negf %34 : vector<8x128xf32>
      %36 = math.exp %35 : vector<8x128xf32>
      %cst_32 = arith.constant 1.000000e+00 : f32
      %37 = vector.broadcast %cst_32 : f32 to vector<8x128xf32>
      %38 = arith.addf %37, %36 : vector<8x128xf32>
      %39 = arith.divf %37, %38 : vector<8x128xf32>
      %40 = vector.extract_strided_slice %33 {offsets = [0, 128], sizes = [8, 128], strides = [1, 1]} : vector<8x512xf32> to vector<8x128xf32>
      %41 = arith.negf %40 : vector<8x128xf32>
      %42 = math.exp %41 : vector<8x128xf32>
      %cst_33 = arith.constant 1.000000e+00 : f32
      %43 = vector.broadcast %cst_33 : f32 to vector<8x128xf32>
      %44 = arith.addf %43, %42 : vector<8x128xf32>
      %45 = arith.divf %43, %44 : vector<8x128xf32>
      %46 = vector.extract_strided_slice %33 {offsets = [0, 256], sizes = [8, 128], strides = [1, 1]} : vector<8x512xf32> to vector<8x128xf32>
      %47 = math.tanh %46 : vector<8x128xf32>
      %48 = vector.extract_strided_slice %33 {offsets = [0, 384], sizes = [8, 128], strides = [1, 1]} : vector<8x512xf32> to vector<8x128xf32>
      %49 = arith.negf %48 : vector<8x128xf32>
      %50 = math.exp %49 : vector<8x128xf32>
      %cst_34 = arith.constant 1.000000e+00 : f32
      %51 = vector.broadcast %cst_34 : f32 to vector<8x128xf32>
      %52 = arith.addf %51, %50 : vector<8x128xf32>
      %53 = arith.divf %51, %52 : vector<8x128xf32>
      %54 = arith.mulf %45, %arg16 : vector<8x128xf32>
      %55 = arith.mulf %39, %47 : vector<8x128xf32>
      %56 = arith.addf %54, %55 : vector<8x128xf32>
      %57 = math.tanh %56 : vector<8x128xf32>
      %58 = arith.mulf %53, %57 : vector<8x128xf32>
      %59 = arith.truncf %58 : vector<8x128xf32> to vector<8x128xbf16>
      %60 = arith.index_cast %28 : i32 to index
      %c0_35 = arith.constant 0 : index
      %61 = vector.load %arg3[%60, %c0_35] : memref<128x1xi32, #tpu.memory_space<vmem>>, vector<8x1xi32>
      %62 = vector.shape_cast %61 : vector<8x1xi32> to vector<8x1xi32>
      %63 = vector.broadcast %62 : vector<8x1xi32> to vector<8x128xi32>
      %c0_i32_36 = arith.constant 0 : i32
      %64 = vector.broadcast %c0_i32_36 : i32 to vector<8x128xi32>
      %65 = arith.cmpi ne, %63, %64 : vector<8x128xi32>
      %66 = arith.select %65, %59, %arg15 : vector<8x128xi1>, vector<8x128xbf16>
      %67 = arith.select %65, %56, %arg16 : vector<8x128xi1>, vector<8x128xf32>
      %cst_37 = arith.constant 0.000000e+00 : f32
      %68 = vector.broadcast %cst_37 : f32 to vector<8x128xf32>
      %69 = arith.select %65, %58, %68 : vector<8x128xi1>, vector<8x128xf32>
      %70 = arith.index_cast %28 : i32 to index
      %c0_38 = arith.constant 0 : index
      %71 = vector.load %arg11[%70, %c0_38] : memref<128x128xf32, #tpu.memory_space<vmem>>, vector<8x128xf32>
      tpu.vector_store %arg11[%70, %c0_38], %69 {strides = array<i32>} : memref<128x128xf32, #tpu.memory_space<vmem>>, vector<8x128xf32>,
      %c8_i32 = arith.constant 8 : i32
      %72 = arith.addi %26, %c8_i32 : i32
      %73 = tpu.assume_multiple %72, 8 : i32
      %74 = arith.index_cast %73 : i32 to index
      %c0_39 = arith.constant 0 : index
      %75 = vector.load %arg10[%74, %c0_39] : memref<128x512xf32, #tpu.memory_space<vmem>>, vector<8x512xf32>
      %c0_40 = arith.constant 0 : index
      %c0_41 = arith.constant 0 : index
      %76 = vector.load %arg5[%c0_40, %c0_41] : memref<128x512xbf16, #tpu.memory_space<vmem>>, vector<128x512xbf16>
      %cst_42 = arith.constant dense<0.000000e+00> : vector<8x512xf32>
      %77 = tpu.matmul %66, %76, %cst_42 {dimension_numbers = #tpu.dot_dimension_numbers<[1], [0], [0], [1], [0, 0, 1, 1], [], []>} : vector<8x128xbf16>, vector<128x512xbf16>, vector<8x512xf32> -> vector<8x512xf32>
      %78 = arith.addf %75, %77 : vector<8x512xf32>
      %79 = vector.extract_strided_slice %78 {offsets = [0, 0], sizes = [8, 128], strides = [1, 1]} : vector<8x512xf32> to vector<8x128xf32>
      %80 = arith.negf %79 : vector<8x128xf32>
      %81 = math.exp %80 : vector<8x128xf32>
      %cst_43 = arith.constant 1.000000e+00 : f32
      %82 = vector.broadcast %cst_43 : f32 to vector<8x128xf32>
      %83 = arith.addf %82, %81 : vector<8x128xf32>
      %84 = arith.divf %82, %83 : vector<8x128xf32>
      %85 = vector.extract_strided_slice %78 {offsets = [0, 128], sizes = [8, 128], strides = [1, 1]} : vector<8x512xf32> to vector<8x128xf32>
      %86 = arith.negf %85 : vector<8x128xf32>
      %87 = math.exp %86 : vector<8x128xf32>
      %cst_44 = arith.constant 1.000000e+00 : f32
      %88 = vector.broadcast %cst_44 : f32 to vector<8x128xf32>
      %89 = arith.addf %88, %87 : vector<8x128xf32>
      %90 = arith.divf %88, %89 : vector<8x128xf32>
      %91 = vector.extract_strided_slice %78 {offsets = [0, 256], sizes = [8, 128], strides = [1, 1]} : vector<8x512xf32> to vector<8x128xf32>
      %92 = math.tanh %91 : vector<8x128xf32>
      %93 = vector.extract_strided_slice %78 {offsets = [0, 384], sizes = [8, 128], strides = [1, 1]} : vector<8x512xf32> to vector<8x128xf32>
      %94 = arith.negf %93 : vector<8x128xf32>
      %95 = math.exp %94 : vector<8x128xf32>
      %cst_45 = arith.constant 1.000000e+00 : f32
      %96 = vector.broadcast %cst_45 : f32 to vector<8x128xf32>
      %97 = arith.addf %96, %95 : vector<8x128xf32>
      %98 = arith.divf %96, %97 : vector<8x128xf32>
      %99 = arith.mulf %90, %67 : vector<8x128xf32>
      %100 = arith.mulf %84, %92 : vector<8x128xf32>
      %101 = arith.addf %99, %100 : vector<8x128xf32>
      %102 = math.tanh %101 : vector<8x128xf32>
      %103 = arith.mulf %98, %102 : vector<8x128xf32>
      %104 = arith.truncf %103 : vector<8x128xf32> to vector<8x128xbf16>
      %105 = arith.index_cast %73 : i32 to index
      %c0_46 = arith.constant 0 : index
      %106 = vector.load %arg3[%105, %c0_46] : memref<128x1xi32, #tpu.memory_space<vmem>>, vector<8x1xi32>
      %107 = vector.shape_cast %106 : vector<8x1xi32> to vector<8x1xi32>
      %108 = vector.broadcast %107 : vector<8x1xi32> to vector<8x128xi32>
      %c0_i32_47 = arith.constant 0 : i32
      %109 = vector.broadcast %c0_i32_47 : i32 to vector<8x128xi32>
      %110 = arith.cmpi ne, %108, %109 : vector<8x128xi32>
      %111 = arith.select %110, %104, %66 : vector<8x128xi1>, vector<8x128xbf16>
      %112 = arith.select %110, %101, %67 : vector<8x128xi1>, vector<8x128xf32>
      %cst_48 = arith.constant 0.000000e+00 : f32
      %113 = vector.broadcast %cst_48 : f32 to vector<8x128xf32>
      %114 = arith.select %110, %103, %113 : vector<8x128xi1>, vector<8x128xf32>
      %115 = arith.index_cast %73 : i32 to index
      %c0_49 = arith.constant 0 : index
      %116 = vector.load %arg11[%115, %c0_49] : memref<128x128xf32, #tpu.memory_space<vmem>>, vector<8x128xf32>
      tpu.vector_store %arg11[%115, %c0_49], %114 {strides = array<i32>} : memref<128x128xf32, #tpu.memory_space<vmem>>, vector<8x128xf32>,
      %c16_i32 = arith.constant 16 : i32
      %117 = arith.addi %26, %c16_i32 : i32
      %118 = tpu.assume_multiple %117, 8 : i32
      %119 = arith.index_cast %118 : i32 to index
      %c0_50 = arith.constant 0 : index
      %120 = vector.load %arg10[%119, %c0_50] : memref<128x512xf32, #tpu.memory_space<vmem>>, vector<8x512xf32>
      %c0_51 = arith.constant 0 : index
      %c0_52 = arith.constant 0 : index
      %121 = vector.load %arg5[%c0_51, %c0_52] : memref<128x512xbf16, #tpu.memory_space<vmem>>, vector<128x512xbf16>
      %cst_53 = arith.constant dense<0.000000e+00> : vector<8x512xf32>
      %122 = tpu.matmul %111, %121, %cst_53 {dimension_numbers = #tpu.dot_dimension_numbers<[1], [0], [0], [1], [0, 0, 1, 1], [], []>} : vector<8x128xbf16>, vector<128x512xbf16>, vector<8x512xf32> -> vector<8x512xf32>
      %123 = arith.addf %120, %122 : vector<8x512xf32>
      %124 = vector.extract_strided_slice %123 {offsets = [0, 0], sizes = [8, 128], strides = [1, 1]} : vector<8x512xf32> to vector<8x128xf32>
      %125 = arith.negf %124 : vector<8x128xf32>
      %126 = math.exp %125 : vector<8x128xf32>
      %cst_54 = arith.constant 1.000000e+00 : f32
      %127 = vector.broadcast %cst_54 : f32 to vector<8x128xf32>
      %128 = arith.addf %127, %126 : vector<8x128xf32>
      %129 = arith.divf %127, %128 : vector<8x128xf32>
      %130 = vector.extract_strided_slice %123 {offsets = [0, 128], sizes = [8, 128], strides = [1, 1]} : vector<8x512xf32> to vector<8x128xf32>
      %131 = arith.negf %130 : vector<8x128xf32>
      %132 = math.exp %131 : vector<8x128xf32>
      %cst_55 = arith.constant 1.000000e+00 : f32
      %133 = vector.broadcast %cst_55 : f32 to vector<8x128xf32>
      %134 = arith.addf %133, %132 : vector<8x128xf32>
      %135 = arith.divf %133, %134 : vector<8x128xf32>
      %136 = vector.extract_strided_slice %123 {offsets = [0, 256], sizes = [8, 128], strides = [1, 1]} : vector<8x512xf32> to vector<8x128xf32>
      %137 = math.tanh %136 : vector<8x128xf32>
      %138 = vector.extract_strided_slice %123 {offsets = [0, 384], sizes = [8, 128], strides = [1, 1]} : vector<8x512xf32> to vector<8x128xf32>
      %139 = arith.negf %138 : vector<8x128xf32>
      %140 = math.exp %139 : vector<8x128xf32>
      %cst_56 = arith.constant 1.000000e+00 : f32
      %141 = vector.broadcast %cst_56 : f32 to vector<8x128xf32>
      %142 = arith.addf %141, %140 : vector<8x128xf32>
      %143 = arith.divf %141, %142 : vector<8x128xf32>
      %144 = arith.mulf %135, %112 : vector<8x128xf32>
      %145 = arith.mulf %129, %137 : vector<8x128xf32>
      %146 = arith.addf %144, %145 : vector<8x128xf32>
      %147 = math.tanh %146 : vector<8x128xf32>
      %148 = arith.mulf %143, %147 : vector<8x128xf32>
      %149 = arith.truncf %148 : vector<8x128xf32> to vector<8x128xbf16>
      %150 = arith.index_cast %118 : i32 to index
      %c0_57 = arith.constant 0 : index
      %151 = vector.load %arg3[%150, %c0_57] : memref<128x1xi32, #tpu.memory_space<vmem>>, vector<8x1xi32>
      %152 = vector.shape_cast %151 : vector<8x1xi32> to vector<8x1xi32>
      %153 = vector.broadcast %152 : vector<8x1xi32> to vector<8x128xi32>
      %c0_i32_58 = arith.constant 0 : i32
      %154 = vector.broadcast %c0_i32_58 : i32 to vector<8x128xi32>
      %155 = arith.cmpi ne, %153, %154 : vector<8x128xi32>
      %156 = arith.select %155, %149, %111 : vector<8x128xi1>, vector<8x128xbf16>
      %157 = arith.select %155, %146, %112 : vector<8x128xi1>, vector<8x128xf32>
      %cst_59 = arith.constant 0.000000e+00 : f32
      %158 = vector.broadcast %cst_59 : f32 to vector<8x128xf32>
      %159 = arith.select %155, %148, %158 : vector<8x128xi1>, vector<8x128xf32>
      %160 = arith.index_cast %118 : i32 to index
      %c0_60 = arith.constant 0 : index
      %161 = vector.load %arg11[%160, %c0_60] : memref<128x128xf32, #tpu.memory_space<vmem>>, vector<8x128xf32>
      tpu.vector_store %arg11[%160, %c0_60], %159 {strides = array<i32>} : memref<128x128xf32, #tpu.memory_space<vmem>>, vector<8x128xf32>,
      %c24_i32 = arith.constant 24 : i32
      %162 = arith.addi %26, %c24_i32 : i32
      %163 = tpu.assume_multiple %162, 8 : i32
      %164 = arith.index_cast %163 : i32 to index
      %c0_61 = arith.constant 0 : index
      %165 = vector.load %arg10[%164, %c0_61] : memref<128x512xf32, #tpu.memory_space<vmem>>, vector<8x512xf32>
      %c0_62 = arith.constant 0 : index
      %c0_63 = arith.constant 0 : index
      %166 = vector.load %arg5[%c0_62, %c0_63] : memref<128x512xbf16, #tpu.memory_space<vmem>>, vector<128x512xbf16>
      %cst_64 = arith.constant dense<0.000000e+00> : vector<8x512xf32>
      %167 = tpu.matmul %156, %166, %cst_64 {dimension_numbers = #tpu.dot_dimension_numbers<[1], [0], [0], [1], [0, 0, 1, 1], [], []>} : vector<8x128xbf16>, vector<128x512xbf16>, vector<8x512xf32> -> vector<8x512xf32>
      %168 = arith.addf %165, %167 : vector<8x512xf32>
      %169 = vector.extract_strided_slice %168 {offsets = [0, 0], sizes = [8, 128], strides = [1, 1]} : vector<8x512xf32> to vector<8x128xf32>
      %170 = arith.negf %169 : vector<8x128xf32>
      %171 = math.exp %170 : vector<8x128xf32>
      %cst_65 = arith.constant 1.000000e+00 : f32
      %172 = vector.broadcast %cst_65 : f32 to vector<8x128xf32>
      %173 = arith.addf %172, %171 : vector<8x128xf32>
      %174 = arith.divf %172, %173 : vector<8x128xf32>
      %175 = vector.extract_strided_slice %168 {offsets = [0, 128], sizes = [8, 128], strides = [1, 1]} : vector<8x512xf32> to vector<8x128xf32>
      %176 = arith.negf %175 : vector<8x128xf32>
      %177 = math.exp %176 : vector<8x128xf32>
      %cst_66 = arith.constant 1.000000e+00 : f32
      %178 = vector.broadcast %cst_66 : f32 to vector<8x128xf32>
      %179 = arith.addf %178, %177 : vector<8x128xf32>
      %180 = arith.divf %178, %179 : vector<8x128xf32>
      %181 = vector.extract_strided_slice %168 {offsets = [0, 256], sizes = [8, 128], strides = [1, 1]} : vector<8x512xf32> to vector<8x128xf32>
      %182 = math.tanh %181 : vector<8x128xf32>
      %183 = vector.extract_strided_slice %168 {offsets = [0, 384], sizes = [8, 128], strides = [1, 1]} : vector<8x512xf32> to vector<8x128xf32>
      %184 = arith.negf %183 : vector<8x128xf32>
      %185 = math.exp %184 : vector<8x128xf32>
      %cst_67 = arith.constant 1.000000e+00 : f32
      %186 = vector.broadcast %cst_67 : f32 to vector<8x128xf32>
      %187 = arith.addf %186, %185 : vector<8x128xf32>
      %188 = arith.divf %186, %187 : vector<8x128xf32>
      %189 = arith.mulf %180, %157 : vector<8x128xf32>
      %190 = arith.mulf %174, %182 : vector<8x128xf32>
      %191 = arith.addf %189, %190 : vector<8x128xf32>
      %192 = math.tanh %191 : vector<8x128xf32>
      %193 = arith.mulf %188, %192 : vector<8x128xf32>
      %194 = arith.truncf %193 : vector<8x128xf32> to vector<8x128xbf16>
      %195 = arith.index_cast %163 : i32 to index
      %c0_68 = arith.constant 0 : index
      %196 = vector.load %arg3[%195, %c0_68] : memref<128x1xi32, #tpu.memory_space<vmem>>, vector<8x1xi32>
      %197 = vector.shape_cast %196 : vector<8x1xi32> to vector<8x1xi32>
      %198 = vector.broadcast %197 : vector<8x1xi32> to vector<8x128xi32>
      %c0_i32_69 = arith.constant 0 : i32
      %199 = vector.broadcast %c0_i32_69 : i32 to vector<8x128xi32>
      %200 = arith.cmpi ne, %198, %199 : vector<8x128xi32>
      %201 = arith.select %200, %194, %156 : vector<8x128xi1>, vector<8x128xbf16>
      %202 = arith.select %200, %191, %157 : vector<8x128xi1>, vector<8x128xf32>
      %cst_70 = arith.constant 0.000000e+00 : f32
      %203 = vector.broadcast %cst_70 : f32 to vector<8x128xf32>
      %204 = arith.select %200, %193, %203 : vector<8x128xi1>, vector<8x128xf32>
      %205 = arith.index_cast %163 : i32 to index
      %c0_71 = arith.constant 0 : index
      %206 = vector.load %arg11[%205, %c0_71] : memref<128x128xf32, #tpu.memory_space<vmem>>, vector<8x128xf32>
      tpu.vector_store %arg11[%205, %c0_71], %204 {strides = array<i32>} : memref<128x128xf32, #tpu.memory_space<vmem>>, vector<8x128xf32>,
      %c32_i32 = arith.constant 32 : i32
      %207 = arith.addi %26, %c32_i32 : i32
      %208 = tpu.assume_multiple %207, 8 : i32
      %209 = arith.index_cast %208 : i32 to index
      %c0_72 = arith.constant 0 : index
      %210 = vector.load %arg10[%209, %c0_72] : memref<128x512xf32, #tpu.memory_space<vmem>>, vector<8x512xf32>
      %c0_73 = arith.constant 0 : index
      %c0_74 = arith.constant 0 : index
      %211 = vector.load %arg5[%c0_73, %c0_74] : memref<128x512xbf16, #tpu.memory_space<vmem>>, vector<128x512xbf16>
      %cst_75 = arith.constant dense<0.000000e+00> : vector<8x512xf32>
      %212 = tpu.matmul %201, %211, %cst_75 {dimension_numbers = #tpu.dot_dimension_numbers<[1], [0], [0], [1], [0, 0, 1, 1], [], []>} : vector<8x128xbf16>, vector<128x512xbf16>, vector<8x512xf32> -> vector<8x512xf32>
      %213 = arith.addf %210, %212 : vector<8x512xf32>
      %214 = vector.extract_strided_slice %213 {offsets = [0, 0], sizes = [8, 128], strides = [1, 1]} : vector<8x512xf32> to vector<8x128xf32>
      %215 = arith.negf %214 : vector<8x128xf32>
      %216 = math.exp %215 : vector<8x128xf32>
      %cst_76 = arith.constant 1.000000e+00 : f32
      %217 = vector.broadcast %cst_76 : f32 to vector<8x128xf32>
      %218 = arith.addf %217, %216 : vector<8x128xf32>
      %219 = arith.divf %217, %218 : vector<8x128xf32>
      %220 = vector.extract_strided_slice %213 {offsets = [0, 128], sizes = [8, 128], strides = [1, 1]} : vector<8x512xf32> to vector<8x128xf32>
      %221 = arith.negf %220 : vector<8x128xf32>
      %222 = math.exp %221 : vector<8x128xf32>
      %cst_77 = arith.constant 1.000000e+00 : f32
      %223 = vector.broadcast %cst_77 : f32 to vector<8x128xf32>
      %224 = arith.addf %223, %222 : vector<8x128xf32>
      %225 = arith.divf %223, %224 : vector<8x128xf32>
      %226 = vector.extract_strided_slice %213 {offsets = [0, 256], sizes = [8, 128], strides = [1, 1]} : vector<8x512xf32> to vector<8x128xf32>
      %227 = math.tanh %226 : vector<8x128xf32>
      %228 = vector.extract_strided_slice %213 {offsets = [0, 384], sizes = [8, 128], strides = [1, 1]} : vector<8x512xf32> to vector<8x128xf32>
      %229 = arith.negf %228 : vector<8x128xf32>
      %230 = math.exp %229 : vector<8x128xf32>
      %cst_78 = arith.constant 1.000000e+00 : f32
      %231 = vector.broadcast %cst_78 : f32 to vector<8x128xf32>
      %232 = arith.addf %231, %230 : vector<8x128xf32>
      %233 = arith.divf %231, %232 : vector<8x128xf32>
      %234 = arith.mulf %225, %202 : vector<8x128xf32>
      %235 = arith.mulf %219, %227 : vector<8x128xf32>
      %236 = arith.addf %234, %235 : vector<8x128xf32>
      %237 = math.tanh %236 : vector<8x128xf32>
      %238 = arith.mulf %233, %237 : vector<8x128xf32>
      %239 = arith.truncf %238 : vector<8x128xf32> to vector<8x128xbf16>
      %240 = arith.index_cast %208 : i32 to index
      %c0_79 = arith.constant 0 : index
      %241 = vector.load %arg3[%240, %c0_79] : memref<128x1xi32, #tpu.memory_space<vmem>>, vector<8x1xi32>
      %242 = vector.shape_cast %241 : vector<8x1xi32> to vector<8x1xi32>
      %243 = vector.broadcast %242 : vector<8x1xi32> to vector<8x128xi32>
      %c0_i32_80 = arith.constant 0 : i32
      %244 = vector.broadcast %c0_i32_80 : i32 to vector<8x128xi32>
      %245 = arith.cmpi ne, %243, %244 : vector<8x128xi32>
      %246 = arith.select %245, %239, %201 : vector<8x128xi1>, vector<8x128xbf16>
      %247 = arith.select %245, %236, %202 : vector<8x128xi1>, vector<8x128xf32>
      %cst_81 = arith.constant 0.000000e+00 : f32
      %248 = vector.broadcast %cst_81 : f32 to vector<8x128xf32>
      %249 = arith.select %245, %238, %248 : vector<8x128xi1>, vector<8x128xf32>
      %250 = arith.index_cast %208 : i32 to index
      %c0_82 = arith.constant 0 : index
      %251 = vector.load %arg11[%250, %c0_82] : memref<128x128xf32, #tpu.memory_space<vmem>>, vector<8x128xf32>
      tpu.vector_store %arg11[%250, %c0_82], %249 {strides = array<i32>} : memref<128x128xf32, #tpu.memory_space<vmem>>, vector<8x128xf32>,
      %c40_i32 = arith.constant 40 : i32
      %252 = arith.addi %26, %c40_i32 : i32
      %253 = tpu.assume_multiple %252, 8 : i32
      %254 = arith.index_cast %253 : i32 to index
      %c0_83 = arith.constant 0 : index
      %255 = vector.load %arg10[%254, %c0_83] : memref<128x512xf32, #tpu.memory_space<vmem>>, vector<8x512xf32>
      %c0_84 = arith.constant 0 : index
      %c0_85 = arith.constant 0 : index
      %256 = vector.load %arg5[%c0_84, %c0_85] : memref<128x512xbf16, #tpu.memory_space<vmem>>, vector<128x512xbf16>
      %cst_86 = arith.constant dense<0.000000e+00> : vector<8x512xf32>
      %257 = tpu.matmul %246, %256, %cst_86 {dimension_numbers = #tpu.dot_dimension_numbers<[1], [0], [0], [1], [0, 0, 1, 1], [], []>} : vector<8x128xbf16>, vector<128x512xbf16>, vector<8x512xf32> -> vector<8x512xf32>
      %258 = arith.addf %255, %257 : vector<8x512xf32>
      %259 = vector.extract_strided_slice %258 {offsets = [0, 0], sizes = [8, 128], strides = [1, 1]} : vector<8x512xf32> to vector<8x128xf32>
      %260 = arith.negf %259 : vector<8x128xf32>
      %261 = math.exp %260 : vector<8x128xf32>
      %cst_87 = arith.constant 1.000000e+00 : f32
      %262 = vector.broadcast %cst_87 : f32 to vector<8x128xf32>
      %263 = arith.addf %262, %261 : vector<8x128xf32>
      %264 = arith.divf %262, %263 : vector<8x128xf32>
      %265 = vector.extract_strided_slice %258 {offsets = [0, 128], sizes = [8, 128], strides = [1, 1]} : vector<8x512xf32> to vector<8x128xf32>
      %266 = arith.negf %265 : vector<8x128xf32>
      %267 = math.exp %266 : vector<8x128xf32>
      %cst_88 = arith.constant 1.000000e+00 : f32
      %268 = vector.broadcast %cst_88 : f32 to vector<8x128xf32>
      %269 = arith.addf %268, %267 : vector<8x128xf32>
      %270 = arith.divf %268, %269 : vector<8x128xf32>
      %271 = vector.extract_strided_slice %258 {offsets = [0, 256], sizes = [8, 128], strides = [1, 1]} : vector<8x512xf32> to vector<8x128xf32>
      %272 = math.tanh %271 : vector<8x128xf32>
      %273 = vector.extract_strided_slice %258 {offsets = [0, 384], sizes = [8, 128], strides = [1, 1]} : vector<8x512xf32> to vector<8x128xf32>
      %274 = arith.negf %273 : vector<8x128xf32>
      %275 = math.exp %274 : vector<8x128xf32>
      %cst_89 = arith.constant 1.000000e+00 : f32
      %276 = vector.broadcast %cst_89 : f32 to vector<8x128xf32>
      %277 = arith.addf %276, %275 : vector<8x128xf32>
      %278 = arith.divf %276, %277 : vector<8x128xf32>
      %279 = arith.mulf %270, %247 : vector<8x128xf32>
      %280 = arith.mulf %264, %272 : vector<8x128xf32>
      %281 = arith.addf %279, %280 : vector<8x128xf32>
      %282 = math.tanh %281 : vector<8x128xf32>
      %283 = arith.mulf %278, %282 : vector<8x128xf32>
      %284 = arith.truncf %283 : vector<8x128xf32> to vector<8x128xbf16>
      %285 = arith.index_cast %253 : i32 to index
      %c0_90 = arith.constant 0 : index
      %286 = vector.load %arg3[%285, %c0_90] : memref<128x1xi32, #tpu.memory_space<vmem>>, vector<8x1xi32>
      %287 = vector.shape_cast %286 : vector<8x1xi32> to vector<8x1xi32>
      %288 = vector.broadcast %287 : vector<8x1xi32> to vector<8x128xi32>
      %c0_i32_91 = arith.constant 0 : i32
      %289 = vector.broadcast %c0_i32_91 : i32 to vector<8x128xi32>
      %290 = arith.cmpi ne, %288, %289 : vector<8x128xi32>
      %291 = arith.select %290, %284, %246 : vector<8x128xi1>, vector<8x128xbf16>
      %292 = arith.select %290, %281, %247 : vector<8x128xi1>, vector<8x128xf32>
      %cst_92 = arith.constant 0.000000e+00 : f32
      %293 = vector.broadcast %cst_92 : f32 to vector<8x128xf32>
      %294 = arith.select %290, %283, %293 : vector<8x128xi1>, vector<8x128xf32>
      %295 = arith.index_cast %253 : i32 to index
      %c0_93 = arith.constant 0 : index
      %296 = vector.load %arg11[%295, %c0_93] : memref<128x128xf32, #tpu.memory_space<vmem>>, vector<8x128xf32>
      tpu.vector_store %arg11[%295, %c0_93], %294 {strides = array<i32>} : memref<128x128xf32, #tpu.memory_space<vmem>>, vector<8x128xf32>,
      %c48_i32 = arith.constant 48 : i32
      %297 = arith.addi %26, %c48_i32 : i32
      %298 = tpu.assume_multiple %297, 8 : i32
      %299 = arith.index_cast %298 : i32 to index
      %c0_94 = arith.constant 0 : index
      %300 = vector.load %arg10[%299, %c0_94] : memref<128x512xf32, #tpu.memory_space<vmem>>, vector<8x512xf32>
      %c0_95 = arith.constant 0 : index
      %c0_96 = arith.constant 0 : index
      %301 = vector.load %arg5[%c0_95, %c0_96] : memref<128x512xbf16, #tpu.memory_space<vmem>>, vector<128x512xbf16>
      %cst_97 = arith.constant dense<0.000000e+00> : vector<8x512xf32>
      %302 = tpu.matmul %291, %301, %cst_97 {dimension_numbers = #tpu.dot_dimension_numbers<[1], [0], [0], [1], [0, 0, 1, 1], [], []>} : vector<8x128xbf16>, vector<128x512xbf16>, vector<8x512xf32> -> vector<8x512xf32>
      %303 = arith.addf %300, %302 : vector<8x512xf32>
      %304 = vector.extract_strided_slice %303 {offsets = [0, 0], sizes = [8, 128], strides = [1, 1]} : vector<8x512xf32> to vector<8x128xf32>
      %305 = arith.negf %304 : vector<8x128xf32>
      %306 = math.exp %305 : vector<8x128xf32>
      %cst_98 = arith.constant 1.000000e+00 : f32
      %307 = vector.broadcast %cst_98 : f32 to vector<8x128xf32>
      %308 = arith.addf %307, %306 : vector<8x128xf32>
      %309 = arith.divf %307, %308 : vector<8x128xf32>
      %310 = vector.extract_strided_slice %303 {offsets = [0, 128], sizes = [8, 128], strides = [1, 1]} : vector<8x512xf32> to vector<8x128xf32>
      %311 = arith.negf %310 : vector<8x128xf32>
      %312 = math.exp %311 : vector<8x128xf32>
      %cst_99 = arith.constant 1.000000e+00 : f32
      %313 = vector.broadcast %cst_99 : f32 to vector<8x128xf32>
      %314 = arith.addf %313, %312 : vector<8x128xf32>
      %315 = arith.divf %313, %314 : vector<8x128xf32>
      %316 = vector.extract_strided_slice %303 {offsets = [0, 256], sizes = [8, 128], strides = [1, 1]} : vector<8x512xf32> to vector<8x128xf32>
      %317 = math.tanh %316 : vector<8x128xf32>
      %318 = vector.extract_strided_slice %303 {offsets = [0, 384], sizes = [8, 128], strides = [1, 1]} : vector<8x512xf32> to vector<8x128xf32>
      %319 = arith.negf %318 : vector<8x128xf32>
      %320 = math.exp %319 : vector<8x128xf32>
      %cst_100 = arith.constant 1.000000e+00 : f32
      %321 = vector.broadcast %cst_100 : f32 to vector<8x128xf32>
      %322 = arith.addf %321, %320 : vector<8x128xf32>
      %323 = arith.divf %321, %322 : vector<8x128xf32>
      %324 = arith.mulf %315, %292 : vector<8x128xf32>
      %325 = arith.mulf %309, %317 : vector<8x128xf32>
      %326 = arith.addf %324, %325 : vector<8x128xf32>
      %327 = math.tanh %326 : vector<8x128xf32>
      %328 = arith.mulf %323, %327 : vector<8x128xf32>
      %329 = arith.truncf %328 : vector<8x128xf32> to vector<8x128xbf16>
      %330 = arith.index_cast %298 : i32 to index
      %c0_101 = arith.constant 0 : index
      %331 = vector.load %arg3[%330, %c0_101] : memref<128x1xi32, #tpu.memory_space<vmem>>, vector<8x1xi32>
      %332 = vector.shape_cast %331 : vector<8x1xi32> to vector<8x1xi32>
      %333 = vector.broadcast %332 : vector<8x1xi32> to vector<8x128xi32>
      %c0_i32_102 = arith.constant 0 : i32
      %334 = vector.broadcast %c0_i32_102 : i32 to vector<8x128xi32>
      %335 = arith.cmpi ne, %333, %334 : vector<8x128xi32>
      %336 = arith.select %335, %329, %291 : vector<8x128xi1>, vector<8x128xbf16>
      %337 = arith.select %335, %326, %292 : vector<8x128xi1>, vector<8x128xf32>
      %cst_103 = arith.constant 0.000000e+00 : f32
      %338 = vector.broadcast %cst_103 : f32 to vector<8x128xf32>
      %339 = arith.select %335, %328, %338 : vector<8x128xi1>, vector<8x128xf32>
      %340 = arith.index_cast %298 : i32 to index
      %c0_104 = arith.constant 0 : index
      %341 = vector.load %arg11[%340, %c0_104] : memref<128x128xf32, #tpu.memory_space<vmem>>, vector<8x128xf32>
      tpu.vector_store %arg11[%340, %c0_104], %339 {strides = array<i32>} : memref<128x128xf32, #tpu.memory_space<vmem>>, vector<8x128xf32>,
      %c56_i32 = arith.constant 56 : i32
      %342 = arith.addi %26, %c56_i32 : i32
      %343 = tpu.assume_multiple %342, 8 : i32
      %344 = arith.index_cast %343 : i32 to index
      %c0_105 = arith.constant 0 : index
      %345 = vector.load %arg10[%344, %c0_105] : memref<128x512xf32, #tpu.memory_space<vmem>>, vector<8x512xf32>
      %c0_106 = arith.constant 0 : index
      %c0_107 = arith.constant 0 : index
      %346 = vector.load %arg5[%c0_106, %c0_107] : memref<128x512xbf16, #tpu.memory_space<vmem>>, vector<128x512xbf16>
      %cst_108 = arith.constant dense<0.000000e+00> : vector<8x512xf32>
      %347 = tpu.matmul %336, %346, %cst_108 {dimension_numbers = #tpu.dot_dimension_numbers<[1], [0], [0], [1], [0, 0, 1, 1], [], []>} : vector<8x128xbf16>, vector<128x512xbf16>, vector<8x512xf32> -> vector<8x512xf32>
      %348 = arith.addf %345, %347 : vector<8x512xf32>
      %349 = vector.extract_strided_slice %348 {offsets = [0, 0], sizes = [8, 128], strides = [1, 1]} : vector<8x512xf32> to vector<8x128xf32>
      %350 = arith.negf %349 : vector<8x128xf32>
      %351 = math.exp %350 : vector<8x128xf32>
      %cst_109 = arith.constant 1.000000e+00 : f32
      %352 = vector.broadcast %cst_109 : f32 to vector<8x128xf32>
      %353 = arith.addf %352, %351 : vector<8x128xf32>
      %354 = arith.divf %352, %353 : vector<8x128xf32>
      %355 = vector.extract_strided_slice %348 {offsets = [0, 128], sizes = [8, 128], strides = [1, 1]} : vector<8x512xf32> to vector<8x128xf32>
      %356 = arith.negf %355 : vector<8x128xf32>
      %357 = math.exp %356 : vector<8x128xf32>
      %cst_110 = arith.constant 1.000000e+00 : f32
      %358 = vector.broadcast %cst_110 : f32 to vector<8x128xf32>
      %359 = arith.addf %358, %357 : vector<8x128xf32>
      %360 = arith.divf %358, %359 : vector<8x128xf32>
      %361 = vector.extract_strided_slice %348 {offsets = [0, 256], sizes = [8, 128], strides = [1, 1]} : vector<8x512xf32> to vector<8x128xf32>
      %362 = math.tanh %361 : vector<8x128xf32>
      %363 = vector.extract_strided_slice %348 {offsets = [0, 384], sizes = [8, 128], strides = [1, 1]} : vector<8x512xf32> to vector<8x128xf32>
      %364 = arith.negf %363 : vector<8x128xf32>
      %365 = math.exp %364 : vector<8x128xf32>
      %cst_111 = arith.constant 1.000000e+00 : f32
      %366 = vector.broadcast %cst_111 : f32 to vector<8x128xf32>
      %367 = arith.addf %366, %365 : vector<8x128xf32>
      %368 = arith.divf %366, %367 : vector<8x128xf32>
      %369 = arith.mulf %360, %337 : vector<8x128xf32>
      %370 = arith.mulf %354, %362 : vector<8x128xf32>
      %371 = arith.addf %369, %370 : vector<8x128xf32>
      %372 = math.tanh %371 : vector<8x128xf32>
      %373 = arith.mulf %368, %372 : vector<8x128xf32>
      %374 = arith.truncf %373 : vector<8x128xf32> to vector<8x128xbf16>
      %375 = arith.index_cast %343 : i32 to index
      %c0_112 = arith.constant 0 : index
      %376 = vector.load %arg3[%375, %c0_112] : memref<128x1xi32, #tpu.memory_space<vmem>>, vector<8x1xi32>
      %377 = vector.shape_cast %376 : vector<8x1xi32> to vector<8x1xi32>
      %378 = vector.broadcast %377 : vector<8x1xi32> to vector<8x128xi32>
      %c0_i32_113 = arith.constant 0 : i32
      %379 = vector.broadcast %c0_i32_113 : i32 to vector<8x128xi32>
      %380 = arith.cmpi ne, %378, %379 : vector<8x128xi32>
      %381 = arith.select %380, %374, %336 : vector<8x128xi1>, vector<8x128xbf16>
      %382 = arith.select %380, %371, %337 : vector<8x128xi1>, vector<8x128xf32>
      %cst_114 = arith.constant 0.000000e+00 : f32
      %383 = vector.broadcast %cst_114 : f32 to vector<8x128xf32>
      %384 = arith.select %380, %373, %383 : vector<8x128xi1>, vector<8x128xf32>
      %385 = arith.index_cast %343 : i32 to index
      %c0_115 = arith.constant 0 : index
      %386 = vector.load %arg11[%385, %c0_115] : memref<128x128xf32, #tpu.memory_space<vmem>>, vector<8x128xf32>
      tpu.vector_store %arg11[%385, %c0_115], %384 {strides = array<i32>} : memref<128x128xf32, #tpu.memory_space<vmem>>, vector<8x128xf32>,
      scf.yield %381, %382 : vector<8x128xbf16>, vector<8x128xf32>
    }
    %c2_i32_13 = arith.constant 2 : i32
    %15 = arith.extf %14#0 : vector<8x128xbf16> to vector<8x128xf32>
    %c0_14 = arith.constant 0 : index
    %c0_15 = arith.constant 0 : index
    %16 = vector.load %arg12[%c0_14, %c0_15] : memref<8x128xf32, #tpu.memory_space<vmem>>, vector<8x128xf32>
    tpu.vector_store %arg12[%c0_14, %c0_15], %15 {strides = array<i32>} : memref<8x128xf32, #tpu.memory_space<vmem>>, vector<8x128xf32>,
    %c0_16 = arith.constant 0 : index
    %c0_17 = arith.constant 0 : index
    %17 = vector.load %arg13[%c0_16, %c0_17] : memref<8x128xf32, #tpu.memory_space<vmem>>, vector<8x128xf32>
    tpu.vector_store %arg13[%c0_16, %c0_17], %14#1 {strides = array<i32>} : memref<8x128xf32, #tpu.memory_space<vmem>>, vector<8x128xf32>,
    %c0_18 = arith.constant 0 : index
    %c0_19 = arith.constant 0 : index
    %18 = vector.load %arg11[%c0_18, %c0_19] : memref<128x128xf32, #tpu.memory_space<vmem>>, vector<128x128xf32>
    %19 = arith.truncf %18 : vector<128x128xf32> to vector<128x128xbf16>
    %c0_20 = arith.constant 0 : index
    %c0_21 = arith.constant 0 : index
    %20 = vector.load %arg7[%c0_20, %c0_21] : memref<128x128xbf16, #tpu.memory_space<vmem>>, vector<128x128xbf16>
    %cst_22 = arith.constant dense<0.000000e+00> : vector<128x128xf32>
    %21 = tpu.matmul %19, %20, %cst_22 {dimension_numbers = #tpu.dot_dimension_numbers<[1], [0], [0], [1], [0, 0, 1, 1], [], []>} : vector<128x128xbf16>, vector<128x128xbf16>, vector<128x128xf32> -> vector<128x128xf32>
    %c0_23 = arith.constant 0 : index
    %c0_24 = arith.constant 0 : index
    %22 = vector.load %arg8[%c0_23, %c0_24] : memref<1x128xf32, #tpu.memory_space<vmem>>, vector<1x128xf32>
    %23 = vector.broadcast %22 : vector<1x128xf32> to vector<128x128xf32>
    %24 = arith.addf %21, %23 : vector<128x128xf32>
    %c0_25 = arith.constant 0 : index
    %c0_26 = arith.constant 0 : index
    %25 = vector.load %arg9[%c0_25, %c0_26] : memref<128x128xf32, #tpu.memory_space<vmem>>, vector<128x128xf32>
    tpu.vector_store %arg9[%c0_25, %c0_26], %24 {strides = array<i32>} : memref<128x128xf32, #tpu.memory_space<vmem>>, vector<128x128xf32>,
    return
  }
  func.func @transform_0(%arg0: i32, %arg1: i32) -> (i32, i32) {
    %c1_i32 = arith.constant 1 : i32
    %0 = arith.muli %arg0, %c1_i32 : i32
    %1 = arith.addi %0, %arg1 : i32
    %c0_i32 = arith.constant 0 : i32
    %c0_i32_0 = arith.constant 0 : i32
    return %1, %c0_i32 : i32, i32
  }
  func.func @transform_1(%arg0: i32, %arg1: i32) -> (i32, i32) {
    %c1_i32 = arith.constant 1 : i32
    %0 = arith.muli %arg0, %c1_i32 : i32
    %1 = arith.addi %0, %arg1 : i32
    %c0_i32 = arith.constant 0 : i32
    %c0_i32_0 = arith.constant 0 : i32
    return %1, %c0_i32 : i32, i32
  }
  func.func @transform_2(%arg0: i32, %arg1: i32) -> (i32, i32) {
    %c0_i32 = arith.constant 0 : i32
    %c0_i32_0 = arith.constant 0 : i32
    %c0_i32_1 = arith.constant 0 : i32
    return %c0_i32, %c0_i32_0 : i32, i32
  }
  func.func @transform_3(%arg0: i32, %arg1: i32) -> (i32, i32) {
    %c0_i32 = arith.constant 0 : i32
    %c0_i32_0 = arith.constant 0 : i32
    %c0_i32_1 = arith.constant 0 : i32
    return %c0_i32, %c0_i32_0 : i32, i32
  }
  func.func @transform_4(%arg0: i32, %arg1: i32) -> (i32, i32) {
    %c0_i32 = arith.constant 0 : i32
    %c0_i32_0 = arith.constant 0 : i32
    %c0_i32_1 = arith.constant 0 : i32
    return %c0_i32, %c0_i32_0 : i32, i32
  }
  func.func @transform_5(%arg0: i32, %arg1: i32) -> (i32, i32) {
    %c0_i32 = arith.constant 0 : i32
    %c0_i32_0 = arith.constant 0 : i32
    %c0_i32_1 = arith.constant 0 : i32
    return %c0_i32, %c0_i32_0 : i32, i32
  }
  func.func @transform_6(%arg0: i32, %arg1: i32) -> (i32, i32) {
    %c0_i32 = arith.constant 0 : i32
    %c0_i32_0 = arith.constant 0 : i32
    %c0_i32_1 = arith.constant 0 : i32
    return %c0_i32, %c0_i32_0 : i32, i32
  }
  func.func @transform_7(%arg0: i32, %arg1: i32) -> (i32, i32) {
    %c1_i32 = arith.constant 1 : i32
    %0 = arith.muli %arg0, %c1_i32 : i32
    %1 = arith.addi %0, %arg1 : i32
    %c0_i32 = arith.constant 0 : i32
    %c0_i32_0 = arith.constant 0 : i32
    return %1, %c0_i32 : i32, i32
  }
}

module attributes {stable_mosaic.version = 11 : i64} {
  func.func @_lstm_tagger_kernel(%arg0: i32, %arg1: i32, %arg2: memref<128x32xbf16, #tpu.memory_space<vmem>>, %arg3: memref<128x1xi32, #tpu.memory_space<vmem>>, %arg4: memref<32x512xbf16, #tpu.memory_space<vmem>>, %arg5: memref<128x512xbf16, #tpu.memory_space<vmem>>, %arg6: memref<1x512xf32, #tpu.memory_space<vmem>>, %arg7: memref<128x128xbf16, #tpu.memory_space<vmem>>, %arg8: memref<1x128xf32, #tpu.memory_space<vmem>>, %arg9: memref<128x128xf32, #tpu.memory_space<vmem>>, %arg10: memref<128x512xf32, #tpu.memory_space<vmem>>, %arg11: memref<128x128xf32, #tpu.memory_space<vmem>>, %arg12: memref<8x128xf32, #tpu.memory_space<vmem>>, %arg13: memref<8x128xf32, #tpu.memory_space<vmem>>) attributes {dimension_semantics = [#tpu.dimension_semantics<parallel>, #tpu.dimension_semantics<arbitrary>], iteration_bounds = array<i64: 1, 1>, scalar_prefetch = 0 : i64, scratch_operands = 4 : i64, tpu.core_type = #tpu.core_type<tc>, window_params = [{transform_indices = @transform_0, window_bounds = array<i64: 128, 32>}, {transform_indices = @transform_1, window_bounds = array<i64: 128, 1>}, {pipeline_mode = #tpu.pipeline_mode<synchronous>, transform_indices = @transform_2, window_bounds = array<i64: 32, 512>}, {pipeline_mode = #tpu.pipeline_mode<synchronous>, transform_indices = @transform_3, window_bounds = array<i64: 128, 512>}, {pipeline_mode = #tpu.pipeline_mode<synchronous>, transform_indices = @transform_4, window_bounds = array<i64: 1, 512>}, {pipeline_mode = #tpu.pipeline_mode<synchronous>, transform_indices = @transform_5, window_bounds = array<i64: 128, 128>}, {pipeline_mode = #tpu.pipeline_mode<synchronous>, transform_indices = @transform_6, window_bounds = array<i64: 1, 128>}, {transform_indices = @transform_7, window_bounds = array<i64: 128, 128>}]} {
    %c0_i32 = arith.constant 0 : i32
    %0 = arith.cmpi eq, %arg1, %c0_i32 : i32
    %1 = arith.extui %0 : i1 to i32
    %c0_i32_0 = arith.constant 0 : i32
    %2 = arith.cmpi ne, %1, %c0_i32_0 : i32
    scf.if %2 {
      %cst_27 = arith.constant 0.000000e+00 : f32
      %26 = vector.broadcast %cst_27 : f32 to vector<8x128xf32>
      %c0_28 = arith.constant 0 : index
      %c0_29 = arith.constant 0 : index
      %27 = vector.load %arg12[%c0_28, %c0_29] : memref<8x128xf32, #tpu.memory_space<vmem>>, vector<8x128xf32>
      tpu.vector_store %arg12[%c0_28, %c0_29], %26 {strides = array<i32>} : memref<8x128xf32, #tpu.memory_space<vmem>>, vector<8x128xf32>,
      %cst_30 = arith.constant 0.000000e+00 : f32
      %28 = vector.broadcast %cst_30 : f32 to vector<8x128xf32>
      %c0_31 = arith.constant 0 : index
      %c0_32 = arith.constant 0 : index
      %29 = vector.load %arg13[%c0_31, %c0_32] : memref<8x128xf32, #tpu.memory_space<vmem>>, vector<8x128xf32>
      tpu.vector_store %arg13[%c0_31, %c0_32], %28 {strides = array<i32>} : memref<8x128xf32, #tpu.memory_space<vmem>>, vector<8x128xf32>,
    } else {
    }
    %c0 = arith.constant 0 : index
    %c0_1 = arith.constant 0 : index
    %3 = vector.load %arg2[%c0, %c0_1] : memref<128x32xbf16, #tpu.memory_space<vmem>>, vector<128x32xbf16>
    %c0_2 = arith.constant 0 : index
    %c0_3 = arith.constant 0 : index
    %4 = vector.load %arg4[%c0_2, %c0_3] : memref<32x512xbf16, #tpu.memory_space<vmem>>, vector<32x512xbf16>
    %cst = arith.constant dense<0.000000e+00> : vector<128x512xf32>
    %5 = tpu.matmul %3, %4, %cst {dimension_numbers = #tpu.dot_dimension_numbers<[1], [0], [0], [1], [0, 0, 1, 1], [], []>} : vector<128x32xbf16>, vector<32x512xbf16>, vector<128x512xf32> -> vector<128x512xf32>
    %c0_4 = arith.constant 0 : index
    %c0_5 = arith.constant 0 : index
    %6 = vector.load %arg6[%c0_4, %c0_5] : memref<1x512xf32, #tpu.memory_space<vmem>>, vector<1x512xf32>
    %7 = vector.broadcast %6 : vector<1x512xf32> to vector<128x512xf32>
    %8 = arith.addf %5, %7 : vector<128x512xf32>
    %c0_6 = arith.constant 0 : index
    %c0_7 = arith.constant 0 : index
    %9 = vector.load %arg10[%c0_6, %c0_7] : memref<128x512xf32, #tpu.memory_space<vmem>>, vector<128x512xf32>
    tpu.vector_store %arg10[%c0_6, %c0_7], %8 {strides = array<i32>} : memref<128x512xf32, #tpu.memory_space<vmem>>, vector<128x512xf32>,
    %c0_8 = arith.constant 0 : index
    %c0_9 = arith.constant 0 : index
    %10 = vector.load %arg12[%c0_8, %c0_9] : memref<8x128xf32, #tpu.memory_space<vmem>>, vector<8x128xf32>
    %11 = arith.truncf %10 : vector<8x128xf32> to vector<8x128xbf16>
    %c0_10 = arith.constant 0 : index
    %c0_11 = arith.constant 0 : index
    %12 = vector.load %arg13[%c0_10, %c0_11] : memref<8x128xf32, #tpu.memory_space<vmem>>, vector<8x128xf32>
    %c0_i32_12 = arith.constant 0 : i32
    %c2_i32 = arith.constant 2 : i32
    %13 = arith.addi %c0_i32_12, %c2_i32 : i32
    %c1_i32 = arith.constant 1 : i32
    %14:2 = scf.for %arg14 = %c0_i32_12 to %13 step %c1_i32 iter_args(%arg15 = %11, %arg16 = %12) -> (vector<8x128xbf16>, vector<8x128xf32>)  : i32 {
      %c64_i32 = arith.constant 64 : i32
      %26 = arith.muli %arg14, %c64_i32 : i32
      %c0_i32_27 = arith.constant 0 : i32
      %27 = arith.addi %26, %c0_i32_27 : i32
      %28 = tpu.assume_multiple %27, 8 : i32
      %29 = arith.index_cast %28 : i32 to index
      %c0_28 = arith.constant 0 : index
      %30 = vector.load %arg10[%29, %c0_28] : memref<128x512xf32, #tpu.memory_space<vmem>>, vector<8x512xf32>
      %c0_29 = arith.constant 0 : index
      %c0_30 = arith.constant 0 : index
      %31 = vector.load %arg5[%c0_29, %c0_30] : memref<128x512xbf16, #tpu.memory_space<vmem>>, vector<128x512xbf16>
      %cst_31 = arith.constant dense<0.000000e+00> : vector<8x512xf32>
      %32 = tpu.matmul %arg15, %31, %cst_31 {dimension_numbers = #tpu.dot_dimension_numbers<[1], [0], [0], [1], [0, 0, 1, 1], [], []>} : vector<8x128xbf16>, vector<128x512xbf16>, vector<8x512xf32> -> vector<8x512xf32>
      %33 = arith.addf %30, %32 : vector<8x512xf32>
      %34 = vector.extract_strided_slice %33 {offsets = [0, 0], sizes = [8, 128], strides = [1, 1]} : vector<8x512xf32> to vector<8x128xf32>
      %35 = arith.negf %34 : vector<8x128xf32>
      %36 = math.exp %35 : vector<8x128xf32>
      %cst_32 = arith.constant 1.000000e+00 : f32
      %37 = vector.broadcast %cst_32 : f32 to vector<8x128xf32>
      %38 = arith.addf %37, %36 : vector<8x128xf32>
      %39 = arith.divf %37, %38 : vector<8x128xf32>
      %40 = vector.extract_strided_slice %33 {offsets = [0, 128], sizes = [8, 128], strides = [1, 1]} : vector<8x512xf32> to vector<8x128xf32>
      %41 = arith.negf %40 : vector<8x128xf32>
      %42 = math.exp %41 : vector<8x128xf32>
      %cst_33 = arith.constant 1.000000e+00 : f32
      %43 = vector.broadcast %cst_33 : f32 to vector<8x128xf32>
      %44 = arith.addf %43, %42 : vector<8x128xf32>
      %45 = arith.divf %43, %44 : vector<8x128xf32>
      %46 = vector.extract_strided_slice %33 {offsets = [0, 256], sizes = [8, 128], strides = [1, 1]} : vector<8x512xf32> to vector<8x128xf32>
      %47 = math.tanh %46 : vector<8x128xf32>
      %48 = vector.extract_strided_slice %33 {offsets = [0, 384], sizes = [8, 128], strides = [1, 1]} : vector<8x512xf32> to vector<8x128xf32>
      %49 = arith.negf %48 : vector<8x128xf32>
      %50 = math.exp %49 : vector<8x128xf32>
      %cst_34 = arith.constant 1.000000e+00 : f32
      %51 = vector.broadcast %cst_34 : f32 to vector<8x128xf32>
      %52 = arith.addf %51, %50 : vector<8x128xf32>
      %53 = arith.divf %51, %52 : vector<8x128xf32>
      %54 = arith.mulf %45, %arg16 : vector<8x128xf32>
      %55 = arith.mulf %39, %47 : vector<8x128xf32>
      %56 = arith.addf %54, %55 : vector<8x128xf32>
      %57 = math.tanh %56 : vector<8x128xf32>
      %58 = arith.mulf %53, %57 : vector<8x128xf32>
      %59 = arith.truncf %58 : vector<8x128xf32> to vector<8x128xbf16>
      %60 = arith.index_cast %28 : i32 to index
      %c0_35 = arith.constant 0 : index
      %61 = vector.load %arg3[%60, %c0_35] : memref<128x1xi32, #tpu.memory_space<vmem>>, vector<8x1xi32>
      %62 = vector.shape_cast %61 : vector<8x1xi32> to vector<8x1xi32>
      %63 = vector.broadcast %62 : vector<8x1xi32> to vector<8x128xi32>
      %c0_i32_36 = arith.constant 0 : i32
      %64 = vector.broadcast %c0_i32_36 : i32 to vector<8x128xi32>
      %65 = arith.cmpi ne, %63, %64 : vector<8x128xi32>
      %66 = arith.select %65, %59, %arg15 : vector<8x128xi1>, vector<8x128xbf16>
      %67 = arith.select %65, %56, %arg16 : vector<8x128xi1>, vector<8x128xf32>
      %cst_37 = arith.constant 0.000000e+00 : f32
      %68 = vector.broadcast %cst_37 : f32 to vector<8x128xf32>
      %69 = arith.select %65, %58, %68 : vector<8x128xi1>, vector<8x128xf32>
      %70 = arith.index_cast %28 : i32 to index
      %c0_38 = arith.constant 0 : index
      %71 = vector.load %arg11[%70, %c0_38] : memref<128x128xf32, #tpu.memory_space<vmem>>, vector<8x128xf32>
      tpu.vector_store %arg11[%70, %c0_38], %69 {strides = array<i32>} : memref<128x128xf32, #tpu.memory_space<vmem>>, vector<8x128xf32>,
      %c8_i32 = arith.constant 8 : i32
      %72 = arith.addi %26, %c8_i32 : i32
      %73 = tpu.assume_multiple %72, 8 : i32
      %74 = arith.index_cast %73 : i32 to index
      %c0_39 = arith.constant 0 : index
      %75 = vector.load %arg10[%74, %c0_39] : memref<128x512xf32, #tpu.memory_space<vmem>>, vector<8x512xf32>
      %c0_40 = arith.constant 0 : index
      %c0_41 = arith.constant 0 : index
      %76 = vector.load %arg5[%c0_40, %c0_41] : memref<128x512xbf16, #tpu.memory_space<vmem>>, vector<128x512xbf16>
      %cst_42 = arith.constant dense<0.000000e+00> : vector<8x512xf32>
      %77 = tpu.matmul %66, %76, %cst_42 {dimension_numbers = #tpu.dot_dimension_numbers<[1], [0], [0], [1], [0, 0, 1, 1], [], []>} : vector<8x128xbf16>, vector<128x512xbf16>, vector<8x512xf32> -> vector<8x512xf32>
      %78 = arith.addf %75, %77 : vector<8x512xf32>
      %79 = vector.extract_strided_slice %78 {offsets = [0, 0], sizes = [8, 128], strides = [1, 1]} : vector<8x512xf32> to vector<8x128xf32>
      %80 = arith.negf %79 : vector<8x128xf32>
      %81 = math.exp %80 : vector<8x128xf32>
      %cst_43 = arith.constant 1.000000e+00 : f32
      %82 = vector.broadcast %cst_43 : f32 to vector<8x128xf32>
      %83 = arith.addf %82, %81 : vector<8x128xf32>
      %84 = arith.divf %82, %83 : vector<8x128xf32>
      %85 = vector.extract_strided_slice %78 {offsets = [0, 128], sizes = [8, 128], strides = [1, 1]} : vector<8x512xf32> to vector<8x128xf32>
      %86 = arith.negf %85 : vector<8x128xf32>
      %87 = math.exp %86 : vector<8x128xf32>
      %cst_44 = arith.constant 1.000000e+00 : f32
      %88 = vector.broadcast %cst_44 : f32 to vector<8x128xf32>
      %89 = arith.addf %88, %87 : vector<8x128xf32>
      %90 = arith.divf %88, %89 : vector<8x128xf32>
      %91 = vector.extract_strided_slice %78 {offsets = [0, 256], sizes = [8, 128], strides = [1, 1]} : vector<8x512xf32> to vector<8x128xf32>
      %92 = math.tanh %91 : vector<8x128xf32>
      %93 = vector.extract_strided_slice %78 {offsets = [0, 384], sizes = [8, 128], strides = [1, 1]} : vector<8x512xf32> to vector<8x128xf32>
      %94 = arith.negf %93 : vector<8x128xf32>
      %95 = math.exp %94 : vector<8x128xf32>
      %cst_45 = arith.constant 1.000000e+00 : f32
      %96 = vector.broadcast %cst_45 : f32 to vector<8x128xf32>
      %97 = arith.addf %96, %95 : vector<8x128xf32>
      %98 = arith.divf %96, %97 : vector<8x128xf32>
      %99 = arith.mulf %90, %67 : vector<8x128xf32>
      %100 = arith.mulf %84, %92 : vector<8x128xf32>
      %101 = arith.addf %99, %100 : vector<8x128xf32>
      %102 = math.tanh %101 : vector<8x128xf32>
      %103 = arith.mulf %98, %102 : vector<8x128xf32>
      %104 = arith.truncf %103 : vector<8x128xf32> to vector<8x128xbf16>
      %105 = arith.index_cast %73 : i32 to index
      %c0_46 = arith.constant 0 : index
      %106 = vector.load %arg3[%105, %c0_46] : memref<128x1xi32, #tpu.memory_space<vmem>>, vector<8x1xi32>
      %107 = vector.shape_cast %106 : vector<8x1xi32> to vector<8x1xi32>
      %108 = vector.broadcast %107 : vector<8x1xi32> to vector<8x128xi32>
      %c0_i32_47 = arith.constant 0 : i32
      %109 = vector.broadcast %c0_i32_47 : i32 to vector<8x128xi32>
      %110 = arith.cmpi ne, %108, %109 : vector<8x128xi32>
      %111 = arith.select %110, %104, %66 : vector<8x128xi1>, vector<8x128xbf16>
      %112 = arith.select %110, %101, %67 : vector<8x128xi1>, vector<8x128xf32>
      %cst_48 = arith.constant 0.000000e+00 : f32
      %113 = vector.broadcast %cst_48 : f32 to vector<8x128xf32>
      %114 = arith.select %110, %103, %113 : vector<8x128xi1>, vector<8x128xf32>
      %115 = arith.index_cast %73 : i32 to index
      %c0_49 = arith.constant 0 : index
      %116 = vector.load %arg11[%115, %c0_49] : memref<128x128xf32, #tpu.memory_space<vmem>>, vector<8x128xf32>
      tpu.vector_store %arg11[%115, %c0_49], %114 {strides = array<i32>} : memref<128x128xf32, #tpu.memory_space<vmem>>, vector<8x128xf32>,
      %c16_i32 = arith.constant 16 : i32
      %117 = arith.addi %26, %c16_i32 : i32
      %118 = tpu.assume_multiple %117, 8 : i32
      %119 = arith.index_cast %118 : i32 to index
      %c0_50 = arith.constant 0 : index
      %120 = vector.load %arg10[%119, %c0_50] : memref<128x512xf32, #tpu.memory_space<vmem>>, vector<8x512xf32>
      %c0_51 = arith.constant 0 : index
      %c0_52 = arith.constant 0 : index
      %121 = vector.load %arg5[%c0_51, %c0_52] : memref<128x512xbf16, #tpu.memory_space<vmem>>, vector<128x512xbf16>
      %cst_53 = arith.constant dense<0.000000e+00> : vector<8x512xf32>
      %122 = tpu.matmul %111, %121, %cst_53 {dimension_numbers = #tpu.dot_dimension_numbers<[1], [0], [0], [1], [0, 0, 1, 1], [], []>} : vector<8x128xbf16>, vector<128x512xbf16>, vector<8x512xf32> -> vector<8x512xf32>
      %123 = arith.addf %120, %122 : vector<8x512xf32>
      %124 = vector.extract_strided_slice %123 {offsets = [0, 0], sizes = [8, 128], strides = [1, 1]} : vector<8x512xf32> to vector<8x128xf32>
      %125 = arith.negf %124 : vector<8x128xf32>
      %126 = math.exp %125 : vector<8x128xf32>
      %cst_54 = arith.constant 1.000000e+00 : f32
      %127 = vector.broadcast %cst_54 : f32 to vector<8x128xf32>
      %128 = arith.addf %127, %126 : vector<8x128xf32>
      %129 = arith.divf %127, %128 : vector<8x128xf32>
      %130 = vector.extract_strided_slice %123 {offsets = [0, 128], sizes = [8, 128], strides = [1, 1]} : vector<8x512xf32> to vector<8x128xf32>
      %131 = arith.negf %130 : vector<8x128xf32>
      %132 = math.exp %131 : vector<8x128xf32>
      %cst_55 = arith.constant 1.000000e+00 : f32
      %133 = vector.broadcast %cst_55 : f32 to vector<8x128xf32>
      %134 = arith.addf %133, %132 : vector<8x128xf32>
      %135 = arith.divf %133, %134 : vector<8x128xf32>
      %136 = vector.extract_strided_slice %123 {offsets = [0, 256], sizes = [8, 128], strides = [1, 1]} : vector<8x512xf32> to vector<8x128xf32>
      %137 = math.tanh %136 : vector<8x128xf32>
      %138 = vector.extract_strided_slice %123 {offsets = [0, 384], sizes = [8, 128], strides = [1, 1]} : vector<8x512xf32> to vector<8x128xf32>
      %139 = arith.negf %138 : vector<8x128xf32>
      %140 = math.exp %139 : vector<8x128xf32>
      %cst_56 = arith.constant 1.000000e+00 : f32
      %141 = vector.broadcast %cst_56 : f32 to vector<8x128xf32>
      %142 = arith.addf %141, %140 : vector<8x128xf32>
      %143 = arith.divf %141, %142 : vector<8x128xf32>
      %144 = arith.mulf %135, %112 : vector<8x128xf32>
      %145 = arith.mulf %129, %137 : vector<8x128xf32>
      %146 = arith.addf %144, %145 : vector<8x128xf32>
      %147 = math.tanh %146 : vector<8x128xf32>
      %148 = arith.mulf %143, %147 : vector<8x128xf32>
      %149 = arith.truncf %148 : vector<8x128xf32> to vector<8x128xbf16>
      %150 = arith.index_cast %118 : i32 to index
      %c0_57 = arith.constant 0 : index
      %151 = vector.load %arg3[%150, %c0_57] : memref<128x1xi32, #tpu.memory_space<vmem>>, vector<8x1xi32>
      %152 = vector.shape_cast %151 : vector<8x1xi32> to vector<8x1xi32>
      %153 = vector.broadcast %152 : vector<8x1xi32> to vector<8x128xi32>
      %c0_i32_58 = arith.constant 0 : i32
      %154 = vector.broadcast %c0_i32_58 : i32 to vector<8x128xi32>
      %155 = arith.cmpi ne, %153, %154 : vector<8x128xi32>
      %156 = arith.select %155, %149, %111 : vector<8x128xi1>, vector<8x128xbf16>
      %157 = arith.select %155, %146, %112 : vector<8x128xi1>, vector<8x128xf32>
      %cst_59 = arith.constant 0.000000e+00 : f32
      %158 = vector.broadcast %cst_59 : f32 to vector<8x128xf32>
      %159 = arith.select %155, %148, %158 : vector<8x128xi1>, vector<8x128xf32>
      %160 = arith.index_cast %118 : i32 to index
      %c0_60 = arith.constant 0 : index
      %161 = vector.load %arg11[%160, %c0_60] : memref<128x128xf32, #tpu.memory_space<vmem>>, vector<8x128xf32>
      tpu.vector_store %arg11[%160, %c0_60], %159 {strides = array<i32>} : memref<128x128xf32, #tpu.memory_space<vmem>>, vector<8x128xf32>,
      %c24_i32 = arith.constant 24 : i32
      %162 = arith.addi %26, %c24_i32 : i32
      %163 = tpu.assume_multiple %162, 8 : i32
      %164 = arith.index_cast %163 : i32 to index
      %c0_61 = arith.constant 0 : index
      %165 = vector.load %arg10[%164, %c0_61] : memref<128x512xf32, #tpu.memory_space<vmem>>, vector<8x512xf32>
      %c0_62 = arith.constant 0 : index
      %c0_63 = arith.constant 0 : index
      %166 = vector.load %arg5[%c0_62, %c0_63] : memref<128x512xbf16, #tpu.memory_space<vmem>>, vector<128x512xbf16>
      %cst_64 = arith.constant dense<0.000000e+00> : vector<8x512xf32>
      %167 = tpu.matmul %156, %166, %cst_64 {dimension_numbers = #tpu.dot_dimension_numbers<[1], [0], [0], [1], [0, 0, 1, 1], [], []>} : vector<8x128xbf16>, vector<128x512xbf16>, vector<8x512xf32> -> vector<8x512xf32>
      %168 = arith.addf %165, %167 : vector<8x512xf32>
      %169 = vector.extract_strided_slice %168 {offsets = [0, 0], sizes = [8, 128], strides = [1, 1]} : vector<8x512xf32> to vector<8x128xf32>
      %170 = arith.negf %169 : vector<8x128xf32>
      %171 = math.exp %170 : vector<8x128xf32>
      %cst_65 = arith.constant 1.000000e+00 : f32
      %172 = vector.broadcast %cst_65 : f32 to vector<8x128xf32>
      %173 = arith.addf %172, %171 : vector<8x128xf32>
      %174 = arith.divf %172, %173 : vector<8x128xf32>
      %175 = vector.extract_strided_slice %168 {offsets = [0, 128], sizes = [8, 128], strides = [1, 1]} : vector<8x512xf32> to vector<8x128xf32>
      %176 = arith.negf %175 : vector<8x128xf32>
      %177 = math.exp %176 : vector<8x128xf32>
      %cst_66 = arith.constant 1.000000e+00 : f32
      %178 = vector.broadcast %cst_66 : f32 to vector<8x128xf32>
      %179 = arith.addf %178, %177 : vector<8x128xf32>
      %180 = arith.divf %178, %179 : vector<8x128xf32>
      %181 = vector.extract_strided_slice %168 {offsets = [0, 256], sizes = [8, 128], strides = [1, 1]} : vector<8x512xf32> to vector<8x128xf32>
      %182 = math.tanh %181 : vector<8x128xf32>
      %183 = vector.extract_strided_slice %168 {offsets = [0, 384], sizes = [8, 128], strides = [1, 1]} : vector<8x512xf32> to vector<8x128xf32>
      %184 = arith.negf %183 : vector<8x128xf32>
      %185 = math.exp %184 : vector<8x128xf32>
      %cst_67 = arith.constant 1.000000e+00 : f32
      %186 = vector.broadcast %cst_67 : f32 to vector<8x128xf32>
      %187 = arith.addf %186, %185 : vector<8x128xf32>
      %188 = arith.divf %186, %187 : vector<8x128xf32>
      %189 = arith.mulf %180, %157 : vector<8x128xf32>
      %190 = arith.mulf %174, %182 : vector<8x128xf32>
      %191 = arith.addf %189, %190 : vector<8x128xf32>
      %192 = math.tanh %191 : vector<8x128xf32>
      %193 = arith.mulf %188, %192 : vector<8x128xf32>
      %194 = arith.truncf %193 : vector<8x128xf32> to vector<8x128xbf16>
      %195 = arith.index_cast %163 : i32 to index
      %c0_68 = arith.constant 0 : index
      %196 = vector.load %arg3[%195, %c0_68] : memref<128x1xi32, #tpu.memory_space<vmem>>, vector<8x1xi32>
      %197 = vector.shape_cast %196 : vector<8x1xi32> to vector<8x1xi32>
      %198 = vector.broadcast %197 : vector<8x1xi32> to vector<8x128xi32>
      %c0_i32_69 = arith.constant 0 : i32
      %199 = vector.broadcast %c0_i32_69 : i32 to vector<8x128xi32>
      %200 = arith.cmpi ne, %198, %199 : vector<8x128xi32>
      %201 = arith.select %200, %194, %156 : vector<8x128xi1>, vector<8x128xbf16>
      %202 = arith.select %200, %191, %157 : vector<8x128xi1>, vector<8x128xf32>
      %cst_70 = arith.constant 0.000000e+00 : f32
      %203 = vector.broadcast %cst_70 : f32 to vector<8x128xf32>
      %204 = arith.select %200, %193, %203 : vector<8x128xi1>, vector<8x128xf32>
      %205 = arith.index_cast %163 : i32 to index
      %c0_71 = arith.constant 0 : index
      %206 = vector.load %arg11[%205, %c0_71] : memref<128x128xf32, #tpu.memory_space<vmem>>, vector<8x128xf32>
      tpu.vector_store %arg11[%205, %c0_71], %204 {strides = array<i32>} : memref<128x128xf32, #tpu.memory_space<vmem>>, vector<8x128xf32>,
      %c32_i32 = arith.constant 32 : i32
      %207 = arith.addi %26, %c32_i32 : i32
      %208 = tpu.assume_multiple %207, 8 : i32
      %209 = arith.index_cast %208 : i32 to index
      %c0_72 = arith.constant 0 : index
      %210 = vector.load %arg10[%209, %c0_72] : memref<128x512xf32, #tpu.memory_space<vmem>>, vector<8x512xf32>
      %c0_73 = arith.constant 0 : index
      %c0_74 = arith.constant 0 : index
      %211 = vector.load %arg5[%c0_73, %c0_74] : memref<128x512xbf16, #tpu.memory_space<vmem>>, vector<128x512xbf16>
      %cst_75 = arith.constant dense<0.000000e+00> : vector<8x512xf32>
      %212 = tpu.matmul %201, %211, %cst_75 {dimension_numbers = #tpu.dot_dimension_numbers<[1], [0], [0], [1], [0, 0, 1, 1], [], []>} : vector<8x128xbf16>, vector<128x512xbf16>, vector<8x512xf32> -> vector<8x512xf32>
      %213 = arith.addf %210, %212 : vector<8x512xf32>
      %214 = vector.extract_strided_slice %213 {offsets = [0, 0], sizes = [8, 128], strides = [1, 1]} : vector<8x512xf32> to vector<8x128xf32>
      %215 = arith.negf %214 : vector<8x128xf32>
      %216 = math.exp %215 : vector<8x128xf32>
      %cst_76 = arith.constant 1.000000e+00 : f32
      %217 = vector.broadcast %cst_76 : f32 to vector<8x128xf32>
      %218 = arith.addf %217, %216 : vector<8x128xf32>
      %219 = arith.divf %217, %218 : vector<8x128xf32>
      %220 = vector.extract_strided_slice %213 {offsets = [0, 128], sizes = [8, 128], strides = [1, 1]} : vector<8x512xf32> to vector<8x128xf32>
      %221 = arith.negf %220 : vector<8x128xf32>
      %222 = math.exp %221 : vector<8x128xf32>
      %cst_77 = arith.constant 1.000000e+00 : f32
      %223 = vector.broadcast %cst_77 : f32 to vector<8x128xf32>
      %224 = arith.addf %223, %222 : vector<8x128xf32>
      %225 = arith.divf %223, %224 : vector<8x128xf32>
      %226 = vector.extract_strided_slice %213 {offsets = [0, 256], sizes = [8, 128], strides = [1, 1]} : vector<8x512xf32> to vector<8x128xf32>
      %227 = math.tanh %226 : vector<8x128xf32>
      %228 = vector.extract_strided_slice %213 {offsets = [0, 384], sizes = [8, 128], strides = [1, 1]} : vector<8x512xf32> to vector<8x128xf32>
      %229 = arith.negf %228 : vector<8x128xf32>
      %230 = math.exp %229 : vector<8x128xf32>
      %cst_78 = arith.constant 1.000000e+00 : f32
      %231 = vector.broadcast %cst_78 : f32 to vector<8x128xf32>
      %232 = arith.addf %231, %230 : vector<8x128xf32>
      %233 = arith.divf %231, %232 : vector<8x128xf32>
      %234 = arith.mulf %225, %202 : vector<8x128xf32>
      %235 = arith.mulf %219, %227 : vector<8x128xf32>
      %236 = arith.addf %234, %235 : vector<8x128xf32>
      %237 = math.tanh %236 : vector<8x128xf32>
      %238 = arith.mulf %233, %237 : vector<8x128xf32>
      %239 = arith.truncf %238 : vector<8x128xf32> to vector<8x128xbf16>
      %240 = arith.index_cast %208 : i32 to index
      %c0_79 = arith.constant 0 : index
      %241 = vector.load %arg3[%240, %c0_79] : memref<128x1xi32, #tpu.memory_space<vmem>>, vector<8x1xi32>
      %242 = vector.shape_cast %241 : vector<8x1xi32> to vector<8x1xi32>
      %243 = vector.broadcast %242 : vector<8x1xi32> to vector<8x128xi32>
      %c0_i32_80 = arith.constant 0 : i32
      %244 = vector.broadcast %c0_i32_80 : i32 to vector<8x128xi32>
      %245 = arith.cmpi ne, %243, %244 : vector<8x128xi32>
      %246 = arith.select %245, %239, %201 : vector<8x128xi1>, vector<8x128xbf16>
      %247 = arith.select %245, %236, %202 : vector<8x128xi1>, vector<8x128xf32>
      %cst_81 = arith.constant 0.000000e+00 : f32
      %248 = vector.broadcast %cst_81 : f32 to vector<8x128xf32>
      %249 = arith.select %245, %238, %248 : vector<8x128xi1>, vector<8x128xf32>
      %250 = arith.index_cast %208 : i32 to index
      %c0_82 = arith.constant 0 : index
      %251 = vector.load %arg11[%250, %c0_82] : memref<128x128xf32, #tpu.memory_space<vmem>>, vector<8x128xf32>
      tpu.vector_store %arg11[%250, %c0_82], %249 {strides = array<i32>} : memref<128x128xf32, #tpu.memory_space<vmem>>, vector<8x128xf32>,
      %c40_i32 = arith.constant 40 : i32
      %252 = arith.addi %26, %c40_i32 : i32
      %253 = tpu.assume_multiple %252, 8 : i32
      %254 = arith.index_cast %253 : i32 to index
      %c0_83 = arith.constant 0 : index
      %255 = vector.load %arg10[%254, %c0_83] : memref<128x512xf32, #tpu.memory_space<vmem>>, vector<8x512xf32>
      %c0_84 = arith.constant 0 : index
      %c0_85 = arith.constant 0 : index
      %256 = vector.load %arg5[%c0_84, %c0_85] : memref<128x512xbf16, #tpu.memory_space<vmem>>, vector<128x512xbf16>
      %cst_86 = arith.constant dense<0.000000e+00> : vector<8x512xf32>
      %257 = tpu.matmul %246, %256, %cst_86 {dimension_numbers = #tpu.dot_dimension_numbers<[1], [0], [0], [1], [0, 0, 1, 1], [], []>} : vector<8x128xbf16>, vector<128x512xbf16>, vector<8x512xf32> -> vector<8x512xf32>
      %258 = arith.addf %255, %257 : vector<8x512xf32>
      %259 = vector.extract_strided_slice %258 {offsets = [0, 0], sizes = [8, 128], strides = [1, 1]} : vector<8x512xf32> to vector<8x128xf32>
      %260 = arith.negf %259 : vector<8x128xf32>
      %261 = math.exp %260 : vector<8x128xf32>
      %cst_87 = arith.constant 1.000000e+00 : f32
      %262 = vector.broadcast %cst_87 : f32 to vector<8x128xf32>
      %263 = arith.addf %262, %261 : vector<8x128xf32>
      %264 = arith.divf %262, %263 : vector<8x128xf32>
      %265 = vector.extract_strided_slice %258 {offsets = [0, 128], sizes = [8, 128], strides = [1, 1]} : vector<8x512xf32> to vector<8x128xf32>
      %266 = arith.negf %265 : vector<8x128xf32>
      %267 = math.exp %266 : vector<8x128xf32>
      %cst_88 = arith.constant 1.000000e+00 : f32
      %268 = vector.broadcast %cst_88 : f32 to vector<8x128xf32>
      %269 = arith.addf %268, %267 : vector<8x128xf32>
      %270 = arith.divf %268, %269 : vector<8x128xf32>
      %271 = vector.extract_strided_slice %258 {offsets = [0, 256], sizes = [8, 128], strides = [1, 1]} : vector<8x512xf32> to vector<8x128xf32>
      %272 = math.tanh %271 : vector<8x128xf32>
      %273 = vector.extract_strided_slice %258 {offsets = [0, 384], sizes = [8, 128], strides = [1, 1]} : vector<8x512xf32> to vector<8x128xf32>
      %274 = arith.negf %273 : vector<8x128xf32>
      %275 = math.exp %274 : vector<8x128xf32>
      %cst_89 = arith.constant 1.000000e+00 : f32
      %276 = vector.broadcast %cst_89 : f32 to vector<8x128xf32>
      %277 = arith.addf %276, %275 : vector<8x128xf32>
      %278 = arith.divf %276, %277 : vector<8x128xf32>
      %279 = arith.mulf %270, %247 : vector<8x128xf32>
      %280 = arith.mulf %264, %272 : vector<8x128xf32>
      %281 = arith.addf %279, %280 : vector<8x128xf32>
      %282 = math.tanh %281 : vector<8x128xf32>
      %283 = arith.mulf %278, %282 : vector<8x128xf32>
      %284 = arith.truncf %283 : vector<8x128xf32> to vector<8x128xbf16>
      %285 = arith.index_cast %253 : i32 to index
      %c0_90 = arith.constant 0 : index
      %286 = vector.load %arg3[%285, %c0_90] : memref<128x1xi32, #tpu.memory_space<vmem>>, vector<8x1xi32>
      %287 = vector.shape_cast %286 : vector<8x1xi32> to vector<8x1xi32>
      %288 = vector.broadcast %287 : vector<8x1xi32> to vector<8x128xi32>
      %c0_i32_91 = arith.constant 0 : i32
      %289 = vector.broadcast %c0_i32_91 : i32 to vector<8x128xi32>
      %290 = arith.cmpi ne, %288, %289 : vector<8x128xi32>
      %291 = arith.select %290, %284, %246 : vector<8x128xi1>, vector<8x128xbf16>
      %292 = arith.select %290, %281, %247 : vector<8x128xi1>, vector<8x128xf32>
      %cst_92 = arith.constant 0.000000e+00 : f32
      %293 = vector.broadcast %cst_92 : f32 to vector<8x128xf32>
      %294 = arith.select %290, %283, %293 : vector<8x128xi1>, vector<8x128xf32>
      %295 = arith.index_cast %253 : i32 to index
      %c0_93 = arith.constant 0 : index
      %296 = vector.load %arg11[%295, %c0_93] : memref<128x128xf32, #tpu.memory_space<vmem>>, vector<8x128xf32>
      tpu.vector_store %arg11[%295, %c0_93], %294 {strides = array<i32>} : memref<128x128xf32, #tpu.memory_space<vmem>>, vector<8x128xf32>,
      %c48_i32 = arith.constant 48 : i32
      %297 = arith.addi %26, %c48_i32 : i32
      %298 = tpu.assume_multiple %297, 8 : i32
      %299 = arith.index_cast %298 : i32 to index
      %c0_94 = arith.constant 0 : index
      %300 = vector.load %arg10[%299, %c0_94] : memref<128x512xf32, #tpu.memory_space<vmem>>, vector<8x512xf32>
      %c0_95 = arith.constant 0 : index
      %c0_96 = arith.constant 0 : index
      %301 = vector.load %arg5[%c0_95, %c0_96] : memref<128x512xbf16, #tpu.memory_space<vmem>>, vector<128x512xbf16>
      %cst_97 = arith.constant dense<0.000000e+00> : vector<8x512xf32>
      %302 = tpu.matmul %291, %301, %cst_97 {dimension_numbers = #tpu.dot_dimension_numbers<[1], [0], [0], [1], [0, 0, 1, 1], [], []>} : vector<8x128xbf16>, vector<128x512xbf16>, vector<8x512xf32> -> vector<8x512xf32>
      %303 = arith.addf %300, %302 : vector<8x512xf32>
      %304 = vector.extract_strided_slice %303 {offsets = [0, 0], sizes = [8, 128], strides = [1, 1]} : vector<8x512xf32> to vector<8x128xf32>
      %305 = arith.negf %304 : vector<8x128xf32>
      %306 = math.exp %305 : vector<8x128xf32>
      %cst_98 = arith.constant 1.000000e+00 : f32
      %307 = vector.broadcast %cst_98 : f32 to vector<8x128xf32>
      %308 = arith.addf %307, %306 : vector<8x128xf32>
      %309 = arith.divf %307, %308 : vector<8x128xf32>
      %310 = vector.extract_strided_slice %303 {offsets = [0, 128], sizes = [8, 128], strides = [1, 1]} : vector<8x512xf32> to vector<8x128xf32>
      %311 = arith.negf %310 : vector<8x128xf32>
      %312 = math.exp %311 : vector<8x128xf32>
      %cst_99 = arith.constant 1.000000e+00 : f32
      %313 = vector.broadcast %cst_99 : f32 to vector<8x128xf32>
      %314 = arith.addf %313, %312 : vector<8x128xf32>
      %315 = arith.divf %313, %314 : vector<8x128xf32>
      %316 = vector.extract_strided_slice %303 {offsets = [0, 256], sizes = [8, 128], strides = [1, 1]} : vector<8x512xf32> to vector<8x128xf32>
      %317 = math.tanh %316 : vector<8x128xf32>
      %318 = vector.extract_strided_slice %303 {offsets = [0, 384], sizes = [8, 128], strides = [1, 1]} : vector<8x512xf32> to vector<8x128xf32>
      %319 = arith.negf %318 : vector<8x128xf32>
      %320 = math.exp %319 : vector<8x128xf32>
      %cst_100 = arith.constant 1.000000e+00 : f32
      %321 = vector.broadcast %cst_100 : f32 to vector<8x128xf32>
      %322 = arith.addf %321, %320 : vector<8x128xf32>
      %323 = arith.divf %321, %322 : vector<8x128xf32>
      %324 = arith.mulf %315, %292 : vector<8x128xf32>
      %325 = arith.mulf %309, %317 : vector<8x128xf32>
      %326 = arith.addf %324, %325 : vector<8x128xf32>
      %327 = math.tanh %326 : vector<8x128xf32>
      %328 = arith.mulf %323, %327 : vector<8x128xf32>
      %329 = arith.truncf %328 : vector<8x128xf32> to vector<8x128xbf16>
      %330 = arith.index_cast %298 : i32 to index
      %c0_101 = arith.constant 0 : index
      %331 = vector.load %arg3[%330, %c0_101] : memref<128x1xi32, #tpu.memory_space<vmem>>, vector<8x1xi32>
      %332 = vector.shape_cast %331 : vector<8x1xi32> to vector<8x1xi32>
      %333 = vector.broadcast %332 : vector<8x1xi32> to vector<8x128xi32>
      %c0_i32_102 = arith.constant 0 : i32
      %334 = vector.broadcast %c0_i32_102 : i32 to vector<8x128xi32>
      %335 = arith.cmpi ne, %333, %334 : vector<8x128xi32>
      %336 = arith.select %335, %329, %291 : vector<8x128xi1>, vector<8x128xbf16>
      %337 = arith.select %335, %326, %292 : vector<8x128xi1>, vector<8x128xf32>
      %cst_103 = arith.constant 0.000000e+00 : f32
      %338 = vector.broadcast %cst_103 : f32 to vector<8x128xf32>
      %339 = arith.select %335, %328, %338 : vector<8x128xi1>, vector<8x128xf32>
      %340 = arith.index_cast %298 : i32 to index
      %c0_104 = arith.constant 0 : index
      %341 = vector.load %arg11[%340, %c0_104] : memref<128x128xf32, #tpu.memory_space<vmem>>, vector<8x128xf32>
      tpu.vector_store %arg11[%340, %c0_104], %339 {strides = array<i32>} : memref<128x128xf32, #tpu.memory_space<vmem>>, vector<8x128xf32>,
      %c56_i32 = arith.constant 56 : i32
      %342 = arith.addi %26, %c56_i32 : i32
      %343 = tpu.assume_multiple %342, 8 : i32
      %344 = arith.index_cast %343 : i32 to index
      %c0_105 = arith.constant 0 : index
      %345 = vector.load %arg10[%344, %c0_105] : memref<128x512xf32, #tpu.memory_space<vmem>>, vector<8x512xf32>
      %c0_106 = arith.constant 0 : index
      %c0_107 = arith.constant 0 : index
      %346 = vector.load %arg5[%c0_106, %c0_107] : memref<128x512xbf16, #tpu.memory_space<vmem>>, vector<128x512xbf16>
      %cst_108 = arith.constant dense<0.000000e+00> : vector<8x512xf32>
      %347 = tpu.matmul %336, %346, %cst_108 {dimension_numbers = #tpu.dot_dimension_numbers<[1], [0], [0], [1], [0, 0, 1, 1], [], []>} : vector<8x128xbf16>, vector<128x512xbf16>, vector<8x512xf32> -> vector<8x512xf32>
      %348 = arith.addf %345, %347 : vector<8x512xf32>
      %349 = vector.extract_strided_slice %348 {offsets = [0, 0], sizes = [8, 128], strides = [1, 1]} : vector<8x512xf32> to vector<8x128xf32>
      %350 = arith.negf %349 : vector<8x128xf32>
      %351 = math.exp %350 : vector<8x128xf32>
      %cst_109 = arith.constant 1.000000e+00 : f32
      %352 = vector.broadcast %cst_109 : f32 to vector<8x128xf32>
      %353 = arith.addf %352, %351 : vector<8x128xf32>
      %354 = arith.divf %352, %353 : vector<8x128xf32>
      %355 = vector.extract_strided_slice %348 {offsets = [0, 128], sizes = [8, 128], strides = [1, 1]} : vector<8x512xf32> to vector<8x128xf32>
      %356 = arith.negf %355 : vector<8x128xf32>
      %357 = math.exp %356 : vector<8x128xf32>
      %cst_110 = arith.constant 1.000000e+00 : f32
      %358 = vector.broadcast %cst_110 : f32 to vector<8x128xf32>
      %359 = arith.addf %358, %357 : vector<8x128xf32>
      %360 = arith.divf %358, %359 : vector<8x128xf32>
      %361 = vector.extract_strided_slice %348 {offsets = [0, 256], sizes = [8, 128], strides = [1, 1]} : vector<8x512xf32> to vector<8x128xf32>
      %362 = math.tanh %361 : vector<8x128xf32>
      %363 = vector.extract_strided_slice %348 {offsets = [0, 384], sizes = [8, 128], strides = [1, 1]} : vector<8x512xf32> to vector<8x128xf32>
      %364 = arith.negf %363 : vector<8x128xf32>
      %365 = math.exp %364 : vector<8x128xf32>
      %cst_111 = arith.constant 1.000000e+00 : f32
      %366 = vector.broadcast %cst_111 : f32 to vector<8x128xf32>
      %367 = arith.addf %366, %365 : vector<8x128xf32>
      %368 = arith.divf %366, %367 : vector<8x128xf32>
      %369 = arith.mulf %360, %337 : vector<8x128xf32>
      %370 = arith.mulf %354, %362 : vector<8x128xf32>
      %371 = arith.addf %369, %370 : vector<8x128xf32>
      %372 = math.tanh %371 : vector<8x128xf32>
      %373 = arith.mulf %368, %372 : vector<8x128xf32>
      %374 = arith.truncf %373 : vector<8x128xf32> to vector<8x128xbf16>
      %375 = arith.index_cast %343 : i32 to index
      %c0_112 = arith.constant 0 : index
      %376 = vector.load %arg3[%375, %c0_112] : memref<128x1xi32, #tpu.memory_space<vmem>>, vector<8x1xi32>
      %377 = vector.shape_cast %376 : vector<8x1xi32> to vector<8x1xi32>
      %378 = vector.broadcast %377 : vector<8x1xi32> to vector<8x128xi32>
      %c0_i32_113 = arith.constant 0 : i32
      %379 = vector.broadcast %c0_i32_113 : i32 to vector<8x128xi32>
      %380 = arith.cmpi ne, %378, %379 : vector<8x128xi32>
      %381 = arith.select %380, %374, %336 : vector<8x128xi1>, vector<8x128xbf16>
      %382 = arith.select %380, %371, %337 : vector<8x128xi1>, vector<8x128xf32>
      %cst_114 = arith.constant 0.000000e+00 : f32
      %383 = vector.broadcast %cst_114 : f32 to vector<8x128xf32>
      %384 = arith.select %380, %373, %383 : vector<8x128xi1>, vector<8x128xf32>
      %385 = arith.index_cast %343 : i32 to index
      %c0_115 = arith.constant 0 : index
      %386 = vector.load %arg11[%385, %c0_115] : memref<128x128xf32, #tpu.memory_space<vmem>>, vector<8x128xf32>
      tpu.vector_store %arg11[%385, %c0_115], %384 {strides = array<i32>} : memref<128x128xf32, #tpu.memory_space<vmem>>, vector<8x128xf32>,
      scf.yield %381, %382 : vector<8x128xbf16>, vector<8x128xf32>
    }
    %c2_i32_13 = arith.constant 2 : i32
    %15 = arith.extf %14#0 : vector<8x128xbf16> to vector<8x128xf32>
    %c0_14 = arith.constant 0 : index
    %c0_15 = arith.constant 0 : index
    %16 = vector.load %arg12[%c0_14, %c0_15] : memref<8x128xf32, #tpu.memory_space<vmem>>, vector<8x128xf32>
    tpu.vector_store %arg12[%c0_14, %c0_15], %15 {strides = array<i32>} : memref<8x128xf32, #tpu.memory_space<vmem>>, vector<8x128xf32>,
    %c0_16 = arith.constant 0 : index
    %c0_17 = arith.constant 0 : index
    %17 = vector.load %arg13[%c0_16, %c0_17] : memref<8x128xf32, #tpu.memory_space<vmem>>, vector<8x128xf32>
    tpu.vector_store %arg13[%c0_16, %c0_17], %14#1 {strides = array<i32>} : memref<8x128xf32, #tpu.memory_space<vmem>>, vector<8x128xf32>,
    %c0_18 = arith.constant 0 : index
    %c0_19 = arith.constant 0 : index
    %18 = vector.load %arg11[%c0_18, %c0_19] : memref<128x128xf32, #tpu.memory_space<vmem>>, vector<128x128xf32>
    %19 = arith.truncf %18 : vector<128x128xf32> to vector<128x128xbf16>
    %c0_20 = arith.constant 0 : index
    %c0_21 = arith.constant 0 : index
    %20 = vector.load %arg7[%c0_20, %c0_21] : memref<128x128xbf16, #tpu.memory_space<vmem>>, vector<128x128xbf16>
    %cst_22 = arith.constant dense<0.000000e+00> : vector<128x128xf32>
    %21 = tpu.matmul %19, %20, %cst_22 {dimension_numbers = #tpu.dot_dimension_numbers<[1], [0], [0], [1], [0, 0, 1, 1], [], []>} : vector<128x128xbf16>, vector<128x128xbf16>, vector<128x128xf32> -> vector<128x128xf32>
    %c0_23 = arith.constant 0 : index
    %c0_24 = arith.constant 0 : index
    %22 = vector.load %arg8[%c0_23, %c0_24] : memref<1x128xf32, #tpu.memory_space<vmem>>, vector<1x128xf32>
    %23 = vector.broadcast %22 : vector<1x128xf32> to vector<128x128xf32>
    %24 = arith.addf %21, %23 : vector<128x128xf32>
    %c0_25 = arith.constant 0 : index
    %c0_26 = arith.constant 0 : index
    %25 = vector.load %arg9[%c0_25, %c0_26] : memref<128x128xf32, #tpu.memory_space<vmem>>, vector<128x128xf32>
    tpu.vector_store %arg9[%c0_25, %c0_26], %24 {strides = array<i32>} : memref<128x128xf32, #tpu.memory_space<vmem>>, vector<128x128xf32>,
    return
  }
  func.func @transform_0(%arg0: i32, %arg1: i32) -> (i32, i32) {
    %c1_i32 = arith.constant 1 : i32
    %0 = arith.muli %arg0, %c1_i32 : i32
    %1 = arith.addi %0, %arg1 : i32
    %c0_i32 = arith.constant 0 : i32
    %c0_i32_0 = arith.constant 0 : i32
    return %1, %c0_i32 : i32, i32
  }
  func.func @transform_1(%arg0: i32, %arg1: i32) -> (i32, i32) {
    %c1_i32 = arith.constant 1 : i32
    %0 = arith.muli %arg0, %c1_i32 : i32
    %1 = arith.addi %0, %arg1 : i32
    %c0_i32 = arith.constant 0 : i32
    %c0_i32_0 = arith.constant 0 : i32
    return %1, %c0_i32 : i32, i32
  }
  func.func @transform_2(%arg0: i32, %arg1: i32) -> (i32, i32) {
    %c0_i32 = arith.constant 0 : i32
    %c0_i32_0 = arith.constant 0 : i32
    %c0_i32_1 = arith.constant 0 : i32
    return %c0_i32, %c0_i32_0 : i32, i32
  }
  func.func @transform_3(%arg0: i32, %arg1: i32) -> (i32, i32) {
    %c0_i32 = arith.constant 0 : i32
    %c0_i32_0 = arith.constant 0 : i32
    %c0_i32_1 = arith.constant 0 : i32
    return %c0_i32, %c0_i32_0 : i32, i32
  }
  func.func @transform_4(%arg0: i32, %arg1: i32) -> (i32, i32) {
    %c0_i32 = arith.constant 0 : i32
    %c0_i32_0 = arith.constant 0 : i32
    %c0_i32_1 = arith.constant 0 : i32
    return %c0_i32, %c0_i32_0 : i32, i32
  }
  func.func @transform_5(%arg0: i32, %arg1: i32) -> (i32, i32) {
    %c0_i32 = arith.constant 0 : i32
    %c0_i32_0 = arith.constant 0 : i32
    %c0_i32_1 = arith.constant 0 : i32
    return %c0_i32, %c0_i32_0 : i32, i32
  }
  func.func @transform_6(%arg0: i32, %arg1: i32) -> (i32, i32) {
    %c0_i32 = arith.constant 0 : i32
    %c0_i32_0 = arith.constant 0 : i32
    %c0_i32_1 = arith.constant 0 : i32
    return %c0_i32, %c0_i32_0 : i32, i32
  }
  func.func @transform_7(%arg0: i32, %arg1: i32) -> (i32, i32) {
    %c1_i32 = arith.constant 1 : i32
    %0 = arith.muli %arg0, %c1_i32 : i32
    %1 = arith.addi %0, %arg1 : i32
    %c0_i32 = arith.constant 0 : i32
    %c0_i32_0 = arith.constant 0 : i32
    return %1, %c0_i32 : i32, i32
  }
}

</mosaic_0001>

<llo_original>
// kernel: tpu_custom_call.1
$region0: #{tpu_custom_call.1}
  #allocation0 [shape = 'u32[]', space=smem, size = 0x4, offset = 0x4, fixed_abs, tag = 'smem constant byte address 0x4 - core index']
  #allocation1 [shape = 'u32[72,128]{1,0:T(1,128)}', space=vmem, size = 0x9000, scoped, tag = 'internal scratch']
  #allocation2 [shape = 'f32[128,512]{1,0:T(8,128)}', space=vmem, size = 0x40000, scoped, tag = 'scratch operand']
  #allocation3 [shape = 'f32[128,128]{1,0:T(8,128)}', space=vmem, size = 0x10000, scoped, tag = 'scratch operand']
  #allocation4 [shape = 'f32[8,128]{1,0:T(8,128)}', space=vmem, size = 0x1000, scoped, tag = 'scratch operand']
  #allocation5 [shape = 'f32[8,128]{1,0:T(8,128)}', space=vmem, size = 0x1000, scoped, tag = 'scratch operand']
  %s0 = inlined_call_operand.vmem [shape: bf16[128,32], index: 0, kind: input, shape index: {}]
  %s1 = inlined_call_operand.vmem [shape: s32[128,1], index: 1, kind: input, shape index: {}]
  %s2 = inlined_call_operand.vmem [shape: bf16[32,512], index: 2, kind: input, shape index: {}]
  %s3 = inlined_call_operand.hbm [shape: bf16[128,512], index: 3, kind: input, shape index: {}]
  %s4 = inlined_call_operand.vmem [shape: f32[1,512], index: 4, kind: input, shape index: {}]
  %s5 = inlined_call_operand.vmem [shape: bf16[128,128], index: 5, kind: input, shape index: {}]
  %s6 = inlined_call_operand.vmem [shape: f32[1,128], index: 6, kind: input, shape index: {}]
  %s7 = inlined_call_operand.hbm [shape: f32[128,128], index: 7, kind: output, shape index: {}]
  %s8 = sld [smem:[#allocation0]]
  $region53: #{tpu_custom_call.1} parent=0
    _
  %s10 = ssub.s32 1, %s8
  %s11 = scalar_select 0, %s10, %s8
  $region1: #{tpu_custom_call.1} parent=0
    #allocation6 [shape = 'u8[131072]{0}', space=vmem, size = 0x20000, scoped, tag = 'input window, operand 3, single buffered']
    #allocation7 [shape = 's32[1]{0}', space=sflag, size = 0x4, scoped, tag = 'scoped memory for tpu_custom_call.1']
    #allocation8 [shape = 's32[1]{0}', space=sflag, size = 0x4, scoped, tag = 'scoped memory for tpu_custom_call.1']
    #allocation9 [shape = 'u8[65536]{0}', space=vmem, size = 0x10000, scoped, tag = 'output window, operand 0, single buffered']
    %12 = vsyncpa [#allocation7], 0
    %13 = vsyncpa [#allocation8], 0
    // Predicated region
    $region2: #{tpu_custom_call.1} parent=1 // pred_check
      _
    $region3: #{tpu_custom_call.1} parent=1 // pred_check_branch
      %15 = sbr.rel (0) target = $region5
    $region4: #{tpu_custom_call.1} parent=1 // pred_region
      %s16 = sadd.s32 0, 0
      %s17 = smul.u32 16, %s16
      %p18 = scmp.lt.s32.totalorder %s17, 15
      %s19 = scalar_select %p18, %s17, 15
      %s20 = smul.addr %s19, 4
      %s21 = scalar_lea.vmem %s0, %s20
      %s22 = sadd.s32 0, 0
      %s23 = smul.u32 16, %s22
    $region5: #{tpu_custom_call.1} parent=1 // pred_fallthru
      _
    // Predicated region
    $region6: #{tpu_custom_call.1} parent=1 // pred_check
      _
    $region7: #{tpu_custom_call.1} parent=1 // pred_check_branch
      %25 = sbr.rel (0) target = $region9
    $region8: #{tpu_custom_call.1} parent=1 // pred_region
      %s26 = sadd.s32 0, 0
      %s27 = smul.u32 16, %s26
      %p28 = scmp.lt.s32.totalorder %s27, 15
      %s29 = scalar_select %p28, %s27, 15
      %s30 = smul.addr %s29, 8
      %s31 = scalar_lea.vmem %s1, %s30
      %s32 = sadd.s32 0, 0
      %s33 = smul.u32 16, %s32
    $region9: #{tpu_custom_call.1} parent=1 // pred_fallthru
      _
    // Predicated region
    $region10: #{tpu_custom_call.1} parent=1 // pred_check
      _
    $region11: #{tpu_custom_call.1} parent=1 // pred_check_branch
      %35 = sbr.rel (0) target = $region13
    $region12: #{tpu_custom_call.1} parent=1 // pred_region
      _
    $region13: #{tpu_custom_call.1} parent=1 // pred_fallthru
      _
    // Predicated region
    $region14: #{tpu_custom_call.1} parent=1 // pred_check
      _
    $region15: #{tpu_custom_call.1} parent=1 // pred_check_branch
      %37 = sbr.rel (0) target = $region17
    $region16: #{tpu_custom_call.1} parent=1 // pred_region
      %39 = vsyncadd [#allocation7], 0
      %s40 = sshll.u32 %s3, 4
      %s41 = int_to_ptr.hbm [resolvable:$true] %s40
      %s42 = sshll.u32 [#allocation6], 4
      %s43 = int_to_ptr.vmem [resolvable:$true] %s42
      %48 = dma.hbm_to_vmem [thread:$0]  %s41, 4096, %s43, [#allocation7], 256, 256, 16
    $region17: #{tpu_custom_call.1} parent=1 // pred_fallthru
      _
    // Predicated region
    $region18: #{tpu_custom_call.1} parent=1 // pred_check
      _
    $region19: #{tpu_custom_call.1} parent=1 // pred_check_branch
      %50 = sbr.rel (0) target = $region21
    $region20: #{tpu_custom_call.1} parent=1 // pred_region
      _
    $region21: #{tpu_custom_call.1} parent=1 // pred_fallthru
      _
    // Predicated region
    $region22: #{tpu_custom_call.1} parent=1 // pred_check
      _
    $region23: #{tpu_custom_call.1} parent=1 // pred_check_branch
      %52 = sbr.rel (0) target = $region25
    $region24: #{tpu_custom_call.1} parent=1 // pred_region
      _
    $region25: #{tpu_custom_call.1} parent=1 // pred_fallthru
      _
    // Predicated region
    $region26: #{tpu_custom_call.1} parent=1 // pred_check
      _
    $region27: #{tpu_custom_call.1} parent=1 // pred_check_branch
      %54 = sbr.rel (0) target = $region29
    $region28: #{tpu_custom_call.1} parent=1 // pred_region
      _
    $region29: #{tpu_custom_call.1} parent=1 // pred_fallthru
      _
    // Predicated region
    $region30: #{tpu_custom_call.1} parent=1 // pred_check
      _
    $region31: #{tpu_custom_call.1} parent=1 // pred_check_branch
      %56 = sbr.rel (0) target = $region33
    $region32: #{tpu_custom_call.1} parent=1 // pred_region
      %58 = dma.done [#allocation7], 4096
    $region33: #{tpu_custom_call.1} parent=1 // pred_fallthru
      _
    %s59 = sadd.s32 0, 0
    %s60 = smul.u32 16, %s59
    %p61 = scmp.lt.s32.totalorder %s60, 15
    %s62 = scalar_select %p61, %s60, 15
    %s63 = smul.addr %s62, 4
    %s64 = scalar_lea.vmem %s0, %s63
    %s65 = sadd.s32 0, 0
    %s66 = smul.u32 16, %s65
    %p67 = scmp.lt.s32.totalorder %s66, 15
    %s68 = scalar_select %p67, %s66, 15
    %s69 = smul.addr %s68, 8
    %s70 = scalar_lea.vmem %s1, %s69
    %s71 = sadd.s32 0, 0
    %s72 = smul.u32 16, %s71
    %p73 = scmp.lt.s32.totalorder %s72, 15
    %s74 = scalar_select %p73, %s72, 15
    %s75 = smul.addr %s74, 4
    %s76 = scalar_lea.vmem %s0, %s75
    %s77 = sadd.s32 0, 0
    %s78 = smul.u32 16, %s77
    %s79 = sadd.s32 0, 0
    %s80 = smul.u32 16, %s79
    %p81 = scmp.lt.s32.totalorder %s80, 15
    %s82 = scalar_select %p81, %s80, 15
    %s83 = smul.addr %s82, 8
    %s84 = scalar_lea.vmem %s1, %s83
    %s85 = sadd.s32 0, 0
    %s86 = smul.u32 16, %s85
    %s87 = sadd.s32 0, 0
    %s88 = smul.u32 16, %s87
    %p90 = scmp.eq.s32.totalorder 0, 0
    // Predicated region
    $region34: #{tpu_custom_call.1} parent=1 // pred_check
      %p91 = pneg %p90
    $region35: #{tpu_custom_call.1} parent=1 // pred_check_branch
      %93 = sbr.rel (%p91) target = $region37
    $region36: #{tpu_custom_call.1} parent=1 // pred_region
      %94 = vst [vmem:[#allocation4] sm:$0xff] 0.0
      %95 = vst [vmem:[#allocation5] sm:$0xff] 0.0
    $region37: #{tpu_custom_call.1} parent=1 // pred_fallthru
      _
    %v96 = vld [vmem:[%s76] sm:$0xf]
    %v97 = vld [vmem:[%s76 + $0x4] sm:$0xf]
    %v98 = vld [vmem:[%s76 + $0x8] sm:$0xf]
    %v99 = vld [vmem:[%s76 + $0xc] sm:$0xf]
    %v100 = vld [vmem:[%s76 + $0x10] sm:$0xf]
    %v101 = vld [vmem:[%s76 + $0x14] sm:$0xf]
    %v102 = vld [vmem:[%s76 + $0x18] sm:$0xf]
    %v103 = vld [vmem:[%s76 + $0x1c] sm:$0xf]
    %v104 = vld [vmem:[%s76 + $0x20] sm:$0xf]
    %v105 = vld [vmem:[%s76 + $0x24] sm:$0xf]
    %v106 = vld [vmem:[%s76 + $0x28] sm:$0xf]
    %v107 = vld [vmem:[%s76 + $0x2c] sm:$0xf]
    %v108 = vld [vmem:[%s76 + $0x30] sm:$0xf]
    %v109 = vld [vmem:[%s76 + $0x34] sm:$0xf]
    %v110 = vld [vmem:[%s76 + $0x38] sm:$0xf]
    %v111 = vld [vmem:[%s76 + $0x3c] sm:$0xf]
    %v112 = vld [vmem:[%s2] sm:$0xff]
    %v113 = vld [vmem:[%s2 + $0x8] sm:$0xff]
    %v114 = vld [vmem:[%s2 + $0x10] sm:$0xff]
    %v115 = vld [vmem:[%s2 + $0x18] sm:$0xff]
    %v116 = vld [vmem:[%s2 + $0x20] sm:$0xff]
    %v117 = vld [vmem:[%s2 + $0x28] sm:$0xff]
    %v118 = vld [vmem:[%s2 + $0x30] sm:$0xff]
    %v119 = vld [vmem:[%s2 + $0x38] sm:$0xff]
    %v120 = vld [vmem:[%s4] sm:$0xf]
    %v122 = vperm.slane %v120, 0
    %v123 = vperm.slane %v120, 1
    %v124 = vperm.slane %v120, 2
    %v125 = vperm.slane %v120, 3
    %v146 = vunpack.c.l.b16 %v96
    %v147 = vunpack.c.l.b16 %v97
    %v148 = vunpack.c.l.b16 %v98
    %v149 = vunpack.c.l.b16 %v99
    %v150 = vunpack.c.l.b16 %v100
    %v151 = vunpack.c.l.b16 %v101
    %v152 = vunpack.c.l.b16 %v102
    %v153 = vunpack.c.l.b16 %v103
    %v154 = vunpack.c.l.b16 %v104
    %v155 = vunpack.c.l.b16 %v105
    %v156 = vunpack.c.l.b16 %v106
    %v157 = vunpack.c.l.b16 %v107
    %v158 = vunpack.c.l.b16 %v108
    %v159 = vunpack.c.l.b16 %v109
    %v160 = vunpack.c.l.b16 %v110
    %v161 = vunpack.c.l.b16 %v111
    %v162 = vpack.c.b16 %v147, %v146
    %v163 = vpack.c.b16 %v149, %v148
    %v164 = vpack.c.b16 %v151, %v150
    %v165 = vpack.c.b16 %v153, %v152
    %v166 = vpack.c.b16 %v155, %v154
    %v167 = vpack.c.b16 %v157, %v156
    %v168 = vpack.c.b16 %v159, %v158
    %v169 = vpack.c.b16 %v161, %v160
    %v178 = vunpack.c.l.b16 %v112
    %v179 = vunpack.c.h.b16 %v112
    %v180 = vunpack.c.l.b16 %v113
    %v181 = vunpack.c.h.b16 %v113
    %v182 = vunpack.c.l.b16 %v114
    %v183 = vunpack.c.h.b16 %v114
    %v184 = vunpack.c.l.b16 %v115
    %v185 = vunpack.c.h.b16 %v115
    %v186 = vunpack.c.l.b16 %v116
    %v187 = vunpack.c.h.b16 %v116
    %v188 = vunpack.c.l.b16 %v117
    %v189 = vunpack.c.h.b16 %v117
    %v190 = vunpack.c.l.b16 %v118
    %v191 = vunpack.c.h.b16 %v118
    %v192 = vunpack.c.l.b16 %v119
    %v193 = vunpack.c.h.b16 %v119
    %v194 = vpack.c.b16 %v182, %v178
    %v195 = vpack.c.b16 %v183, %v179
    %v196 = vpack.c.b16 %v184, %v180
    %v197 = vpack.c.b16 %v185, %v181
    %v198 = vpack.c.b16 %v190, %v186
    %v199 = vpack.c.b16 %v191, %v187
    %v200 = vpack.c.b16 %v192, %v188
    %v201 = vpack.c.b16 %v193, %v189
    %vm210 = vcmask 261120
    %v212 = vsel %vm210, %v162, 0
    %v215 = vsel %vm210, %v163, 0
    %v218 = vsel %vm210, %v164, 0
    %v221 = vsel %vm210, %v165, 0
    %v224 = vsel %vm210, %v166, 0
    %v227 = vsel %vm210, %v167, 0
    %v230 = vsel %vm210, %v168, 0
    %v233 = vsel %vm210, %v169, 0
    %235 = vmatpush.bf16.msra.mxu0 0
    %236 = vmatpush.bf16.msra.mxu0 0
    %237 = vmatpush.bf16.msra.mxu0 0
    %238 = vmatpush.bf16.msra.mxu0 0
    %239 = vmatpush.bf16.msra.mxu0 0
    %240 = vmatpush.bf16.msra.mxu0 0
    %241 = vmatpush.bf16.msra.mxu0 %v198
    %242 = vmatpush.bf16.msra.mxu0 %v194
    %243 = vmatmul.bf16.gmra.mxu0 %v212
    %v244 = vpop.f32.mrf.mxu0
    %v245 = vadd.f32 %v122, %v244
    %v246 = vpop.f32.mrf.mxu0
    %v247 = vadd.f32 %v122, %v246
    %248 = vmatmul.bf16.gmra.mxu0 %v215
    %v249 = vpop.f32.mrf.mxu0
    %v250 = vadd.f32 %v122, %v249
    %v251 = vpop.f32.mrf.mxu0
    %v252 = vadd.f32 %v122, %v251
    %253 = vmatmul.bf16.gmra.mxu0 %v218
    %v254 = vpop.f32.mrf.mxu0
    %v255 = vadd.f32 %v122, %v254
    %v256 = vpop.f32.mrf.mxu0
    %v257 = vadd.f32 %v122, %v256
    %258 = vmatmul.bf16.gmra.mxu0 %v221
    %v259 = vpop.f32.mrf.mxu0
    %v260 = vadd.f32 %v122, %v259
    %v261 = vpop.f32.mrf.mxu0
    %v262 = vadd.f32 %v122, %v261
    %263 = vmatmul.bf16.gmra.mxu0 %v224
    %v264 = vpop.f32.mrf.mxu0
    %v265 = vadd.f32 %v122, %v264
    %v266 = vpop.f32.mrf.mxu0
    %v267 = vadd.f32 %v122, %v266
    %268 = vmatmul.bf16.gmra.mxu0 %v227
    %v269 = vpop.f32.mrf.mxu0
    %v270 = vadd.f32 %v122, %v269
    %v271 = vpop.f32.mrf.mxu0
    %v272 = vadd.f32 %v122, %v271
    %273 = vmatmul.bf16.gmra.mxu0 %v230
    %v274 = vpop.f32.mrf.mxu0
    %v275 = vadd.f32 %v122, %v274
    %v276 = vpop.f32.mrf.mxu0
    %v277 = vadd.f32 %v122, %v276
    %278 = vmatmul.bf16.gmra.mxu0 %v233
    %v279 = vpop.f32.mrf.mxu0
    %v280 = vadd.f32 %v122, %v279
    %v281 = vpop.f32.mrf.mxu0
    %v282 = vadd.f32 %v122, %v281
    %283 = vdwg.mxu0
    %284 = vmatpush.bf16.msra.mxu0 0
    %285 = vmatpush.bf16.msra.mxu0 0
    %286 = vmatpush.bf16.msra.mxu0 0
    %287 = vmatpush.bf16.msra.mxu0 0
    %288 = vmatpush.bf16.msra.mxu0 0
    %289 = vmatpush.bf16.msra.mxu0 0
    %290 = vmatpush.bf16.msra.mxu0 %v199
    %291 = vmatpush.bf16.msra.mxu0 %v195
    %292 = vmatmul.bf16.gmra.mxu0 %v212
    %v293 = vpop.f32.mrf.mxu0
    %v294 = vadd.f32 %v123, %v293
    %v295 = vpop.f32.mrf.mxu0
    %v296 = vadd.f32 %v123, %v295
    %297 = vmatmul.bf16.gmra.mxu0 %v215
    %v298 = vpop.f32.mrf.mxu0
    %v299 = vadd.f32 %v123, %v298
    %v300 = vpop.f32.mrf.mxu0
    %v301 = vadd.f32 %v123, %v300
    %302 = vmatmul.bf16.gmra.mxu0 %v218
    %v303 = vpop.f32.mrf.mxu0
    %v304 = vadd.f32 %v123, %v303
    %v305 = vpop.f32.mrf.mxu0
    %v306 = vadd.f32 %v123, %v305
    %307 = vmatmul.bf16.gmra.mxu0 %v221
    %v308 = vpop.f32.mrf.mxu0
    %v309 = vadd.f32 %v123, %v308
    %v310 = vpop.f32.mrf.mxu0
    %v311 = vadd.f32 %v123, %v310
    %312 = vmatmul.bf16.gmra.mxu0 %v224
    %v313 = vpop.f32.mrf.mxu0
    %v314 = vadd.f32 %v123, %v313
    %v315 = vpop.f32.mrf.mxu0
    %v316 = vadd.f32 %v123, %v315
    %317 = vmatmul.bf16.gmra.mxu0 %v227
    %v318 = vpop.f32.mrf.mxu0
    %v319 = vadd.f32 %v123, %v318
    %v320 = vpop.f32.mrf.mxu0
    %v321 = vadd.f32 %v123, %v320
    %322 = vmatmul.bf16.gmra.mxu0 %v230
    %v323 = vpop.f32.mrf.mxu0
    %v324 = vadd.f32 %v123, %v323
    %v325 = vpop.f32.mrf.mxu0
    %v326 = vadd.f32 %v123, %v325
    %327 = vmatmul.bf16.gmra.mxu0 %v233
    %v328 = vpop.f32.mrf.mxu0
    %v329 = vadd.f32 %v123, %v328
    %v330 = vpop.f32.mrf.mxu0
    %v331 = vadd.f32 %v123, %v330
    %332 = vdwg.mxu0
    %333 = vmatpush.bf16.msra.mxu0 0
    %334 = vmatpush.bf16.msra.mxu0 0
    %335 = vmatpush.bf16.msra.mxu0 0
    %336 = vmatpush.bf16.msra.mxu0 0
    %337 = vmatpush.bf16.msra.mxu0 0
    %338 = vmatpush.bf16.msra.mxu0 0
    %339 = vmatpush.bf16.msra.mxu0 %v200
    %340 = vmatpush.bf16.msra.mxu0 %v196
    %341 = vmatmul.bf16.gmra.mxu0 %v212
    %v342 = vpop.f32.mrf.mxu0
    %v343 = vadd.f32 %v124, %v342
    %v344 = vpop.f32.mrf.mxu0
    %v345 = vadd.f32 %v124, %v344
    %346 = vmatmul.bf16.gmra.mxu0 %v215
    %v347 = vpop.f32.mrf.mxu0
    %v348 = vadd.f32 %v124, %v347
    %v349 = vpop.f32.mrf.mxu0
    %v350 = vadd.f32 %v124, %v349
    %351 = vmatmul.bf16.gmra.mxu0 %v218
    %v352 = vpop.f32.mrf.mxu0
    %v353 = vadd.f32 %v124, %v352
    %v354 = vpop.f32.mrf.mxu0
    %v355 = vadd.f32 %v124, %v354
    %356 = vmatmul.bf16.gmra.mxu0 %v221
    %v357 = vpop.f32.mrf.mxu0
    %v358 = vadd.f32 %v124, %v357
    %v359 = vpop.f32.mrf.mxu0
    %v360 = vadd.f32 %v124, %v359
    %361 = vmatmul.bf16.gmra.mxu0 %v224
    %v362 = vpop.f32.mrf.mxu0
    %v363 = vadd.f32 %v124, %v362
    %v364 = vpop.f32.mrf.mxu0
    %v365 = vadd.f32 %v124, %v364
    %366 = vmatmul.bf16.gmra.mxu0 %v227
    %v367 = vpop.f32.mrf.mxu0
    %v368 = vadd.f32 %v124, %v367
    %v369 = vpop.f32.mrf.mxu0
    %v370 = vadd.f32 %v124, %v369
    %371 = vmatmul.bf16.gmra.mxu0 %v230
    %v372 = vpop.f32.mrf.mxu0
    %v373 = vadd.f32 %v124, %v372
    %v374 = vpop.f32.mrf.mxu0
    %v375 = vadd.f32 %v124, %v374
    %376 = vmatmul.bf16.gmra.mxu0 %v233
    %v377 = vpop.f32.mrf.mxu0
    %v378 = vadd.f32 %v124, %v377
    %v379 = vpop.f32.mrf.mxu0
    %v380 = vadd.f32 %v124, %v379
    %381 = vdwg.mxu0
    %382 = vmatpush.bf16.msra.mxu0 0
    %383 = vmatpush.bf16.msra.mxu0 0
    %384 = vmatpush.bf16.msra.mxu0 0
    %385 = vmatpush.bf16.msra.mxu0 0
    %386 = vmatpush.bf16.msra.mxu0 0
    %387 = vmatpush.bf16.msra.mxu0 0
    %388 = vmatpush.bf16.msra.mxu0 %v201
    %389 = vmatpush.bf16.msra.mxu0 %v197
    %390 = vmatmul.bf16.gmra.mxu0 %v212
    %v391 = vpop.f32.mrf.mxu0
    %v392 = vadd.f32 %v125, %v391
    %v393 = vpop.f32.mrf.mxu0
    %v394 = vadd.f32 %v125, %v393
    %395 = vmatmul.bf16.gmra.mxu0 %v215
    %v396 = vpop.f32.mrf.mxu0
    %v397 = vadd.f32 %v125, %v396
    %v398 = vpop.f32.mrf.mxu0
    %v399 = vadd.f32 %v125, %v398
    %400 = vmatmul.bf16.gmra.mxu0 %v218
    %v401 = vpop.f32.mrf.mxu0
    %v402 = vadd.f32 %v125, %v401
    %v403 = vpop.f32.mrf.mxu0
    %v404 = vadd.f32 %v125, %v403
    %405 = vmatmul.bf16.gmra.mxu0 %v221
    %v406 = vpop.f32.mrf.mxu0
    %v407 = vadd.f32 %v125, %v406
    %v408 = vpop.f32.mrf.mxu0
    %v409 = vadd.f32 %v125, %v408
    %410 = vmatmul.bf16.gmra.mxu0 %v224
    %v411 = vpop.f32.mrf.mxu0
    %v412 = vadd.f32 %v125, %v411
    %v413 = vpop.f32.mrf.mxu0
    %v414 = vadd.f32 %v125, %v413
    %415 = vmatmul.bf16.gmra.mxu0 %v227
    %v416 = vpop.f32.mrf.mxu0
    %v417 = vadd.f32 %v125, %v416
    %v418 = vpop.f32.mrf.mxu0
    %v419 = vadd.f32 %v125, %v418
    %420 = vmatmul.bf16.gmra.mxu0 %v230
    %v421 = vpop.f32.mrf.mxu0
    %v422 = vadd.f32 %v125, %v421
    %v423 = vpop.f32.mrf.mxu0
    %v424 = vadd.f32 %v125, %v423
    %425 = vmatmul.bf16.gmra.mxu0 %v233
    %v426 = vpop.f32.mrf.mxu0
    %v427 = vadd.f32 %v125, %v426
    %v428 = vpop.f32.mrf.mxu0
    %v429 = vadd.f32 %v125, %v428
    %430 = vdwg.mxu0
    %431 = vst [vmem:[#allocation2] sm:$0xff] %v245
    %432 = vst [vmem:[#allocation2 + $0x8] sm:$0xff] %v294
    %433 = vst [vmem:[#allocation2 + $0x10] sm:$0xff] %v343
    %434 = vst [vmem:[#allocation2 + $0x18] sm:$0xff] %v392
    %435 = vst [vmem:[#allocation2 + $0x20] sm:$0xff] %v247
    %436 = vst [vmem:[#allocation2 + $0x28] sm:$0xff] %v296
    %437 = vst [vmem:[#allocation2 + $0x30] sm:$0xff] %v345
    %438 = vst [vmem:[#allocation2 + $0x38] sm:$0xff] %v394
    %439 = vst [vmem:[#allocation2 + $0x40] sm:$0xff] %v250
    %440 = vst [vmem:[#allocation2 + $0x48] sm:$0xff] %v299
    %441 = vst [vmem:[#allocation2 + $0x50] sm:$0xff] %v348
    %442 = vst [vmem:[#allocation2 + $0x58] sm:$0xff] %v397
    %443 = vst [vmem:[#allocation2 + $0x60] sm:$0xff] %v252
    %444 = vst [vmem:[#allocation2 + $0x68] sm:$0xff] %v301
    %445 = vst [vmem:[#allocation2 + $0x70] sm:$0xff] %v350
    %446 = vst [vmem:[#allocation2 + $0x78] sm:$0xff] %v399
    %447 = vst [vmem:[#allocation2 + $0x80] sm:$0xff] %v255
    %448 = vst [vmem:[#allocation2 + $0x88] sm:$0xff] %v304
    %449 = vst [vmem:[#allocation2 + $0x90] sm:$0xff] %v353
    %450 = vst [vmem:[#allocation2 + $0x98] sm:$0xff] %v402
    %451 = vst [vmem:[#allocation2 + $0xa0] sm:$0xff] %v257
    %452 = vst [vmem:[#allocation2 + $0xa8] sm:$0xff] %v306
    %453 = vst [vmem:[#allocation2 + $0xb0] sm:$0xff] %v355
    %454 = vst [vmem:[#allocation2 + $0xb8] sm:$0xff] %v404
    %455 = vst [vmem:[#allocation2 + $0xc0] sm:$0xff] %v260
    %456 = vst [vmem:[#allocation2 + $0xc8] sm:$0xff] %v309
    %457 = vst [vmem:[#allocation2 + $0xd0] sm:$0xff] %v358
    %458 = vst [vmem:[#allocation2 + $0xd8] sm:$0xff] %v407
    %459 = vst [vmem:[#allocation2 + $0xe0] sm:$0xff] %v262
    %460 = vst [vmem:[#allocation2 + $0xe8] sm:$0xff] %v311
    %461 = vst [vmem:[#allocation2 + $0xf0] sm:$0xff] %v360
    %462 = vst [vmem:[#allocation2 + $0xf8] sm:$0xff] %v409
    %463 = vst [vmem:[#allocation2 + $0x100] sm:$0xff] %v265
    %464 = vst [vmem:[#allocation2 + $0x108] sm:$0xff] %v314
    %465 = vst [vmem:[#allocation2 + $0x110] sm:$0xff] %v363
    %466 = vst [vmem:[#allocation2 + $0x118] sm:$0xff] %v412
    %467 = vst [vmem:[#allocation2 + $0x120] sm:$0xff] %v267
    %468 = vst [vmem:[#allocation2 + $0x128] sm:$0xff] %v316
    %469 = vst [vmem:[#allocation2 + $0x130] sm:$0xff] %v365
    %470 = vst [vmem:[#allocation2 + $0x138] sm:$0xff] %v414
    %471 = vst [vmem:[#allocation2 + $0x140] sm:$0xff] %v270
    %472 = vst [vmem:[#allocation2 + $0x148] sm:$0xff] %v319
    %473 = vst [vmem:[#allocation2 + $0x150] sm:$0xff] %v368
    %474 = vst [vmem:[#allocation2 + $0x158] sm:$0xff] %v417
    %475 = vst [vmem:[#allocation2 + $0x160] sm:$0xff] %v272
    %476 = vst [vmem:[#allocation2 + $0x168] sm:$0xff] %v321
    %477 = vst [vmem:[#allocation2 + $0x170] sm:$0xff] %v370
    %478 = vst [vmem:[#allocation2 + $0x178] sm:$0xff] %v419
    %479 = vst [vmem:[#allocation2 + $0x180] sm:$0xff] %v275
    %480 = vst [vmem:[#allocation2 + $0x188] sm:$0xff] %v324
    %481 = vst [vmem:[#allocation2 + $0x190] sm:$0xff] %v373
    %482 = vst [vmem:[#allocation2 + $0x198] sm:$0xff] %v422
    %483 = vst [vmem:[#allocation2 + $0x1a0] sm:$0xff] %v277
    %484 = vst [vmem:[#allocation2 + $0x1a8] sm:$0xff] %v326
    %485 = vst [vmem:[#allocation2 + $0x1b0] sm:$0xff] %v375
    %486 = vst [vmem:[#allocation2 + $0x1b8] sm:$0xff] %v424
    %487 = vst [vmem:[#allocation2 + $0x1c0] sm:$0xff] %v280
    %488 = vst [vmem:[#allocation2 + $0x1c8] sm:$0xff] %v329
    %489 = vst [vmem:[#allocation2 + $0x1d0] sm:$0xff] %v378
    %490 = vst [vmem:[#allocation2 + $0x1d8] sm:$0xff] %v427
    %491 = vst [vmem:[#allocation2 + $0x1e0] sm:$0xff] %v282
    %492 = vst [vmem:[#allocation2 + $0x1e8] sm:$0xff] %v331
    %493 = vst [vmem:[#allocation2 + $0x1f0] sm:$0xff] %v380
    %494 = vst [vmem:[#allocation2 + $0x1f8] sm:$0xff] %v429
    %v495 = vld [vmem:[#allocation4] sm:$0xff]
    %v496 = vpack.c.bf16 %v495, %v495
    %v497 = vld [vmem:[#allocation5] sm:$0xff]
    loop: start=0, step=1, limit=2
    $region38: #{tpu_custom_call.1} parent=1 // loop_pre_header
      _
    $region39: #{tpu_custom_call.1} parent=1 // loop_header
      %s499 = sphi 0, %s503
      %p500 = scmp.ge.s32.totalorder %s499, 2
      %v504 = vphi %v496, %v3173
      %v505 = vphi %v497, %v3174
    $region40: #{tpu_custom_call.1} parent=1 // loop_header_branch
      %502 = sbr.rel (%p500) target = $region44
    $region41: #{tpu_custom_call.1} parent=1 // loop_body
      %s506 = smul.u32 %s499, 64
      %s507 = sshra.s32 %s506, 3
      %s508 = sand.u32 %s506, 7
      %s509 = smul.u32 %s507, 4
      %s510 = smul.addr %s509, 8
      %s511 = scalar_lea.vmem [#allocation2], %s510
      %v512 = vld [vmem:[%s511] sm:$0xff]
      %v513 = vld [vmem:[%s511 + $0x8] sm:$0xff]
      %v514 = vld [vmem:[%s511 + $0x10] sm:$0xff]
      %v515 = vld [vmem:[%s511 + $0x18] sm:$0xff]
      %v516 = vld [vmem:[#allocation6] sm:$0xff]
      %v517 = vld [vmem:[#allocation6 + $0x8] sm:$0xff]
      %v518 = vld [vmem:[#allocation6 + $0x10] sm:$0xff]
      %v519 = vld [vmem:[#allocation6 + $0x18] sm:$0xff]
      %v520 = vld [vmem:[#allocation6 + $0x20] sm:$0xff]
      %v521 = vld [vmem:[#allocation6 + $0x28] sm:$0xff]
      %v522 = vld [vmem:[#allocation6 + $0x30] sm:$0xff]
      %v523 = vld [vmem:[#allocation6 + $0x38] sm:$0xff]
      %v524 = vld [vmem:[#allocation6 + $0x40] sm:$0xff]
      %v525 = vld [vmem:[#allocation6 + $0x48] sm:$0xff]
      %v526 = vld [vmem:[#allocation6 + $0x50] sm:$0xff]
      %v527 = vld [vmem:[#allocation6 + $0x58] sm:$0xff]
      %v528 = vld [vmem:[#allocation6 + $0x60] sm:$0xff]
      %v529 = vld [vmem:[#allocation6 + $0x68] sm:$0xff]
      %v530 = vld [vmem:[#allocation6 + $0x70] sm:$0xff]
      %v531 = vld [vmem:[#allocation6 + $0x78] sm:$0xff]
      %v532 = vld [vmem:[#allocation6 + $0x80] sm:$0xff]
      %v533 = vld [vmem:[#allocation6 + $0x88] sm:$0xff]
      %v534 = vld [vmem:[#allocation6 + $0x90] sm:$0xff]
      %v535 = vld [vmem:[#allocation6 + $0x98] sm:$0xff]
      %v536 = vld [vmem:[#allocation6 + $0xa0] sm:$0xff]
      %v537 = vld [vmem:[#allocation6 + $0xa8] sm:$0xff]
      %v538 = vld [vmem:[#allocation6 + $0xb0] sm:$0xff]
      %v539 = vld [vmem:[#allocation6 + $0xb8] sm:$0xff]
      %v540 = vld [vmem:[#allocation6 + $0xc0] sm:$0xff]
      %v541 = vld [vmem:[#allocation6 + $0xc8] sm:$0xff]
      %v542 = vld [vmem:[#allocation6 + $0xd0] sm:$0xff]
      %v543 = vld [vmem:[#allocation6 + $0xd8] sm:$0xff]
      %v544 = vld [vmem:[#allocation6 + $0xe0] sm:$0xff]
      %v545 = vld [vmem:[#allocation6 + $0xe8] sm:$0xff]
      %v546 = vld [vmem:[#allocation6 + $0xf0] sm:$0xff]
      %v547 = vld [vmem:[#allocation6 + $0xf8] sm:$0xff]
      %v580 = vunpack.c.l.b16 %v516
      %v581 = vunpack.c.h.b16 %v516
      %v582 = vunpack.c.l.b16 %v517
      %v583 = vunpack.c.h.b16 %v517
      %v584 = vunpack.c.l.b16 %v518
      %v585 = vunpack.c.h.b16 %v518
      %v586 = vunpack.c.l.b16 %v519
      %v587 = vunpack.c.h.b16 %v519
      %v588 = vunpack.c.l.b16 %v520
      %v589 = vunpack.c.h.b16 %v520
      %v590 = vunpack.c.l.b16 %v521
      %v591 = vunpack.c.h.b16 %v521
      %v592 = vunpack.c.l.b16 %v522
      %v593 = vunpack.c.h.b16 %v522
      %v594 = vunpack.c.l.b16 %v523
      %v595 = vunpack.c.h.b16 %v523
      %v596 = vunpack.c.l.b16 %v524
      %v597 = vunpack.c.h.b16 %v524
      %v598 = vunpack.c.l.b16 %v525
      %v599 = vunpack.c.h.b16 %v525
      %v600 = vunpack.c.l.b16 %v526
      %v601 = vunpack.c.h.b16 %v526
      %v602 = vunpack.c.l.b16 %v527
      %v603 = vunpack.c.h.b16 %v527
      %v604 = vunpack.c.l.b16 %v528
      %v605 = vunpack.c.h.b16 %v528
      %v606 = vunpack.c.l.b16 %v529
      %v607 = vunpack.c.h.b16 %v529
      %v608 = vunpack.c.l.b16 %v530
      %v609 = vunpack.c.h.b16 %v530
      %v610 = vunpack.c.l.b16 %v531
      %v611 = vunpack.c.h.b16 %v531
      %v612 = vunpack.c.l.b16 %v532
      %v613 = vunpack.c.h.b16 %v532
      %v614 = vunpack.c.l.b16 %v533
      %v615 = vunpack.c.h.b16 %v533
      %v616 = vunpack.c.l.b16 %v534
      %v617 = vunpack.c.h.b16 %v534
      %v618 = vunpack.c.l.b16 %v535
      %v619 = vunpack.c.h.b16 %v535
      %v620 = vunpack.c.l.b16 %v536
      %v621 = vunpack.c.h.b16 %v536
      %v622 = vunpack.c.l.b16 %v537
      %v623 = vunpack.c.h.b16 %v537
      %v624 = vunpack.c.l.b16 %v538
      %v625 = vunpack.c.h.b16 %v538
      %v626 = vunpack.c.l.b16 %v539
      %v627 = vunpack.c.h.b16 %v539
      %v628 = vunpack.c.l.b16 %v540
      %v629 = vunpack.c.h.b16 %v540
      %v630 = vunpack.c.l.b16 %v541
      %v631 = vunpack.c.h.b16 %v541
      %v632 = vunpack.c.l.b16 %v542
      %v633 = vunpack.c.h.b16 %v542
      %v634 = vunpack.c.l.b16 %v543
      %v635 = vunpack.c.h.b16 %v543
      %v636 = vunpack.c.l.b16 %v544
      %v637 = vunpack.c.h.b16 %v544
      %v638 = vunpack.c.l.b16 %v545
      %v639 = vunpack.c.h.b16 %v545
      %v640 = vunpack.c.l.b16 %v546
      %v641 = vunpack.c.h.b16 %v546
      %v642 = vunpack.c.l.b16 %v547
      %v643 = vunpack.c.h.b16 %v547
      %v644 = vpack.c.b16 %v584, %v580
      %v645 = vpack.c.b16 %v585, %v581
      %v646 = vpack.c.b16 %v586, %v582
      %v647 = vpack.c.b16 %v587, %v583
      %v648 = vpack.c.b16 %v592, %v588
      %v649 = vpack.c.b16 %v593, %v589
      %v650 = vpack.c.b16 %v594, %v590
      %v651 = vpack.c.b16 %v595, %v591
      %v652 = vpack.c.b16 %v600, %v596
      %v653 = vpack.c.b16 %v601, %v597
      %v654 = vpack.c.b16 %v602, %v598
      %v655 = vpack.c.b16 %v603, %v599
      %v656 = vpack.c.b16 %v608, %v604
      %v657 = vpack.c.b16 %v609, %v605
      %v658 = vpack.c.b16 %v610, %v606
      %v659 = vpack.c.b16 %v611, %v607
      %v660 = vpack.c.b16 %v616, %v612
      %v661 = vpack.c.b16 %v617, %v613
      %v662 = vpack.c.b16 %v618, %v614
      %v663 = vpack.c.b16 %v619, %v615
      %v664 = vpack.c.b16 %v624, %v620
      %v665 = vpack.c.b16 %v625, %v621
      %v666 = vpack.c.b16 %v626, %v622
      %v667 = vpack.c.b16 %v627, %v623
      %v668 = vpack.c.b16 %v632, %v628
      %v669 = vpack.c.b16 %v633, %v629
      %v670 = vpack.c.b16 %v634, %v630
      %v671 = vpack.c.b16 %v635, %v631
      %v672 = vpack.c.b16 %v640, %v636
      %v673 = vpack.c.b16 %v641, %v637
      %v674 = vpack.c.b16 %v642, %v638
      %v675 = vpack.c.b16 %v643, %v639
      %708 = vmatpush.bf16.msra.mxu0 %v672
      %709 = vmatpush.bf16.msra.mxu0 %v668
      %710 = vmatpush.bf16.msra.mxu0 %v664
      %711 = vmatpush.bf16.msra.mxu0 %v660
      %712 = vmatpush.bf16.msra.mxu0 %v656
      %713 = vmatpush.bf16.msra.mxu0 %v652
      %714 = vmatpush.bf16.msra.mxu0 %v648
      %715 = vmatpush.bf16.msra.mxu0 %v644
      %716 = vmatmul.bf16.gmra.mxu0 %v504
      %v717 = vpop.f32.mrf.mxu0
      %v718 = vadd.f32 0.0, %v717
      %v719 = vpop.f32.mrf.mxu0
      %720 = vdwg.mxu0
      %721 = vmatpush.bf16.msra.mxu0 %v673
      %722 = vmatpush.bf16.msra.mxu0 %v669
      %723 = vmatpush.bf16.msra.mxu0 %v665
      %724 = vmatpush.bf16.msra.mxu0 %v661
      %725 = vmatpush.bf16.msra.mxu0 %v657
      %726 = vmatpush.bf16.msra.mxu0 %v653
      %727 = vmatpush.bf16.msra.mxu0 %v649
      %728 = vmatpush.bf16.msra.mxu0 %v645
      %729 = vmatmul.bf16.gmra.mxu0 %v504
      %v730 = vpop.f32.mrf.mxu0
      %v731 = vadd.f32 0.0, %v730
      %v732 = vpop.f32.mrf.mxu0
      %733 = vdwg.mxu0
      %734 = vmatpush.bf16.msra.mxu0 %v674
      %735 = vmatpush.bf16.msra.mxu0 %v670
      %736 = vmatpush.bf16.msra.mxu0 %v666
      %737 = vmatpush.bf16.msra.mxu0 %v662
      %738 = vmatpush.bf16.msra.mxu0 %v658
      %739 = vmatpush.bf16.msra.mxu0 %v654
      %740 = vmatpush.bf16.msra.mxu0 %v650
      %741 = vmatpush.bf16.msra.mxu0 %v646
      %742 = vmatmul.bf16.gmra.mxu0 %v504
      %v743 = vpop.f32.mrf.mxu0
      %v744 = vadd.f32 0.0, %v743
      %v745 = vpop.f32.mrf.mxu0
      %746 = vdwg.mxu0
      %747 = vmatpush.bf16.msra.mxu0 %v675
      %748 = vmatpush.bf16.msra.mxu0 %v671
      %749 = vmatpush.bf16.msra.mxu0 %v667
      %750 = vmatpush.bf16.msra.mxu0 %v663
      %751 = vmatpush.bf16.msra.mxu0 %v659
      %752 = vmatpush.bf16.msra.mxu0 %v655
      %753 = vmatpush.bf16.msra.mxu0 %v651
      %754 = vmatpush.bf16.msra.mxu0 %v647
      %755 = vmatmul.bf16.gmra.mxu0 %v504
      %v756 = vpop.f32.mrf.mxu0
      %v757 = vadd.f32 0.0, %v756
      %v758 = vpop.f32.mrf.mxu0
      %759 = vdwg.mxu0
      %v760 = vadd.f32 %v512, %v718
      %v761 = vadd.f32 %v513, %v731
      %v762 = vadd.f32 %v514, %v744
      %v763 = vadd.f32 %v515, %v757
      %v764 = vxor.u32 %v760, 2147483648
      %v765 = vmul.f32 %v764, 1.442695
      %v766 = vpow.pop %v765
      %v767 = vadd.f32 %v766, 1.0
      %v768 = vrcp.pop %v767
      %v769 = vmul.f32 %v767, %v768
      %v770 = vsub.f32 1.0, %v769
      %v771 = vmul.f32 %v768, %v770
      %v772 = vadd.f32 %v768, %v771
      %vm773 = vweird.f32 %v767
      %vm774 = vweird.f32 %v768
      %vm775 = vmor %vm773, %vm774
      %v776 = vsel %vm775, %v768, %v772
      %v777 = vand.u32 2147483647, %v767
      %vm778 = vcmp.eq.f32.partialorder %v777, 8.507059e+37
      %v779 = vand.u32 %v767, 2147483648
      %v780 = vor.u32 1.1754944e-38, %v779
      %v781 = vsel %vm778, %v780, %v776
      %v782 = vmul.f32 1.0, %v781
      %v783 = vxor.u32 %v761, 2147483648
      %v784 = vmul.f32 %v783, 1.442695
      %v785 = vpow.pop %v784
      %v786 = vadd.f32 %v785, 1.0
      %v787 = vrcp.pop %v786
      %v788 = vmul.f32 %v786, %v787
      %v789 = vsub.f32 1.0, %v788
      %v790 = vmul.f32 %v787, %v789
      %v791 = vadd.f32 %v787, %v790
      %vm792 = vweird.f32 %v786
      %vm793 = vweird.f32 %v787
      %vm794 = vmor %vm792, %vm793
      %v795 = vsel %vm794, %v787, %v791
      %v796 = vand.u32 2147483647, %v786
      %vm797 = vcmp.eq.f32.partialorder %v796, 8.507059e+37
      %v798 = vand.u32 %v786, 2147483648
      %v799 = vor.u32 1.1754944e-38, %v798
      %v800 = vsel %vm797, %v799, %v795
      %v801 = vmul.f32 1.0, %v800
      %v802 = vtanh.pop %v762
      %v803 = vxor.u32 %v763, 2147483648
      %v804 = vmul.f32 %v803, 1.442695
      %v805 = vpow.pop %v804
      %v806 = vadd.f32 %v805, 1.0
      %v807 = vrcp.pop %v806
      %v808 = vmul.f32 %v806, %v807
      %v809 = vsub.f32 1.0, %v808
      %v810 = vmul.f32 %v807, %v809
      %v811 = vadd.f32 %v807, %v810
      %vm812 = vweird.f32 %v806
      %vm813 = vweird.f32 %v807
      %vm814 = vmor %vm812, %vm813
      %v815 = vsel %vm814, %v807, %v811
      %v816 = vand.u32 2147483647, %v806
      %vm817 = vcmp.eq.f32.partialorder %v816, 8.507059e+37
      %v818 = vand.u32 %v806, 2147483648
      %v819 = vor.u32 1.1754944e-38, %v818
      %v820 = vsel %vm817, %v819, %v815
      %v821 = vmul.f32 1.0, %v820
      %v822 = vmul.f32 %v801, %v505
      %v823 = vmul.f32 %v782, %v802
      %v824 = vadd.f32 %v822, %v823
      %v825 = vtanh.pop %v824
      %v826 = vmul.f32 %v821, %v825
      %v827 = vpack.c.bf16 %v826, %v826
      %s828 = scalar_lea.vmem %s84, %s506
      %v829 = vld [vmem:[%s828] sm:$0xff]
      %830 = vset.pattern.permute.xlu0 0
      %831 = vperm.xlu0 %830, %v829
      %v832 = vpop.permute.xlu0 %831
      %vm833 = vcmp.ne.s32.totalorder %v832, 0
      %vm834 = vmpackc.low %vm833, %vm833
      %v835 = vsel %vm834, %v827, %v504
      %v836 = vsel %vm833, %v824, %v505
      %v837 = vsel %vm833, %v826, 0.0
      %s838 = scalar_lea.vmem [#allocation3], %s506
      %839 = vst [vmem:[%s838] sm:$0xff] %v837
      %s840 = sadd.s32 %s506, 8
      %s841 = sshra.s32 %s840, 3
      %s842 = sand.u32 %s840, 7
      %s843 = smul.u32 %s841, 4
      %s844 = smul.addr %s843, 8
      %s845 = scalar_lea.vmem [#allocation2], %s844
      %v846 = vld [vmem:[%s845] sm:$0xff]
      %v847 = vld [vmem:[%s845 + $0x8] sm:$0xff]
      %v848 = vld [vmem:[%s845 + $0x10] sm:$0xff]
      %v849 = vld [vmem:[%s845 + $0x18] sm:$0xff]
      %v850 = vld [vmem:[#allocation6] sm:$0xff]
      %v851 = vld [vmem:[#allocation6 + $0x8] sm:$0xff]
      %v852 = vld [vmem:[#allocation6 + $0x10] sm:$0xff]
      %v853 = vld [vmem:[#allocation6 + $0x18] sm:$0xff]
      %v854 = vld [vmem:[#allocation6 + $0x20] sm:$0xff]
      %v855 = vld [vmem:[#allocation6 + $0x28] sm:$0xff]
      %v856 = vld [vmem:[#allocation6 + $0x30] sm:$0xff]
      %v857 = vld [vmem:[#allocation6 + $0x38] sm:$0xff]
      %v858 = vld [vmem:[#allocation6 + $0x40] sm:$0xff]
      %v859 = vld [vmem:[#allocation6 + $0x48] sm:$0xff]
      %v860 = vld [vmem:[#allocation6 + $0x50] sm:$0xff]
      %v861 = vld [vmem:[#allocation6 + $0x58] sm:$0xff]
      %v862 = vld [vmem:[#allocation6 + $0x60] sm:$0xff]
      %v863 = vld [vmem:[#allocation6 + $0x68] sm:$0xff]
      %v864 = vld [vmem:[#allocation6 + $0x70] sm:$0xff]
      %v865 = vld [vmem:[#allocation6 + $0x78] sm:$0xff]
      %v866 = vld [vmem:[#allocation6 + $0x80] sm:$0xff]
      %v867 = vld [vmem:[#allocation6 + $0x88] sm:$0xff]
      %v868 = vld [vmem:[#allocation6 + $0x90] sm:$0xff]
      %v869 = vld [vmem:[#allocation6 + $0x98] sm:$0xff]
      %v870 = vld [vmem:[#allocation6 + $0xa0] sm:$0xff]
      %v871 = vld [vmem:[#allocation6 + $0xa8] sm:$0xff]
      %v872 = vld [vmem:[#allocation6 + $0xb0] sm:$0xff]
      %v873 = vld [vmem:[#allocation6 + $0xb8] sm:$0xff]
      %v874 = vld [vmem:[#allocation6 + $0xc0] sm:$0xff]
      %v875 = vld [vmem:[#allocation6 + $0xc8] sm:$0xff]
      %v876 = vld [vmem:[#allocation6 + $0xd0] sm:$0xff]
      %v877 = vld [vmem:[#allocation6 + $0xd8] sm:$0xff]
      %v878 = vld [vmem:[#allocation6 + $0xe0] sm:$0xff]
      %v879 = vld [vmem:[#allocation6 + $0xe8] sm:$0xff]
      %v880 = vld [vmem:[#allocation6 + $0xf0] sm:$0xff]
      %v881 = vld [vmem:[#allocation6 + $0xf8] sm:$0xff]
      %v914 = vunpack.c.l.b16 %v850
      %v915 = vunpack.c.h.b16 %v850
      %v916 = vunpack.c.l.b16 %v851
      %v917 = vunpack.c.h.b16 %v851
      %v918 = vunpack.c.l.b16 %v852
      %v919 = vunpack.c.h.b16 %v852
      %v920 = vunpack.c.l.b16 %v853
      %v921 = vunpack.c.h.b16 %v853
      %v922 = vunpack.c.l.b16 %v854
      %v923 = vunpack.c.h.b16 %v854
      %v924 = vunpack.c.l.b16 %v855
      %v925 = vunpack.c.h.b16 %v855
      %v926 = vunpack.c.l.b16 %v856
      %v927 = vunpack.c.h.b16 %v856
      %v928 = vunpack.c.l.b16 %v857
      %v929 = vunpack.c.h.b16 %v857
      %v930 = vunpack.c.l.b16 %v858
      %v931 = vunpack.c.h.b16 %v858
      %v932 = vunpack.c.l.b16 %v859
      %v933 = vunpack.c.h.b16 %v859
      %v934 = vunpack.c.l.b16 %v860
      %v935 = vunpack.c.h.b16 %v860
      %v936 = vunpack.c.l.b16 %v861
      %v937 = vunpack.c.h.b16 %v861
      %v938 = vunpack.c.l.b16 %v862
      %v939 = vunpack.c.h.b16 %v862
      %v940 = vunpack.c.l.b16 %v863
      %v941 = vunpack.c.h.b16 %v863
      %v942 = vunpack.c.l.b16 %v864
      %v943 = vunpack.c.h.b16 %v864
      %v944 = vunpack.c.l.b16 %v865
      %v945 = vunpack.c.h.b16 %v865
      %v946 = vunpack.c.l.b16 %v866
      %v947 = vunpack.c.h.b16 %v866
      %v948 = vunpack.c.l.b16 %v867
      %v949 = vunpack.c.h.b16 %v867
      %v950 = vunpack.c.l.b16 %v868
      %v951 = vunpack.c.h.b16 %v868
      %v952 = vunpack.c.l.b16 %v869
      %v953 = vunpack.c.h.b16 %v869
      %v954 = vunpack.c.l.b16 %v870
      %v955 = vunpack.c.h.b16 %v870
      %v956 = vunpack.c.l.b16 %v871
      %v957 = vunpack.c.h.b16 %v871
      %v958 = vunpack.c.l.b16 %v872
      %v959 = vunpack.c.h.b16 %v872
      %v960 = vunpack.c.l.b16 %v873
      %v961 = vunpack.c.h.b16 %v873
      %v962 = vunpack.c.l.b16 %v874
      %v963 = vunpack.c.h.b16 %v874
      %v964 = vunpack.c.l.b16 %v875
      %v965 = vunpack.c.h.b16 %v875
      %v966 = vunpack.c.l.b16 %v876
      %v967 = vunpack.c.h.b16 %v876
      %v968 = vunpack.c.l.b16 %v877
      %v969 = vunpack.c.h.b16 %v877
      %v970 = vunpack.c.l.b16 %v878
      %v971 = vunpack.c.h.b16 %v878
      %v972 = vunpack.c.l.b16 %v879
      %v973 = vunpack.c.h.b16 %v879
      %v974 = vunpack.c.l.b16 %v880
      %v975 = vunpack.c.h.b16 %v880
      %v976 = vunpack.c.l.b16 %v881
      %v977 = vunpack.c.h.b16 %v881
      %v978 = vpack.c.b16 %v918, %v914
      %v979 = vpack.c.b16 %v919, %v915
      %v980 = vpack.c.b16 %v920, %v916
      %v981 = vpack.c.b16 %v921, %v917
      %v982 = vpack.c.b16 %v926, %v922
      %v983 = vpack.c.b16 %v927, %v923
      %v984 = vpack.c.b16 %v928, %v924
      %v985 = vpack.c.b16 %v929, %v925
      %v986 = vpack.c.b16 %v934, %v930
      %v987 = vpack.c.b16 %v935, %v931
      %v988 = vpack.c.b16 %v936, %v932
      %v989 = vpack.c.b16 %v937, %v933
      %v990 = vpack.c.b16 %v942, %v938
      %v991 = vpack.c.b16 %v943, %v939
      %v992 = vpack.c.b16 %v944, %v940
      %v993 = vpack.c.b16 %v945, %v941
      %v994 = vpack.c.b16 %v950, %v946
      %v995 = vpack.c.b16 %v951, %v947
      %v996 = vpack.c.b16 %v952, %v948
      %v997 = vpack.c.b16 %v953, %v949
      %v998 = vpack.c.b16 %v958, %v954
      %v999 = vpack.c.b16 %v959, %v955
      %v1000 = vpack.c.b16 %v960, %v956
      %v1001 = vpack.c.b16 %v961, %v957
      %v1002 = vpack.c.b16 %v966, %v962
      %v1003 = vpack.c.b16 %v967, %v963
      %v1004 = vpack.c.b16 %v968, %v964
      %v1005 = vpack.c.b16 %v969, %v965
      %v1006 = vpack.c.b16 %v974, %v970
      %v1007 = vpack.c.b16 %v975, %v971
      %v1008 = vpack.c.b16 %v976, %v972
      %v1009 = vpack.c.b16 %v977, %v973
      %1042 = vmatpush.bf16.msra.mxu0 %v1006
      %1043 = vmatpush.bf16.msra.mxu0 %v1002
      %1044 = vmatpush.bf16.msra.mxu0 %v998
      %1045 = vmatpush.bf16.msra.mxu0 %v994
      %1046 = vmatpush.bf16.msra.mxu0 %v990
      %1047 = vmatpush.bf16.msra.mxu0 %v986
      %1048 = vmatpush.bf16.msra.mxu0 %v982
      %1049 = vmatpush.bf16.msra.mxu0 %v978
      %1050 = vmatmul.bf16.gmra.mxu0 %v835
      %v1051 = vpop.f32.mrf.mxu0
      %v1052 = vadd.f32 0.0, %v1051
      %v1053 = vpop.f32.mrf.mxu0
      %1054 = vdwg.mxu0
      %1055 = vmatpush.bf16.msra.mxu0 %v1007
      %1056 = vmatpush.bf16.msra.mxu0 %v1003
      %1057 = vmatpush.bf16.msra.mxu0 %v999
      %1058 = vmatpush.bf16.msra.mxu0 %v995
      %1059 = vmatpush.bf16.msra.mxu0 %v991
      %1060 = vmatpush.bf16.msra.mxu0 %v987
      %1061 = vmatpush.bf16.msra.mxu0 %v983
      %1062 = vmatpush.bf16.msra.mxu0 %v979
      %1063 = vmatmul.bf16.gmra.mxu0 %v835
      %v1064 = vpop.f32.mrf.mxu0
      %v1065 = vadd.f32 0.0, %v1064
      %v1066 = vpop.f32.mrf.mxu0
      %1067 = vdwg.mxu0
      %1068 = vmatpush.bf16.msra.mxu0 %v1008
      %1069 = vmatpush.bf16.msra.mxu0 %v1004
      %1070 = vmatpush.bf16.msra.mxu0 %v1000
      %1071 = vmatpush.bf16.msra.mxu0 %v996
      %1072 = vmatpush.bf16.msra.mxu0 %v992
      %1073 = vmatpush.bf16.msra.mxu0 %v988
      %1074 = vmatpush.bf16.msra.mxu0 %v984
      %1075 = vmatpush.bf16.msra.mxu0 %v980
      %1076 = vmatmul.bf16.gmra.mxu0 %v835
      %v1077 = vpop.f32.mrf.mxu0
      %v1078 = vadd.f32 0.0, %v1077
      %v1079 = vpop.f32.mrf.mxu0
      %1080 = vdwg.mxu0
      %1081 = vmatpush.bf16.msra.mxu0 %v1009
      %1082 = vmatpush.bf16.msra.mxu0 %v1005
      %1083 = vmatpush.bf16.msra.mxu0 %v1001
      %1084 = vmatpush.bf16.msra.mxu0 %v997
      %1085 = vmatpush.bf16.msra.mxu0 %v993
      %1086 = vmatpush.bf16.msra.mxu0 %v989
      %1087 = vmatpush.bf16.msra.mxu0 %v985
      %1088 = vmatpush.bf16.msra.mxu0 %v981
      %1089 = vmatmul.bf16.gmra.mxu0 %v835
      %v1090 = vpop.f32.mrf.mxu0
      %v1091 = vadd.f32 0.0, %v1090
      %v1092 = vpop.f32.mrf.mxu0
      %1093 = vdwg.mxu0
      %v1094 = vadd.f32 %v846, %v1052
      %v1095 = vadd.f32 %v847, %v1065
      %v1096 = vadd.f32 %v848, %v1078
      %v1097 = vadd.f32 %v849, %v1091
      %v1098 = vxor.u32 %v1094, 2147483648
      %v1099 = vmul.f32 %v1098, 1.442695
      %v1100 = vpow.pop %v1099
      %v1101 = vadd.f32 %v1100, 1.0
      %v1102 = vrcp.pop %v1101
      %v1103 = vmul.f32 %v1101, %v1102
      %v1104 = vsub.f32 1.0, %v1103
      %v1105 = vmul.f32 %v1102, %v1104
      %v1106 = vadd.f32 %v1102, %v1105
      %vm1107 = vweird.f32 %v1101
      %vm1108 = vweird.f32 %v1102
      %vm1109 = vmor %vm1107, %vm1108
      %v1110 = vsel %vm1109, %v1102, %v1106
      %v1111 = vand.u32 2147483647, %v1101
      %vm1112 = vcmp.eq.f32.partialorder %v1111, 8.507059e+37
      %v1113 = vand.u32 %v1101, 2147483648
      %v1114 = vor.u32 1.1754944e-38, %v1113
      %v1115 = vsel %vm1112, %v1114, %v1110
      %v1116 = vmul.f32 1.0, %v1115
      %v1117 = vxor.u32 %v1095, 2147483648
      %v1118 = vmul.f32 %v1117, 1.442695
      %v1119 = vpow.pop %v1118
      %v1120 = vadd.f32 %v1119, 1.0
      %v1121 = vrcp.pop %v1120
      %v1122 = vmul.f32 %v1120, %v1121
      %v1123 = vsub.f32 1.0, %v1122
      %v1124 = vmul.f32 %v1121, %v1123
      %v1125 = vadd.f32 %v1121, %v1124
      %vm1126 = vweird.f32 %v1120
      %vm1127 = vweird.f32 %v1121
      %vm1128 = vmor %vm1126, %vm1127
      %v1129 = vsel %vm1128, %v1121, %v1125
      %v1130 = vand.u32 2147483647, %v1120
      %vm1131 = vcmp.eq.f32.partialorder %v1130, 8.507059e+37
      %v1132 = vand.u32 %v1120, 2147483648
      %v1133 = vor.u32 1.1754944e-38, %v1132
      %v1134 = vsel %vm1131, %v1133, %v1129
      %v1135 = vmul.f32 1.0, %v1134
      %v1136 = vtanh.pop %v1096
      %v1137 = vxor.u32 %v1097, 2147483648
      %v1138 = vmul.f32 %v1137, 1.442695
      %v1139 = vpow.pop %v1138
      %v1140 = vadd.f32 %v1139, 1.0
      %v1141 = vrcp.pop %v1140
      %v1142 = vmul.f32 %v1140, %v1141
      %v1143 = vsub.f32 1.0, %v1142
      %v1144 = vmul.f32 %v1141, %v1143
      %v1145 = vadd.f32 %v1141, %v1144
      %vm1146 = vweird.f32 %v1140
      %vm1147 = vweird.f32 %v1141
      %vm1148 = vmor %vm1146, %vm1147
      %v1149 = vsel %vm1148, %v1141, %v1145
      %v1150 = vand.u32 2147483647, %v1140
      %vm1151 = vcmp.eq.f32.partialorder %v1150, 8.507059e+37
      %v1152 = vand.u32 %v1140, 2147483648
      %v1153 = vor.u32 1.1754944e-38, %v1152
      %v1154 = vsel %vm1151, %v1153, %v1149
      %v1155 = vmul.f32 1.0, %v1154
      %v1156 = vmul.f32 %v1135, %v836
      %v1157 = vmul.f32 %v1116, %v1136
      %v1158 = vadd.f32 %v1156, %v1157
      %v1159 = vtanh.pop %v1158
      %v1160 = vmul.f32 %v1155, %v1159
      %v1161 = vpack.c.bf16 %v1160, %v1160
      %s1162 = scalar_lea.vmem %s84, %s840
      %v1163 = vld [vmem:[%s1162] sm:$0xff]
      %1164 = vset.pattern.permute.xlu0 0
      %1165 = vperm.xlu0 %1164, %v1163
      %v1166 = vpop.permute.xlu0 %1165
      %vm1167 = vcmp.ne.s32.totalorder %v1166, 0
      %vm1168 = vmpackc.low %vm1167, %vm1167
      %v1169 = vsel %vm1168, %v1161, %v835
      %v1170 = vsel %vm1167, %v1158, %v836
      %v1171 = vsel %vm1167, %v1160, 0.0
      %s1172 = scalar_lea.vmem [#allocation3], %s840
      %1173 = vst [vmem:[%s1172] sm:$0xff] %v1171
      %s1174 = sadd.s32 %s506, 16
      %s1175 = sshra.s32 %s1174, 3
      %s1176 = sand.u32 %s1174, 7
      %s1177 = smul.u32 %s1175, 4
      %s1178 = smul.addr %s1177, 8
      %s1179 = scalar_lea.vmem [#allocation2], %s1178
      %v1180 = vld [vmem:[%s1179] sm:$0xff]
      %v1181 = vld [vmem:[%s1179 + $0x8] sm:$0xff]
      %v1182 = vld [vmem:[%s1179 + $0x10] sm:$0xff]
      %v1183 = vld [vmem:[%s1179 + $0x18] sm:$0xff]
      %v1184 = vld [vmem:[#allocation6] sm:$0xff]
      %v1185 = vld [vmem:[#allocation6 + $0x8] sm:$0xff]
      %v1186 = vld [vmem:[#allocation6 + $0x10] sm:$0xff]
      %v1187 = vld [vmem:[#allocation6 + $0x18] sm:$0xff]
      %v1188 = vld [vmem:[#allocation6 + $0x20] sm:$0xff]
      %v1189 = vld [vmem:[#allocation6 + $0x28] sm:$0xff]
      %v1190 = vld [vmem:[#allocation6 + $0x30] sm:$0xff]
      %v1191 = vld [vmem:[#allocation6 + $0x38] sm:$0xff]
      %v1192 = vld [vmem:[#allocation6 + $0x40] sm:$0xff]
      %v1193 = vld [vmem:[#allocation6 + $0x48] sm:$0xff]
      %v1194 = vld [vmem:[#allocation6 + $0x50] sm:$0xff]
      %v1195 = vld [vmem:[#allocation6 + $0x58] sm:$0xff]
      %v1196 = vld [vmem:[#allocation6 + $0x60] sm:$0xff]
      %v1197 = vld [vmem:[#allocation6 + $0x68] sm:$0xff]
      %v1198 = vld [vmem:[#allocation6 + $0x70] sm:$0xff]
      %v1199 = vld [vmem:[#allocation6 + $0x78] sm:$0xff]
      %v1200 = vld [vmem:[#allocation6 + $0x80] sm:$0xff]
      %v1201 = vld [vmem:[#allocation6 + $0x88] sm:$0xff]
      %v1202 = vld [vmem:[#allocation6 + $0x90] sm:$0xff]
      %v1203 = vld [vmem:[#allocation6 + $0x98] sm:$0xff]
      %v1204 = vld [vmem:[#allocation6 + $0xa0] sm:$0xff]
      %v1205 = vld [vmem:[#allocation6 + $0xa8] sm:$0xff]
      %v1206 = vld [vmem:[#allocation6 + $0xb0] sm:$0xff]
      %v1207 = vld [vmem:[#allocation6 + $0xb8] sm:$0xff]
      %v1208 = vld [vmem:[#allocation6 + $0xc0] sm:$0xff]
      %v1209 = vld [vmem:[#allocation6 + $0xc8] sm:$0xff]
      %v1210 = vld [vmem:[#allocation6 + $0xd0] sm:$0xff]
      %v1211 = vld [vmem:[#allocation6 + $0xd8] sm:$0xff]
      %v1212 = vld [vmem:[#allocation6 + $0xe0] sm:$0xff]
      %v1213 = vld [vmem:[#allocation6 + $0xe8] sm:$0xff]
      %v1214 = vld [vmem:[#allocation6 + $0xf0] sm:$0xff]
      %v1215 = vld [vmem:[#allocation6 + $0xf8] sm:$0xff]
      %v1248 = vunpack.c.l.b16 %v1184
      %v1249 = vunpack.c.h.b16 %v1184
      %v1250 = vunpack.c.l.b16 %v1185
      %v1251 = vunpack.c.h.b16 %v1185
      %v1252 = vunpack.c.l.b16 %v1186
      %v1253 = vunpack.c.h.b16 %v1186
      %v1254 = vunpack.c.l.b16 %v1187
      %v1255 = vunpack.c.h.b16 %v1187
      %v1256 = vunpack.c.l.b16 %v1188
      %v1257 = vunpack.c.h.b16 %v1188
      %v1258 = vunpack.c.l.b16 %v1189
      %v1259 = vunpack.c.h.b16 %v1189
      %v1260 = vunpack.c.l.b16 %v1190
      %v1261 = vunpack.c.h.b16 %v1190
      %v1262 = vunpack.c.l.b16 %v1191
      %v1263 = vunpack.c.h.b16 %v1191
      %v1264 = vunpack.c.l.b16 %v1192
      %v1265 = vunpack.c.h.b16 %v1192
      %v1266 = vunpack.c.l.b16 %v1193
      %v1267 = vunpack.c.h.b16 %v1193
      %v1268 = vunpack.c.l.b16 %v1194
      %v1269 = vunpack.c.h.b16 %v1194
      %v1270 = vunpack.c.l.b16 %v1195
      %v1271 = vunpack.c.h.b16 %v1195
      %v1272 = vunpack.c.l.b16 %v1196
      %v1273 = vunpack.c.h.b16 %v1196
      %v1274 = vunpack.c.l.b16 %v1197
      %v1275 = vunpack.c.h.b16 %v1197
      %v1276 = vunpack.c.l.b16 %v1198
      %v1277 = vunpack.c.h.b16 %v1198
      %v1278 = vunpack.c.l.b16 %v1199
      %v1279 = vunpack.c.h.b16 %v1199
      %v1280 = vunpack.c.l.b16 %v1200
      %v1281 = vunpack.c.h.b16 %v1200
      %v1282 = vunpack.c.l.b16 %v1201
      %v1283 = vunpack.c.h.b16 %v1201
      %v1284 = vunpack.c.l.b16 %v1202
      %v1285 = vunpack.c.h.b16 %v1202
      %v1286 = vunpack.c.l.b16 %v1203
      %v1287 = vunpack.c.h.b16 %v1203
      %v1288 = vunpack.c.l.b16 %v1204
      %v1289 = vunpack.c.h.b16 %v1204
      %v1290 = vunpack.c.l.b16 %v1205
      %v1291 = vunpack.c.h.b16 %v1205
      %v1292 = vunpack.c.l.b16 %v1206
      %v1293 = vunpack.c.h.b16 %v1206
      %v1294 = vunpack.c.l.b16 %v1207
      %v1295 = vunpack.c.h.b16 %v1207
      %v1296 = vunpack.c.l.b16 %v1208
      %v1297 = vunpack.c.h.b16 %v1208
      %v1298 = vunpack.c.l.b16 %v1209
      %v1299 = vunpack.c.h.b16 %v1209
      %v1300 = vunpack.c.l.b16 %v1210
      %v1301 = vunpack.c.h.b16 %v1210
      %v1302 = vunpack.c.l.b16 %v1211
      %v1303 = vunpack.c.h.b16 %v1211
      %v1304 = vunpack.c.l.b16 %v1212
      %v1305 = vunpack.c.h.b16 %v1212
      %v1306 = vunpack.c.l.b16 %v1213
      %v1307 = vunpack.c.h.b16 %v1213
      %v1308 = vunpack.c.l.b16 %v1214
      %v1309 = vunpack.c.h.b16 %v1214
      %v1310 = vunpack.c.l.b16 %v1215
      %v1311 = vunpack.c.h.b16 %v1215
      %v1312 = vpack.c.b16 %v1252, %v1248
      %v1313 = vpack.c.b16 %v1253, %v1249
      %v1314 = vpack.c.b16 %v1254, %v1250
      %v1315 = vpack.c.b16 %v1255, %v1251
      %v1316 = vpack.c.b16 %v1260, %v1256
      %v1317 = vpack.c.b16 %v1261, %v1257
      %v1318 = vpack.c.b16 %v1262, %v1258
      %v1319 = vpack.c.b16 %v1263, %v1259
      %v1320 = vpack.c.b16 %v1268, %v1264
      %v1321 = vpack.c.b16 %v1269, %v1265
      %v1322 = vpack.c.b16 %v1270, %v1266
      %v1323 = vpack.c.b16 %v1271, %v1267
      %v1324 = vpack.c.b16 %v1276, %v1272
      %v1325 = vpack.c.b16 %v1277, %v1273
      %v1326 = vpack.c.b16 %v1278, %v1274
      %v1327 = vpack.c.b16 %v1279, %v1275
      %v1328 = vpack.c.b16 %v1284, %v1280
      %v1329 = vpack.c.b16 %v1285, %v1281
      %v1330 = vpack.c.b16 %v1286, %v1282
      %v1331 = vpack.c.b16 %v1287, %v1283
      %v1332 = vpack.c.b16 %v1292, %v1288
      %v1333 = vpack.c.b16 %v1293, %v1289
      %v1334 = vpack.c.b16 %v1294, %v1290
      %v1335 = vpack.c.b16 %v1295, %v1291
      %v1336 = vpack.c.b16 %v1300, %v1296
      %v1337 = vpack.c.b16 %v1301, %v1297
      %v1338 = vpack.c.b16 %v1302, %v1298
      %v1339 = vpack.c.b16 %v1303, %v1299
      %v1340 = vpack.c.b16 %v1308, %v1304
      %v1341 = vpack.c.b16 %v1309, %v1305
      %v1342 = vpack.c.b16 %v1310, %v1306
      %v1343 = vpack.c.b16 %v1311, %v1307
      %1376 = vmatpush.bf16.msra.mxu0 %v1340
      %1377 = vmatpush.bf16.msra.mxu0 %v1336
      %1378 = vmatpush.bf16.msra.mxu0 %v1332
      %1379 = vmatpush.bf16.msra.mxu0 %v1328
      %1380 = vmatpush.bf16.msra.mxu0 %v1324
      %1381 = vmatpush.bf16.msra.mxu0 %v1320
      %1382 = vmatpush.bf16.msra.mxu0 %v1316
      %1383 = vmatpush.bf16.msra.mxu0 %v1312
      %1384 = vmatmul.bf16.gmra.mxu0 %v1169
      %v1385 = vpop.f32.mrf.mxu0
      %v1386 = vadd.f32 0.0, %v1385
      %v1387 = vpop.f32.mrf.mxu0
      %1388 = vdwg.mxu0
      %1389 = vmatpush.bf16.msra.mxu0 %v1341
      %1390 = vmatpush.bf16.msra.mxu0 %v1337
      %1391 = vmatpush.bf16.msra.mxu0 %v1333
      %1392 = vmatpush.bf16.msra.mxu0 %v1329
      %1393 = vmatpush.bf16.msra.mxu0 %v1325
      %1394 = vmatpush.bf16.msra.mxu0 %v1321
      %1395 = vmatpush.bf16.msra.mxu0 %v1317
      %1396 = vmatpush.bf16.msra.mxu0 %v1313
      %1397 = vmatmul.bf16.gmra.mxu0 %v1169
      %v1398 = vpop.f32.mrf.mxu0
      %v1399 = vadd.f32 0.0, %v1398
      %v1400 = vpop.f32.mrf.mxu0
      %1401 = vdwg.mxu0
      %1402 = vmatpush.bf16.msra.mxu0 %v1342
      %1403 = vmatpush.bf16.msra.mxu0 %v1338
      %1404 = vmatpush.bf16.msra.mxu0 %v1334
      %1405 = vmatpush.bf16.msra.mxu0 %v1330
      %1406 = vmatpush.bf16.msra.mxu0 %v1326
      %1407 = vmatpush.bf16.msra.mxu0 %v1322
      %1408 = vmatpush.bf16.msra.mxu0 %v1318
      %1409 = vmatpush.bf16.msra.mxu0 %v1314
      %1410 = vmatmul.bf16.gmra.mxu0 %v1169
      %v1411 = vpop.f32.mrf.mxu0
      %v1412 = vadd.f32 0.0, %v1411
      %v1413 = vpop.f32.mrf.mxu0
      %1414 = vdwg.mxu0
      %1415 = vmatpush.bf16.msra.mxu0 %v1343
      %1416 = vmatpush.bf16.msra.mxu0 %v1339
      %1417 = vmatpush.bf16.msra.mxu0 %v1335
      %1418 = vmatpush.bf16.msra.mxu0 %v1331
      %1419 = vmatpush.bf16.msra.mxu0 %v1327
      %1420 = vmatpush.bf16.msra.mxu0 %v1323
      %1421 = vmatpush.bf16.msra.mxu0 %v1319
      %1422 = vmatpush.bf16.msra.mxu0 %v1315
      %1423 = vmatmul.bf16.gmra.mxu0 %v1169
      %v1424 = vpop.f32.mrf.mxu0
      %v1425 = vadd.f32 0.0, %v1424
      %v1426 = vpop.f32.mrf.mxu0
      %1427 = vdwg.mxu0
      %v1428 = vadd.f32 %v1180, %v1386
      %v1429 = vadd.f32 %v1181, %v1399
      %v1430 = vadd.f32 %v1182, %v1412
      %v1431 = vadd.f32 %v1183, %v1425
      %v1432 = vxor.u32 %v1428, 2147483648
      %v1433 = vmul.f32 %v1432, 1.442695
      %v1434 = vpow.pop %v1433
      %v1435 = vadd.f32 %v1434, 1.0
      %v1436 = vrcp.pop %v1435
      %v1437 = vmul.f32 %v1435, %v1436
      %v1438 = vsub.f32 1.0, %v1437
      %v1439 = vmul.f32 %v1436, %v1438
      %v1440 = vadd.f32 %v1436, %v1439
      %vm1441 = vweird.f32 %v1435
      %vm1442 = vweird.f32 %v1436
      %vm1443 = vmor %vm1441, %vm1442
      %v1444 = vsel %vm1443, %v1436, %v1440
      %v1445 = vand.u32 2147483647, %v1435
      %vm1446 = vcmp.eq.f32.partialorder %v1445, 8.507059e+37
      %v1447 = vand.u32 %v1435, 2147483648
      %v1448 = vor.u32 1.1754944e-38, %v1447
      %v1449 = vsel %vm1446, %v1448, %v1444
      %v1450 = vmul.f32 1.0, %v1449
      %v1451 = vxor.u32 %v1429, 2147483648
      %v1452 = vmul.f32 %v1451, 1.442695
      %v1453 = vpow.pop %v1452
      %v1454 = vadd.f32 %v1453, 1.0
      %v1455 = vrcp.pop %v1454
      %v1456 = vmul.f32 %v1454, %v1455
      %v1457 = vsub.f32 1.0, %v1456
      %v1458 = vmul.f32 %v1455, %v1457
      %v1459 = vadd.f32 %v1455, %v1458
      %vm1460 = vweird.f32 %v1454
      %vm1461 = vweird.f32 %v1455
      %vm1462 = vmor %vm1460, %vm1461
      %v1463 = vsel %vm1462, %v1455, %v1459
      %v1464 = vand.u32 2147483647, %v1454
      %vm1465 = vcmp.eq.f32.partialorder %v1464, 8.507059e+37
      %v1466 = vand.u32 %v1454, 2147483648
      %v1467 = vor.u32 1.1754944e-38, %v1466
      %v1468 = vsel %vm1465, %v1467, %v1463
      %v1469 = vmul.f32 1.0, %v1468
      %v1470 = vtanh.pop %v1430
      %v1471 = vxor.u32 %v1431, 2147483648
      %v1472 = vmul.f32 %v1471, 1.442695
      %v1473 = vpow.pop %v1472
      %v1474 = vadd.f32 %v1473, 1.0
      %v1475 = vrcp.pop %v1474
      %v1476 = vmul.f32 %v1474, %v1475
      %v1477 = vsub.f32 1.0, %v1476
      %v1478 = vmul.f32 %v1475, %v1477
      %v1479 = vadd.f32 %v1475, %v1478
      %vm1480 = vweird.f32 %v1474
      %vm1481 = vweird.f32 %v1475
      %vm1482 = vmor %vm1480, %vm1481
      %v1483 = vsel %vm1482, %v1475, %v1479
      %v1484 = vand.u32 2147483647, %v1474
      %vm1485 = vcmp.eq.f32.partialorder %v1484, 8.507059e+37
      %v1486 = vand.u32 %v1474, 2147483648
      %v1487 = vor.u32 1.1754944e-38, %v1486
      %v1488 = vsel %vm1485, %v1487, %v1483
      %v1489 = vmul.f32 1.0, %v1488
      %v1490 = vmul.f32 %v1469, %v1170
      %v1491 = vmul.f32 %v1450, %v1470
      %v1492 = vadd.f32 %v1490, %v1491
      %v1493 = vtanh.pop %v1492
      %v1494 = vmul.f32 %v1489, %v1493
      %v1495 = vpack.c.bf16 %v1494, %v1494
      %s1496 = scalar_lea.vmem %s84, %s1174
      %v1497 = vld [vmem:[%s1496] sm:$0xff]
      %1498 = vset.pattern.permute.xlu0 0
      %1499 = vperm.xlu0 %1498, %v1497
      %v1500 = vpop.permute.xlu0 %1499
      %vm1501 = vcmp.ne.s32.totalorder %v1500, 0
      %vm1502 = vmpackc.low %vm1501, %vm1501
      %v1503 = vsel %vm1502, %v1495, %v1169
      %v1504 = vsel %vm1501, %v1492, %v1170
      %v1505 = vsel %vm1501, %v1494, 0.0
      %s1506 = scalar_lea.vmem [#allocation3], %s1174
      %1507 = vst [vmem:[%s1506] sm:$0xff] %v1505
      %s1508 = sadd.s32 %s506, 24
      %s1509 = sshra.s32 %s1508, 3
      %s1510 = sand.u32 %s1508, 7
      %s1511 = smul.u32 %s1509, 4
      %s1512 = smul.addr %s1511, 8
      %s1513 = scalar_lea.vmem [#allocation2], %s1512
      %v1514 = vld [vmem:[%s1513] sm:$0xff]
      %v1515 = vld [vmem:[%s1513 + $0x8] sm:$0xff]
      %v1516 = vld [vmem:[%s1513 + $0x10] sm:$0xff]
      %v1517 = vld [vmem:[%s1513 + $0x18] sm:$0xff]
      %v1518 = vld [vmem:[#allocation6] sm:$0xff]
      %v1519 = vld [vmem:[#allocation6 + $0x8] sm:$0xff]
      %v1520 = vld [vmem:[#allocation6 + $0x10] sm:$0xff]
      %v1521 = vld [vmem:[#allocation6 + $0x18] sm:$0xff]
      %v1522 = vld [vmem:[#allocation6 + $0x20] sm:$0xff]
      %v1523 = vld [vmem:[#allocation6 + $0x28] sm:$0xff]
      %v1524 = vld [vmem:[#allocation6 + $0x30] sm:$0xff]
      %v1525 = vld [vmem:[#allocation6 + $0x38] sm:$0xff]
      %v1526 = vld [vmem:[#allocation6 + $0x40] sm:$0xff]
      %v1527 = vld [vmem:[#allocation6 + $0x48] sm:$0xff]
      %v1528 = vld [vmem:[#allocation6 + $0x50] sm:$0xff]
      %v1529 = vld [vmem:[#allocation6 + $0x58] sm:$0xff]
      %v1530 = vld [vmem:[#allocation6 + $0x60] sm:$0xff]
      %v1531 = vld [vmem:[#allocation6 + $0x68] sm:$0xff]
      %v1532 = vld [vmem:[#allocation6 + $0x70] sm:$0xff]
      %v1533 = vld [vmem:[#allocation6 + $0x78] sm:$0xff]
      %v1534 = vld [vmem:[#allocation6 + $0x80] sm:$0xff]
      %v1535 = vld [vmem:[#allocation6 + $0x88] sm:$0xff]
      %v1536 = vld [vmem:[#allocation6 + $0x90] sm:$0xff]
      %v1537 = vld [vmem:[#allocation6 + $0x98] sm:$0xff]
      %v1538 = vld [vmem:[#allocation6 + $0xa0] sm:$0xff]
      %v1539 = vld [vmem:[#allocation6 + $0xa8] sm:$0xff]
      %v1540 = vld [vmem:[#allocation6 + $0xb0] sm:$0xff]
      %v1541 = vld [vmem:[#allocation6 + $0xb8] sm:$0xff]
      %v1542 = vld [vmem:[#allocation6 + $0xc0] sm:$0xff]
      %v1543 = vld [vmem:[#allocation6 + $0xc8] sm:$0xff]
      %v1544 = vld [vmem:[#allocation6 + $0xd0] sm:$0xff]
      %v1545 = vld [vmem:[#allocation6 + $0xd8] sm:$0xff]
      %v1546 = vld [vmem:[#allocation6 + $0xe0] sm:$0xff]
      %v1547 = vld [vmem:[#allocation6 + $0xe8] sm:$0xff]
      %v1548 = vld [vmem:[#allocation6 + $0xf0] sm:$0xff]
      %v1549 = vld [vmem:[#allocation6 + $0xf8] sm:$0xff]
      %v1582 = vunpack.c.l.b16 %v1518
      %v1583 = vunpack.c.h.b16 %v1518
      %v1584 = vunpack.c.l.b16 %v1519
      %v1585 = vunpack.c.h.b16 %v1519
      %v1586 = vunpack.c.l.b16 %v1520
      %v1587 = vunpack.c.h.b16 %v1520
      %v1588 = vunpack.c.l.b16 %v1521
      %v1589 = vunpack.c.h.b16 %v1521
      %v1590 = vunpack.c.l.b16 %v1522
      %v1591 = vunpack.c.h.b16 %v1522
      %v1592 = vunpack.c.l.b16 %v1523
      %v1593 = vunpack.c.h.b16 %v1523
      %v1594 = vunpack.c.l.b16 %v1524
      %v1595 = vunpack.c.h.b16 %v1524
      %v1596 = vunpack.c.l.b16 %v1525
      %v1597 = vunpack.c.h.b16 %v1525
      %v1598 = vunpack.c.l.b16 %v1526
      %v1599 = vunpack.c.h.b16 %v1526
      %v1600 = vunpack.c.l.b16 %v1527
      %v1601 = vunpack.c.h.b16 %v1527
      %v1602 = vunpack.c.l.b16 %v1528
      %v1603 = vunpack.c.h.b16 %v1528
      %v1604 = vunpack.c.l.b16 %v1529
      %v1605 = vunpack.c.h.b16 %v1529
      %v1606 = vunpack.c.l.b16 %v1530
      %v1607 = vunpack.c.h.b16 %v1530
      %v1608 = vunpack.c.l.b16 %v1531
      %v1609 = vunpack.c.h.b16 %v1531
      %v1610 = vunpack.c.l.b16 %v1532
      %v1611 = vunpack.c.h.b16 %v1532
      %v1612 = vunpack.c.l.b16 %v1533
      %v1613 = vunpack.c.h.b16 %v1533
      %v1614 = vunpack.c.l.b16 %v1534
      %v1615 = vunpack.c.h.b16 %v1534
      %v1616 = vunpack.c.l.b16 %v1535
      %v1617 = vunpack.c.h.b16 %v1535
      %v1618 = vunpack.c.l.b16 %v1536
      %v1619 = vunpack.c.h.b16 %v1536
      %v1620 = vunpack.c.l.b16 %v1537
      %v1621 = vunpack.c.h.b16 %v1537
      %v1622 = vunpack.c.l.b16 %v1538
      %v1623 = vunpack.c.h.b16 %v1538
      %v1624 = vunpack.c.l.b16 %v1539
      %v1625 = vunpack.c.h.b16 %v1539
      %v1626 = vunpack.c.l.b16 %v1540
      %v1627 = vunpack.c.h.b16 %v1540
      %v1628 = vunpack.c.l.b16 %v1541
      %v1629 = vunpack.c.h.b16 %v1541
      %v1630 = vunpack.c.l.b16 %v1542
      %v1631 = vunpack.c.h.b16 %v1542
      %v1632 = vunpack.c.l.b16 %v1543
      %v1633 = vunpack.c.h.b16 %v1543
      %v1634 = vunpack.c.l.b16 %v1544
      %v1635 = vunpack.c.h.b16 %v1544
      %v1636 = vunpack.c.l.b16 %v1545
      %v1637 = vunpack.c.h.b16 %v1545
      %v1638 = vunpack.c.l.b16 %v1546
      %v1639 = vunpack.c.h.b16 %v1546
      %v1640 = vunpack.c.l.b16 %v1547
      %v1641 = vunpack.c.h.b16 %v1547
      %v1642 = vunpack.c.l.b16 %v1548
      %v1643 = vunpack.c.h.b16 %v1548
      %v1644 = vunpack.c.l.b16 %v1549
      %v1645 = vunpack.c.h.b16 %v1549
      %v1646 = vpack.c.b16 %v1586, %v1582
      %v1647 = vpack.c.b16 %v1587, %v1583
      %v1648 = vpack.c.b16 %v1588, %v1584
      %v1649 = vpack.c.b16 %v1589, %v1585
      %v1650 = vpack.c.b16 %v1594, %v1590
      %v1651 = vpack.c.b16 %v1595, %v1591
      %v1652 = vpack.c.b16 %v1596, %v1592
      %v1653 = vpack.c.b16 %v1597, %v1593
      %v1654 = vpack.c.b16 %v1602, %v1598
      %v1655 = vpack.c.b16 %v1603, %v1599
      %v1656 = vpack.c.b16 %v1604, %v1600
      %v1657 = vpack.c.b16 %v1605, %v1601
      %v1658 = vpack.c.b16 %v1610, %v1606
      %v1659 = vpack.c.b16 %v1611, %v1607
      %v1660 = vpack.c.b16 %v1612, %v1608
      %v1661 = vpack.c.b16 %v1613, %v1609
      %v1662 = vpack.c.b16 %v1618, %v1614
      %v1663 = vpack.c.b16 %v1619, %v1615
      %v1664 = vpack.c.b16 %v1620, %v1616
      %v1665 = vpack.c.b16 %v1621, %v1617
      %v1666 = vpack.c.b16 %v1626, %v1622
      %v1667 = vpack.c.b16 %v1627, %v1623
      %v1668 = vpack.c.b16 %v1628, %v1624
      %v1669 = vpack.c.b16 %v1629, %v1625
      %v1670 = vpack.c.b16 %v1634, %v1630
      %v1671 = vpack.c.b16 %v1635, %v1631
      %v1672 = vpack.c.b16 %v1636, %v1632
      %v1673 = vpack.c.b16 %v1637, %v1633
      %v1674 = vpack.c.b16 %v1642, %v1638
      %v1675 = vpack.c.b16 %v1643, %v1639
      %v1676 = vpack.c.b16 %v1644, %v1640
      %v1677 = vpack.c.b16 %v1645, %v1641
      %1710 = vmatpush.bf16.msra.mxu0 %v1674
      %1711 = vmatpush.bf16.msra.mxu0 %v1670
      %1712 = vmatpush.bf16.msra.mxu0 %v1666
      %1713 = vmatpush.bf16.msra.mxu0 %v1662
      %1714 = vmatpush.bf16.msra.mxu0 %v1658
      %1715 = vmatpush.bf16.msra.mxu0 %v1654
      %1716 = vmatpush.bf16.msra.mxu0 %v1650
      %1717 = vmatpush.bf16.msra.mxu0 %v1646
      %1718 = vmatmul.bf16.gmra.mxu0 %v1503
      %v1719 = vpop.f32.mrf.mxu0
      %v1720 = vadd.f32 0.0, %v1719
      %v1721 = vpop.f32.mrf.mxu0
      %1722 = vdwg.mxu0
      %1723 = vmatpush.bf16.msra.mxu0 %v1675
      %1724 = vmatpush.bf16.msra.mxu0 %v1671
      %1725 = vmatpush.bf16.msra.mxu0 %v1667
      %1726 = vmatpush.bf16.msra.mxu0 %v1663
      %1727 = vmatpush.bf16.msra.mxu0 %v1659
      %1728 = vmatpush.bf16.msra.mxu0 %v1655
      %1729 = vmatpush.bf16.msra.mxu0 %v1651
      %1730 = vmatpush.bf16.msra.mxu0 %v1647
      %1731 = vmatmul.bf16.gmra.mxu0 %v1503
      %v1732 = vpop.f32.mrf.mxu0
      %v1733 = vadd.f32 0.0, %v1732
      %v1734 = vpop.f32.mrf.mxu0
      %1735 = vdwg.mxu0
      %1736 = vmatpush.bf16.msra.mxu0 %v1676
      %1737 = vmatpush.bf16.msra.mxu0 %v1672
      %1738 = vmatpush.bf16.msra.mxu0 %v1668
      %1739 = vmatpush.bf16.msra.mxu0 %v1664
      %1740 = vmatpush.bf16.msra.mxu0 %v1660
      %1741 = vmatpush.bf16.msra.mxu0 %v1656
      %1742 = vmatpush.bf16.msra.mxu0 %v1652
      %1743 = vmatpush.bf16.msra.mxu0 %v1648
      %1744 = vmatmul.bf16.gmra.mxu0 %v1503
      %v1745 = vpop.f32.mrf.mxu0
      %v1746 = vadd.f32 0.0, %v1745
      %v1747 = vpop.f32.mrf.mxu0
      %1748 = vdwg.mxu0
      %1749 = vmatpush.bf16.msra.mxu0 %v1677
      %1750 = vmatpush.bf16.msra.mxu0 %v1673
      %1751 = vmatpush.bf16.msra.mxu0 %v1669
      %1752 = vmatpush.bf16.msra.mxu0 %v1665
      %1753 = vmatpush.bf16.msra.mxu0 %v1661
      %1754 = vmatpush.bf16.msra.mxu0 %v1657
      %1755 = vmatpush.bf16.msra.mxu0 %v1653
      %1756 = vmatpush.bf16.msra.mxu0 %v1649
      %1757 = vmatmul.bf16.gmra.mxu0 %v1503
      %v1758 = vpop.f32.mrf.mxu0
      %v1759 = vadd.f32 0.0, %v1758
      %v1760 = vpop.f32.mrf.mxu0
      %1761 = vdwg.mxu0
      %v1762 = vadd.f32 %v1514, %v1720
      %v1763 = vadd.f32 %v1515, %v1733
      %v1764 = vadd.f32 %v1516, %v1746
      %v1765 = vadd.f32 %v1517, %v1759
      %v1766 = vxor.u32 %v1762, 2147483648
      %v1767 = vmul.f32 %v1766, 1.442695
      %v1768 = vpow.pop %v1767
      %v1769 = vadd.f32 %v1768, 1.0
      %v1770 = vrcp.pop %v1769
      %v1771 = vmul.f32 %v1769, %v1770
      %v1772 = vsub.f32 1.0, %v1771
      %v1773 = vmul.f32 %v1770, %v1772
      %v1774 = vadd.f32 %v1770, %v1773
      %vm1775 = vweird.f32 %v1769
      %vm1776 = vweird.f32 %v1770
      %vm1777 = vmor %vm1775, %vm1776
      %v1778 = vsel %vm1777, %v1770, %v1774
      %v1779 = vand.u32 2147483647, %v1769
      %vm1780 = vcmp.eq.f32.partialorder %v1779, 8.507059e+37
      %v1781 = vand.u32 %v1769, 2147483648
      %v1782 = vor.u32 1.1754944e-38, %v1781
      %v1783 = vsel %vm1780, %v1782, %v1778
      %v1784 = vmul.f32 1.0, %v1783
      %v1785 = vxor.u32 %v1763, 2147483648
      %v1786 = vmul.f32 %v1785, 1.442695
      %v1787 = vpow.pop %v1786
      %v1788 = vadd.f32 %v1787, 1.0
      %v1789 = vrcp.pop %v1788
      %v1790 = vmul.f32 %v1788, %v1789
      %v1791 = vsub.f32 1.0, %v1790
      %v1792 = vmul.f32 %v1789, %v1791
      %v1793 = vadd.f32 %v1789, %v1792
      %vm1794 = vweird.f32 %v1788
      %vm1795 = vweird.f32 %v1789
      %vm1796 = vmor %vm1794, %vm1795
      %v1797 = vsel %vm1796, %v1789, %v1793
      %v1798 = vand.u32 2147483647, %v1788
      %vm1799 = vcmp.eq.f32.partialorder %v1798, 8.507059e+37
      %v1800 = vand.u32 %v1788, 2147483648
      %v1801 = vor.u32 1.1754944e-38, %v1800
      %v1802 = vsel %vm1799, %v1801, %v1797
      %v1803 = vmul.f32 1.0, %v1802
      %v1804 = vtanh.pop %v1764
      %v1805 = vxor.u32 %v1765, 2147483648
      %v1806 = vmul.f32 %v1805, 1.442695
      %v1807 = vpow.pop %v1806
      %v1808 = vadd.f32 %v1807, 1.0
      %v1809 = vrcp.pop %v1808
      %v1810 = vmul.f32 %v1808, %v1809
      %v1811 = vsub.f32 1.0, %v1810
      %v1812 = vmul.f32 %v1809, %v1811
      %v1813 = vadd.f32 %v1809, %v1812
      %vm1814 = vweird.f32 %v1808
      %vm1815 = vweird.f32 %v1809
      %vm1816 = vmor %vm1814, %vm1815
      %v1817 = vsel %vm1816, %v1809, %v1813
      %v1818 = vand.u32 2147483647, %v1808
      %vm1819 = vcmp.eq.f32.partialorder %v1818, 8.507059e+37
      %v1820 = vand.u32 %v1808, 2147483648
      %v1821 = vor.u32 1.1754944e-38, %v1820
      %v1822 = vsel %vm1819, %v1821, %v1817
      %v1823 = vmul.f32 1.0, %v1822
      %v1824 = vmul.f32 %v1803, %v1504
      %v1825 = vmul.f32 %v1784, %v1804
      %v1826 = vadd.f32 %v1824, %v1825
      %v1827 = vtanh.pop %v1826
      %v1828 = vmul.f32 %v1823, %v1827
      %v1829 = vpack.c.bf16 %v1828, %v1828
      %s1830 = scalar_lea.vmem %s84, %s1508
      %v1831 = vld [vmem:[%s1830] sm:$0xff]
      %1832 = vset.pattern.permute.xlu0 0
      %1833 = vperm.xlu0 %1832, %v1831
      %v1834 = vpop.permute.xlu0 %1833
      %vm1835 = vcmp.ne.s32.totalorder %v1834, 0
      %vm1836 = vmpackc.low %vm1835, %vm1835
      %v1837 = vsel %vm1836, %v1829, %v1503
      %v1838 = vsel %vm1835, %v1826, %v1504
      %v1839 = vsel %vm1835, %v1828, 0.0
      %s1840 = scalar_lea.vmem [#allocation3], %s1508
      %1841 = vst [vmem:[%s1840] sm:$0xff] %v1839
      %s1842 = sadd.s32 %s506, 32
      %s1843 = sshra.s32 %s1842, 3
      %s1844 = sand.u32 %s1842, 7
      %s1845 = smul.u32 %s1843, 4
      %s1846 = smul.addr %s1845, 8
      %s1847 = scalar_lea.vmem [#allocation2], %s1846
      %v1848 = vld [vmem:[%s1847] sm:$0xff]
      %v1849 = vld [vmem:[%s1847 + $0x8] sm:$0xff]
      %v1850 = vld [vmem:[%s1847 + $0x10] sm:$0xff]
      %v1851 = vld [vmem:[%s1847 + $0x18] sm:$0xff]
      %v1852 = vld [vmem:[#allocation6] sm:$0xff]
      %v1853 = vld [vmem:[#allocation6 + $0x8] sm:$0xff]
      %v1854 = vld [vmem:[#allocation6 + $0x10] sm:$0xff]
      %v1855 = vld [vmem:[#allocation6 + $0x18] sm:$0xff]
      %v1856 = vld [vmem:[#allocation6 + $0x20] sm:$0xff]
      %v1857 = vld [vmem:[#allocation6 + $0x28] sm:$0xff]
      %v1858 = vld [vmem:[#allocation6 + $0x30] sm:$0xff]
      %v1859 = vld [vmem:[#allocation6 + $0x38] sm:$0xff]
      %v1860 = vld [vmem:[#allocation6 + $0x40] sm:$0xff]
      %v1861 = vld [vmem:[#allocation6 + $0x48] sm:$0xff]
      %v1862 = vld [vmem:[#allocation6 + $0x50] sm:$0xff]
      %v1863 = vld [vmem:[#allocation6 + $0x58] sm:$0xff]
      %v1864 = vld [vmem:[#allocation6 + $0x60] sm:$0xff]
      %v1865 = vld [vmem:[#allocation6 + $0x68] sm:$0xff]
      %v1866 = vld [vmem:[#allocation6 + $0x70] sm:$0xff]
      %v1867 = vld [vmem:[#allocation6 + $0x78] sm:$0xff]
      %v1868 = vld [vmem:[#allocation6 + $0x80] sm:$0xff]
      %v1869 = vld [vmem:[#allocation6 + $0x88] sm:$0xff]
      %v1870 = vld [vmem:[#allocation6 + $0x90] sm:$0xff]
      %v1871 = vld [vmem:[#allocation6 + $0x98] sm:$0xff]
      %v1872 = vld [vmem:[#allocation6 + $0xa0] sm:$0xff]
      %v1873 = vld [vmem:[#allocation6 + $0xa8] sm:$0xff]
      %v1874 = vld [vmem:[#allocation6 + $0xb0] sm:$0xff]
      %v1875 = vld [vmem:[#allocation6 + $0xb8] sm:$0xff]
      %v1876 = vld [vmem:[#allocation6 + $0xc0] sm:$0xff]
      %v1877 = vld [vmem:[#allocation6 + $0xc8] sm:$0xff]
      %v1878 = vld [vmem:[#allocation6 + $0xd0] sm:$0xff]
      %v1879 = vld [vmem:[#allocation6 + $0xd8] sm:$0xff]
      %v1880 = vld [vmem:[#allocation6 + $0xe0] sm:$0xff]
      %v1881 = vld [vmem:[#allocation6 + $0xe8] sm:$0xff]
      %v1882 = vld [vmem:[#allocation6 + $0xf0] sm:$0xff]
      %v1883 = vld [vmem:[#allocation6 + $0xf8] sm:$0xff]
      %v1916 = vunpack.c.l.b16 %v1852
      %v1917 = vunpack.c.h.b16 %v1852
      %v1918 = vunpack.c.l.b16 %v1853
      %v1919 = vunpack.c.h.b16 %v1853
      %v1920 = vunpack.c.l.b16 %v1854
      %v1921 = vunpack.c.h.b16 %v1854
      %v1922 = vunpack.c.l.b16 %v1855
      %v1923 = vunpack.c.h.b16 %v1855
      %v1924 = vunpack.c.l.b16 %v1856
      %v1925 = vunpack.c.h.b16 %v1856
      %v1926 = vunpack.c.l.b16 %v1857
      %v1927 = vunpack.c.h.b16 %v1857
      %v1928 = vunpack.c.l.b16 %v1858
      %v1929 = vunpack.c.h.b16 %v1858
      %v1930 = vunpack.c.l.b16 %v1859
      %v1931 = vunpack.c.h.b16 %v1859
      %v1932 = vunpack.c.l.b16 %v1860
      %v1933 = vunpack.c.h.b16 %v1860
      %v1934 = vunpack.c.l.b16 %v1861
      %v1935 = vunpack.c.h.b16 %v1861
      %v1936 = vunpack.c.l.b16 %v1862
      %v1937 = vunpack.c.h.b16 %v1862
      %v1938 = vunpack.c.l.b16 %v1863
      %v1939 = vunpack.c.h.b16 %v1863
      %v1940 = vunpack.c.l.b16 %v1864
      %v1941 = vunpack.c.h.b16 %v1864
      %v1942 = vunpack.c.l.b16 %v1865
      %v1943 = vunpack.c.h.b16 %v1865
      %v1944 = vunpack.c.l.b16 %v1866
      %v1945 = vunpack.c.h.b16 %v1866
      %v1946 = vunpack.c.l.b16 %v1867
      %v1947 = vunpack.c.h.b16 %v1867
      %v1948 = vunpack.c.l.b16 %v1868
      %v1949 = vunpack.c.h.b16 %v1868
      %v1950 = vunpack.c.l.b16 %v1869
      %v1951 = vunpack.c.h.b16 %v1869
      %v1952 = vunpack.c.l.b16 %v1870
      %v1953 = vunpack.c.h.b16 %v1870
      %v1954 = vunpack.c.l.b16 %v1871
      %v1955 = vunpack.c.h.b16 %v1871
      %v1956 = vunpack.c.l.b16 %v1872
      %v1957 = vunpack.c.h.b16 %v1872
      %v1958 = vunpack.c.l.b16 %v1873
      %v1959 = vunpack.c.h.b16 %v1873
      %v1960 = vunpack.c.l.b16 %v1874
      %v1961 = vunpack.c.h.b16 %v1874
      %v1962 = vunpack.c.l.b16 %v1875
      %v1963 = vunpack.c.h.b16 %v1875
      %v1964 = vunpack.c.l.b16 %v1876
      %v1965 = vunpack.c.h.b16 %v1876
      %v1966 = vunpack.c.l.b16 %v1877
      %v1967 = vunpack.c.h.b16 %v1877
      %v1968 = vunpack.c.l.b16 %v1878
      %v1969 = vunpack.c.h.b16 %v1878
      %v1970 = vunpack.c.l.b16 %v1879
      %v1971 = vunpack.c.h.b16 %v1879
      %v1972 = vunpack.c.l.b16 %v1880
      %v1973 = vunpack.c.h.b16 %v1880
      %v1974 = vunpack.c.l.b16 %v1881
      %v1975 = vunpack.c.h.b16 %v1881
      %v1976 = vunpack.c.l.b16 %v1882
      %v1977 = vunpack.c.h.b16 %v1882
      %v1978 = vunpack.c.l.b16 %v1883
      %v1979 = vunpack.c.h.b16 %v1883
      %v1980 = vpack.c.b16 %v1920, %v1916
      %v1981 = vpack.c.b16 %v1921, %v1917
      %v1982 = vpack.c.b16 %v1922, %v1918
      %v1983 = vpack.c.b16 %v1923, %v1919
      %v1984 = vpack.c.b16 %v1928, %v1924
      %v1985 = vpack.c.b16 %v1929, %v1925
      %v1986 = vpack.c.b16 %v1930, %v1926
      %v1987 = vpack.c.b16 %v1931, %v1927
      %v1988 = vpack.c.b16 %v1936, %v1932
      %v1989 = vpack.c.b16 %v1937, %v1933
      %v1990 = vpack.c.b16 %v1938, %v1934
      %v1991 = vpack.c.b16 %v1939, %v1935
      %v1992 = vpack.c.b16 %v1944, %v1940
      %v1993 = vpack.c.b16 %v1945, %v1941
      %v1994 = vpack.c.b16 %v1946, %v1942
      %v1995 = vpack.c.b16 %v1947, %v1943
      %v1996 = vpack.c.b16 %v1952, %v1948
      %v1997 = vpack.c.b16 %v1953, %v1949
      %v1998 = vpack.c.b16 %v1954, %v1950
      %v1999 = vpack.c.b16 %v1955, %v1951
      %v2000 = vpack.c.b16 %v1960, %v1956
      %v2001 = vpack.c.b16 %v1961, %v1957
      %v2002 = vpack.c.b16 %v1962, %v1958
      %v2003 = vpack.c.b16 %v1963, %v1959
      %v2004 = vpack.c.b16 %v1968, %v1964
      %v2005 = vpack.c.b16 %v1969, %v1965
      %v2006 = vpack.c.b16 %v1970, %v1966
      %v2007 = vpack.c.b16 %v1971, %v1967
      %v2008 = vpack.c.b16 %v1976, %v1972
      %v2009 = vpack.c.b16 %v1977, %v1973
      %v2010 = vpack.c.b16 %v1978, %v1974
      %v2011 = vpack.c.b16 %v1979, %v1975
      %2044 = vmatpush.bf16.msra.mxu0 %v2008
      %2045 = vmatpush.bf16.msra.mxu0 %v2004
      %2046 = vmatpush.bf16.msra.mxu0 %v2000
      %2047 = vmatpush.bf16.msra.mxu0 %v1996
      %2048 = vmatpush.bf16.msra.mxu0 %v1992
      %2049 = vmatpush.bf16.msra.mxu0 %v1988
      %2050 = vmatpush.bf16.msra.mxu0 %v1984
      %2051 = vmatpush.bf16.msra.mxu0 %v1980
      %2052 = vmatmul.bf16.gmra.mxu0 %v1837
      %v2053 = vpop.f32.mrf.mxu0
      %v2054 = vadd.f32 0.0, %v2053
      %v2055 = vpop.f32.mrf.mxu0
      %2056 = vdwg.mxu0
      %2057 = vmatpush.bf16.msra.mxu0 %v2009
      %2058 = vmatpush.bf16.msra.mxu0 %v2005
      %2059 = vmatpush.bf16.msra.mxu0 %v2001
      %2060 = vmatpush.bf16.msra.mxu0 %v1997
      %2061 = vmatpush.bf16.msra.mxu0 %v1993
      %2062 = vmatpush.bf16.msra.mxu0 %v1989
      %2063 = vmatpush.bf16.msra.mxu0 %v1985
      %2064 = vmatpush.bf16.msra.mxu0 %v1981
      %2065 = vmatmul.bf16.gmra.mxu0 %v1837
      %v2066 = vpop.f32.mrf.mxu0
      %v2067 = vadd.f32 0.0, %v2066
      %v2068 = vpop.f32.mrf.mxu0
      %2069 = vdwg.mxu0
      %2070 = vmatpush.bf16.msra.mxu0 %v2010
      %2071 = vmatpush.bf16.msra.mxu0 %v2006
      %2072 = vmatpush.bf16.msra.mxu0 %v2002
      %2073 = vmatpush.bf16.msra.mxu0 %v1998
      %2074 = vmatpush.bf16.msra.mxu0 %v1994
      %2075 = vmatpush.bf16.msra.mxu0 %v1990
      %2076 = vmatpush.bf16.msra.mxu0 %v1986
      %2077 = vmatpush.bf16.msra.mxu0 %v1982
      %2078 = vmatmul.bf16.gmra.mxu0 %v1837
      %v2079 = vpop.f32.mrf.mxu0
      %v2080 = vadd.f32 0.0, %v2079
      %v2081 = vpop.f32.mrf.mxu0
      %2082 = vdwg.mxu0
      %2083 = vmatpush.bf16.msra.mxu0 %v2011
      %2084 = vmatpush.bf16.msra.mxu0 %v2007
      %2085 = vmatpush.bf16.msra.mxu0 %v2003
      %2086 = vmatpush.bf16.msra.mxu0 %v1999
      %2087 = vmatpush.bf16.msra.mxu0 %v1995
      %2088 = vmatpush.bf16.msra.mxu0 %v1991
      %2089 = vmatpush.bf16.msra.mxu0 %v1987
      %2090 = vmatpush.bf16.msra.mxu0 %v1983
      %2091 = vmatmul.bf16.gmra.mxu0 %v1837
      %v2092 = vpop.f32.mrf.mxu0
      %v2093 = vadd.f32 0.0, %v2092
      %v2094 = vpop.f32.mrf.mxu0
      %2095 = vdwg.mxu0
      %v2096 = vadd.f32 %v1848, %v2054
      %v2097 = vadd.f32 %v1849, %v2067
      %v2098 = vadd.f32 %v1850, %v2080
      %v2099 = vadd.f32 %v1851, %v2093
      %v2100 = vxor.u32 %v2096, 2147483648
      %v2101 = vmul.f32 %v2100, 1.442695
      %v2102 = vpow.pop %v2101
      %v2103 = vadd.f32 %v2102, 1.0
      %v2104 = vrcp.pop %v2103
      %v2105 = vmul.f32 %v2103, %v2104
      %v2106 = vsub.f32 1.0, %v2105
      %v2107 = vmul.f32 %v2104, %v2106
      %v2108 = vadd.f32 %v2104, %v2107
      %vm2109 = vweird.f32 %v2103
      %vm2110 = vweird.f32 %v2104
      %vm2111 = vmor %vm2109, %vm2110
      %v2112 = vsel %vm2111, %v2104, %v2108
      %v2113 = vand.u32 2147483647, %v2103
      %vm2114 = vcmp.eq.f32.partialorder %v2113, 8.507059e+37
      %v2115 = vand.u32 %v2103, 2147483648
      %v2116 = vor.u32 1.1754944e-38, %v2115
      %v2117 = vsel %vm2114, %v2116, %v2112
      %v2118 = vmul.f32 1.0, %v2117
      %v2119 = vxor.u32 %v2097, 2147483648
      %v2120 = vmul.f32 %v2119, 1.442695
      %v2121 = vpow.pop %v2120
      %v2122 = vadd.f32 %v2121, 1.0
      %v2123 = vrcp.pop %v2122
      %v2124 = vmul.f32 %v2122, %v2123
      %v2125 = vsub.f32 1.0, %v2124
      %v2126 = vmul.f32 %v2123, %v2125
      %v2127 = vadd.f32 %v2123, %v2126
      %vm2128 = vweird.f32 %v2122
      %vm2129 = vweird.f32 %v2123
      %vm2130 = vmor %vm2128, %vm2129
      %v2131 = vsel %vm2130, %v2123, %v2127
      %v2132 = vand.u32 2147483647, %v2122
      %vm2133 = vcmp.eq.f32.partialorder %v2132, 8.507059e+37
      %v2134 = vand.u32 %v2122, 2147483648
      %v2135 = vor.u32 1.1754944e-38, %v2134
      %v2136 = vsel %vm2133, %v2135, %v2131
      %v2137 = vmul.f32 1.0, %v2136
      %v2138 = vtanh.pop %v2098
      %v2139 = vxor.u32 %v2099, 2147483648
      %v2140 = vmul.f32 %v2139, 1.442695
      %v2141 = vpow.pop %v2140
      %v2142 = vadd.f32 %v2141, 1.0
      %v2143 = vrcp.pop %v2142
      %v2144 = vmul.f32 %v2142, %v2143
      %v2145 = vsub.f32 1.0, %v2144
      %v2146 = vmul.f32 %v2143, %v2145
      %v2147 = vadd.f32 %v2143, %v2146
      %vm2148 = vweird.f32 %v2142
      %vm2149 = vweird.f32 %v2143
      %vm2150 = vmor %vm2148, %vm2149
      %v2151 = vsel %vm2150, %v2143, %v2147
      %v2152 = vand.u32 2147483647, %v2142
      %vm2153 = vcmp.eq.f32.partialorder %v2152, 8.507059e+37
      %v2154 = vand.u32 %v2142, 2147483648
      %v2155 = vor.u32 1.1754944e-38, %v2154
      %v2156 = vsel %vm2153, %v2155, %v2151
      %v2157 = vmul.f32 1.0, %v2156
      %v2158 = vmul.f32 %v2137, %v1838
      %v2159 = vmul.f32 %v2118, %v2138
      %v2160 = vadd.f32 %v2158, %v2159
      %v2161 = vtanh.pop %v2160
      %v2162 = vmul.f32 %v2157, %v2161
      %v2163 = vpack.c.bf16 %v2162, %v2162
      %s2164 = scalar_lea.vmem %s84, %s1842
      %v2165 = vld [vmem:[%s2164] sm:$0xff]
      %2166 = vset.pattern.permute.xlu0 0
      %2167 = vperm.xlu0 %2166, %v2165
      %v2168 = vpop.permute.xlu0 %2167
      %vm2169 = vcmp.ne.s32.totalorder %v2168, 0
      %vm2170 = vmpackc.low %vm2169, %vm2169
      %v2171 = vsel %vm2170, %v2163, %v1837
      %v2172 = vsel %vm2169, %v2160, %v1838
      %v2173 = vsel %vm2169, %v2162, 0.0
      %s2174 = scalar_lea.vmem [#allocation3], %s1842
      %2175 = vst [vmem:[%s2174] sm:$0xff] %v2173
      %s2176 = sadd.s32 %s506, 40
      %s2177 = sshra.s32 %s2176, 3
      %s2178 = sand.u32 %s2176, 7
      %s2179 = smul.u32 %s2177, 4
      %s2180 = smul.addr %s2179, 8
      %s2181 = scalar_lea.vmem [#allocation2], %s2180
      %v2182 = vld [vmem:[%s2181] sm:$0xff]
      %v2183 = vld [vmem:[%s2181 + $0x8] sm:$0xff]
      %v2184 = vld [vmem:[%s2181 + $0x10] sm:$0xff]
      %v2185 = vld [vmem:[%s2181 + $0x18] sm:$0xff]
      %v2186 = vld [vmem:[#allocation6] sm:$0xff]
      %v2187 = vld [vmem:[#allocation6 + $0x8] sm:$0xff]
      %v2188 = vld [vmem:[#allocation6 + $0x10] sm:$0xff]
      %v2189 = vld [vmem:[#allocation6 + $0x18] sm:$0xff]
      %v2190 = vld [vmem:[#allocation6 + $0x20] sm:$0xff]
      %v2191 = vld [vmem:[#allocation6 + $0x28] sm:$0xff]
      %v2192 = vld [vmem:[#allocation6 + $0x30] sm:$0xff]
      %v2193 = vld [vmem:[#allocation6 + $0x38] sm:$0xff]
      %v2194 = vld [vmem:[#allocation6 + $0x40] sm:$0xff]
      %v2195 = vld [vmem:[#allocation6 + $0x48] sm:$0xff]
      %v2196 = vld [vmem:[#allocation6 + $0x50] sm:$0xff]
      %v2197 = vld [vmem:[#allocation6 + $0x58] sm:$0xff]
      %v2198 = vld [vmem:[#allocation6 + $0x60] sm:$0xff]
      %v2199 = vld [vmem:[#allocation6 + $0x68] sm:$0xff]
      %v2200 = vld [vmem:[#allocation6 + $0x70] sm:$0xff]
      %v2201 = vld [vmem:[#allocation6 + $0x78] sm:$0xff]
      %v2202 = vld [vmem:[#allocation6 + $0x80] sm:$0xff]
      %v2203 = vld [vmem:[#allocation6 + $0x88] sm:$0xff]
      %v2204 = vld [vmem:[#allocation6 + $0x90] sm:$0xff]
      %v2205 = vld [vmem:[#allocation6 + $0x98] sm:$0xff]
      %v2206 = vld [vmem:[#allocation6 + $0xa0] sm:$0xff]
      %v2207 = vld [vmem:[#allocation6 + $0xa8] sm:$0xff]
      %v2208 = vld [vmem:[#allocation6 + $0xb0] sm:$0xff]
      %v2209 = vld [vmem:[#allocation6 + $0xb8] sm:$0xff]
      %v2210 = vld [vmem:[#allocation6 + $0xc0] sm:$0xff]
      %v2211 = vld [vmem:[#allocation6 + $0xc8] sm:$0xff]
      %v2212 = vld [vmem:[#allocation6 + $0xd0] sm:$0xff]
      %v2213 = vld [vmem:[#allocation6 + $0xd8] sm:$0xff]
      %v2214 = vld [vmem:[#allocation6 + $0xe0] sm:$0xff]
      %v2215 = vld [vmem:[#allocation6 + $0xe8] sm:$0xff]
      %v2216 = vld [vmem:[#allocation6 + $0xf0] sm:$0xff]
      %v2217 = vld [vmem:[#allocation6 + $0xf8] sm:$0xff]
      %v2250 = vunpack.c.l.b16 %v2186
      %v2251 = vunpack.c.h.b16 %v2186
      %v2252 = vunpack.c.l.b16 %v2187
      %v2253 = vunpack.c.h.b16 %v2187
      %v2254 = vunpack.c.l.b16 %v2188
      %v2255 = vunpack.c.h.b16 %v2188
      %v2256 = vunpack.c.l.b16 %v2189
      %v2257 = vunpack.c.h.b16 %v2189
      %v2258 = vunpack.c.l.b16 %v2190
      %v2259 = vunpack.c.h.b16 %v2190
      %v2260 = vunpack.c.l.b16 %v2191
      %v2261 = vunpack.c.h.b16 %v2191
      %v2262 = vunpack.c.l.b16 %v2192
      %v2263 = vunpack.c.h.b16 %v2192
      %v2264 = vunpack.c.l.b16 %v2193
      %v2265 = vunpack.c.h.b16 %v2193
      %v2266 = vunpack.c.l.b16 %v2194
      %v2267 = vunpack.c.h.b16 %v2194
      %v2268 = vunpack.c.l.b16 %v2195
      %v2269 = vunpack.c.h.b16 %v2195
      %v2270 = vunpack.c.l.b16 %v2196
      %v2271 = vunpack.c.h.b16 %v2196
      %v2272 = vunpack.c.l.b16 %v2197
      %v2273 = vunpack.c.h.b16 %v2197
      %v2274 = vunpack.c.l.b16 %v2198
      %v2275 = vunpack.c.h.b16 %v2198
      %v2276 = vunpack.c.l.b16 %v2199
      %v2277 = vunpack.c.h.b16 %v2199
      %v2278 = vunpack.c.l.b16 %v2200
      %v2279 = vunpack.c.h.b16 %v2200
      %v2280 = vunpack.c.l.b16 %v2201
      %v2281 = vunpack.c.h.b16 %v2201
      %v2282 = vunpack.c.l.b16 %v2202
      %v2283 = vunpack.c.h.b16 %v2202
      %v2284 = vunpack.c.l.b16 %v2203
      %v2285 = vunpack.c.h.b16 %v2203
      %v2286 = vunpack.c.l.b16 %v2204
      %v2287 = vunpack.c.h.b16 %v2204
      %v2288 = vunpack.c.l.b16 %v2205
      %v2289 = vunpack.c.h.b16 %v2205
      %v2290 = vunpack.c.l.b16 %v2206
      %v2291 = vunpack.c.h.b16 %v2206
      %v2292 = vunpack.c.l.b16 %v2207
      %v2293 = vunpack.c.h.b16 %v2207
      %v2294 = vunpack.c.l.b16 %v2208
      %v2295 = vunpack.c.h.b16 %v2208
      %v2296 = vunpack.c.l.b16 %v2209
      %v2297 = vunpack.c.h.b16 %v2209
      %v2298 = vunpack.c.l.b16 %v2210
      %v2299 = vunpack.c.h.b16 %v2210
      %v2300 = vunpack.c.l.b16 %v2211
      %v2301 = vunpack.c.h.b16 %v2211
      %v2302 = vunpack.c.l.b16 %v2212
      %v2303 = vunpack.c.h.b16 %v2212
      %v2304 = vunpack.c.l.b16 %v2213
      %v2305 = vunpack.c.h.b16 %v2213
      %v2306 = vunpack.c.l.b16 %v2214
      %v2307 = vunpack.c.h.b16 %v2214
      %v2308 = vunpack.c.l.b16 %v2215
      %v2309 = vunpack.c.h.b16 %v2215
      %v2310 = vunpack.c.l.b16 %v2216
      %v2311 = vunpack.c.h.b16 %v2216
      %v2312 = vunpack.c.l.b16 %v2217
      %v2313 = vunpack.c.h.b16 %v2217
      %v2314 = vpack.c.b16 %v2254, %v2250
      %v2315 = vpack.c.b16 %v2255, %v2251
      %v2316 = vpack.c.b16 %v2256, %v2252
      %v2317 = vpack.c.b16 %v2257, %v2253
      %v2318 = vpack.c.b16 %v2262, %v2258
      %v2319 = vpack.c.b16 %v2263, %v2259
      %v2320 = vpack.c.b16 %v2264, %v2260
      %v2321 = vpack.c.b16 %v2265, %v2261
      %v2322 = vpack.c.b16 %v2270, %v2266
      %v2323 = vpack.c.b16 %v2271, %v2267
      %v2324 = vpack.c.b16 %v2272, %v2268
      %v2325 = vpack.c.b16 %v2273, %v2269
      %v2326 = vpack.c.b16 %v2278, %v2274
      %v2327 = vpack.c.b16 %v2279, %v2275
      %v2328 = vpack.c.b16 %v2280, %v2276
      %v2329 = vpack.c.b16 %v2281, %v2277
      %v2330 = vpack.c.b16 %v2286, %v2282
      %v2331 = vpack.c.b16 %v2287, %v2283
      %v2332 = vpack.c.b16 %v2288, %v2284
      %v2333 = vpack.c.b16 %v2289, %v2285
      %v2334 = vpack.c.b16 %v2294, %v2290
      %v2335 = vpack.c.b16 %v2295, %v2291
      %v2336 = vpack.c.b16 %v2296, %v2292
      %v2337 = vpack.c.b16 %v2297, %v2293
      %v2338 = vpack.c.b16 %v2302, %v2298
      %v2339 = vpack.c.b16 %v2303, %v2299
      %v2340 = vpack.c.b16 %v2304, %v2300
      %v2341 = vpack.c.b16 %v2305, %v2301
      %v2342 = vpack.c.b16 %v2310, %v2306
      %v2343 = vpack.c.b16 %v2311, %v2307
      %v2344 = vpack.c.b16 %v2312, %v2308
      %v2345 = vpack.c.b16 %v2313, %v2309
      %2378 = vmatpush.bf16.msra.mxu0 %v2342
      %2379 = vmatpush.bf16.msra.mxu0 %v2338
      %2380 = vmatpush.bf16.msra.mxu0 %v2334
      %2381 = vmatpush.bf16.msra.mxu0 %v2330
      %2382 = vmatpush.bf16.msra.mxu0 %v2326
      %2383 = vmatpush.bf16.msra.mxu0 %v2322
      %2384 = vmatpush.bf16.msra.mxu0 %v2318
      %2385 = vmatpush.bf16.msra.mxu0 %v2314
      %2386 = vmatmul.bf16.gmra.mxu0 %v2171
      %v2387 = vpop.f32.mrf.mxu0
      %v2388 = vadd.f32 0.0, %v2387
      %v2389 = vpop.f32.mrf.mxu0
      %2390 = vdwg.mxu0
      %2391 = vmatpush.bf16.msra.mxu0 %v2343
      %2392 = vmatpush.bf16.msra.mxu0 %v2339
      %2393 = vmatpush.bf16.msra.mxu0 %v2335
      %2394 = vmatpush.bf16.msra.mxu0 %v2331
      %2395 = vmatpush.bf16.msra.mxu0 %v2327
      %2396 = vmatpush.bf16.msra.mxu0 %v2323
      %2397 = vmatpush.bf16.msra.mxu0 %v2319
      %2398 = vmatpush.bf16.msra.mxu0 %v2315
      %2399 = vmatmul.bf16.gmra.mxu0 %v2171
      %v2400 = vpop.f32.mrf.mxu0
      %v2401 = vadd.f32 0.0, %v2400
      %v2402 = vpop.f32.mrf.mxu0
      %2403 = vdwg.mxu0
      %2404 = vmatpush.bf16.msra.mxu0 %v2344
      %2405 = vmatpush.bf16.msra.mxu0 %v2340
      %2406 = vmatpush.bf16.msra.mxu0 %v2336
      %2407 = vmatpush.bf16.msra.mxu0 %v2332
      %2408 = vmatpush.bf16.msra.mxu0 %v2328
      %2409 = vmatpush.bf16.msra.mxu0 %v2324
      %2410 = vmatpush.bf16.msra.mxu0 %v2320
      %2411 = vmatpush.bf16.msra.mxu0 %v2316
      %2412 = vmatmul.bf16.gmra.mxu0 %v2171
      %v2413 = vpop.f32.mrf.mxu0
      %v2414 = vadd.f32 0.0, %v2413
      %v2415 = vpop.f32.mrf.mxu0
      %2416 = vdwg.mxu0
      %2417 = vmatpush.bf16.msra.mxu0 %v2345
      %2418 = vmatpush.bf16.msra.mxu0 %v2341
      %2419 = vmatpush.bf16.msra.mxu0 %v2337
      %2420 = vmatpush.bf16.msra.mxu0 %v2333
      %2421 = vmatpush.bf16.msra.mxu0 %v2329
      %2422 = vmatpush.bf16.msra.mxu0 %v2325
      %2423 = vmatpush.bf16.msra.mxu0 %v2321
      %2424 = vmatpush.bf16.msra.mxu0 %v2317
      %2425 = vmatmul.bf16.gmra.mxu0 %v2171
      %v2426 = vpop.f32.mrf.mxu0
      %v2427 = vadd.f32 0.0, %v2426
      %v2428 = vpop.f32.mrf.mxu0
      %2429 = vdwg.mxu0
      %v2430 = vadd.f32 %v2182, %v2388
      %v2431 = vadd.f32 %v2183, %v2401
      %v2432 = vadd.f32 %v2184, %v2414
      %v2433 = vadd.f32 %v2185, %v2427
      %v2434 = vxor.u32 %v2430, 2147483648
      %v2435 = vmul.f32 %v2434, 1.442695
      %v2436 = vpow.pop %v2435
      %v2437 = vadd.f32 %v2436, 1.0
      %v2438 = vrcp.pop %v2437
      %v2439 = vmul.f32 %v2437, %v2438
      %v2440 = vsub.f32 1.0, %v2439
      %v2441 = vmul.f32 %v2438, %v2440
      %v2442 = vadd.f32 %v2438, %v2441
      %vm2443 = vweird.f32 %v2437
      %vm2444 = vweird.f32 %v2438
      %vm2445 = vmor %vm2443, %vm2444
      %v2446 = vsel %vm2445, %v2438, %v2442
      %v2447 = vand.u32 2147483647, %v2437
      %vm2448 = vcmp.eq.f32.partialorder %v2447, 8.507059e+37
      %v2449 = vand.u32 %v2437, 2147483648
      %v2450 = vor.u32 1.1754944e-38, %v2449
      %v2451 = vsel %vm2448, %v2450, %v2446
      %v2452 = vmul.f32 1.0, %v2451
      %v2453 = vxor.u32 %v2431, 2147483648
      %v2454 = vmul.f32 %v2453, 1.442695
      %v2455 = vpow.pop %v2454
      %v2456 = vadd.f32 %v2455, 1.0
      %v2457 = vrcp.pop %v2456
      %v2458 = vmul.f32 %v2456, %v2457
      %v2459 = vsub.f32 1.0, %v2458
      %v2460 = vmul.f32 %v2457, %v2459
      %v2461 = vadd.f32 %v2457, %v2460
      %vm2462 = vweird.f32 %v2456
      %vm2463 = vweird.f32 %v2457
      %vm2464 = vmor %vm2462, %vm2463
      %v2465 = vsel %vm2464, %v2457, %v2461
      %v2466 = vand.u32 2147483647, %v2456
      %vm2467 = vcmp.eq.f32.partialorder %v2466, 8.507059e+37
      %v2468 = vand.u32 %v2456, 2147483648
      %v2469 = vor.u32 1.1754944e-38, %v2468
      %v2470 = vsel %vm2467, %v2469, %v2465
      %v2471 = vmul.f32 1.0, %v2470
      %v2472 = vtanh.pop %v2432
      %v2473 = vxor.u32 %v2433, 2147483648
      %v2474 = vmul.f32 %v2473, 1.442695
      %v2475 = vpow.pop %v2474
      %v2476 = vadd.f32 %v2475, 1.0
      %v2477 = vrcp.pop %v2476
      %v2478 = vmul.f32 %v2476, %v2477
      %v2479 = vsub.f32 1.0, %v2478
      %v2480 = vmul.f32 %v2477, %v2479
      %v2481 = vadd.f32 %v2477, %v2480
      %vm2482 = vweird.f32 %v2476
      %vm2483 = vweird.f32 %v2477
      %vm2484 = vmor %vm2482, %vm2483
      %v2485 = vsel %vm2484, %v2477, %v2481
      %v2486 = vand.u32 2147483647, %v2476
      %vm2487 = vcmp.eq.f32.partialorder %v2486, 8.507059e+37
      %v2488 = vand.u32 %v2476, 2147483648
      %v2489 = vor.u32 1.1754944e-38, %v2488
      %v2490 = vsel %vm2487, %v2489, %v2485
      %v2491 = vmul.f32 1.0, %v2490
      %v2492 = vmul.f32 %v2471, %v2172
      %v2493 = vmul.f32 %v2452, %v2472
      %v2494 = vadd.f32 %v2492, %v2493
      %v2495 = vtanh.pop %v2494
      %v2496 = vmul.f32 %v2491, %v2495
      %v2497 = vpack.c.bf16 %v2496, %v2496
      %s2498 = scalar_lea.vmem %s84, %s2176
      %v2499 = vld [vmem:[%s2498] sm:$0xff]
      %2500 = vset.pattern.permute.xlu0 0
      %2501 = vperm.xlu0 %2500, %v2499
      %v2502 = vpop.permute.xlu0 %2501
      %vm2503 = vcmp.ne.s32.totalorder %v2502, 0
      %vm2504 = vmpackc.low %vm2503, %vm2503
      %v2505 = vsel %vm2504, %v2497, %v2171
      %v2506 = vsel %vm2503, %v2494, %v2172
      %v2507 = vsel %vm2503, %v2496, 0.0
      %s2508 = scalar_lea.vmem [#allocation3], %s2176
      %2509 = vst [vmem:[%s2508] sm:$0xff] %v2507
      %s2510 = sadd.s32 %s506, 48
      %s2511 = sshra.s32 %s2510, 3
      %s2512 = sand.u32 %s2510, 7
      %s2513 = smul.u32 %s2511, 4
      %s2514 = smul.addr %s2513, 8
      %s2515 = scalar_lea.vmem [#allocation2], %s2514
      %v2516 = vld [vmem:[%s2515] sm:$0xff]
      %v2517 = vld [vmem:[%s2515 + $0x8] sm:$0xff]
      %v2518 = vld [vmem:[%s2515 + $0x10] sm:$0xff]
      %v2519 = vld [vmem:[%s2515 + $0x18] sm:$0xff]
      %v2520 = vld [vmem:[#allocation6] sm:$0xff]
      %v2521 = vld [vmem:[#allocation6 + $0x8] sm:$0xff]
      %v2522 = vld [vmem:[#allocation6 + $0x10] sm:$0xff]
      %v2523 = vld [vmem:[#allocation6 + $0x18] sm:$0xff]
      %v2524 = vld [vmem:[#allocation6 + $0x20] sm:$0xff]
      %v2525 = vld [vmem:[#allocation6 + $0x28] sm:$0xff]
      %v2526 = vld [vmem:[#allocation6 + $0x30] sm:$0xff]
      %v2527 = vld [vmem:[#allocation6 + $0x38] sm:$0xff]
      %v2528 = vld [vmem:[#allocation6 + $0x40] sm:$0xff]
      %v2529 = vld [vmem:[#allocation6 + $0x48] sm:$0xff]
      %v2530 = vld [vmem:[#allocation6 + $0x50] sm:$0xff]
      %v2531 = vld [vmem:[#allocation6 + $0x58] sm:$0xff]
      %v2532 = vld [vmem:[#allocation6 + $0x60] sm:$0xff]
      %v2533 = vld [vmem:[#allocation6 + $0x68] sm:$0xff]
      %v2534 = vld [vmem:[#allocation6 + $0x70] sm:$0xff]
      %v2535 = vld [vmem:[#allocation6 + $0x78] sm:$0xff]
      %v2536 = vld [vmem:[#allocation6 + $0x80] sm:$0xff]
      %v2537 = vld [vmem:[#allocation6 + $0x88] sm:$0xff]
      %v2538 = vld [vmem:[#allocation6 + $0x90] sm:$0xff]
      %v2539 = vld [vmem:[#allocation6 + $0x98] sm:$0xff]
      %v2540 = vld [vmem:[#allocation6 + $0xa0] sm:$0xff]
      %v2541 = vld [vmem:[#allocation6 + $0xa8] sm:$0xff]
      %v2542 = vld [vmem:[#allocation6 + $0xb0] sm:$0xff]
      %v2543 = vld [vmem:[#allocation6 + $0xb8] sm:$0xff]
      %v2544 = vld [vmem:[#allocation6 + $0xc0] sm:$0xff]
      %v2545 = vld [vmem:[#allocation6 + $0xc8] sm:$0xff]
      %v2546 = vld [vmem:[#allocation6 + $0xd0] sm:$0xff]
      %v2547 = vld [vmem:[#allocation6 + $0xd8] sm:$0xff]
      %v2548 = vld [vmem:[#allocation6 + $0xe0] sm:$0xff]
      %v2549 = vld [vmem:[#allocation6 + $0xe8] sm:$0xff]
      %v2550 = vld [vmem:[#allocation6 + $0xf0] sm:$0xff]
      %v2551 = vld [vmem:[#allocation6 + $0xf8] sm:$0xff]
      %v2584 = vunpack.c.l.b16 %v2520
      %v2585 = vunpack.c.h.b16 %v2520
      %v2586 = vunpack.c.l.b16 %v2521
      %v2587 = vunpack.c.h.b16 %v2521
      %v2588 = vunpack.c.l.b16 %v2522
      %v2589 = vunpack.c.h.b16 %v2522
      %v2590 = vunpack.c.l.b16 %v2523
      %v2591 = vunpack.c.h.b16 %v2523
      %v2592 = vunpack.c.l.b16 %v2524
      %v2593 = vunpack.c.h.b16 %v2524
      %v2594 = vunpack.c.l.b16 %v2525
      %v2595 = vunpack.c.h.b16 %v2525
      %v2596 = vunpack.c.l.b16 %v2526
      %v2597 = vunpack.c.h.b16 %v2526
      %v2598 = vunpack.c.l.b16 %v2527
      %v2599 = vunpack.c.h.b16 %v2527
      %v2600 = vunpack.c.l.b16 %v2528
      %v2601 = vunpack.c.h.b16 %v2528
      %v2602 = vunpack.c.l.b16 %v2529
      %v2603 = vunpack.c.h.b16 %v2529
      %v2604 = vunpack.c.l.b16 %v2530
      %v2605 = vunpack.c.h.b16 %v2530
      %v2606 = vunpack.c.l.b16 %v2531
      %v2607 = vunpack.c.h.b16 %v2531
      %v2608 = vunpack.c.l.b16 %v2532
      %v2609 = vunpack.c.h.b16 %v2532
      %v2610 = vunpack.c.l.b16 %v2533
      %v2611 = vunpack.c.h.b16 %v2533
      %v2612 = vunpack.c.l.b16 %v2534
      %v2613 = vunpack.c.h.b16 %v2534
      %v2614 = vunpack.c.l.b16 %v2535
      %v2615 = vunpack.c.h.b16 %v2535
      %v2616 = vunpack.c.l.b16 %v2536
      %v2617 = vunpack.c.h.b16 %v2536
      %v2618 = vunpack.c.l.b16 %v2537
      %v2619 = vunpack.c.h.b16 %v2537
      %v2620 = vunpack.c.l.b16 %v2538
      %v2621 = vunpack.c.h.b16 %v2538
      %v2622 = vunpack.c.l.b16 %v2539
      %v2623 = vunpack.c.h.b16 %v2539
      %v2624 = vunpack.c.l.b16 %v2540
      %v2625 = vunpack.c.h.b16 %v2540
      %v2626 = vunpack.c.l.b16 %v2541
      %v2627 = vunpack.c.h.b16 %v2541
      %v2628 = vunpack.c.l.b16 %v2542
      %v2629 = vunpack.c.h.b16 %v2542
      %v2630 = vunpack.c.l.b16 %v2543
      %v2631 = vunpack.c.h.b16 %v2543
      %v2632 = vunpack.c.l.b16 %v2544
      %v2633 = vunpack.c.h.b16 %v2544
      %v2634 = vunpack.c.l.b16 %v2545
      %v2635 = vunpack.c.h.b16 %v2545
      %v2636 = vunpack.c.l.b16 %v2546
      %v2637 = vunpack.c.h.b16 %v2546
      %v2638 = vunpack.c.l.b16 %v2547
      %v2639 = vunpack.c.h.b16 %v2547
      %v2640 = vunpack.c.l.b16 %v2548
      %v2641 = vunpack.c.h.b16 %v2548
      %v2642 = vunpack.c.l.b16 %v2549
      %v2643 = vunpack.c.h.b16 %v2549
      %v2644 = vunpack.c.l.b16 %v2550
      %v2645 = vunpack.c.h.b16 %v2550
      %v2646 = vunpack.c.l.b16 %v2551
      %v2647 = vunpack.c.h.b16 %v2551
      %v2648 = vpack.c.b16 %v2588, %v2584
      %v2649 = vpack.c.b16 %v2589, %v2585
      %v2650 = vpack.c.b16 %v2590, %v2586
      %v2651 = vpack.c.b16 %v2591, %v2587
      %v2652 = vpack.c.b16 %v2596, %v2592
      %v2653 = vpack.c.b16 %v2597, %v2593
      %v2654 = vpack.c.b16 %v2598, %v2594
      %v2655 = vpack.c.b16 %v2599, %v2595
      %v2656 = vpack.c.b16 %v2604, %v2600
      %v2657 = vpack.c.b16 %v2605, %v2601
      %v2658 = vpack.c.b16 %v2606, %v2602
      %v2659 = vpack.c.b16 %v2607, %v2603
      %v2660 = vpack.c.b16 %v2612, %v2608
      %v2661 = vpack.c.b16 %v2613, %v2609
      %v2662 = vpack.c.b16 %v2614, %v2610
      %v2663 = vpack.c.b16 %v2615, %v2611
      %v2664 = vpack.c.b16 %v2620, %v2616
      %v2665 = vpack.c.b16 %v2621, %v2617
      %v2666 = vpack.c.b16 %v2622, %v2618
      %v2667 = vpack.c.b16 %v2623, %v2619
      %v2668 = vpack.c.b16 %v2628, %v2624
      %v2669 = vpack.c.b16 %v2629, %v2625
      %v2670 = vpack.c.b16 %v2630, %v2626
      %v2671 = vpack.c.b16 %v2631, %v2627
      %v2672 = vpack.c.b16 %v2636, %v2632
      %v2673 = vpack.c.b16 %v2637, %v2633
      %v2674 = vpack.c.b16 %v2638, %v2634
      %v2675 = vpack.c.b16 %v2639, %v2635
      %v2676 = vpack.c.b16 %v2644, %v2640
      %v2677 = vpack.c.b16 %v2645, %v2641
      %v2678 = vpack.c.b16 %v2646, %v2642
      %v2679 = vpack.c.b16 %v2647, %v2643
      %2712 = vmatpush.bf16.msra.mxu0 %v2676
      %2713 = vmatpush.bf16.msra.mxu0 %v2672
      %2714 = vmatpush.bf16.msra.mxu0 %v2668
      %2715 = vmatpush.bf16.msra.mxu0 %v2664
      %2716 = vmatpush.bf16.msra.mxu0 %v2660
      %2717 = vmatpush.bf16.msra.mxu0 %v2656
      %2718 = vmatpush.bf16.msra.mxu0 %v2652
      %2719 = vmatpush.bf16.msra.mxu0 %v2648
      %2720 = vmatmul.bf16.gmra.mxu0 %v2505
      %v2721 = vpop.f32.mrf.mxu0
      %v2722 = vadd.f32 0.0, %v2721
      %v2723 = vpop.f32.mrf.mxu0
      %2724 = vdwg.mxu0
      %2725 = vmatpush.bf16.msra.mxu0 %v2677
      %2726 = vmatpush.bf16.msra.mxu0 %v2673
      %2727 = vmatpush.bf16.msra.mxu0 %v2669
      %2728 = vmatpush.bf16.msra.mxu0 %v2665
      %2729 = vmatpush.bf16.msra.mxu0 %v2661
      %2730 = vmatpush.bf16.msra.mxu0 %v2657
      %2731 = vmatpush.bf16.msra.mxu0 %v2653
      %2732 = vmatpush.bf16.msra.mxu0 %v2649
      %2733 = vmatmul.bf16.gmra.mxu0 %v2505
      %v2734 = vpop.f32.mrf.mxu0
      %v2735 = vadd.f32 0.0, %v2734
      %v2736 = vpop.f32.mrf.mxu0
      %2737 = vdwg.mxu0
      %2738 = vmatpush.bf16.msra.mxu0 %v2678
      %2739 = vmatpush.bf16.msra.mxu0 %v2674
      %2740 = vmatpush.bf16.msra.mxu0 %v2670
      %2741 = vmatpush.bf16.msra.mxu0 %v2666
      %2742 = vmatpush.bf16.msra.mxu0 %v2662
      %2743 = vmatpush.bf16.msra.mxu0 %v2658
      %2744 = vmatpush.bf16.msra.mxu0 %v2654
      %2745 = vmatpush.bf16.msra.mxu0 %v2650
      %2746 = vmatmul.bf16.gmra.mxu0 %v2505
      %v2747 = vpop.f32.mrf.mxu0
      %v2748 = vadd.f32 0.0, %v2747
      %v2749 = vpop.f32.mrf.mxu0
      %2750 = vdwg.mxu0
      %2751 = vmatpush.bf16.msra.mxu0 %v2679
      %2752 = vmatpush.bf16.msra.mxu0 %v2675
      %2753 = vmatpush.bf16.msra.mxu0 %v2671
      %2754 = vmatpush.bf16.msra.mxu0 %v2667
      %2755 = vmatpush.bf16.msra.mxu0 %v2663
      %2756 = vmatpush.bf16.msra.mxu0 %v2659
      %2757 = vmatpush.bf16.msra.mxu0 %v2655
      %2758 = vmatpush.bf16.msra.mxu0 %v2651
      %2759 = vmatmul.bf16.gmra.mxu0 %v2505
      %v2760 = vpop.f32.mrf.mxu0
      %v2761 = vadd.f32 0.0, %v2760
      %v2762 = vpop.f32.mrf.mxu0
      %2763 = vdwg.mxu0
      %v2764 = vadd.f32 %v2516, %v2722
      %v2765 = vadd.f32 %v2517, %v2735
      %v2766 = vadd.f32 %v2518, %v2748
      %v2767 = vadd.f32 %v2519, %v2761
      %v2768 = vxor.u32 %v2764, 2147483648
      %v2769 = vmul.f32 %v2768, 1.442695
      %v2770 = vpow.pop %v2769
      %v2771 = vadd.f32 %v2770, 1.0
      %v2772 = vrcp.pop %v2771
      %v2773 = vmul.f32 %v2771, %v2772
      %v2774 = vsub.f32 1.0, %v2773
      %v2775 = vmul.f32 %v2772, %v2774
      %v2776 = vadd.f32 %v2772, %v2775
      %vm2777 = vweird.f32 %v2771
      %vm2778 = vweird.f32 %v2772
      %vm2779 = vmor %vm2777, %vm2778
      %v2780 = vsel %vm2779, %v2772, %v2776
      %v2781 = vand.u32 2147483647, %v2771
      %vm2782 = vcmp.eq.f32.partialorder %v2781, 8.507059e+37
      %v2783 = vand.u32 %v2771, 2147483648
      %v2784 = vor.u32 1.1754944e-38, %v2783
      %v2785 = vsel %vm2782, %v2784, %v2780
      %v2786 = vmul.f32 1.0, %v2785
      %v2787 = vxor.u32 %v2765, 2147483648
      %v2788 = vmul.f32 %v2787, 1.442695
      %v2789 = vpow.pop %v2788
      %v2790 = vadd.f32 %v2789, 1.0
      %v2791 = vrcp.pop %v2790
      %v2792 = vmul.f32 %v2790, %v2791
      %v2793 = vsub.f32 1.0, %v2792
      %v2794 = vmul.f32 %v2791, %v2793
      %v2795 = vadd.f32 %v2791, %v2794
      %vm2796 = vweird.f32 %v2790
      %vm2797 = vweird.f32 %v2791
      %vm2798 = vmor %vm2796, %vm2797
      %v2799 = vsel %vm2798, %v2791, %v2795
      %v2800 = vand.u32 2147483647, %v2790
      %vm2801 = vcmp.eq.f32.partialorder %v2800, 8.507059e+37
      %v2802 = vand.u32 %v2790, 2147483648
      %v2803 = vor.u32 1.1754944e-38, %v2802
      %v2804 = vsel %vm2801, %v2803, %v2799
      %v2805 = vmul.f32 1.0, %v2804
      %v2806 = vtanh.pop %v2766
      %v2807 = vxor.u32 %v2767, 2147483648
      %v2808 = vmul.f32 %v2807, 1.442695
      %v2809 = vpow.pop %v2808
      %v2810 = vadd.f32 %v2809, 1.0
      %v2811 = vrcp.pop %v2810
      %v2812 = vmul.f32 %v2810, %v2811
      %v2813 = vsub.f32 1.0, %v2812
      %v2814 = vmul.f32 %v2811, %v2813
      %v2815 = vadd.f32 %v2811, %v2814
      %vm2816 = vweird.f32 %v2810
      %vm2817 = vweird.f32 %v2811
      %vm2818 = vmor %vm2816, %vm2817
      %v2819 = vsel %vm2818, %v2811, %v2815
      %v2820 = vand.u32 2147483647, %v2810
      %vm2821 = vcmp.eq.f32.partialorder %v2820, 8.507059e+37
      %v2822 = vand.u32 %v2810, 2147483648
      %v2823 = vor.u32 1.1754944e-38, %v2822
      %v2824 = vsel %vm2821, %v2823, %v2819
      %v2825 = vmul.f32 1.0, %v2824
      %v2826 = vmul.f32 %v2805, %v2506
      %v2827 = vmul.f32 %v2786, %v2806
      %v2828 = vadd.f32 %v2826, %v2827
      %v2829 = vtanh.pop %v2828
      %v2830 = vmul.f32 %v2825, %v2829
      %v2831 = vpack.c.bf16 %v2830, %v2830
      %s2832 = scalar_lea.vmem %s84, %s2510
      %v2833 = vld [vmem:[%s2832] sm:$0xff]
      %2834 = vset.pattern.permute.xlu0 0
      %2835 = vperm.xlu0 %2834, %v2833
      %v2836 = vpop.permute.xlu0 %2835
      %vm2837 = vcmp.ne.s32.totalorder %v2836, 0
      %vm2838 = vmpackc.low %vm2837, %vm2837
      %v2839 = vsel %vm2838, %v2831, %v2505
      %v2840 = vsel %vm2837, %v2828, %v2506
      %v2841 = vsel %vm2837, %v2830, 0.0
      %s2842 = scalar_lea.vmem [#allocation3], %s2510
      %2843 = vst [vmem:[%s2842] sm:$0xff] %v2841
      %s2844 = sadd.s32 %s506, 56
      %s2845 = sshra.s32 %s2844, 3
      %s2846 = sand.u32 %s2844, 7
      %s2847 = smul.u32 %s2845, 4
      %s2848 = smul.addr %s2847, 8
      %s2849 = scalar_lea.vmem [#allocation2], %s2848
      %v2850 = vld [vmem:[%s2849] sm:$0xff]
      %v2851 = vld [vmem:[%s2849 + $0x8] sm:$0xff]
      %v2852 = vld [vmem:[%s2849 + $0x10] sm:$0xff]
      %v2853 = vld [vmem:[%s2849 + $0x18] sm:$0xff]
      %v2854 = vld [vmem:[#allocation6] sm:$0xff]
      %v2855 = vld [vmem:[#allocation6 + $0x8] sm:$0xff]
      %v2856 = vld [vmem:[#allocation6 + $0x10] sm:$0xff]
      %v2857 = vld [vmem:[#allocation6 + $0x18] sm:$0xff]
      %v2858 = vld [vmem:[#allocation6 + $0x20] sm:$0xff]
      %v2859 = vld [vmem:[#allocation6 + $0x28] sm:$0xff]
      %v2860 = vld [vmem:[#allocation6 + $0x30] sm:$0xff]
      %v2861 = vld [vmem:[#allocation6 + $0x38] sm:$0xff]
      %v2862 = vld [vmem:[#allocation6 + $0x40] sm:$0xff]
      %v2863 = vld [vmem:[#allocation6 + $0x48] sm:$0xff]
      %v2864 = vld [vmem:[#allocation6 + $0x50] sm:$0xff]
      %v2865 = vld [vmem:[#allocation6 + $0x58] sm:$0xff]
      %v2866 = vld [vmem:[#allocation6 + $0x60] sm:$0xff]
      %v2867 = vld [vmem:[#allocation6 + $0x68] sm:$0xff]
      %v2868 = vld [vmem:[#allocation6 + $0x70] sm:$0xff]
      %v2869 = vld [vmem:[#allocation6 + $0x78] sm:$0xff]
      %v2870 = vld [vmem:[#allocation6 + $0x80] sm:$0xff]
      %v2871 = vld [vmem:[#allocation6 + $0x88] sm:$0xff]
      %v2872 = vld [vmem:[#allocation6 + $0x90] sm:$0xff]
      %v2873 = vld [vmem:[#allocation6 + $0x98] sm:$0xff]
      %v2874 = vld [vmem:[#allocation6 + $0xa0] sm:$0xff]
      %v2875 = vld [vmem:[#allocation6 + $0xa8] sm:$0xff]
      %v2876 = vld [vmem:[#allocation6 + $0xb0] sm:$0xff]
      %v2877 = vld [vmem:[#allocation6 + $0xb8] sm:$0xff]
      %v2878 = vld [vmem:[#allocation6 + $0xc0] sm:$0xff]
      %v2879 = vld [vmem:[#allocation6 + $0xc8] sm:$0xff]
      %v2880 = vld [vmem:[#allocation6 + $0xd0] sm:$0xff]
      %v2881 = vld [vmem:[#allocation6 + $0xd8] sm:$0xff]
      %v2882 = vld [vmem:[#allocation6 + $0xe0] sm:$0xff]
      %v2883 = vld [vmem:[#allocation6 + $0xe8] sm:$0xff]
      %v2884 = vld [vmem:[#allocation6 + $0xf0] sm:$0xff]
      %v2885 = vld [vmem:[#allocation6 + $0xf8] sm:$0xff]
      %v2918 = vunpack.c.l.b16 %v2854
      %v2919 = vunpack.c.h.b16 %v2854
      %v2920 = vunpack.c.l.b16 %v2855
      %v2921 = vunpack.c.h.b16 %v2855
      %v2922 = vunpack.c.l.b16 %v2856
      %v2923 = vunpack.c.h.b16 %v2856
      %v2924 = vunpack.c.l.b16 %v2857
      %v2925 = vunpack.c.h.b16 %v2857
      %v2926 = vunpack.c.l.b16 %v2858
      %v2927 = vunpack.c.h.b16 %v2858
      %v2928 = vunpack.c.l.b16 %v2859
      %v2929 = vunpack.c.h.b16 %v2859
      %v2930 = vunpack.c.l.b16 %v2860
      %v2931 = vunpack.c.h.b16 %v2860
      %v2932 = vunpack.c.l.b16 %v2861
      %v2933 = vunpack.c.h.b16 %v2861
      %v2934 = vunpack.c.l.b16 %v2862
      %v2935 = vunpack.c.h.b16 %v2862
      %v2936 = vunpack.c.l.b16 %v2863
      %v2937 = vunpack.c.h.b16 %v2863
      %v2938 = vunpack.c.l.b16 %v2864
      %v2939 = vunpack.c.h.b16 %v2864
      %v2940 = vunpack.c.l.b16 %v2865
      %v2941 = vunpack.c.h.b16 %v2865
      %v2942 = vunpack.c.l.b16 %v2866
      %v2943 = vunpack.c.h.b16 %v2866
      %v2944 = vunpack.c.l.b16 %v2867
      %v2945 = vunpack.c.h.b16 %v2867
      %v2946 = vunpack.c.l.b16 %v2868
      %v2947 = vunpack.c.h.b16 %v2868
      %v2948 = vunpack.c.l.b16 %v2869
      %v2949 = vunpack.c.h.b16 %v2869
      %v2950 = vunpack.c.l.b16 %v2870
      %v2951 = vunpack.c.h.b16 %v2870
      %v2952 = vunpack.c.l.b16 %v2871
      %v2953 = vunpack.c.h.b16 %v2871
      %v2954 = vunpack.c.l.b16 %v2872
      %v2955 = vunpack.c.h.b16 %v2872
      %v2956 = vunpack.c.l.b16 %v2873
      %v2957 = vunpack.c.h.b16 %v2873
      %v2958 = vunpack.c.l.b16 %v2874
      %v2959 = vunpack.c.h.b16 %v2874
      %v2960 = vunpack.c.l.b16 %v2875
      %v2961 = vunpack.c.h.b16 %v2875
      %v2962 = vunpack.c.l.b16 %v2876
      %v2963 = vunpack.c.h.b16 %v2876
      %v2964 = vunpack.c.l.b16 %v2877
      %v2965 = vunpack.c.h.b16 %v2877
      %v2966 = vunpack.c.l.b16 %v2878
      %v2967 = vunpack.c.h.b16 %v2878
      %v2968 = vunpack.c.l.b16 %v2879
      %v2969 = vunpack.c.h.b16 %v2879
      %v2970 = vunpack.c.l.b16 %v2880
      %v2971 = vunpack.c.h.b16 %v2880
      %v2972 = vunpack.c.l.b16 %v2881
      %v2973 = vunpack.c.h.b16 %v2881
      %v2974 = vunpack.c.l.b16 %v2882
      %v2975 = vunpack.c.h.b16 %v2882
      %v2976 = vunpack.c.l.b16 %v2883
      %v2977 = vunpack.c.h.b16 %v2883
      %v2978 = vunpack.c.l.b16 %v2884
      %v2979 = vunpack.c.h.b16 %v2884
      %v2980 = vunpack.c.l.b16 %v2885
      %v2981 = vunpack.c.h.b16 %v2885
      %v2982 = vpack.c.b16 %v2922, %v2918
      %v2983 = vpack.c.b16 %v2923, %v2919
      %v2984 = vpack.c.b16 %v2924, %v2920
      %v2985 = vpack.c.b16 %v2925, %v2921
      %v2986 = vpack.c.b16 %v2930, %v2926
      %v2987 = vpack.c.b16 %v2931, %v2927
      %v2988 = vpack.c.b16 %v2932, %v2928
      %v2989 = vpack.c.b16 %v2933, %v2929
      %v2990 = vpack.c.b16 %v2938, %v2934
      %v2991 = vpack.c.b16 %v2939, %v2935
      %v2992 = vpack.c.b16 %v2940, %v2936
      %v2993 = vpack.c.b16 %v2941, %v2937
      %v2994 = vpack.c.b16 %v2946, %v2942
      %v2995 = vpack.c.b16 %v2947, %v2943
      %v2996 = vpack.c.b16 %v2948, %v2944
      %v2997 = vpack.c.b16 %v2949, %v2945
      %v2998 = vpack.c.b16 %v2954, %v2950
      %v2999 = vpack.c.b16 %v2955, %v2951
      %v3000 = vpack.c.b16 %v2956, %v2952
      %v3001 = vpack.c.b16 %v2957, %v2953
      %v3002 = vpack.c.b16 %v2962, %v2958
      %v3003 = vpack.c.b16 %v2963, %v2959
      %v3004 = vpack.c.b16 %v2964, %v2960
      %v3005 = vpack.c.b16 %v2965, %v2961
      %v3006 = vpack.c.b16 %v2970, %v2966
      %v3007 = vpack.c.b16 %v2971, %v2967
      %v3008 = vpack.c.b16 %v2972, %v2968
      %v3009 = vpack.c.b16 %v2973, %v2969
      %v3010 = vpack.c.b16 %v2978, %v2974
      %v3011 = vpack.c.b16 %v2979, %v2975
      %v3012 = vpack.c.b16 %v2980, %v2976
      %v3013 = vpack.c.b16 %v2981, %v2977
      %3046 = vmatpush.bf16.msra.mxu0 %v3010
      %3047 = vmatpush.bf16.msra.mxu0 %v3006
      %3048 = vmatpush.bf16.msra.mxu0 %v3002
      %3049 = vmatpush.bf16.msra.mxu0 %v2998
      %3050 = vmatpush.bf16.msra.mxu0 %v2994
      %3051 = vmatpush.bf16.msra.mxu0 %v2990
      %3052 = vmatpush.bf16.msra.mxu0 %v2986
      %3053 = vmatpush.bf16.msra.mxu0 %v2982
      %3054 = vmatmul.bf16.gmra.mxu0 %v2839
      %v3055 = vpop.f32.mrf.mxu0
      %v3056 = vadd.f32 0.0, %v3055
      %v3057 = vpop.f32.mrf.mxu0
      %3058 = vdwg.mxu0
      %3059 = vmatpush.bf16.msra.mxu0 %v3011
      %3060 = vmatpush.bf16.msra.mxu0 %v3007
      %3061 = vmatpush.bf16.msra.mxu0 %v3003
      %3062 = vmatpush.bf16.msra.mxu0 %v2999
      %3063 = vmatpush.bf16.msra.mxu0 %v2995
      %3064 = vmatpush.bf16.msra.mxu0 %v2991
      %3065 = vmatpush.bf16.msra.mxu0 %v2987
      %3066 = vmatpush.bf16.msra.mxu0 %v2983
      %3067 = vmatmul.bf16.gmra.mxu0 %v2839
      %v3068 = vpop.f32.mrf.mxu0
      %v3069 = vadd.f32 0.0, %v3068
      %v3070 = vpop.f32.mrf.mxu0
      %3071 = vdwg.mxu0
      %3072 = vmatpush.bf16.msra.mxu0 %v3012
      %3073 = vmatpush.bf16.msra.mxu0 %v3008
      %3074 = vmatpush.bf16.msra.mxu0 %v3004
      %3075 = vmatpush.bf16.msra.mxu0 %v3000
      %3076 = vmatpush.bf16.msra.mxu0 %v2996
      %3077 = vmatpush.bf16.msra.mxu0 %v2992
      %3078 = vmatpush.bf16.msra.mxu0 %v2988
      %3079 = vmatpush.bf16.msra.mxu0 %v2984
      %3080 = vmatmul.bf16.gmra.mxu0 %v2839
      %v3081 = vpop.f32.mrf.mxu0
      %v3082 = vadd.f32 0.0, %v3081
      %v3083 = vpop.f32.mrf.mxu0
      %3084 = vdwg.mxu0
      %3085 = vmatpush.bf16.msra.mxu0 %v3013
      %3086 = vmatpush.bf16.msra.mxu0 %v3009
      %3087 = vmatpush.bf16.msra.mxu0 %v3005
      %3088 = vmatpush.bf16.msra.mxu0 %v3001
      %3089 = vmatpush.bf16.msra.mxu0 %v2997
      %3090 = vmatpush.bf16.msra.mxu0 %v2993
      %3091 = vmatpush.bf16.msra.mxu0 %v2989
      %3092 = vmatpush.bf16.msra.mxu0 %v2985
      %3093 = vmatmul.bf16.gmra.mxu0 %v2839
      %v3094 = vpop.f32.mrf.mxu0
      %v3095 = vadd.f32 0.0, %v3094
      %v3096 = vpop.f32.mrf.mxu0
      %3097 = vdwg.mxu0
      %v3098 = vadd.f32 %v2850, %v3056
      %v3099 = vadd.f32 %v2851, %v3069
      %v3100 = vadd.f32 %v2852, %v3082
      %v3101 = vadd.f32 %v2853, %v3095
      %v3102 = vxor.u32 %v3098, 2147483648
      %v3103 = vmul.f32 %v3102, 1.442695
      %v3104 = vpow.pop %v3103
      %v3105 = vadd.f32 %v3104, 1.0
      %v3106 = vrcp.pop %v3105
      %v3107 = vmul.f32 %v3105, %v3106
      %v3108 = vsub.f32 1.0, %v3107
      %v3109 = vmul.f32 %v3106, %v3108
      %v3110 = vadd.f32 %v3106, %v3109
      %vm3111 = vweird.f32 %v3105
      %vm3112 = vweird.f32 %v3106
      %vm3113 = vmor %vm3111, %vm3112
      %v3114 = vsel %vm3113, %v3106, %v3110
      %v3115 = vand.u32 2147483647, %v3105
      %vm3116 = vcmp.eq.f32.partialorder %v3115, 8.507059e+37
      %v3117 = vand.u32 %v3105, 2147483648
      %v3118 = vor.u32 1.1754944e-38, %v3117
      %v3119 = vsel %vm3116, %v3118, %v3114
      %v3120 = vmul.f32 1.0, %v3119
      %v3121 = vxor.u32 %v3099, 2147483648
      %v3122 = vmul.f32 %v3121, 1.442695
      %v3123 = vpow.pop %v3122
      %v3124 = vadd.f32 %v3123, 1.0
      %v3125 = vrcp.pop %v3124
      %v3126 = vmul.f32 %v3124, %v3125
      %v3127 = vsub.f32 1.0, %v3126
      %v3128 = vmul.f32 %v3125, %v3127
      %v3129 = vadd.f32 %v3125, %v3128
      %vm3130 = vweird.f32 %v3124
      %vm3131 = vweird.f32 %v3125
      %vm3132 = vmor %vm3130, %vm3131
      %v3133 = vsel %vm3132, %v3125, %v3129
      %v3134 = vand.u32 2147483647, %v3124
      %vm3135 = vcmp.eq.f32.partialorder %v3134, 8.507059e+37
      %v3136 = vand.u32 %v3124, 2147483648
      %v3137 = vor.u32 1.1754944e-38, %v3136
      %v3138 = vsel %vm3135, %v3137, %v3133
      %v3139 = vmul.f32 1.0, %v3138
      %v3140 = vtanh.pop %v3100
      %v3141 = vxor.u32 %v3101, 2147483648
      %v3142 = vmul.f32 %v3141, 1.442695
      %v3143 = vpow.pop %v3142
      %v3144 = vadd.f32 %v3143, 1.0
      %v3145 = vrcp.pop %v3144
      %v3146 = vmul.f32 %v3144, %v3145
      %v3147 = vsub.f32 1.0, %v3146
      %v3148 = vmul.f32 %v3145, %v3147
      %v3149 = vadd.f32 %v3145, %v3148
      %vm3150 = vweird.f32 %v3144
      %vm3151 = vweird.f32 %v3145
      %vm3152 = vmor %vm3150, %vm3151
      %v3153 = vsel %vm3152, %v3145, %v3149
      %v3154 = vand.u32 2147483647, %v3144
      %vm3155 = vcmp.eq.f32.partialorder %v3154, 8.507059e+37
      %v3156 = vand.u32 %v3144, 2147483648
      %v3157 = vor.u32 1.1754944e-38, %v3156
      %v3158 = vsel %vm3155, %v3157, %v3153
      %v3159 = vmul.f32 1.0, %v3158
      %v3160 = vmul.f32 %v3139, %v2840
      %v3161 = vmul.f32 %v3120, %v3140
      %v3162 = vadd.f32 %v3160, %v3161
      %v3163 = vtanh.pop %v3162
      %v3164 = vmul.f32 %v3159, %v3163
      %v3165 = vpack.c.bf16 %v3164, %v3164
      %s3166 = scalar_lea.vmem %s84, %s2844
      %v3167 = vld [vmem:[%s3166] sm:$0xff]
      %3168 = vset.pattern.permute.xlu0 0
      %3169 = vperm.xlu0 %3168, %v3167
      %v3170 = vpop.permute.xlu0 %3169
      %vm3171 = vcmp.ne.s32.totalorder %v3170, 0
      %vm3172 = vmpackc.low %vm3171, %vm3171
      %v3173 = vsel %vm3172, %v3165, %v2839
      %v3174 = vsel %vm3171, %v3162, %v2840
      %v3175 = vsel %vm3171, %v3164, 0.0
      %s3176 = scalar_lea.vmem [#allocation3], %s2844
      %3177 = vst [vmem:[%s3176] sm:$0xff] %v3175
    $region42: #{tpu_custom_call.1} parent=1 // loop_footer
      %s503 = sadd.s32 1, %s499
    $region43: #{tpu_custom_call.1} parent=1 // loop_footer_branch
      %498 = sbr.rel target = $region39
    $region44: #{tpu_custom_call.1} parent=1 // loop_exit
      _
    %v3178 = vunpack.c.l.bf16 %v504
    %3179 = vst [vmem:[#allocation4] sm:$0xff] %v3178
    %3180 = vst [vmem:[#allocation5] sm:$0xff] %v505
    %v3181 = vld [vmem:[#allocation3] sm:$0xff]
    %v3182 = vld [vmem:[#allocation3 + $0x8] sm:$0xff]
    %v3183 = vld [vmem:[#allocation3 + $0x10] sm:$0xff]
    %v3184 = vld [vmem:[#allocation3 + $0x18] sm:$0xff]
    %v3185 = vld [vmem:[#allocation3 + $0x20] sm:$0xff]
    %v3186 = vld [vmem:[#allocation3 + $0x28] sm:$0xff]
    %v3187 = vld [vmem:[#allocation3 + $0x30] sm:$0xff]
    %v3188 = vld [vmem:[#allocation3 + $0x38] sm:$0xff]
    %v3189 = vld [vmem:[#allocation3 + $0x40] sm:$0xff]
    %v3190 = vld [vmem:[#allocation3 + $0x48] sm:$0xff]
    %v3191 = vld [vmem:[#allocation3 + $0x50] sm:$0xff]
    %v3192 = vld [vmem:[#allocation3 + $0x58] sm:$0xff]
    %v3193 = vld [vmem:[#allocation3 + $0x60] sm:$0xff]
    %v3194 = vld [vmem:[#allocation3 + $0x68] sm:$0xff]
    %v3195 = vld [vmem:[#allocation3 + $0x70] sm:$0xff]
    %v3196 = vld [vmem:[#allocation3 + $0x78] sm:$0xff]
    %v3197 = vpack.c.bf16 %v3182, %v3181
    %v3198 = vpack.c.bf16 %v3184, %v3183
    %v3199 = vpack.c.bf16 %v3186, %v3185
    %v3200 = vpack.c.bf16 %v3188, %v3187
    %v3201 = vpack.c.bf16 %v3190, %v3189
    %v3202 = vpack.c.bf16 %v3192, %v3191
    %v3203 = vpack.c.bf16 %v3194, %v3193
    %v3204 = vpack.c.bf16 %v3196, %v3195
    %v3205 = vld [vmem:[%s5] sm:$0xf]
    %v3206 = vld [vmem:[%s5 + $0x4] sm:$0xf]
    %v3207 = vld [vmem:[%s5 + $0x8] sm:$0xf]
    %v3208 = vld [vmem:[%s5 + $0xc] sm:$0xf]
    %v3209 = vld [vmem:[%s5 + $0x10] sm:$0xf]
    %v3210 = vld [vmem:[%s5 + $0x14] sm:$0xf]
    %v3211 = vld [vmem:[%s5 + $0x18] sm:$0xf]
    %v3212 = vld [vmem:[%s5 + $0x1c] sm:$0xf]
    %v3213 = vld [vmem:[%s5 + $0x20] sm:$0xf]
    %v3214 = vld [vmem:[%s5 + $0x24] sm:$0xf]
    %v3215 = vld [vmem:[%s5 + $0x28] sm:$0xf]
    %v3216 = vld [vmem:[%s5 + $0x2c] sm:$0xf]
    %v3217 = vld [vmem:[%s5 + $0x30] sm:$0xf]
    %v3218 = vld [vmem:[%s5 + $0x34] sm:$0xf]
    %v3219 = vld [vmem:[%s5 + $0x38] sm:$0xf]
    %v3220 = vld [vmem:[%s5 + $0x3c] sm:$0xf]
    %v3221 = vld [vmem:[%s6] sm:$0x1]
    %v3223 = vperm.slane %v3221, 0
    %v3241 = vunpack.c.l.b16 %v3205
    %v3242 = vunpack.c.l.b16 %v3206
    %v3243 = vunpack.c.l.b16 %v3207
    %v3244 = vunpack.c.l.b16 %v3208
    %v3245 = vunpack.c.l.b16 %v3209
    %v3246 = vunpack.c.l.b16 %v3210
    %v3247 = vunpack.c.l.b16 %v3211
    %v3248 = vunpack.c.l.b16 %v3212
    %v3249 = vunpack.c.l.b16 %v3213
    %v3250 = vunpack.c.l.b16 %v3214
    %v3251 = vunpack.c.l.b16 %v3215
    %v3252 = vunpack.c.l.b16 %v3216
    %v3253 = vunpack.c.l.b16 %v3217
    %v3254 = vunpack.c.l.b16 %v3218
    %v3255 = vunpack.c.l.b16 %v3219
    %v3256 = vunpack.c.l.b16 %v3220
    %v3257 = vpack.c.b16 %v3242, %v3241
    %v3258 = vpack.c.b16 %v3244, %v3243
    %v3259 = vpack.c.b16 %v3246, %v3245
    %v3260 = vpack.c.b16 %v3248, %v3247
    %v3261 = vpack.c.b16 %v3250, %v3249
    %v3262 = vpack.c.b16 %v3252, %v3251
    %v3263 = vpack.c.b16 %v3254, %v3253
    %v3264 = vpack.c.b16 %v3256, %v3255
    %3273 = vmatpush.bf16.msra.mxu0 %v3264
    %3274 = vmatpush.bf16.msra.mxu0 %v3263
    %3275 = vmatpush.bf16.msra.mxu0 %v3262
    %3276 = vmatpush.bf16.msra.mxu0 %v3261
    %3277 = vmatpush.bf16.msra.mxu0 %v3260
    %3278 = vmatpush.bf16.msra.mxu0 %v3259
    %3279 = vmatpush.bf16.msra.mxu0 %v3258
    %3280 = vmatpush.bf16.msra.mxu0 %v3257
    %3281 = vmatmul.bf16.gmra.mxu0 %v3197
    %v3282 = vpop.f32.mrf.mxu0
    %v3283 = vadd.f32 %v3223, %v3282
    %v3284 = vpop.f32.mrf.mxu0
    %v3285 = vadd.f32 %v3223, %v3284
    %3286 = vmatmul.bf16.gmra.mxu0 %v3198
    %v3287 = vpop.f32.mrf.mxu0
    %v3288 = vadd.f32 %v3223, %v3287
    %v3289 = vpop.f32.mrf.mxu0
    %v3290 = vadd.f32 %v3223, %v3289
    %3291 = vmatmul.bf16.gmra.mxu0 %v3199
    %v3292 = vpop.f32.mrf.mxu0
    %v3293 = vadd.f32 %v3223, %v3292
    %v3294 = vpop.f32.mrf.mxu0
    %v3295 = vadd.f32 %v3223, %v3294
    %3296 = vmatmul.bf16.gmra.mxu0 %v3200
    %v3297 = vpop.f32.mrf.mxu0
    %v3298 = vadd.f32 %v3223, %v3297
    %v3299 = vpop.f32.mrf.mxu0
    %v3300 = vadd.f32 %v3223, %v3299
    %3301 = vmatmul.bf16.gmra.mxu0 %v3201
    %v3302 = vpop.f32.mrf.mxu0
    %v3303 = vadd.f32 %v3223, %v3302
    %v3304 = vpop.f32.mrf.mxu0
    %v3305 = vadd.f32 %v3223, %v3304
    %3306 = vmatmul.bf16.gmra.mxu0 %v3202
    %v3307 = vpop.f32.mrf.mxu0
    %v3308 = vadd.f32 %v3223, %v3307
    %v3309 = vpop.f32.mrf.mxu0
    %v3310 = vadd.f32 %v3223, %v3309
    %3311 = vmatmul.bf16.gmra.mxu0 %v3203
    %v3312 = vpop.f32.mrf.mxu0
    %v3313 = vadd.f32 %v3223, %v3312
    %v3314 = vpop.f32.mrf.mxu0
    %v3315 = vadd.f32 %v3223, %v3314
    %3316 = vmatmul.bf16.gmra.mxu0 %v3204
    %v3317 = vpop.f32.mrf.mxu0
    %v3318 = vadd.f32 %v3223, %v3317
    %v3319 = vpop.f32.mrf.mxu0
    %v3320 = vadd.f32 %v3223, %v3319
    %3321 = vdwg.mxu0
    %3322 = vst [vmem:[#allocation9] sm:$0xff] %v3283
    %3323 = vst [vmem:[#allocation9 + $0x8] sm:$0xff] %v3285
    %3324 = vst [vmem:[#allocation9 + $0x10] sm:$0xff] %v3288
    %3325 = vst [vmem:[#allocation9 + $0x18] sm:$0xff] %v3290
    %3326 = vst [vmem:[#allocation9 + $0x20] sm:$0xff] %v3293
    %3327 = vst [vmem:[#allocation9 + $0x28] sm:$0xff] %v3295
    %3328 = vst [vmem:[#allocation9 + $0x30] sm:$0xff] %v3298
    %3329 = vst [vmem:[#allocation9 + $0x38] sm:$0xff] %v3300
    %3330 = vst [vmem:[#allocation9 + $0x40] sm:$0xff] %v3303
    %3331 = vst [vmem:[#allocation9 + $0x48] sm:$0xff] %v3305
    %3332 = vst [vmem:[#allocation9 + $0x50] sm:$0xff] %v3308
    %3333 = vst [vmem:[#allocation9 + $0x58] sm:$0xff] %v3310
    %3334 = vst [vmem:[#allocation9 + $0x60] sm:$0xff] %v3313
    %3335 = vst [vmem:[#allocation9 + $0x68] sm:$0xff] %v3315
    %3336 = vst [vmem:[#allocation9 + $0x70] sm:$0xff] %v3318
    %3337 = vst [vmem:[#allocation9 + $0x78] sm:$0xff] %v3320
    // Predicated region
    $region45: #{tpu_custom_call.1} parent=1 // pred_check
      _
    $region46: #{tpu_custom_call.1} parent=1 // pred_check_branch
      %3339 = sbr.rel (0) target = $region48
    $region47: #{tpu_custom_call.1} parent=1 // pred_region
      %s3340 = sadd.s32 0, 0
      %s3341 = smul.u32 16, %s3340
      %3343 = vsyncadd [#allocation8], 0
      %s3344 = smul.addr %s3341, 8
      %s3345 = scalar_lea.hbm %s7, %s3344
      %s3346 = sshll.u32 [#allocation9], 4
      %s3347 = int_to_ptr.vmem [resolvable:$true] %s3346
      %s3348 = sshll.u32 %s3345, 4
      %s3349 = int_to_ptr.hbm [resolvable:$true] %s3348
      %3354 = dma.vmem_to_hbm [thread:$0]  %s3347, 2048, %s3349, [#allocation8], 128, 128, 8
    $region48: #{tpu_custom_call.1} parent=1 // pred_fallthru
      _
    // Predicated region
    $region49: #{tpu_custom_call.1} parent=1 // pred_check
      _
    $region50: #{tpu_custom_call.1} parent=1 // pred_check_branch
      %3356 = sbr.rel (0) target = $region52
    $region51: #{tpu_custom_call.1} parent=1 // pred_region
      %3358 = dma.done [#allocation8], 2048
    $region52: #{tpu_custom_call.1} parent=1 // pred_fallthru
      _
    %3359 = vsyncpa [#allocation7], 1
    %3360 = vsyncpa [#allocation8], 1

// kernel: tpu_custom_call.1
$region0: #{tpu_custom_call.1}
  #allocation0 [shape = 'u32[]', space=smem, size = 0x4, offset = 0x4, fixed_abs, tag = 'smem constant byte address 0x4 - core index']
  #allocation1 [shape = 'u32[72,128]{1,0:T(1,128)}', space=vmem, size = 0x9000, scoped, tag = 'internal scratch']
  #allocation2 [shape = 'f32[128,512]{1,0:T(8,128)}', space=vmem, size = 0x40000, scoped, tag = 'scratch operand']
  #allocation3 [shape = 'f32[128,128]{1,0:T(8,128)}', space=vmem, size = 0x10000, scoped, tag = 'scratch operand']
  #allocation4 [shape = 'f32[8,128]{1,0:T(8,128)}', space=vmem, size = 0x1000, scoped, tag = 'scratch operand']
  #allocation5 [shape = 'f32[8,128]{1,0:T(8,128)}', space=vmem, size = 0x1000, scoped, tag = 'scratch operand']
  %s0 = inlined_call_operand.vmem [shape: bf16[128,32], index: 0, kind: input, shape index: {}]
  %s1 = inlined_call_operand.vmem [shape: s32[128,1], index: 1, kind: input, shape index: {}]
  %s2 = inlined_call_operand.vmem [shape: bf16[32,512], index: 2, kind: input, shape index: {}]
  %s3 = inlined_call_operand.hbm [shape: bf16[128,512], index: 3, kind: input, shape index: {}]
  %s4 = inlined_call_operand.vmem [shape: f32[1,512], index: 4, kind: input, shape index: {}]
  %s5 = inlined_call_operand.vmem [shape: bf16[128,128], index: 5, kind: input, shape index: {}]
  %s6 = inlined_call_operand.vmem [shape: f32[1,128], index: 6, kind: input, shape index: {}]
  %s7 = inlined_call_operand.hbm [shape: f32[128,128], index: 7, kind: output, shape index: {}]
  %s8 = sld [smem:[#allocation0]]
  $region53: #{tpu_custom_call.1} parent=0
    _
  %s10 = ssub.s32 1, %s8
  %s11 = scalar_select 0, %s10, %s8
  $region1: #{tpu_custom_call.1} parent=0
    #allocation6 [shape = 'u8[131072]{0}', space=vmem, size = 0x20000, scoped, tag = 'input window, operand 3, single buffered']
    #allocation7 [shape = 's32[1]{0}', space=sflag, size = 0x4, scoped, tag = 'scoped memory for tpu_custom_call.1']
    #allocation8 [shape = 's32[1]{0}', space=sflag, size = 0x4, scoped, tag = 'scoped memory for tpu_custom_call.1']
    #allocation9 [shape = 'u8[65536]{0}', space=vmem, size = 0x10000, scoped, tag = 'output window, operand 0, single buffered']
    %12 = vsyncpa [#allocation7], 0
    %13 = vsyncpa [#allocation8], 0
    // Predicated region
    $region2: #{tpu_custom_call.1} parent=1 // pred_check
      _
    $region3: #{tpu_custom_call.1} parent=1 // pred_check_branch
      %15 = sbr.rel (0) target = $region5
    $region4: #{tpu_custom_call.1} parent=1 // pred_region
      %s16 = sadd.s32 0, 0
      %s17 = smul.u32 16, %s16
      %p18 = scmp.lt.s32.totalorder %s17, 15
      %s19 = scalar_select %p18, %s17, 15
      %s20 = smul.addr %s19, 4
      %s21 = scalar_lea.vmem %s0, %s20
      %s22 = sadd.s32 0, 0
      %s23 = smul.u32 16, %s22
    $region5: #{tpu_custom_call.1} parent=1 // pred_fallthru
      _
    // Predicated region
    $region6: #{tpu_custom_call.1} parent=1 // pred_check
      _
    $region7: #{tpu_custom_call.1} parent=1 // pred_check_branch
      %25 = sbr.rel (0) target = $region9
    $region8: #{tpu_custom_call.1} parent=1 // pred_region
      %s26 = sadd.s32 0, 0
      %s27 = smul.u32 16, %s26
      %p28 = scmp.lt.s32.totalorder %s27, 15
      %s29 = scalar_select %p28, %s27, 15
      %s30 = smul.addr %s29, 8
      %s31 = scalar_lea.vmem %s1, %s30
      %s32 = sadd.s32 0, 0
      %s33 = smul.u32 16, %s32
    $region9: #{tpu_custom_call.1} parent=1 // pred_fallthru
      _
    // Predicated region
    $region10: #{tpu_custom_call.1} parent=1 // pred_check
      _
    $region11: #{tpu_custom_call.1} parent=1 // pred_check_branch
      %35 = sbr.rel (0) target = $region13
    $region12: #{tpu_custom_call.1} parent=1 // pred_region
      _
    $region13: #{tpu_custom_call.1} parent=1 // pred_fallthru
      _
    // Predicated region
    $region14: #{tpu_custom_call.1} parent=1 // pred_check
      _
    $region15: #{tpu_custom_call.1} parent=1 // pred_check_branch
      %37 = sbr.rel (0) target = $region17
    $region16: #{tpu_custom_call.1} parent=1 // pred_region
      %39 = vsyncadd [#allocation7], 0
      %s40 = sshll.u32 %s3, 4
      %s41 = int_to_ptr.hbm [resolvable:$true] %s40
      %s42 = sshll.u32 [#allocation6], 4
      %s43 = int_to_ptr.vmem [resolvable:$true] %s42
      %48 = dma.hbm_to_vmem [thread:$0]  %s41, 4096, %s43, [#allocation7], 256, 256, 16
    $region17: #{tpu_custom_call.1} parent=1 // pred_fallthru
      _
    // Predicated region
    $region18: #{tpu_custom_call.1} parent=1 // pred_check
      _
    $region19: #{tpu_custom_call.1} parent=1 // pred_check_branch
      %50 = sbr.rel (0) target = $region21
    $region20: #{tpu_custom_call.1} parent=1 // pred_region
      _
    $region21: #{tpu_custom_call.1} parent=1 // pred_fallthru
      _
    // Predicated region
    $region22: #{tpu_custom_call.1} parent=1 // pred_check
      _
    $region23: #{tpu_custom_call.1} parent=1 // pred_check_branch
      %52 = sbr.rel (0) target = $region25
    $region24: #{tpu_custom_call.1} parent=1 // pred_region
      _
    $region25: #{tpu_custom_call.1} parent=1 // pred_fallthru
      _
    // Predicated region
    $region26: #{tpu_custom_call.1} parent=1 // pred_check
      _
    $region27: #{tpu_custom_call.1} parent=1 // pred_check_branch
      %54 = sbr.rel (0) target = $region29
    $region28: #{tpu_custom_call.1} parent=1 // pred_region
      _
    $region29: #{tpu_custom_call.1} parent=1 // pred_fallthru
      _
    // Predicated region
    $region30: #{tpu_custom_call.1} parent=1 // pred_check
      _
    $region31: #{tpu_custom_call.1} parent=1 // pred_check_branch
      %56 = sbr.rel (0) target = $region33
    $region32: #{tpu_custom_call.1} parent=1 // pred_region
      %58 = dma.done [#allocation7], 4096
    $region33: #{tpu_custom_call.1} parent=1 // pred_fallthru
      _
    %s59 = sadd.s32 0, 0
    %s60 = smul.u32 16, %s59
    %p61 = scmp.lt.s32.totalorder %s60, 15
    %s62 = scalar_select %p61, %s60, 15
    %s63 = smul.addr %s62, 4
    %s64 = scalar_lea.vmem %s0, %s63
    %s65 = sadd.s32 0, 0
    %s66 = smul.u32 16, %s65
    %p67 = scmp.lt.s32.totalorder %s66, 15
    %s68 = scalar_select %p67, %s66, 15
    %s69 = smul.addr %s68, 8
    %s70 = scalar_lea.vmem %s1, %s69
    %s71 = sadd.s32 0, 0
    %s72 = smul.u32 16, %s71
    %p73 = scmp.lt.s32.totalorder %s72, 15
    %s74 = scalar_select %p73, %s72, 15
    %s75 = smul.addr %s74, 4
    %s76 = scalar_lea.vmem %s0, %s75
    %s77 = sadd.s32 0, 0
    %s78 = smul.u32 16, %s77
    %s79 = sadd.s32 0, 0
    %s80 = smul.u32 16, %s79
    %p81 = scmp.lt.s32.totalorder %s80, 15
    %s82 = scalar_select %p81, %s80, 15
    %s83 = smul.addr %s82, 8
    %s84 = scalar_lea.vmem %s1, %s83
    %s85 = sadd.s32 0, 0
    %s86 = smul.u32 16, %s85
    %s87 = sadd.s32 0, 0
    %s88 = smul.u32 16, %s87
    %p90 = scmp.eq.s32.totalorder 0, 0
    // Predicated region
    $region34: #{tpu_custom_call.1} parent=1 // pred_check
      %p91 = pneg %p90
    $region35: #{tpu_custom_call.1} parent=1 // pred_check_branch
      %93 = sbr.rel (%p91) target = $region37
    $region36: #{tpu_custom_call.1} parent=1 // pred_region
      %94 = vst [vmem:[#allocation4] sm:$0xff] 0.0
      %95 = vst [vmem:[#allocation5] sm:$0xff] 0.0
    $region37: #{tpu_custom_call.1} parent=1 // pred_fallthru
      _
    %v96 = vld [vmem:[%s76] sm:$0xf]
    %v97 = vld [vmem:[%s76 + $0x4] sm:$0xf]
    %v98 = vld [vmem:[%s76 + $0x8] sm:$0xf]
    %v99 = vld [vmem:[%s76 + $0xc] sm:$0xf]
    %v100 = vld [vmem:[%s76 + $0x10] sm:$0xf]
    %v101 = vld [vmem:[%s76 + $0x14] sm:$0xf]
    %v102 = vld [vmem:[%s76 + $0x18] sm:$0xf]
    %v103 = vld [vmem:[%s76 + $0x1c] sm:$0xf]
    %v104 = vld [vmem:[%s76 + $0x20] sm:$0xf]
    %v105 = vld [vmem:[%s76 + $0x24] sm:$0xf]
    %v106 = vld [vmem:[%s76 + $0x28] sm:$0xf]
    %v107 = vld [vmem:[%s76 + $0x2c] sm:$0xf]
    %v108 = vld [vmem:[%s76 + $0x30] sm:$0xf]
    %v109 = vld [vmem:[%s76 + $0x34] sm:$0xf]
    %v110 = vld [vmem:[%s76 + $0x38] sm:$0xf]
    %v111 = vld [vmem:[%s76 + $0x3c] sm:$0xf]
    %v112 = vld [vmem:[%s2] sm:$0xff]
    %v113 = vld [vmem:[%s2 + $0x8] sm:$0xff]
    %v114 = vld [vmem:[%s2 + $0x10] sm:$0xff]
    %v115 = vld [vmem:[%s2 + $0x18] sm:$0xff]
    %v116 = vld [vmem:[%s2 + $0x20] sm:$0xff]
    %v117 = vld [vmem:[%s2 + $0x28] sm:$0xff]
    %v118 = vld [vmem:[%s2 + $0x30] sm:$0xff]
    %v119 = vld [vmem:[%s2 + $0x38] sm:$0xff]
    %v120 = vld [vmem:[%s4] sm:$0xf]
    %v122 = vperm.slane %v120, 0
    %v123 = vperm.slane %v120, 1
    %v124 = vperm.slane %v120, 2
    %v125 = vperm.slane %v120, 3
    %v146 = vunpack.c.l.b16 %v96
    %v147 = vunpack.c.l.b16 %v97
    %v148 = vunpack.c.l.b16 %v98
    %v149 = vunpack.c.l.b16 %v99
    %v150 = vunpack.c.l.b16 %v100
    %v151 = vunpack.c.l.b16 %v101
    %v152 = vunpack.c.l.b16 %v102
    %v153 = vunpack.c.l.b16 %v103
    %v154 = vunpack.c.l.b16 %v104
    %v155 = vunpack.c.l.b16 %v105
    %v156 = vunpack.c.l.b16 %v106
    %v157 = vunpack.c.l.b16 %v107
    %v158 = vunpack.c.l.b16 %v108
    %v159 = vunpack.c.l.b16 %v109
    %v160 = vunpack.c.l.b16 %v110
    %v161 = vunpack.c.l.b16 %v111
    %v162 = vpack.c.b16 %v147, %v146
    %v163 = vpack.c.b16 %v149, %v148
    %v164 = vpack.c.b16 %v151, %v150
    %v165 = vpack.c.b16 %v153, %v152
    %v166 = vpack.c.b16 %v155, %v154
    %v167 = vpack.c.b16 %v157, %v156
    %v168 = vpack.c.b16 %v159, %v158
    %v169 = vpack.c.b16 %v161, %v160
    %v178 = vunpack.c.l.b16 %v112
    %v179 = vunpack.c.h.b16 %v112
    %v180 = vunpack.c.l.b16 %v113
    %v181 = vunpack.c.h.b16 %v113
    %v182 = vunpack.c.l.b16 %v114
    %v183 = vunpack.c.h.b16 %v114
    %v184 = vunpack.c.l.b16 %v115
    %v185 = vunpack.c.h.b16 %v115
    %v186 = vunpack.c.l.b16 %v116
    %v187 = vunpack.c.h.b16 %v116
    %v188 = vunpack.c.l.b16 %v117
    %v189 = vunpack.c.h.b16 %v117
    %v190 = vunpack.c.l.b16 %v118
    %v191 = vunpack.c.h.b16 %v118
    %v192 = vunpack.c.l.b16 %v119
    %v193 = vunpack.c.h.b16 %v119
    %v194 = vpack.c.b16 %v182, %v178
    %v195 = vpack.c.b16 %v183, %v179
    %v196 = vpack.c.b16 %v184, %v180
    %v197 = vpack.c.b16 %v185, %v181
    %v198 = vpack.c.b16 %v190, %v186
    %v199 = vpack.c.b16 %v191, %v187
    %v200 = vpack.c.b16 %v192, %v188
    %v201 = vpack.c.b16 %v193, %v189
    %vm210 = vcmask 261120
    %v212 = vsel %vm210, %v162, 0
    %v215 = vsel %vm210, %v163, 0
    %v218 = vsel %vm210, %v164, 0
    %v221 = vsel %vm210, %v165, 0
    %v224 = vsel %vm210, %v166, 0
    %v227 = vsel %vm210, %v167, 0
    %v230 = vsel %vm210, %v168, 0
    %v233 = vsel %vm210, %v169, 0
    %235 = vmatpush.bf16.msra.mxu0 0
    %236 = vmatpush.bf16.msra.mxu0 0
    %237 = vmatpush.bf16.msra.mxu0 0
    %238 = vmatpush.bf16.msra.mxu0 0
    %239 = vmatpush.bf16.msra.mxu0 0
    %240 = vmatpush.bf16.msra.mxu0 0
    %241 = vmatpush.bf16.msra.mxu0 %v198
    %242 = vmatpush.bf16.msra.mxu0 %v194
    %243 = vmatmul.bf16.gmra.mxu0 %v212
    %v244 = vpop.f32.mrf.mxu0
    %v245 = vadd.f32 %v122, %v244
    %v246 = vpop.f32.mrf.mxu0
    %v247 = vadd.f32 %v122, %v246
    %248 = vmatmul.bf16.gmra.mxu0 %v215
    %v249 = vpop.f32.mrf.mxu0
    %v250 = vadd.f32 %v122, %v249
    %v251 = vpop.f32.mrf.mxu0
    %v252 = vadd.f32 %v122, %v251
    %253 = vmatmul.bf16.gmra.mxu0 %v218
    %v254 = vpop.f32.mrf.mxu0
    %v255 = vadd.f32 %v122, %v254
    %v256 = vpop.f32.mrf.mxu0
    %v257 = vadd.f32 %v122, %v256
    %258 = vmatmul.bf16.gmra.mxu0 %v221
    %v259 = vpop.f32.mrf.mxu0
    %v260 = vadd.f32 %v122, %v259
    %v261 = vpop.f32.mrf.mxu0
    %v262 = vadd.f32 %v122, %v261
    %263 = vmatmul.bf16.gmra.mxu0 %v224
    %v264 = vpop.f32.mrf.mxu0
    %v265 = vadd.f32 %v122, %v264
    %v266 = vpop.f32.mrf.mxu0
    %v267 = vadd.f32 %v122, %v266
    %268 = vmatmul.bf16.gmra.mxu0 %v227
    %v269 = vpop.f32.mrf.mxu0
    %v270 = vadd.f32 %v122, %v269
    %v271 = vpop.f32.mrf.mxu0
    %v272 = vadd.f32 %v122, %v271
    %273 = vmatmul.bf16.gmra.mxu0 %v230
    %v274 = vpop.f32.mrf.mxu0
    %v275 = vadd.f32 %v122, %v274
    %v276 = vpop.f32.mrf.mxu0
    %v277 = vadd.f32 %v122, %v276
    %278 = vmatmul.bf16.gmra.mxu0 %v233
    %v279 = vpop.f32.mrf.mxu0
    %v280 = vadd.f32 %v122, %v279
    %v281 = vpop.f32.mrf.mxu0
    %v282 = vadd.f32 %v122, %v281
    %283 = vdwg.mxu0
    %284 = vmatpush.bf16.msra.mxu0 0
    %285 = vmatpush.bf16.msra.mxu0 0
    %286 = vmatpush.bf16.msra.mxu0 0
    %287 = vmatpush.bf16.msra.mxu0 0
    %288 = vmatpush.bf16.msra.mxu0 0
    %289 = vmatpush.bf16.msra.mxu0 0
    %290 = vmatpush.bf16.msra.mxu0 %v199
    %291 = vmatpush.bf16.msra.mxu0 %v195
    %292 = vmatmul.bf16.gmra.mxu0 %v212
    %v293 = vpop.f32.mrf.mxu0
    %v294 = vadd.f32 %v123, %v293
    %v295 = vpop.f32.mrf.mxu0
    %v296 = vadd.f32 %v123, %v295
    %297 = vmatmul.bf16.gmra.mxu0 %v215
    %v298 = vpop.f32.mrf.mxu0
    %v299 = vadd.f32 %v123, %v298
    %v300 = vpop.f32.mrf.mxu0
    %v301 = vadd.f32 %v123, %v300
    %302 = vmatmul.bf16.gmra.mxu0 %v218
    %v303 = vpop.f32.mrf.mxu0
    %v304 = vadd.f32 %v123, %v303
    %v305 = vpop.f32.mrf.mxu0
    %v306 = vadd.f32 %v123, %v305
    %307 = vmatmul.bf16.gmra.mxu0 %v221
    %v308 = vpop.f32.mrf.mxu0
    %v309 = vadd.f32 %v123, %v308
    %v310 = vpop.f32.mrf.mxu0
    %v311 = vadd.f32 %v123, %v310
    %312 = vmatmul.bf16.gmra.mxu0 %v224
    %v313 = vpop.f32.mrf.mxu0
    %v314 = vadd.f32 %v123, %v313
    %v315 = vpop.f32.mrf.mxu0
    %v316 = vadd.f32 %v123, %v315
    %317 = vmatmul.bf16.gmra.mxu0 %v227
    %v318 = vpop.f32.mrf.mxu0
    %v319 = vadd.f32 %v123, %v318
    %v320 = vpop.f32.mrf.mxu0
    %v321 = vadd.f32 %v123, %v320
    %322 = vmatmul.bf16.gmra.mxu0 %v230
    %v323 = vpop.f32.mrf.mxu0
    %v324 = vadd.f32 %v123, %v323
    %v325 = vpop.f32.mrf.mxu0
    %v326 = vadd.f32 %v123, %v325
    %327 = vmatmul.bf16.gmra.mxu0 %v233
    %v328 = vpop.f32.mrf.mxu0
    %v329 = vadd.f32 %v123, %v328
    %v330 = vpop.f32.mrf.mxu0
    %v331 = vadd.f32 %v123, %v330
    %332 = vdwg.mxu0
    %333 = vmatpush.bf16.msra.mxu0 0
    %334 = vmatpush.bf16.msra.mxu0 0
    %335 = vmatpush.bf16.msra.mxu0 0
    %336 = vmatpush.bf16.msra.mxu0 0
    %337 = vmatpush.bf16.msra.mxu0 0
    %338 = vmatpush.bf16.msra.mxu0 0
    %339 = vmatpush.bf16.msra.mxu0 %v200
    %340 = vmatpush.bf16.msra.mxu0 %v196
    %341 = vmatmul.bf16.gmra.mxu0 %v212
    %v342 = vpop.f32.mrf.mxu0
    %v343 = vadd.f32 %v124, %v342
    %v344 = vpop.f32.mrf.mxu0
    %v345 = vadd.f32 %v124, %v344
    %346 = vmatmul.bf16.gmra.mxu0 %v215
    %v347 = vpop.f32.mrf.mxu0
    %v348 = vadd.f32 %v124, %v347
    %v349 = vpop.f32.mrf.mxu0
    %v350 = vadd.f32 %v124, %v349
    %351 = vmatmul.bf16.gmra.mxu0 %v218
    %v352 = vpop.f32.mrf.mxu0
    %v353 = vadd.f32 %v124, %v352
    %v354 = vpop.f32.mrf.mxu0
    %v355 = vadd.f32 %v124, %v354
    %356 = vmatmul.bf16.gmra.mxu0 %v221
    %v357 = vpop.f32.mrf.mxu0
    %v358 = vadd.f32 %v124, %v357
    %v359 = vpop.f32.mrf.mxu0
    %v360 = vadd.f32 %v124, %v359
    %361 = vmatmul.bf16.gmra.mxu0 %v224
    %v362 = vpop.f32.mrf.mxu0
    %v363 = vadd.f32 %v124, %v362
    %v364 = vpop.f32.mrf.mxu0
    %v365 = vadd.f32 %v124, %v364
    %366 = vmatmul.bf16.gmra.mxu0 %v227
    %v367 = vpop.f32.mrf.mxu0
    %v368 = vadd.f32 %v124, %v367
    %v369 = vpop.f32.mrf.mxu0
    %v370 = vadd.f32 %v124, %v369
    %371 = vmatmul.bf16.gmra.mxu0 %v230
    %v372 = vpop.f32.mrf.mxu0
    %v373 = vadd.f32 %v124, %v372
    %v374 = vpop.f32.mrf.mxu0
    %v375 = vadd.f32 %v124, %v374
    %376 = vmatmul.bf16.gmra.mxu0 %v233
    %v377 = vpop.f32.mrf.mxu0
    %v378 = vadd.f32 %v124, %v377
    %v379 = vpop.f32.mrf.mxu0
    %v380 = vadd.f32 %v124, %v379
    %381 = vdwg.mxu0
    %382 = vmatpush.bf16.msra.mxu0 0
    %383 = vmatpush.bf16.msra.mxu0 0
    %384 = vmatpush.bf16.msra.mxu0 0
    %385 = vmatpush.bf16.msra.mxu0 0
    %386 = vmatpush.bf16.msra.mxu0 0
    %387 = vmatpush.bf16.msra.mxu0 0
    %388 = vmatpush.bf16.msra.mxu0 %v201
    %389 = vmatpush.bf16.msra.mxu0 %v197
    %390 = vmatmul.bf16.gmra.mxu0 %v212
    %v391 = vpop.f32.mrf.mxu0
    %v392 = vadd.f32 %v125, %v391
    %v393 = vpop.f32.mrf.mxu0
    %v394 = vadd.f32 %v125, %v393
    %395 = vmatmul.bf16.gmra.mxu0 %v215
    %v396 = vpop.f32.mrf.mxu0
    %v397 = vadd.f32 %v125, %v396
    %v398 = vpop.f32.mrf.mxu0
    %v399 = vadd.f32 %v125, %v398
    %400 = vmatmul.bf16.gmra.mxu0 %v218
    %v401 = vpop.f32.mrf.mxu0
    %v402 = vadd.f32 %v125, %v401
    %v403 = vpop.f32.mrf.mxu0
    %v404 = vadd.f32 %v125, %v403
    %405 = vmatmul.bf16.gmra.mxu0 %v221
    %v406 = vpop.f32.mrf.mxu0
    %v407 = vadd.f32 %v125, %v406
    %v408 = vpop.f32.mrf.mxu0
    %v409 = vadd.f32 %v125, %v408
    %410 = vmatmul.bf16.gmra.mxu0 %v224
    %v411 = vpop.f32.mrf.mxu0
    %v412 = vadd.f32 %v125, %v411
    %v413 = vpop.f32.mrf.mxu0
    %v414 = vadd.f32 %v125, %v413
    %415 = vmatmul.bf16.gmra.mxu0 %v227
    %v416 = vpop.f32.mrf.mxu0
    %v417 = vadd.f32 %v125, %v416
    %v418 = vpop.f32.mrf.mxu0
    %v419 = vadd.f32 %v125, %v418
    %420 = vmatmul.bf16.gmra.mxu0 %v230
    %v421 = vpop.f32.mrf.mxu0
    %v422 = vadd.f32 %v125, %v421
    %v423 = vpop.f32.mrf.mxu0
    %v424 = vadd.f32 %v125, %v423
    %425 = vmatmul.bf16.gmra.mxu0 %v233
    %v426 = vpop.f32.mrf.mxu0
    %v427 = vadd.f32 %v125, %v426
    %v428 = vpop.f32.mrf.mxu0
    %v429 = vadd.f32 %v125, %v428
    %430 = vdwg.mxu0
    %431 = vst [vmem:[#allocation2] sm:$0xff] %v245
    %432 = vst [vmem:[#allocation2 + $0x8] sm:$0xff] %v294
    %433 = vst [vmem:[#allocation2 + $0x10] sm:$0xff] %v343
    %434 = vst [vmem:[#allocation2 + $0x18] sm:$0xff] %v392
    %435 = vst [vmem:[#allocation2 + $0x20] sm:$0xff] %v247
    %436 = vst [vmem:[#allocation2 + $0x28] sm:$0xff] %v296
    %437 = vst [vmem:[#allocation2 + $0x30] sm:$0xff] %v345
    %438 = vst [vmem:[#allocation2 + $0x38] sm:$0xff] %v394
    %439 = vst [vmem:[#allocation2 + $0x40] sm:$0xff] %v250
    %440 = vst [vmem:[#allocation2 + $0x48] sm:$0xff] %v299
    %441 = vst [vmem:[#allocation2 + $0x50] sm:$0xff] %v348
    %442 = vst [vmem:[#allocation2 + $0x58] sm:$0xff] %v397
    %443 = vst [vmem:[#allocation2 + $0x60] sm:$0xff] %v252
    %444 = vst [vmem:[#allocation2 + $0x68] sm:$0xff] %v301
    %445 = vst [vmem:[#allocation2 + $0x70] sm:$0xff] %v350
    %446 = vst [vmem:[#allocation2 + $0x78] sm:$0xff] %v399
    %447 = vst [vmem:[#allocation2 + $0x80] sm:$0xff] %v255
    %448 = vst [vmem:[#allocation2 + $0x88] sm:$0xff] %v304
    %449 = vst [vmem:[#allocation2 + $0x90] sm:$0xff] %v353
    %450 = vst [vmem:[#allocation2 + $0x98] sm:$0xff] %v402
    %451 = vst [vmem:[#allocation2 + $0xa0] sm:$0xff] %v257
    %452 = vst [vmem:[#allocation2 + $0xa8] sm:$0xff] %v306
    %453 = vst [vmem:[#allocation2 + $0xb0] sm:$0xff] %v355
    %454 = vst [vmem:[#allocation2 + $0xb8] sm:$0xff] %v404
    %455 = vst [vmem:[#allocation2 + $0xc0] sm:$0xff] %v260
    %456 = vst [vmem:[#allocation2 + $0xc8] sm:$0xff] %v309
    %457 = vst [vmem:[#allocation2 + $0xd0] sm:$0xff] %v358
    %458 = vst [vmem:[#allocation2 + $0xd8] sm:$0xff] %v407
    %459 = vst [vmem:[#allocation2 + $0xe0] sm:$0xff] %v262
    %460 = vst [vmem:[#allocation2 + $0xe8] sm:$0xff] %v311
    %461 = vst [vmem:[#allocation2 + $0xf0] sm:$0xff] %v360
    %462 = vst [vmem:[#allocation2 + $0xf8] sm:$0xff] %v409
    %463 = vst [vmem:[#allocation2 + $0x100] sm:$0xff] %v265
    %464 = vst [vmem:[#allocation2 + $0x108] sm:$0xff] %v314
    %465 = vst [vmem:[#allocation2 + $0x110] sm:$0xff] %v363
    %466 = vst [vmem:[#allocation2 + $0x118] sm:$0xff] %v412
    %467 = vst [vmem:[#allocation2 + $0x120] sm:$0xff] %v267
    %468 = vst [vmem:[#allocation2 + $0x128] sm:$0xff] %v316
    %469 = vst [vmem:[#allocation2 + $0x130] sm:$0xff] %v365
    %470 = vst [vmem:[#allocation2 + $0x138] sm:$0xff] %v414
    %471 = vst [vmem:[#allocation2 + $0x140] sm:$0xff] %v270
    %472 = vst [vmem:[#allocation2 + $0x148] sm:$0xff] %v319
    %473 = vst [vmem:[#allocation2 + $0x150] sm:$0xff] %v368
    %474 = vst [vmem:[#allocation2 + $0x158] sm:$0xff] %v417
    %475 = vst [vmem:[#allocation2 + $0x160] sm:$0xff] %v272
    %476 = vst [vmem:[#allocation2 + $0x168] sm:$0xff] %v321
    %477 = vst [vmem:[#allocation2 + $0x170] sm:$0xff] %v370
    %478 = vst [vmem:[#allocation2 + $0x178] sm:$0xff] %v419
    %479 = vst [vmem:[#allocation2 + $0x180] sm:$0xff] %v275
    %480 = vst [vmem:[#allocation2 + $0x188] sm:$0xff] %v324
    %481 = vst [vmem:[#allocation2 + $0x190] sm:$0xff] %v373
    %482 = vst [vmem:[#allocation2 + $0x198] sm:$0xff] %v422
    %483 = vst [vmem:[#allocation2 + $0x1a0] sm:$0xff] %v277
    %484 = vst [vmem:[#allocation2 + $0x1a8] sm:$0xff] %v326
    %485 = vst [vmem:[#allocation2 + $0x1b0] sm:$0xff] %v375
    %486 = vst [vmem:[#allocation2 + $0x1b8] sm:$0xff] %v424
    %487 = vst [vmem:[#allocation2 + $0x1c0] sm:$0xff] %v280
    %488 = vst [vmem:[#allocation2 + $0x1c8] sm:$0xff] %v329
    %489 = vst [vmem:[#allocation2 + $0x1d0] sm:$0xff] %v378
    %490 = vst [vmem:[#allocation2 + $0x1d8] sm:$0xff] %v427
    %491 = vst [vmem:[#allocation2 + $0x1e0] sm:$0xff] %v282
    %492 = vst [vmem:[#allocation2 + $0x1e8] sm:$0xff] %v331
    %493 = vst [vmem:[#allocation2 + $0x1f0] sm:$0xff] %v380
    %494 = vst [vmem:[#allocation2 + $0x1f8] sm:$0xff] %v429
    %v495 = vld [vmem:[#allocation4] sm:$0xff]
    %v496 = vpack.c.bf16 %v495, %v495
    %v497 = vld [vmem:[#allocation5] sm:$0xff]
    loop: start=0, step=1, limit=2
    $region38: #{tpu_custom_call.1} parent=1 // loop_pre_header
      _
    $region39: #{tpu_custom_call.1} parent=1 // loop_header
      %s499 = sphi 0, %s503
      %p500 = scmp.ge.s32.totalorder %s499, 2
      %v504 = vphi %v496, %v3173
      %v505 = vphi %v497, %v3174
    $region40: #{tpu_custom_call.1} parent=1 // loop_header_branch
      %502 = sbr.rel (%p500) target = $region44
    $region41: #{tpu_custom_call.1} parent=1 // loop_body
      %s506 = smul.u32 %s499, 64
      %s507 = sshra.s32 %s506, 3
      %s508 = sand.u32 %s506, 7
      %s509 = smul.u32 %s507, 4
      %s510 = smul.addr %s509, 8
      %s511 = scalar_lea.vmem [#allocation2], %s510
      %v512 = vld [vmem:[%s511] sm:$0xff]
      %v513 = vld [vmem:[%s511 + $0x8] sm:$0xff]
      %v514 = vld [vmem:[%s511 + $0x10] sm:$0xff]
      %v515 = vld [vmem:[%s511 + $0x18] sm:$0xff]
      %v516 = vld [vmem:[#allocation6] sm:$0xff]
      %v517 = vld [vmem:[#allocation6 + $0x8] sm:$0xff]
      %v518 = vld [vmem:[#allocation6 + $0x10] sm:$0xff]
      %v519 = vld [vmem:[#allocation6 + $0x18] sm:$0xff]
      %v520 = vld [vmem:[#allocation6 + $0x20] sm:$0xff]
      %v521 = vld [vmem:[#allocation6 + $0x28] sm:$0xff]
      %v522 = vld [vmem:[#allocation6 + $0x30] sm:$0xff]
      %v523 = vld [vmem:[#allocation6 + $0x38] sm:$0xff]
      %v524 = vld [vmem:[#allocation6 + $0x40] sm:$0xff]
      %v525 = vld [vmem:[#allocation6 + $0x48] sm:$0xff]
      %v526 = vld [vmem:[#allocation6 + $0x50] sm:$0xff]
      %v527 = vld [vmem:[#allocation6 + $0x58] sm:$0xff]
      %v528 = vld [vmem:[#allocation6 + $0x60] sm:$0xff]
      %v529 = vld [vmem:[#allocation6 + $0x68] sm:$0xff]
      %v530 = vld [vmem:[#allocation6 + $0x70] sm:$0xff]
      %v531 = vld [vmem:[#allocation6 + $0x78] sm:$0xff]
      %v532 = vld [vmem:[#allocation6 + $0x80] sm:$0xff]
      %v533 = vld [vmem:[#allocation6 + $0x88] sm:$0xff]
      %v534 = vld [vmem:[#allocation6 + $0x90] sm:$0xff]
      %v535 = vld [vmem:[#allocation6 + $0x98] sm:$0xff]
      %v536 = vld [vmem:[#allocation6 + $0xa0] sm:$0xff]
      %v537 = vld [vmem:[#allocation6 + $0xa8] sm:$0xff]
      %v538 = vld [vmem:[#allocation6 + $0xb0] sm:$0xff]
      %v539 = vld [vmem:[#allocation6 + $0xb8] sm:$0xff]
      %v540 = vld [vmem:[#allocation6 + $0xc0] sm:$0xff]
      %v541 = vld [vmem:[#allocation6 + $0xc8] sm:$0xff]
      %v542 = vld [vmem:[#allocation6 + $0xd0] sm:$0xff]
      %v543 = vld [vmem:[#allocation6 + $0xd8] sm:$0xff]
      %v544 = vld [vmem:[#allocation6 + $0xe0] sm:$0xff]
      %v545 = vld [vmem:[#allocation6 + $0xe8] sm:$0xff]
      %v546 = vld [vmem:[#allocation6 + $0xf0] sm:$0xff]
      %v547 = vld [vmem:[#allocation6 + $0xf8] sm:$0xff]
      %v580 = vunpack.c.l.b16 %v516
      %v581 = vunpack.c.h.b16 %v516
      %v582 = vunpack.c.l.b16 %v517
      %v583 = vunpack.c.h.b16 %v517
      %v584 = vunpack.c.l.b16 %v518
      %v585 = vunpack.c.h.b16 %v518
      %v586 = vunpack.c.l.b16 %v519
      %v587 = vunpack.c.h.b16 %v519
      %v588 = vunpack.c.l.b16 %v520
      %v589 = vunpack.c.h.b16 %v520
      %v590 = vunpack.c.l.b16 %v521
      %v591 = vunpack.c.h.b16 %v521
      %v592 = vunpack.c.l.b16 %v522
      %v593 = vunpack.c.h.b16 %v522
      %v594 = vunpack.c.l.b16 %v523
      %v595 = vunpack.c.h.b16 %v523
      %v596 = vunpack.c.l.b16 %v524
      %v597 = vunpack.c.h.b16 %v524
      %v598 = vunpack.c.l.b16 %v525
      %v599 = vunpack.c.h.b16 %v525
      %v600 = vunpack.c.l.b16 %v526
      %v601 = vunpack.c.h.b16 %v526
      %v602 = vunpack.c.l.b16 %v527
      %v603 = vunpack.c.h.b16 %v527
      %v604 = vunpack.c.l.b16 %v528
      %v605 = vunpack.c.h.b16 %v528
      %v606 = vunpack.c.l.b16 %v529
      %v607 = vunpack.c.h.b16 %v529
      %v608 = vunpack.c.l.b16 %v530
      %v609 = vunpack.c.h.b16 %v530
      %v610 = vunpack.c.l.b16 %v531
      %v611 = vunpack.c.h.b16 %v531
      %v612 = vunpack.c.l.b16 %v532
      %v613 = vunpack.c.h.b16 %v532
      %v614 = vunpack.c.l.b16 %v533
      %v615 = vunpack.c.h.b16 %v533
      %v616 = vunpack.c.l.b16 %v534
      %v617 = vunpack.c.h.b16 %v534
      %v618 = vunpack.c.l.b16 %v535
      %v619 = vunpack.c.h.b16 %v535
      %v620 = vunpack.c.l.b16 %v536
      %v621 = vunpack.c.h.b16 %v536
      %v622 = vunpack.c.l.b16 %v537
      %v623 = vunpack.c.h.b16 %v537
      %v624 = vunpack.c.l.b16 %v538
      %v625 = vunpack.c.h.b16 %v538
      %v626 = vunpack.c.l.b16 %v539
      %v627 = vunpack.c.h.b16 %v539
      %v628 = vunpack.c.l.b16 %v540
      %v629 = vunpack.c.h.b16 %v540
      %v630 = vunpack.c.l.b16 %v541
      %v631 = vunpack.c.h.b16 %v541
      %v632 = vunpack.c.l.b16 %v542
      %v633 = vunpack.c.h.b16 %v542
      %v634 = vunpack.c.l.b16 %v543
      %v635 = vunpack.c.h.b16 %v543
      %v636 = vunpack.c.l.b16 %v544
      %v637 = vunpack.c.h.b16 %v544
      %v638 = vunpack.c.l.b16 %v545
      %v639 = vunpack.c.h.b16 %v545
      %v640 = vunpack.c.l.b16 %v546
      %v641 = vunpack.c.h.b16 %v546
      %v642 = vunpack.c.l.b16 %v547
      %v643 = vunpack.c.h.b16 %v547
      %v644 = vpack.c.b16 %v584, %v580
      %v645 = vpack.c.b16 %v585, %v581
      %v646 = vpack.c.b16 %v586, %v582
      %v647 = vpack.c.b16 %v587, %v583
      %v648 = vpack.c.b16 %v592, %v588
      %v649 = vpack.c.b16 %v593, %v589
      %v650 = vpack.c.b16 %v594, %v590
      %v651 = vpack.c.b16 %v595, %v591
      %v652 = vpack.c.b16 %v600, %v596
      %v653 = vpack.c.b16 %v601, %v597
      %v654 = vpack.c.b16 %v602, %v598
      %v655 = vpack.c.b16 %v603, %v599
      %v656 = vpack.c.b16 %v608, %v604
      %v657 = vpack.c.b16 %v609, %v605
      %v658 = vpack.c.b16 %v610, %v606
      %v659 = vpack.c.b16 %v611, %v607
      %v660 = vpack.c.b16 %v616, %v612
      %v661 = vpack.c.b16 %v617, %v613
      %v662 = vpack.c.b16 %v618, %v614
      %v663 = vpack.c.b16 %v619, %v615
      %v664 = vpack.c.b16 %v624, %v620
      %v665 = vpack.c.b16 %v625, %v621
      %v666 = vpack.c.b16 %v626, %v622
      %v667 = vpack.c.b16 %v627, %v623
      %v668 = vpack.c.b16 %v632, %v628
      %v669 = vpack.c.b16 %v633, %v629
      %v670 = vpack.c.b16 %v634, %v630
      %v671 = vpack.c.b16 %v635, %v631
      %v672 = vpack.c.b16 %v640, %v636
      %v673 = vpack.c.b16 %v641, %v637
      %v674 = vpack.c.b16 %v642, %v638
      %v675 = vpack.c.b16 %v643, %v639
      %708 = vmatpush.bf16.msra.mxu0 %v672
      %709 = vmatpush.bf16.msra.mxu0 %v668
      %710 = vmatpush.bf16.msra.mxu0 %v664
      %711 = vmatpush.bf16.msra.mxu0 %v660
      %712 = vmatpush.bf16.msra.mxu0 %v656
      %713 = vmatpush.bf16.msra.mxu0 %v652
      %714 = vmatpush.bf16.msra.mxu0 %v648
      %715 = vmatpush.bf16.msra.mxu0 %v644
      %716 = vmatmul.bf16.gmra.mxu0 %v504
      %v717 = vpop.f32.mrf.mxu0
      %v718 = vadd.f32 0.0, %v717
      %v719 = vpop.f32.mrf.mxu0
      %720 = vdwg.mxu0
      %721 = vmatpush.bf16.msra.mxu0 %v673
      %722 = vmatpush.bf16.msra.mxu0 %v669
      %723 = vmatpush.bf16.msra.mxu0 %v665
      %724 = vmatpush.bf16.msra.mxu0 %v661
      %725 = vmatpush.bf16.msra.mxu0 %v657
      %726 = vmatpush.bf16.msra.mxu0 %v653
      %727 = vmatpush.bf16.msra.mxu0 %v649
      %728 = vmatpush.bf16.msra.mxu0 %v645
      %729 = vmatmul.bf16.gmra.mxu0 %v504
      %v730 = vpop.f32.mrf.mxu0
      %v731 = vadd.f32 0.0, %v730
      %v732 = vpop.f32.mrf.mxu0
      %733 = vdwg.mxu0
      %734 = vmatpush.bf16.msra.mxu0 %v674
      %735 = vmatpush.bf16.msra.mxu0 %v670
      %736 = vmatpush.bf16.msra.mxu0 %v666
      %737 = vmatpush.bf16.msra.mxu0 %v662
      %738 = vmatpush.bf16.msra.mxu0 %v658
      %739 = vmatpush.bf16.msra.mxu0 %v654
      %740 = vmatpush.bf16.msra.mxu0 %v650
      %741 = vmatpush.bf16.msra.mxu0 %v646
      %742 = vmatmul.bf16.gmra.mxu0 %v504
      %v743 = vpop.f32.mrf.mxu0
      %v744 = vadd.f32 0.0, %v743
      %v745 = vpop.f32.mrf.mxu0
      %746 = vdwg.mxu0
      %747 = vmatpush.bf16.msra.mxu0 %v675
      %748 = vmatpush.bf16.msra.mxu0 %v671
      %749 = vmatpush.bf16.msra.mxu0 %v667
      %750 = vmatpush.bf16.msra.mxu0 %v663
      %751 = vmatpush.bf16.msra.mxu0 %v659
      %752 = vmatpush.bf16.msra.mxu0 %v655
      %753 = vmatpush.bf16.msra.mxu0 %v651
      %754 = vmatpush.bf16.msra.mxu0 %v647
      %755 = vmatmul.bf16.gmra.mxu0 %v504
      %v756 = vpop.f32.mrf.mxu0
      %v757 = vadd.f32 0.0, %v756
      %v758 = vpop.f32.mrf.mxu0
      %759 = vdwg.mxu0
      %v760 = vadd.f32 %v512, %v718
      %v761 = vadd.f32 %v513, %v731
      %v762 = vadd.f32 %v514, %v744
      %v763 = vadd.f32 %v515, %v757
      %v764 = vxor.u32 %v760, 2147483648
      %v765 = vmul.f32 %v764, 1.442695
      %v766 = vpow.pop %v765
      %v767 = vadd.f32 %v766, 1.0
      %v768 = vrcp.pop %v767
      %v769 = vmul.f32 %v767, %v768
      %v770 = vsub.f32 1.0, %v769
      %v771 = vmul.f32 %v768, %v770
      %v772 = vadd.f32 %v768, %v771
      %vm773 = vweird.f32 %v767
      %vm774 = vweird.f32 %v768
      %vm775 = vmor %vm773, %vm774
      %v776 = vsel %vm775, %v768, %v772
      %v777 = vand.u32 2147483647, %v767
      %vm778 = vcmp.eq.f32.partialorder %v777, 8.507059e+37
      %v779 = vand.u32 %v767, 2147483648
      %v780 = vor.u32 1.1754944e-38, %v779
      %v781 = vsel %vm778, %v780, %v776
      %v782 = vmul.f32 1.0, %v781
      %v783 = vxor.u32 %v761, 2147483648
      %v784 = vmul.f32 %v783, 1.442695
      %v785 = vpow.pop %v784
      %v786 = vadd.f32 %v785, 1.0
      %v787 = vrcp.pop %v786
      %v788 = vmul.f32 %v786, %v787
      %v789 = vsub.f32 1.0, %v788
      %v790 = vmul.f32 %v787, %v789
      %v791 = vadd.f32 %v787, %v790
      %vm792 = vweird.f32 %v786
      %vm793 = vweird.f32 %v787
      %vm794 = vmor %vm792, %vm793
      %v795 = vsel %vm794, %v787, %v791
      %v796 = vand.u32 2147483647, %v786
      %vm797 = vcmp.eq.f32.partialorder %v796, 8.507059e+37
      %v798 = vand.u32 %v786, 2147483648
      %v799 = vor.u32 1.1754944e-38, %v798
      %v800 = vsel %vm797, %v799, %v795
      %v801 = vmul.f32 1.0, %v800
      %v802 = vtanh.pop %v762
      %v803 = vxor.u32 %v763, 2147483648
      %v804 = vmul.f32 %v803, 1.442695
      %v805 = vpow.pop %v804
      %v806 = vadd.f32 %v805, 1.0
      %v807 = vrcp.pop %v806
      %v808 = vmul.f32 %v806, %v807
      %v809 = vsub.f32 1.0, %v808
      %v810 = vmul.f32 %v807, %v809
      %v811 = vadd.f32 %v807, %v810
      %vm812 = vweird.f32 %v806
      %vm813 = vweird.f32 %v807
      %vm814 = vmor %vm812, %vm813
      %v815 = vsel %vm814, %v807, %v811
      %v816 = vand.u32 2147483647, %v806
      %vm817 = vcmp.eq.f32.partialorder %v816, 8.507059e+37
      %v818 = vand.u32 %v806, 2147483648
      %v819 = vor.u32 1.1754944e-38, %v818
      %v820 = vsel %vm817, %v819, %v815
      %v821 = vmul.f32 1.0, %v820
      %v822 = vmul.f32 %v801, %v505
      %v823 = vmul.f32 %v782, %v802
      %v824 = vadd.f32 %v822, %v823
      %v825 = vtanh.pop %v824
      %v826 = vmul.f32 %v821, %v825
      %v827 = vpack.c.bf16 %v826, %v826
      %s828 = scalar_lea.vmem %s84, %s506
      %v829 = vld [vmem:[%s828] sm:$0xff]
      %830 = vset.pattern.permute.xlu0 0
      %831 = vperm.xlu0 %830, %v829
      %v832 = vpop.permute.xlu0 %831
      %vm833 = vcmp.ne.s32.totalorder %v832, 0
      %vm834 = vmpackc.low %vm833, %vm833
      %v835 = vsel %vm834, %v827, %v504
      %v836 = vsel %vm833, %v824, %v505
      %v837 = vsel %vm833, %v826, 0.0
      %s838 = scalar_lea.vmem [#allocation3], %s506
      %839 = vst [vmem:[%s838] sm:$0xff] %v837
      %s840 = sadd.s32 %s506, 8
      %s841 = sshra.s32 %s840, 3
      %s842 = sand.u32 %s840, 7
      %s843 = smul.u32 %s841, 4
      %s844 = smul.addr %s843, 8
      %s845 = scalar_lea.vmem [#allocation2], %s844
      %v846 = vld [vmem:[%s845] sm:$0xff]
      %v847 = vld [vmem:[%s845 + $0x8] sm:$0xff]
      %v848 = vld [vmem:[%s845 + $0x10] sm:$0xff]
      %v849 = vld [vmem:[%s845 + $0x18] sm:$0xff]
      %v850 = vld [vmem:[#allocation6] sm:$0xff]
      %v851 = vld [vmem:[#allocation6 + $0x8] sm:$0xff]
      %v852 = vld [vmem:[#allocation6 + $0x10] sm:$0xff]
      %v853 = vld [vmem:[#allocation6 + $0x18] sm:$0xff]
      %v854 = vld [vmem:[#allocation6 + $0x20] sm:$0xff]
      %v855 = vld [vmem:[#allocation6 + $0x28] sm:$0xff]
      %v856 = vld [vmem:[#allocation6 + $0x30] sm:$0xff]
      %v857 = vld [vmem:[#allocation6 + $0x38] sm:$0xff]
      %v858 = vld [vmem:[#allocation6 + $0x40] sm:$0xff]
      %v859 = vld [vmem:[#allocation6 + $0x48] sm:$0xff]
      %v860 = vld [vmem:[#allocation6 + $0x50] sm:$0xff]
      %v861 = vld [vmem:[#allocation6 + $0x58] sm:$0xff]
      %v862 = vld [vmem:[#allocation6 + $0x60] sm:$0xff]
      %v863 = vld [vmem:[#allocation6 + $0x68] sm:$0xff]
      %v864 = vld [vmem:[#allocation6 + $0x70] sm:$0xff]
      %v865 = vld [vmem:[#allocation6 + $0x78] sm:$0xff]
      %v866 = vld [vmem:[#allocation6 + $0x80] sm:$0xff]
      %v867 = vld [vmem:[#allocation6 + $0x88] sm:$0xff]
      %v868 = vld [vmem:[#allocation6 + $0x90] sm:$0xff]
      %v869 = vld [vmem:[#allocation6 + $0x98] sm:$0xff]
      %v870 = vld [vmem:[#allocation6 + $0xa0] sm:$0xff]
      %v871 = vld [vmem:[#allocation6 + $0xa8] sm:$0xff]
      %v872 = vld [vmem:[#allocation6 + $0xb0] sm:$0xff]
      %v873 = vld [vmem:[#allocation6 + $0xb8] sm:$0xff]
      %v874 = vld [vmem:[#allocation6 + $0xc0] sm:$0xff]
      %v875 = vld [vmem:[#allocation6 + $0xc8] sm:$0xff]
      %v876 = vld [vmem:[#allocation6 + $0xd0] sm:$0xff]
      %v877 = vld [vmem:[#allocation6 + $0xd8] sm:$0xff]
      %v878 = vld [vmem:[#allocation6 + $0xe0] sm:$0xff]
      %v879 = vld [vmem:[#allocation6 + $0xe8] sm:$0xff]
      %v880 = vld [vmem:[#allocation6 + $0xf0] sm:$0xff]
      %v881 = vld [vmem:[#allocation6 + $0xf8] sm:$0xff]
      %v914 = vunpack.c.l.b16 %v850
      %v915 = vunpack.c.h.b16 %v850
      %v916 = vunpack.c.l.b16 %v851
      %v917 = vunpack.c.h.b16 %v851
      %v918 = vunpack.c.l.b16 %v852
      %v919 = vunpack.c.h.b16 %v852
      %v920 = vunpack.c.l.b16 %v853
      %v921 = vunpack.c.h.b16 %v853
      %v922 = vunpack.c.l.b16 %v854
      %v923 = vunpack.c.h.b16 %v854
      %v924 = vunpack.c.l.b16 %v855
      %v925 = vunpack.c.h.b16 %v855
      %v926 = vunpack.c.l.b16 %v856
      %v927 = vunpack.c.h.b16 %v856
      %v928 = vunpack.c.l.b16 %v857
      %v929 = vunpack.c.h.b16 %v857
      %v930 = vunpack.c.l.b16 %v858
      %v931 = vunpack.c.h.b16 %v858
      %v932 = vunpack.c.l.b16 %v859
      %v933 = vunpack.c.h.b16 %v859
      %v934 = vunpack.c.l.b16 %v860
      %v935 = vunpack.c.h.b16 %v860
      %v936 = vunpack.c.l.b16 %v861
      %v937 = vunpack.c.h.b16 %v861
      %v938 = vunpack.c.l.b16 %v862
      %v939 = vunpack.c.h.b16 %v862
      %v940 = vunpack.c.l.b16 %v863
      %v941 = vunpack.c.h.b16 %v863
      %v942 = vunpack.c.l.b16 %v864
      %v943 = vunpack.c.h.b16 %v864
      %v944 = vunpack.c.l.b16 %v865
      %v945 = vunpack.c.h.b16 %v865
      %v946 = vunpack.c.l.b16 %v866
      %v947 = vunpack.c.h.b16 %v866
      %v948 = vunpack.c.l.b16 %v867
      %v949 = vunpack.c.h.b16 %v867
      %v950 = vunpack.c.l.b16 %v868
      %v951 = vunpack.c.h.b16 %v868
      %v952 = vunpack.c.l.b16 %v869
      %v953 = vunpack.c.h.b16 %v869
      %v954 = vunpack.c.l.b16 %v870
      %v955 = vunpack.c.h.b16 %v870
      %v956 = vunpack.c.l.b16 %v871
      %v957 = vunpack.c.h.b16 %v871
      %v958 = vunpack.c.l.b16 %v872
      %v959 = vunpack.c.h.b16 %v872
      %v960 = vunpack.c.l.b16 %v873
      %v961 = vunpack.c.h.b16 %v873
      %v962 = vunpack.c.l.b16 %v874
      %v963 = vunpack.c.h.b16 %v874
      %v964 = vunpack.c.l.b16 %v875
      %v965 = vunpack.c.h.b16 %v875
      %v966 = vunpack.c.l.b16 %v876
      %v967 = vunpack.c.h.b16 %v876
      %v968 = vunpack.c.l.b16 %v877
      %v969 = vunpack.c.h.b16 %v877
      %v970 = vunpack.c.l.b16 %v878
      %v971 = vunpack.c.h.b16 %v878
      %v972 = vunpack.c.l.b16 %v879
      %v973 = vunpack.c.h.b16 %v879
      %v974 = vunpack.c.l.b16 %v880
      %v975 = vunpack.c.h.b16 %v880
      %v976 = vunpack.c.l.b16 %v881
      %v977 = vunpack.c.h.b16 %v881
      %v978 = vpack.c.b16 %v918, %v914
      %v979 = vpack.c.b16 %v919, %v915
      %v980 = vpack.c.b16 %v920, %v916
      %v981 = vpack.c.b16 %v921, %v917
      %v982 = vpack.c.b16 %v926, %v922
      %v983 = vpack.c.b16 %v927, %v923
      %v984 = vpack.c.b16 %v928, %v924
      %v985 = vpack.c.b16 %v929, %v925
      %v986 = vpack.c.b16 %v934, %v930
      %v987 = vpack.c.b16 %v935, %v931
      %v988 = vpack.c.b16 %v936, %v932
      %v989 = vpack.c.b16 %v937, %v933
      %v990 = vpack.c.b16 %v942, %v938
      %v991 = vpack.c.b16 %v943, %v939
      %v992 = vpack.c.b16 %v944, %v940
      %v993 = vpack.c.b16 %v945, %v941
      %v994 = vpack.c.b16 %v950, %v946
      %v995 = vpack.c.b16 %v951, %v947
      %v996 = vpack.c.b16 %v952, %v948
      %v997 = vpack.c.b16 %v953, %v949
      %v998 = vpack.c.b16 %v958, %v954
      %v999 = vpack.c.b16 %v959, %v955
      %v1000 = vpack.c.b16 %v960, %v956
      %v1001 = vpack.c.b16 %v961, %v957
      %v1002 = vpack.c.b16 %v966, %v962
      %v1003 = vpack.c.b16 %v967, %v963
      %v1004 = vpack.c.b16 %v968, %v964
      %v1005 = vpack.c.b16 %v969, %v965
      %v1006 = vpack.c.b16 %v974, %v970
      %v1007 = vpack.c.b16 %v975, %v971
      %v1008 = vpack.c.b16 %v976, %v972
      %v1009 = vpack.c.b16 %v977, %v973
      %1042 = vmatpush.bf16.msra.mxu0 %v1006
      %1043 = vmatpush.bf16.msra.mxu0 %v1002
      %1044 = vmatpush.bf16.msra.mxu0 %v998
      %1045 = vmatpush.bf16.msra.mxu0 %v994
      %1046 = vmatpush.bf16.msra.mxu0 %v990
      %1047 = vmatpush.bf16.msra.mxu0 %v986
      %1048 = vmatpush.bf16.msra.mxu0 %v982
      %1049 = vmatpush.bf16.msra.mxu0 %v978
      %1050 = vmatmul.bf16.gmra.mxu0 %v835
      %v1051 = vpop.f32.mrf.mxu0
      %v1052 = vadd.f32 0.0, %v1051
      %v1053 = vpop.f32.mrf.mxu0
      %1054 = vdwg.mxu0
      %1055 = vmatpush.bf16.msra.mxu0 %v1007
      %1056 = vmatpush.bf16.msra.mxu0 %v1003
      %1057 = vmatpush.bf16.msra.mxu0 %v999
      %1058 = vmatpush.bf16.msra.mxu0 %v995
      %1059 = vmatpush.bf16.msra.mxu0 %v991
      %1060 = vmatpush.bf16.msra.mxu0 %v987
      %1061 = vmatpush.bf16.msra.mxu0 %v983
      %1062 = vmatpush.bf16.msra.mxu0 %v979
      %1063 = vmatmul.bf16.gmra.mxu0 %v835
      %v1064 = vpop.f32.mrf.mxu0
      %v1065 = vadd.f32 0.0, %v1064
      %v1066 = vpop.f32.mrf.mxu0
      %1067 = vdwg.mxu0
      %1068 = vmatpush.bf16.msra.mxu0 %v1008
      %1069 = vmatpush.bf16.msra.mxu0 %v1004
      %1070 = vmatpush.bf16.msra.mxu0 %v1000
      %1071 = vmatpush.bf16.msra.mxu0 %v996
      %1072 = vmatpush.bf16.msra.mxu0 %v992
      %1073 = vmatpush.bf16.msra.mxu0 %v988
      %1074 = vmatpush.bf16.msra.mxu0 %v984
      %1075 = vmatpush.bf16.msra.mxu0 %v980
      %1076 = vmatmul.bf16.gmra.mxu0 %v835
      %v1077 = vpop.f32.mrf.mxu0
      %v1078 = vadd.f32 0.0, %v1077
      %v1079 = vpop.f32.mrf.mxu0
      %1080 = vdwg.mxu0
      %1081 = vmatpush.bf16.msra.mxu0 %v1009
      %1082 = vmatpush.bf16.msra.mxu0 %v1005
      %1083 = vmatpush.bf16.msra.mxu0 %v1001
      %1084 = vmatpush.bf16.msra.mxu0 %v997
      %1085 = vmatpush.bf16.msra.mxu0 %v993
      %1086 = vmatpush.bf16.msra.mxu0 %v989
      %1087 = vmatpush.bf16.msra.mxu0 %v985
      %1088 = vmatpush.bf16.msra.mxu0 %v981
      %1089 = vmatmul.bf16.gmra.mxu0 %v835
      %v1090 = vpop.f32.mrf.mxu0
      %v1091 = vadd.f32 0.0, %v1090
      %v1092 = vpop.f32.mrf.mxu0
      %1093 = vdwg.mxu0
      %v1094 = vadd.f32 %v846, %v1052
      %v1095 = vadd.f32 %v847, %v1065
      %v1096 = vadd.f32 %v848, %v1078
      %v1097 = vadd.f32 %v849, %v1091
      %v1098 = vxor.u32 %v1094, 2147483648
      %v1099 = vmul.f32 %v1098, 1.442695
      %v1100 = vpow.pop %v1099
      %v1101 = vadd.f32 %v1100, 1.0
      %v1102 = vrcp.pop %v1101
      %v1103 = vmul.f32 %v1101, %v1102
      %v1104 = vsub.f32 1.0, %v1103
      %v1105 = vmul.f32 %v1102, %v1104
      %v1106 = vadd.f32 %v1102, %v1105
      %vm1107 = vweird.f32 %v1101
      %vm1108 = vweird.f32 %v1102
      %vm1109 = vmor %vm1107, %vm1108
      %v1110 = vsel %vm1109, %v1102, %v1106
      %v1111 = vand.u32 2147483647, %v1101
      %vm1112 = vcmp.eq.f32.partialorder %v1111, 8.507059e+37
      %v1113 = vand.u32 %v1101, 2147483648
      %v1114 = vor.u32 1.1754944e-38, %v1113
      %v1115 = vsel %vm1112, %v1114, %v1110
      %v1116 = vmul.f32 1.0, %v1115
      %v1117 = vxor.u32 %v1095, 2147483648
      %v1118 = vmul.f32 %v1117, 1.442695
      %v1119 = vpow.pop %v1118
      %v1120 = vadd.f32 %v1119, 1.0
      %v1121 = vrcp.pop %v1120
      %v1122 = vmul.f32 %v1120, %v1121
      %v1123 = vsub.f32 1.0, %v1122
      %v1124 = vmul.f32 %v1121, %v1123
      %v1125 = vadd.f32 %v1121, %v1124
      %vm1126 = vweird.f32 %v1120
      %vm1127 = vweird.f32 %v1121
      %vm1128 = vmor %vm1126, %vm1127
      %v1129 = vsel %vm1128, %v1121, %v1125
      %v1130 = vand.u32 2147483647, %v1120
      %vm1131 = vcmp.eq.f32.partialorder %v1130, 8.507059e+37
      %v1132 = vand.u32 %v1120, 2147483648
      %v1133 = vor.u32 1.1754944e-38, %v1132
      %v1134 = vsel %vm1131, %v1133, %v1129
      %v1135 = vmul.f32 1.0, %v1134
      %v1136 = vtanh.pop %v1096
      %v1137 = vxor.u32 %v1097, 2147483648
      %v1138 = vmul.f32 %v1137, 1.442695
      %v1139 = vpow.pop %v1138
      %v1140 = vadd.f32 %v1139, 1.0
      %v1141 = vrcp.pop %v1140
      %v1142 = vmul.f32 %v1140, %v1141
      %v1143 = vsub.f32 1.0, %v1142
      %v1144 = vmul.f32 %v1141, %v1143
      %v1145 = vadd.f32 %v1141, %v1144
      %vm1146 = vweird.f32 %v1140
      %vm1147 = vweird.f32 %v1141
      %vm1148 = vmor %vm1146, %vm1147
      %v1149 = vsel %vm1148, %v1141, %v1145
      %v1150 = vand.u32 2147483647, %v1140
      %vm1151 = vcmp.eq.f32.partialorder %v1150, 8.507059e+37
      %v1152 = vand.u32 %v1140, 2147483648
      %v1153 = vor.u32 1.1754944e-38, %v1152
      %v1154 = vsel %vm1151, %v1153, %v1149
      %v1155 = vmul.f32 1.0, %v1154
      %v1156 = vmul.f32 %v1135, %v836
      %v1157 = vmul.f32 %v1116, %v1136
      %v1158 = vadd.f32 %v1156, %v1157
      %v1159 = vtanh.pop %v1158
      %v1160 = vmul.f32 %v1155, %v1159
      %v1161 = vpack.c.bf16 %v1160, %v1160
      %s1162 = scalar_lea.vmem %s84, %s840
      %v1163 = vld [vmem:[%s1162] sm:$0xff]
      %1164 = vset.pattern.permute.xlu0 0
      %1165 = vperm.xlu0 %1164, %v1163
      %v1166 = vpop.permute.xlu0 %1165
      %vm1167 = vcmp.ne.s32.totalorder %v1166, 0
      %vm1168 = vmpackc.low %vm1167, %vm1167
      %v1169 = vsel %vm1168, %v1161, %v835
      %v1170 = vsel %vm1167, %v1158, %v836
      %v1171 = vsel %vm1167, %v1160, 0.0
      %s1172 = scalar_lea.vmem [#allocation3], %s840
      %1173 = vst [vmem:[%s1172] sm:$0xff] %v1171
      %s1174 = sadd.s32 %s506, 16
      %s1175 = sshra.s32 %s1174, 3
      %s1176 = sand.u32 %s1174, 7
      %s1177 = smul.u32 %s1175, 4
      %s1178 = smul.addr %s1177, 8
      %s1179 = scalar_lea.vmem [#allocation2], %s1178
      %v1180 = vld [vmem:[%s1179] sm:$0xff]
      %v1181 = vld [vmem:[%s1179 + $0x8] sm:$0xff]
      %v1182 = vld [vmem:[%s1179 + $0x10] sm:$0xff]
      %v1183 = vld [vmem:[%s1179 + $0x18] sm:$0xff]
      %v1184 = vld [vmem:[#allocation6] sm:$0xff]
      %v1185 = vld [vmem:[#allocation6 + $0x8] sm:$0xff]
      %v1186 = vld [vmem:[#allocation6 + $0x10] sm:$0xff]
      %v1187 = vld [vmem:[#allocation6 + $0x18] sm:$0xff]
      %v1188 = vld [vmem:[#allocation6 + $0x20] sm:$0xff]
      %v1189 = vld [vmem:[#allocation6 + $0x28] sm:$0xff]
      %v1190 = vld [vmem:[#allocation6 + $0x30] sm:$0xff]
      %v1191 = vld [vmem:[#allocation6 + $0x38] sm:$0xff]
      %v1192 = vld [vmem:[#allocation6 + $0x40] sm:$0xff]
      %v1193 = vld [vmem:[#allocation6 + $0x48] sm:$0xff]
      %v1194 = vld [vmem:[#allocation6 + $0x50] sm:$0xff]
      %v1195 = vld [vmem:[#allocation6 + $0x58] sm:$0xff]
      %v1196 = vld [vmem:[#allocation6 + $0x60] sm:$0xff]
      %v1197 = vld [vmem:[#allocation6 + $0x68] sm:$0xff]
      %v1198 = vld [vmem:[#allocation6 + $0x70] sm:$0xff]
      %v1199 = vld [vmem:[#allocation6 + $0x78] sm:$0xff]
      %v1200 = vld [vmem:[#allocation6 + $0x80] sm:$0xff]
      %v1201 = vld [vmem:[#allocation6 + $0x88] sm:$0xff]
      %v1202 = vld [vmem:[#allocation6 + $0x90] sm:$0xff]
      %v1203 = vld [vmem:[#allocation6 + $0x98] sm:$0xff]
      %v1204 = vld [vmem:[#allocation6 + $0xa0] sm:$0xff]
      %v1205 = vld [vmem:[#allocation6 + $0xa8] sm:$0xff]
      %v1206 = vld [vmem:[#allocation6 + $0xb0] sm:$0xff]
      %v1207 = vld [vmem:[#allocation6 + $0xb8] sm:$0xff]
      %v1208 = vld [vmem:[#allocation6 + $0xc0] sm:$0xff]
      %v1209 = vld [vmem:[#allocation6 + $0xc8] sm:$0xff]
      %v1210 = vld [vmem:[#allocation6 + $0xd0] sm:$0xff]
      %v1211 = vld [vmem:[#allocation6 + $0xd8] sm:$0xff]
      %v1212 = vld [vmem:[#allocation6 + $0xe0] sm:$0xff]
      %v1213 = vld [vmem:[#allocation6 + $0xe8] sm:$0xff]
      %v1214 = vld [vmem:[#allocation6 + $0xf0] sm:$0xff]
      %v1215 = vld [vmem:[#allocation6 + $0xf8] sm:$0xff]
      %v1248 = vunpack.c.l.b16 %v1184
      %v1249 = vunpack.c.h.b16 %v1184
      %v1250 = vunpack.c.l.b16 %v1185
      %v1251 = vunpack.c.h.b16 %v1185
      %v1252 = vunpack.c.l.b16 %v1186
      %v1253 = vunpack.c.h.b16 %v1186
      %v1254 = vunpack.c.l.b16 %v1187
      %v1255 = vunpack.c.h.b16 %v1187
      %v1256 = vunpack.c.l.b16 %v1188
      %v1257 = vunpack.c.h.b16 %v1188
      %v1258 = vunpack.c.l.b16 %v1189
      %v1259 = vunpack.c.h.b16 %v1189
      %v1260 = vunpack.c.l.b16 %v1190
      %v1261 = vunpack.c.h.b16 %v1190
      %v1262 = vunpack.c.l.b16 %v1191
      %v1263 = vunpack.c.h.b16 %v1191
      %v1264 = vunpack.c.l.b16 %v1192
      %v1265 = vunpack.c.h.b16 %v1192
      %v1266 = vunpack.c.l.b16 %v1193
      %v1267 = vunpack.c.h.b16 %v1193
      %v1268 = vunpack.c.l.b16 %v1194
      %v1269 = vunpack.c.h.b16 %v1194
      %v1270 = vunpack.c.l.b16 %v1195
      %v1271 = vunpack.c.h.b16 %v1195
      %v1272 = vunpack.c.l.b16 %v1196
      %v1273 = vunpack.c.h.b16 %v1196
      %v1274 = vunpack.c.l.b16 %v1197
      %v1275 = vunpack.c.h.b16 %v1197
      %v1276 = vunpack.c.l.b16 %v1198
      %v1277 = vunpack.c.h.b16 %v1198
      %v1278 = vunpack.c.l.b16 %v1199
      %v1279 = vunpack.c.h.b16 %v1199
      %v1280 = vunpack.c.l.b16 %v1200
      %v1281 = vunpack.c.h.b16 %v1200
      %v1282 = vunpack.c.l.b16 %v1201
      %v1283 = vunpack.c.h.b16 %v1201
      %v1284 = vunpack.c.l.b16 %v1202
      %v1285 = vunpack.c.h.b16 %v1202
      %v1286 = vunpack.c.l.b16 %v1203
      %v1287 = vunpack.c.h.b16 %v1203
      %v1288 = vunpack.c.l.b16 %v1204
      %v1289 = vunpack.c.h.b16 %v1204
      %v1290 = vunpack.c.l.b16 %v1205
      %v1291 = vunpack.c.h.b16 %v1205
      %v1292 = vunpack.c.l.b16 %v1206
      %v1293 = vunpack.c.h.b16 %v1206
      %v1294 = vunpack.c.l.b16 %v1207
      %v1295 = vunpack.c.h.b16 %v1207
      %v1296 = vunpack.c.l.b16 %v1208
      %v1297 = vunpack.c.h.b16 %v1208
      %v1298 = vunpack.c.l.b16 %v1209
      %v1299 = vunpack.c.h.b16 %v1209
      %v1300 = vunpack.c.l.b16 %v1210
      %v1301 = vunpack.c.h.b16 %v1210
      %v1302 = vunpack.c.l.b16 %v1211
      %v1303 = vunpack.c.h.b16 %v1211
      %v1304 = vunpack.c.l.b16 %v1212
      %v1305 = vunpack.c.h.b16 %v1212
      %v1306 = vunpack.c.l.b16 %v1213
      %v1307 = vunpack.c.h.b16 %v1213
      %v1308 = vunpack.c.l.b16 %v1214
      %v1309 = vunpack.c.h.b16 %v1214
      %v1310 = vunpack.c.l.b16 %v1215
      %v1311 = vunpack.c.h.b16 %v1215
      %v1312 = vpack.c.b16 %v1252, %v1248
      %v1313 = vpack.c.b16 %v1253, %v1249
      %v1314 = vpack.c.b16 %v1254, %v1250
      %v1315 = vpack.c.b16 %v1255, %v1251
      %v1316 = vpack.c.b16 %v1260, %v1256
      %v1317 = vpack.c.b16 %v1261, %v1257
      %v1318 = vpack.c.b16 %v1262, %v1258
      %v1319 = vpack.c.b16 %v1263, %v1259
      %v1320 = vpack.c.b16 %v1268, %v1264
      %v1321 = vpack.c.b16 %v1269, %v1265
      %v1322 = vpack.c.b16 %v1270, %v1266
      %v1323 = vpack.c.b16 %v1271, %v1267
      %v1324 = vpack.c.b16 %v1276, %v1272
      %v1325 = vpack.c.b16 %v1277, %v1273
      %v1326 = vpack.c.b16 %v1278, %v1274
      %v1327 = vpack.c.b16 %v1279, %v1275
      %v1328 = vpack.c.b16 %v1284, %v1280
      %v1329 = vpack.c.b16 %v1285, %v1281
      %v1330 = vpack.c.b16 %v1286, %v1282
      %v1331 = vpack.c.b16 %v1287, %v1283
      %v1332 = vpack.c.b16 %v1292, %v1288
      %v1333 = vpack.c.b16 %v1293, %v1289
      %v1334 = vpack.c.b16 %v1294, %v1290
      %v1335 = vpack.c.b16 %v1295, %v1291
      %v1336 = vpack.c.b16 %v1300, %v1296
      %v1337 = vpack.c.b16 %v1301, %v1297
      %v1338 = vpack.c.b16 %v1302, %v1298
      %v1339 = vpack.c.b16 %v1303, %v1299
      %v1340 = vpack.c.b16 %v1308, %v1304
      %v1341 = vpack.c.b16 %v1309, %v1305
      %v1342 = vpack.c.b16 %v1310, %v1306
      %v1343 = vpack.c.b16 %v1311, %v1307
      %1376 = vmatpush.bf16.msra.mxu0 %v1340
      %1377 = vmatpush.bf16.msra.mxu0 %v1336
      %1378 = vmatpush.bf16.msra.mxu0 %v1332
      %1379 = vmatpush.bf16.msra.mxu0 %v1328
      %1380 = vmatpush.bf16.msra.mxu0 %v1324
      %1381 = vmatpush.bf16.msra.mxu0 %v1320
      %1382 = vmatpush.bf16.msra.mxu0 %v1316
      %1383 = vmatpush.bf16.msra.mxu0 %v1312
      %1384 = vmatmul.bf16.gmra.mxu0 %v1169
      %v1385 = vpop.f32.mrf.mxu0
      %v1386 = vadd.f32 0.0, %v1385
      %v1387 = vpop.f32.mrf.mxu0
      %1388 = vdwg.mxu0
      %1389 = vmatpush.bf16.msra.mxu0 %v1341
      %1390 = vmatpush.bf16.msra.mxu0 %v1337
      %1391 = vmatpush.bf16.msra.mxu0 %v1333
      %1392 = vmatpush.bf16.msra.mxu0 %v1329
      %1393 = vmatpush.bf16.msra.mxu0 %v1325
      %1394 = vmatpush.bf16.msra.mxu0 %v1321
      %1395 = vmatpush.bf16.msra.mxu0 %v1317
      %1396 = vmatpush.bf16.msra.mxu0 %v1313
      %1397 = vmatmul.bf16.gmra.mxu0 %v1169
      %v1398 = vpop.f32.mrf.mxu0
      %v1399 = vadd.f32 0.0, %v1398
      %v1400 = vpop.f32.mrf.mxu0
      %1401 = vdwg.mxu0
      %1402 = vmatpush.bf16.msra.mxu0 %v1342
      %1403 = vmatpush.bf16.msra.mxu0 %v1338
      %1404 = vmatpush.bf16.msra.mxu0 %v1334
      %1405 = vmatpush.bf16.msra.mxu0 %v1330
      %1406 = vmatpush.bf16.msra.mxu0 %v1326
      %1407 = vmatpush.bf16.msra.mxu0 %v1322
      %1408 = vmatpush.bf16.msra.mxu0 %v1318
      %1409 = vmatpush.bf16.msra.mxu0 %v1314
      %1410 = vmatmul.bf16.gmra.mxu0 %v1169
      %v1411 = vpop.f32.mrf.mxu0
      %v1412 = vadd.f32 0.0, %v1411
      %v1413 = vpop.f32.mrf.mxu0
      %1414 = vdwg.mxu0
      %1415 = vmatpush.bf16.msra.mxu0 %v1343
      %1416 = vmatpush.bf16.msra.mxu0 %v1339
      %1417 = vmatpush.bf16.msra.mxu0 %v1335
      %1418 = vmatpush.bf16.msra.mxu0 %v1331
      %1419 = vmatpush.bf16.msra.mxu0 %v1327
      %1420 = vmatpush.bf16.msra.mxu0 %v1323
      %1421 = vmatpush.bf16.msra.mxu0 %v1319
      %1422 = vmatpush.bf16.msra.mxu0 %v1315
      %1423 = vmatmul.bf16.gmra.mxu0 %v1169
      %v1424 = vpop.f32.mrf.mxu0
      %v1425 = vadd.f32 0.0, %v1424
      %v1426 = vpop.f32.mrf.mxu0
      %1427 = vdwg.mxu0
      %v1428 = vadd.f32 %v1180, %v1386
      %v1429 = vadd.f32 %v1181, %v1399
      %v1430 = vadd.f32 %v1182, %v1412
      %v1431 = vadd.f32 %v1183, %v1425
      %v1432 = vxor.u32 %v1428, 2147483648
      %v1433 = vmul.f32 %v1432, 1.442695
      %v1434 = vpow.pop %v1433
      %v1435 = vadd.f32 %v1434, 1.0
      %v1436 = vrcp.pop %v1435
      %v1437 = vmul.f32 %v1435, %v1436
      %v1438 = vsub.f32 1.0, %v1437
      %v1439 = vmul.f32 %v1436, %v1438
      %v1440 = vadd.f32 %v1436, %v1439
      %vm1441 = vweird.f32 %v1435
      %vm1442 = vweird.f32 %v1436
      %vm1443 = vmor %vm1441, %vm1442
      %v1444 = vsel %vm1443, %v1436, %v1440
      %v1445 = vand.u32 2147483647, %v1435
      %vm1446 = vcmp.eq.f32.partialorder %v1445, 8.507059e+37
      %v1447 = vand.u32 %v1435, 2147483648
      %v1448 = vor.u32 1.1754944e-38, %v1447
      %v1449 = vsel %vm1446, %v1448, %v1444
      %v1450 = vmul.f32 1.0, %v1449
      %v1451 = vxor.u32 %v1429, 2147483648
      %v1452 = vmul.f32 %v1451, 1.442695
      %v1453 = vpow.pop %v1452
      %v1454 = vadd.f32 %v1453, 1.0
      %v1455 = vrcp.pop %v1454
      %v1456 = vmul.f32 %v1454, %v1455
      %v1457 = vsub.f32 1.0, %v1456
      %v1458 = vmul.f32 %v1455, %v1457
      %v1459 = vadd.f32 %v1455, %v1458
      %vm1460 = vweird.f32 %v1454
      %vm1461 = vweird.f32 %v1455
      %vm1462 = vmor %vm1460, %vm1461
      %v1463 = vsel %vm1462, %v1455, %v1459
      %v1464 = vand.u32 2147483647, %v1454
      %vm1465 = vcmp.eq.f32.partialorder %v1464, 8.507059e+37
      %v1466 = vand.u32 %v1454, 2147483648
      %v1467 = vor.u32 1.1754944e-38, %v1466
      %v1468 = vsel %vm1465, %v1467, %v1463
      %v1469 = vmul.f32 1.0, %v1468
      %v1470 = vtanh.pop %v1430
      %v1471 = vxor.u32 %v1431, 2147483648
      %v1472 = vmul.f32 %v1471, 1.442695
      %v1473 = vpow.pop %v1472
      %v1474 = vadd.f32 %v1473, 1.0
      %v1475 = vrcp.pop %v1474
      %v1476 = vmul.f32 %v1474, %v1475
      %v1477 = vsub.f32 1.0, %v1476
      %v1478 = vmul.f32 %v1475, %v1477
      %v1479 = vadd.f32 %v1475, %v1478
      %vm1480 = vweird.f32 %v1474
      %vm1481 = vweird.f32 %v1475
      %vm1482 = vmor %vm1480, %vm1481
      %v1483 = vsel %vm1482, %v1475, %v1479
      %v1484 = vand.u32 2147483647, %v1474
      %vm1485 = vcmp.eq.f32.partialorder %v1484, 8.507059e+37
      %v1486 = vand.u32 %v1474, 2147483648
      %v1487 = vor.u32 1.1754944e-38, %v1486
      %v1488 = vsel %vm1485, %v1487, %v1483
      %v1489 = vmul.f32 1.0, %v1488
      %v1490 = vmul.f32 %v1469, %v1170
      %v1491 = vmul.f32 %v1450, %v1470
      %v1492 = vadd.f32 %v1490, %v1491
      %v1493 = vtanh.pop %v1492
      %v1494 = vmul.f32 %v1489, %v1493
      %v1495 = vpack.c.bf16 %v1494, %v1494
      %s1496 = scalar_lea.vmem %s84, %s1174
      %v1497 = vld [vmem:[%s1496] sm:$0xff]
      %1498 = vset.pattern.permute.xlu0 0
      %1499 = vperm.xlu0 %1498, %v1497
      %v1500 = vpop.permute.xlu0 %1499
      %vm1501 = vcmp.ne.s32.totalorder %v1500, 0
      %vm1502 = vmpackc.low %vm1501, %vm1501
      %v1503 = vsel %vm1502, %v1495, %v1169
      %v1504 = vsel %vm1501, %v1492, %v1170
      %v1505 = vsel %vm1501, %v1494, 0.0
      %s1506 = scalar_lea.vmem [#allocation3], %s1174
      %1507 = vst [vmem:[%s1506] sm:$0xff] %v1505
      %s1508 = sadd.s32 %s506, 24
      %s1509 = sshra.s32 %s1508, 3
      %s1510 = sand.u32 %s1508, 7
      %s1511 = smul.u32 %s1509, 4
      %s1512 = smul.addr %s1511, 8
      %s1513 = scalar_lea.vmem [#allocation2], %s1512
      %v1514 = vld [vmem:[%s1513] sm:$0xff]
      %v1515 = vld [vmem:[%s1513 + $0x8] sm:$0xff]
      %v1516 = vld [vmem:[%s1513 + $0x10] sm:$0xff]
      %v1517 = vld [vmem:[%s1513 + $0x18] sm:$0xff]
      %v1518 = vld [vmem:[#allocation6] sm:$0xff]
      %v1519 = vld [vmem:[#allocation6 + $0x8] sm:$0xff]
      %v1520 = vld [vmem:[#allocation6 + $0x10] sm:$0xff]
      %v1521 = vld [vmem:[#allocation6 + $0x18] sm:$0xff]
      %v1522 = vld [vmem:[#allocation6 + $0x20] sm:$0xff]
      %v1523 = vld [vmem:[#allocation6 + $0x28] sm:$0xff]
      %v1524 = vld [vmem:[#allocation6 + $0x30] sm:$0xff]
      %v1525 = vld [vmem:[#allocation6 + $0x38] sm:$0xff]
      %v1526 = vld [vmem:[#allocation6 + $0x40] sm:$0xff]
      %v1527 = vld [vmem:[#allocation6 + $0x48] sm:$0xff]
      %v1528 = vld [vmem:[#allocation6 + $0x50] sm:$0xff]
      %v1529 = vld [vmem:[#allocation6 + $0x58] sm:$0xff]
      %v1530 = vld [vmem:[#allocation6 + $0x60] sm:$0xff]
      %v1531 = vld [vmem:[#allocation6 + $0x68] sm:$0xff]
      %v1532 = vld [vmem:[#allocation6 + $0x70] sm:$0xff]
      %v1533 = vld [vmem:[#allocation6 + $0x78] sm:$0xff]
      %v1534 = vld [vmem:[#allocation6 + $0x80] sm:$0xff]
      %v1535 = vld [vmem:[#allocation6 + $0x88] sm:$0xff]
      %v1536 = vld [vmem:[#allocation6 + $0x90] sm:$0xff]
      %v1537 = vld [vmem:[#allocation6 + $0x98] sm:$0xff]
      %v1538 = vld [vmem:[#allocation6 + $0xa0] sm:$0xff]
      %v1539 = vld [vmem:[#allocation6 + $0xa8] sm:$0xff]
      %v1540 = vld [vmem:[#allocation6 + $0xb0] sm:$0xff]
      %v1541 = vld [vmem:[#allocation6 + $0xb8] sm:$0xff]
      %v1542 = vld [vmem:[#allocation6 + $0xc0] sm:$0xff]
      %v1543 = vld [vmem:[#allocation6 + $0xc8] sm:$0xff]
      %v1544 = vld [vmem:[#allocation6 + $0xd0] sm:$0xff]
      %v1545 = vld [vmem:[#allocation6 + $0xd8] sm:$0xff]
      %v1546 = vld [vmem:[#allocation6 + $0xe0] sm:$0xff]
      %v1547 = vld [vmem:[#allocation6 + $0xe8] sm:$0xff]
      %v1548 = vld [vmem:[#allocation6 + $0xf0] sm:$0xff]
      %v1549 = vld [vmem:[#allocation6 + $0xf8] sm:$0xff]
      %v1582 = vunpack.c.l.b16 %v1518
      %v1583 = vunpack.c.h.b16 %v1518
      %v1584 = vunpack.c.l.b16 %v1519
      %v1585 = vunpack.c.h.b16 %v1519
      %v1586 = vunpack.c.l.b16 %v1520
      %v1587 = vunpack.c.h.b16 %v1520
      %v1588 = vunpack.c.l.b16 %v1521
      %v1589 = vunpack.c.h.b16 %v1521
      %v1590 = vunpack.c.l.b16 %v1522
      %v1591 = vunpack.c.h.b16 %v1522
      %v1592 = vunpack.c.l.b16 %v1523
      %v1593 = vunpack.c.h.b16 %v1523
      %v1594 = vunpack.c.l.b16 %v1524
      %v1595 = vunpack.c.h.b16 %v1524
      %v1596 = vunpack.c.l.b16 %v1525
      %v1597 = vunpack.c.h.b16 %v1525
      %v1598 = vunpack.c.l.b16 %v1526
      %v1599 = vunpack.c.h.b16 %v1526
      %v1600 = vunpack.c.l.b16 %v1527
      %v1601 = vunpack.c.h.b16 %v1527
      %v1602 = vunpack.c.l.b16 %v1528
      %v1603 = vunpack.c.h.b16 %v1528
      %v1604 = vunpack.c.l.b16 %v1529
      %v1605 = vunpack.c.h.b16 %v1529
      %v1606 = vunpack.c.l.b16 %v1530
      %v1607 = vunpack.c.h.b16 %v1530
      %v1608 = vunpack.c.l.b16 %v1531
      %v1609 = vunpack.c.h.b16 %v1531
      %v1610 = vunpack.c.l.b16 %v1532
      %v1611 = vunpack.c.h.b16 %v1532
      %v1612 = vunpack.c.l.b16 %v1533
      %v1613 = vunpack.c.h.b16 %v1533
      %v1614 = vunpack.c.l.b16 %v1534
      %v1615 = vunpack.c.h.b16 %v1534
      %v1616 = vunpack.c.l.b16 %v1535
      %v1617 = vunpack.c.h.b16 %v1535
      %v1618 = vunpack.c.l.b16 %v1536
      %v1619 = vunpack.c.h.b16 %v1536
      %v1620 = vunpack.c.l.b16 %v1537
      %v1621 = vunpack.c.h.b16 %v1537
      %v1622 = vunpack.c.l.b16 %v1538
      %v1623 = vunpack.c.h.b16 %v1538
      %v1624 = vunpack.c.l.b16 %v1539
      %v1625 = vunpack.c.h.b16 %v1539
      %v1626 = vunpack.c.l.b16 %v1540
      %v1627 = vunpack.c.h.b16 %v1540
      %v1628 = vunpack.c.l.b16 %v1541
      %v1629 = vunpack.c.h.b16 %v1541
      %v1630 = vunpack.c.l.b16 %v1542
      %v1631 = vunpack.c.h.b16 %v1542
      %v1632 = vunpack.c.l.b16 %v1543
      %v1633 = vunpack.c.h.b16 %v1543
      %v1634 = vunpack.c.l.b16 %v1544
      %v1635 = vunpack.c.h.b16 %v1544
      %v1636 = vunpack.c.l.b16 %v1545
      %v1637 = vunpack.c.h.b16 %v1545
      %v1638 = vunpack.c.l.b16 %v1546
      %v1639 = vunpack.c.h.b16 %v1546
      %v1640 = vunpack.c.l.b16 %v1547
      %v1641 = vunpack.c.h.b16 %v1547
      %v1642 = vunpack.c.l.b16 %v1548
      %v1643 = vunpack.c.h.b16 %v1548
      %v1644 = vunpack.c.l.b16 %v1549
      %v1645 = vunpack.c.h.b16 %v1549
      %v1646 = vpack.c.b16 %v1586, %v1582
      %v1647 = vpack.c.b16 %v1587, %v1583
      %v1648 = vpack.c.b16 %v1588, %v1584
      %v1649 = vpack.c.b16 %v1589, %v1585
      %v1650 = vpack.c.b16 %v1594, %v1590
      %v1651 = vpack.c.b16 %v1595, %v1591
      %v1652 = vpack.c.b16 %v1596, %v1592
      %v1653 = vpack.c.b16 %v1597, %v1593
      %v1654 = vpack.c.b16 %v1602, %v1598
      %v1655 = vpack.c.b16 %v1603, %v1599
      %v1656 = vpack.c.b16 %v1604, %v1600
      %v1657 = vpack.c.b16 %v1605, %v1601
      %v1658 = vpack.c.b16 %v1610, %v1606
      %v1659 = vpack.c.b16 %v1611, %v1607
      %v1660 = vpack.c.b16 %v1612, %v1608
      %v1661 = vpack.c.b16 %v1613, %v1609
      %v1662 = vpack.c.b16 %v1618, %v1614
      %v1663 = vpack.c.b16 %v1619, %v1615
      %v1664 = vpack.c.b16 %v1620, %v1616
      %v1665 = vpack.c.b16 %v1621, %v1617
      %v1666 = vpack.c.b16 %v1626, %v1622
      %v1667 = vpack.c.b16 %v1627, %v1623
      %v1668 = vpack.c.b16 %v1628, %v1624
      %v1669 = vpack.c.b16 %v1629, %v1625
      %v1670 = vpack.c.b16 %v1634, %v1630
      %v1671 = vpack.c.b16 %v1635, %v1631
      %v1672 = vpack.c.b16 %v1636, %v1632
      %v1673 = vpack.c.b16 %v1637, %v1633
      %v1674 = vpack.c.b16 %v1642, %v1638
      %v1675 = vpack.c.b16 %v1643, %v1639
      %v1676 = vpack.c.b16 %v1644, %v1640
      %v1677 = vpack.c.b16 %v1645, %v1641
      %1710 = vmatpush.bf16.msra.mxu0 %v1674
      %1711 = vmatpush.bf16.msra.mxu0 %v1670
      %1712 = vmatpush.bf16.msra.mxu0 %v1666
      %1713 = vmatpush.bf16.msra.mxu0 %v1662
      %1714 = vmatpush.bf16.msra.mxu0 %v1658
      %1715 = vmatpush.bf16.msra.mxu0 %v1654
      %1716 = vmatpush.bf16.msra.mxu0 %v1650
      %1717 = vmatpush.bf16.msra.mxu0 %v1646
      %1718 = vmatmul.bf16.gmra.mxu0 %v1503
      %v1719 = vpop.f32.mrf.mxu0
      %v1720 = vadd.f32 0.0, %v1719
      %v1721 = vpop.f32.mrf.mxu0
      %1722 = vdwg.mxu0
      %1723 = vmatpush.bf16.msra.mxu0 %v1675
      %1724 = vmatpush.bf16.msra.mxu0 %v1671
      %1725 = vmatpush.bf16.msra.mxu0 %v1667
      %1726 = vmatpush.bf16.msra.mxu0 %v1663
      %1727 = vmatpush.bf16.msra.mxu0 %v1659
      %1728 = vmatpush.bf16.msra.mxu0 %v1655
      %1729 = vmatpush.bf16.msra.mxu0 %v1651
      %1730 = vmatpush.bf16.msra.mxu0 %v1647
      %1731 = vmatmul.bf16.gmra.mxu0 %v1503
      %v1732 = vpop.f32.mrf.mxu0
      %v1733 = vadd.f32 0.0, %v1732
      %v1734 = vpop.f32.mrf.mxu0
      %1735 = vdwg.mxu0
      %1736 = vmatpush.bf16.msra.mxu0 %v1676
      %1737 = vmatpush.bf16.msra.mxu0 %v1672
      %1738 = vmatpush.bf16.msra.mxu0 %v1668
      %1739 = vmatpush.bf16.msra.mxu0 %v1664
      %1740 = vmatpush.bf16.msra.mxu0 %v1660
      %1741 = vmatpush.bf16.msra.mxu0 %v1656
      %1742 = vmatpush.bf16.msra.mxu0 %v1652
      %1743 = vmatpush.bf16.msra.mxu0 %v1648
      %1744 = vmatmul.bf16.gmra.mxu0 %v1503
      %v1745 = vpop.f32.mrf.mxu0
      %v1746 = vadd.f32 0.0, %v1745
      %v1747 = vpop.f32.mrf.mxu0
      %1748 = vdwg.mxu0
      %1749 = vmatpush.bf16.msra.mxu0 %v1677
      %1750 = vmatpush.bf16.msra.mxu0 %v1673
      %1751 = vmatpush.bf16.msra.mxu0 %v1669
      %1752 = vmatpush.bf16.msra.mxu0 %v1665
      %1753 = vmatpush.bf16.msra.mxu0 %v1661
      %1754 = vmatpush.bf16.msra.mxu0 %v1657
      %1755 = vmatpush.bf16.msra.mxu0 %v1653
      %1756 = vmatpush.bf16.msra.mxu0 %v1649
      %1757 = vmatmul.bf16.gmra.mxu0 %v1503
      %v1758 = vpop.f32.mrf.mxu0
      %v1759 = vadd.f32 0.0, %v1758
      %v1760 = vpop.f32.mrf.mxu0
      %1761 = vdwg.mxu0
      %v1762 = vadd.f32 %v1514, %v1720
      %v1763 = vadd.f32 %v1515, %v1733
      %v1764 = vadd.f32 %v1516, %v1746
      %v1765 = vadd.f32 %v1517, %v1759
      %v1766 = vxor.u32 %v1762, 2147483648
      %v1767 = vmul.f32 %v1766, 1.442695
      %v1768 = vpow.pop %v1767
      %v1769 = vadd.f32 %v1768, 1.0
      %v1770 = vrcp.pop %v1769
      %v1771 = vmul.f32 %v1769, %v1770
      %v1772 = vsub.f32 1.0, %v1771
      %v1773 = vmul.f32 %v1770, %v1772
      %v1774 = vadd.f32 %v1770, %v1773
      %vm1775 = vweird.f32 %v1769
      %vm1776 = vweird.f32 %v1770
      %vm1777 = vmor %vm1775, %vm1776
      %v1778 = vsel %vm1777, %v1770, %v1774
      %v1779 = vand.u32 2147483647, %v1769
      %vm1780 = vcmp.eq.f32.partialorder %v1779, 8.507059e+37
      %v1781 = vand.u32 %v1769, 2147483648
      %v1782 = vor.u32 1.1754944e-38, %v1781
      %v1783 = vsel %vm1780, %v1782, %v1778
      %v1784 = vmul.f32 1.0, %v1783
      %v1785 = vxor.u32 %v1763, 2147483648
      %v1786 = vmul.f32 %v1785, 1.442695
      %v1787 = vpow.pop %v1786
      %v1788 = vadd.f32 %v1787, 1.0
      %v1789 = vrcp.pop %v1788
      %v1790 = vmul.f32 %v1788, %v1789
      %v1791 = vsub.f32 1.0, %v1790
      %v1792 = vmul.f32 %v1789, %v1791
      %v1793 = vadd.f32 %v1789, %v1792
      %vm1794 = vweird.f32 %v1788
      %vm1795 = vweird.f32 %v1789
      %vm1796 = vmor %vm1794, %vm1795
      %v1797 = vsel %vm1796, %v1789, %v1793
      %v1798 = vand.u32 2147483647, %v1788
      %vm1799 = vcmp.eq.f32.partialorder %v1798, 8.507059e+37
      %v1800 = vand.u32 %v1788, 2147483648
      %v1801 = vor.u32 1.1754944e-38, %v1800
      %v1802 = vsel %vm1799, %v1801, %v1797
      %v1803 = vmul.f32 1.0, %v1802
      %v1804 = vtanh.pop %v1764
      %v1805 = vxor.u32 %v1765, 2147483648
      %v1806 = vmul.f32 %v1805, 1.442695
      %v1807 = vpow.pop %v1806
      %v1808 = vadd.f32 %v1807, 1.0
      %v1809 = vrcp.pop %v1808
      %v1810 = vmul.f32 %v1808, %v1809
      %v1811 = vsub.f32 1.0, %v1810
      %v1812 = vmul.f32 %v1809, %v1811
      %v1813 = vadd.f32 %v1809, %v1812
      %vm1814 = vweird.f32 %v1808
      %vm1815 = vweird.f32 %v1809
      %vm1816 = vmor %vm1814, %vm1815
      %v1817 = vsel %vm1816, %v1809, %v1813
      %v1818 = vand.u32 2147483647, %v1808
      %vm1819 = vcmp.eq.f32.partialorder %v1818, 8.507059e+37
      %v1820 = vand.u32 %v1808, 2147483648
      %v1821 = vor.u32 1.1754944e-38, %v1820
      %v1822 = vsel %vm1819, %v1821, %v1817
      %v1823 = vmul.f32 1.0, %v1822
      %v1824 = vmul.f32 %v1803, %v1504
      %v1825 = vmul.f32 %v1784, %v1804
      %v1826 = vadd.f32 %v1824, %v1825
      %v1827 = vtanh.pop %v1826
      %v1828 = vmul.f32 %v1823, %v1827
      %v1829 = vpack.c.bf16 %v1828, %v1828
      %s1830 = scalar_lea.vmem %s84, %s1508
      %v1831 = vld [vmem:[%s1830] sm:$0xff]
      %1832 = vset.pattern.permute.xlu0 0
      %1833 = vperm.xlu0 %1832, %v1831
      %v1834 = vpop.permute.xlu0 %1833
      %vm1835 = vcmp.ne.s32.totalorder %v1834, 0
      %vm1836 = vmpackc.low %vm1835, %vm1835
      %v1837 = vsel %vm1836, %v1829, %v1503
      %v1838 = vsel %vm1835, %v1826, %v1504
      %v1839 = vsel %vm1835, %v1828, 0.0
      %s1840 = scalar_lea.vmem [#allocation3], %s1508
      %1841 = vst [vmem:[%s1840] sm:$0xff] %v1839
      %s1842 = sadd.s32 %s506, 32
      %s1843 = sshra.s32 %s1842, 3
      %s1844 = sand.u32 %s1842, 7
      %s1845 = smul.u32 %s1843, 4
      %s1846 = smul.addr %s1845, 8
      %s1847 = scalar_lea.vmem [#allocation2], %s1846
      %v1848 = vld [vmem:[%s1847] sm:$0xff]
      %v1849 = vld [vmem:[%s1847 + $0x8] sm:$0xff]
      %v1850 = vld [vmem:[%s1847 + $0x10] sm:$0xff]
      %v1851 = vld [vmem:[%s1847 + $0x18] sm:$0xff]
      %v1852 = vld [vmem:[#allocation6] sm:$0xff]
      %v1853 = vld [vmem:[#allocation6 + $0x8] sm:$0xff]
      %v1854 = vld [vmem:[#allocation6 + $0x10] sm:$0xff]
      %v1855 = vld [vmem:[#allocation6 + $0x18] sm:$0xff]
      %v1856 = vld [vmem:[#allocation6 + $0x20] sm:$0xff]
      %v1857 = vld [vmem:[#allocation6 + $0x28] sm:$0xff]
      %v1858 = vld [vmem:[#allocation6 + $0x30] sm:$0xff]
      %v1859 = vld [vmem:[#allocation6 + $0x38] sm:$0xff]
      %v1860 = vld [vmem:[#allocation6 + $0x40] sm:$0xff]
      %v1861 = vld [vmem:[#allocation6 + $0x48] sm:$0xff]
      %v1862 = vld [vmem:[#allocation6 + $0x50] sm:$0xff]
      %v1863 = vld [vmem:[#allocation6 + $0x58] sm:$0xff]
      %v1864 = vld [vmem:[#allocation6 + $0x60] sm:$0xff]
      %v1865 = vld [vmem:[#allocation6 + $0x68] sm:$0xff]
      %v1866 = vld [vmem:[#allocation6 + $0x70] sm:$0xff]
      %v1867 = vld [vmem:[#allocation6 + $0x78] sm:$0xff]
      %v1868 = vld [vmem:[#allocation6 + $0x80] sm:$0xff]
      %v1869 = vld [vmem:[#allocation6 + $0x88] sm:$0xff]
      %v1870 = vld [vmem:[#allocation6 + $0x90] sm:$0xff]
      %v1871 = vld [vmem:[#allocation6 + $0x98] sm:$0xff]
      %v1872 = vld [vmem:[#allocation6 + $0xa0] sm:$0xff]
      %v1873 = vld [vmem:[#allocation6 + $0xa8] sm:$0xff]
      %v1874 = vld [vmem:[#allocation6 + $0xb0] sm:$0xff]
      %v1875 = vld [vmem:[#allocation6 + $0xb8] sm:$0xff]
      %v1876 = vld [vmem:[#allocation6 + $0xc0] sm:$0xff]
      %v1877 = vld [vmem:[#allocation6 + $0xc8] sm:$0xff]
      %v1878 = vld [vmem:[#allocation6 + $0xd0] sm:$0xff]
      %v1879 = vld [vmem:[#allocation6 + $0xd8] sm:$0xff]
      %v1880 = vld [vmem:[#allocation6 + $0xe0] sm:$0xff]
      %v1881 = vld [vmem:[#allocation6 + $0xe8] sm:$0xff]
      %v1882 = vld [vmem:[#allocation6 + $0xf0] sm:$0xff]
      %v1883 = vld [vmem:[#allocation6 + $0xf8] sm:$0xff]
      %v1916 = vunpack.c.l.b16 %v1852
      %v1917 = vunpack.c.h.b16 %v1852
      %v1918 = vunpack.c.l.b16 %v1853
      %v1919 = vunpack.c.h.b16 %v1853
      %v1920 = vunpack.c.l.b16 %v1854
      %v1921 = vunpack.c.h.b16 %v1854
      %v1922 = vunpack.c.l.b16 %v1855
      %v1923 = vunpack.c.h.b16 %v1855
      %v1924 = vunpack.c.l.b16 %v1856
      %v1925 = vunpack.c.h.b16 %v1856
      %v1926 = vunpack.c.l.b16 %v1857
      %v1927 = vunpack.c.h.b16 %v1857
      %v1928 = vunpack.c.l.b16 %v1858
      %v1929 = vunpack.c.h.b16 %v1858
      %v1930 = vunpack.c.l.b16 %v1859
      %v1931 = vunpack.c.h.b16 %v1859
      %v1932 = vunpack.c.l.b16 %v1860
      %v1933 = vunpack.c.h.b16 %v1860
      %v1934 = vunpack.c.l.b16 %v1861
      %v1935 = vunpack.c.h.b16 %v1861
      %v1936 = vunpack.c.l.b16 %v1862
      %v1937 = vunpack.c.h.b16 %v1862
      %v1938 = vunpack.c.l.b16 %v1863
      %v1939 = vunpack.c.h.b16 %v1863
      %v1940 = vunpack.c.l.b16 %v1864
      %v1941 = vunpack.c.h.b16 %v1864
      %v1942 = vunpack.c.l.b16 %v1865
      %v1943 = vunpack.c.h.b16 %v1865
      %v1944 = vunpack.c.l.b16 %v1866
      %v1945 = vunpack.c.h.b16 %v1866
      %v1946 = vunpack.c.l.b16 %v1867
      %v1947 = vunpack.c.h.b16 %v1867
      %v1948 = vunpack.c.l.b16 %v1868
      %v1949 = vunpack.c.h.b16 %v1868
      %v1950 = vunpack.c.l.b16 %v1869
      %v1951 = vunpack.c.h.b16 %v1869
      %v1952 = vunpack.c.l.b16 %v1870
      %v1953 = vunpack.c.h.b16 %v1870
      %v1954 = vunpack.c.l.b16 %v1871
      %v1955 = vunpack.c.h.b16 %v1871
      %v1956 = vunpack.c.l.b16 %v1872
      %v1957 = vunpack.c.h.b16 %v1872
      %v1958 = vunpack.c.l.b16 %v1873
      %v1959 = vunpack.c.h.b16 %v1873
      %v1960 = vunpack.c.l.b16 %v1874
      %v1961 = vunpack.c.h.b16 %v1874
      %v1962 = vunpack.c.l.b16 %v1875
      %v1963 = vunpack.c.h.b16 %v1875
      %v1964 = vunpack.c.l.b16 %v1876
      %v1965 = vunpack.c.h.b16 %v1876
      %v1966 = vunpack.c.l.b16 %v1877
      %v1967 = vunpack.c.h.b16 %v1877
      %v1968 = vunpack.c.l.b16 %v1878
      %v1969 = vunpack.c.h.b16 %v1878
      %v1970 = vunpack.c.l.b16 %v1879
      %v1971 = vunpack.c.h.b16 %v1879
      %v1972 = vunpack.c.l.b16 %v1880
      %v1973 = vunpack.c.h.b16 %v1880
      %v1974 = vunpack.c.l.b16 %v1881
      %v1975 = vunpack.c.h.b16 %v1881
      %v1976 = vunpack.c.l.b16 %v1882
      %v1977 = vunpack.c.h.b16 %v1882
      %v1978 = vunpack.c.l.b16 %v1883
      %v1979 = vunpack.c.h.b16 %v1883
      %v1980 = vpack.c.b16 %v1920, %v1916
      %v1981 = vpack.c.b16 %v1921, %v1917
      %v1982 = vpack.c.b16 %v1922, %v1918
      %v1983 = vpack.c.b16 %v1923, %v1919
      %v1984 = vpack.c.b16 %v1928, %v1924
      %v1985 = vpack.c.b16 %v1929, %v1925
      %v1986 = vpack.c.b16 %v1930, %v1926
      %v1987 = vpack.c.b16 %v1931, %v1927
      %v1988 = vpack.c.b16 %v1936, %v1932
      %v1989 = vpack.c.b16 %v1937, %v1933
      %v1990 = vpack.c.b16 %v1938, %v1934
      %v1991 = vpack.c.b16 %v1939, %v1935
      %v1992 = vpack.c.b16 %v1944, %v1940
      %v1993 = vpack.c.b16 %v1945, %v1941
      %v1994 = vpack.c.b16 %v1946, %v1942
      %v1995 = vpack.c.b16 %v1947, %v1943
      %v1996 = vpack.c.b16 %v1952, %v1948
      %v1997 = vpack.c.b16 %v1953, %v1949
      %v1998 = vpack.c.b16 %v1954, %v1950
      %v1999 = vpack.c.b16 %v1955, %v1951
      %v2000 = vpack.c.b16 %v1960, %v1956
      %v2001 = vpack.c.b16 %v1961, %v1957
      %v2002 = vpack.c.b16 %v1962, %v1958
      %v2003 = vpack.c.b16 %v1963, %v1959
      %v2004 = vpack.c.b16 %v1968, %v1964
      %v2005 = vpack.c.b16 %v1969, %v1965
      %v2006 = vpack.c.b16 %v1970, %v1966
      %v2007 = vpack.c.b16 %v1971, %v1967
      %v2008 = vpack.c.b16 %v1976, %v1972
      %v2009 = vpack.c.b16 %v1977, %v1973
      %v2010 = vpack.c.b16 %v1978, %v1974
      %v2011 = vpack.c.b16 %v1979, %v1975
      %2044 = vmatpush.bf16.msra.mxu0 %v2008
      %2045 = vmatpush.bf16.msra.mxu0 %v2004
      %2046 = vmatpush.bf16.msra.mxu0 %v2000
      %2047 = vmatpush.bf16.msra.mxu0 %v1996
      %2048 = vmatpush.bf16.msra.mxu0 %v1992
      %2049 = vmatpush.bf16.msra.mxu0 %v1988
      %2050 = vmatpush.bf16.msra.mxu0 %v1984
      %2051 = vmatpush.bf16.msra.mxu0 %v1980
      %2052 = vmatmul.bf16.gmra.mxu0 %v1837
      %v2053 = vpop.f32.mrf.mxu0
      %v2054 = vadd.f32 0.0, %v2053
      %v2055 = vpop.f32.mrf.mxu0
      %2056 = vdwg.mxu0
      %2057 = vmatpush.bf16.msra.mxu0 %v2009
      %2058 = vmatpush.bf16.msra.mxu0 %v2005
      %2059 = vmatpush.bf16.msra.mxu0 %v2001
      %2060 = vmatpush.bf16.msra.mxu0 %v1997
      %2061 = vmatpush.bf16.msra.mxu0 %v1993
      %2062 = vmatpush.bf16.msra.mxu0 %v1989
      %2063 = vmatpush.bf16.msra.mxu0 %v1985
      %2064 = vmatpush.bf16.msra.mxu0 %v1981
      %2065 = vmatmul.bf16.gmra.mxu0 %v1837
      %v2066 = vpop.f32.mrf.mxu0
      %v2067 = vadd.f32 0.0, %v2066
      %v2068 = vpop.f32.mrf.mxu0
      %2069 = vdwg.mxu0
      %2070 = vmatpush.bf16.msra.mxu0 %v2010
      %2071 = vmatpush.bf16.msra.mxu0 %v2006
      %2072 = vmatpush.bf16.msra.mxu0 %v2002
      %2073 = vmatpush.bf16.msra.mxu0 %v1998
      %2074 = vmatpush.bf16.msra.mxu0 %v1994
      %2075 = vmatpush.bf16.msra.mxu0 %v1990
      %2076 = vmatpush.bf16.msra.mxu0 %v1986
      %2077 = vmatpush.bf16.msra.mxu0 %v1982
      %2078 = vmatmul.bf16.gmra.mxu0 %v1837
      %v2079 = vpop.f32.mrf.mxu0
      %v2080 = vadd.f32 0.0, %v2079
      %v2081 = vpop.f32.mrf.mxu0
      %2082 = vdwg.mxu0
      %2083 = vmatpush.bf16.msra.mxu0 %v2011
      %2084 = vmatpush.bf16.msra.mxu0 %v2007
      %2085 = vmatpush.bf16.msra.mxu0 %v2003
      %2086 = vmatpush.bf16.msra.mxu0 %v1999
      %2087 = vmatpush.bf16.msra.mxu0 %v1995
      %2088 = vmatpush.bf16.msra.mxu0 %v1991
      %2089 = vmatpush.bf16.msra.mxu0 %v1987
      %2090 = vmatpush.bf16.msra.mxu0 %v1983
      %2091 = vmatmul.bf16.gmra.mxu0 %v1837
      %v2092 = vpop.f32.mrf.mxu0
      %v2093 = vadd.f32 0.0, %v2092
      %v2094 = vpop.f32.mrf.mxu0
      %2095 = vdwg.mxu0
      %v2096 = vadd.f32 %v1848, %v2054
      %v2097 = vadd.f32 %v1849, %v2067
      %v2098 = vadd.f32 %v1850, %v2080
      %v2099 = vadd.f32 %v1851, %v2093
      %v2100 = vxor.u32 %v2096, 2147483648
      %v2101 = vmul.f32 %v2100, 1.442695
      %v2102 = vpow.pop %v2101
      %v2103 = vadd.f32 %v2102, 1.0
      %v2104 = vrcp.pop %v2103
      %v2105 = vmul.f32 %v2103, %v2104
      %v2106 = vsub.f32 1.0, %v2105
      %v2107 = vmul.f32 %v2104, %v2106
      %v2108 = vadd.f32 %v2104, %v2107
      %vm2109 = vweird.f32 %v2103
      %vm2110 = vweird.f32 %v2104
      %vm2111 = vmor %vm2109, %vm2110
      %v2112 = vsel %vm2111, %v2104, %v2108
      %v2113 = vand.u32 2147483647, %v2103
      %vm2114 = vcmp.eq.f32.partialorder %v2113, 8.507059e+37
      %v2115 = vand.u32 %v2103, 2147483648
      %v2116 = vor.u32 1.1754944e-38, %v2115
      %v2117 = vsel %vm2114, %v2116, %v2112
      %v2118 = vmul.f32 1.0, %v2117
      %v2119 = vxor.u32 %v2097, 2147483648
      %v2120 = vmul.f32 %v2119, 1.442695
      %v2121 = vpow.pop %v2120
      %v2122 = vadd.f32 %v2121, 1.0
      %v2123 = vrcp.pop %v2122
      %v2124 = vmul.f32 %v2122, %v2123
      %v2125 = vsub.f32 1.0, %v2124
      %v2126 = vmul.f32 %v2123, %v2125
      %v2127 = vadd.f32 %v2123, %v2126
      %vm2128 = vweird.f32 %v2122
      %vm2129 = vweird.f32 %v2123
      %vm2130 = vmor %vm2128, %vm2129
      %v2131 = vsel %vm2130, %v2123, %v2127
      %v2132 = vand.u32 2147483647, %v2122
      %vm2133 = vcmp.eq.f32.partialorder %v2132, 8.507059e+37
      %v2134 = vand.u32 %v2122, 2147483648
      %v2135 = vor.u32 1.1754944e-38, %v2134
      %v2136 = vsel %vm2133, %v2135, %v2131
      %v2137 = vmul.f32 1.0, %v2136
      %v2138 = vtanh.pop %v2098
      %v2139 = vxor.u32 %v2099, 2147483648
      %v2140 = vmul.f32 %v2139, 1.442695
      %v2141 = vpow.pop %v2140
      %v2142 = vadd.f32 %v2141, 1.0
      %v2143 = vrcp.pop %v2142
      %v2144 = vmul.f32 %v2142, %v2143
      %v2145 = vsub.f32 1.0, %v2144
      %v2146 = vmul.f32 %v2143, %v2145
      %v2147 = vadd.f32 %v2143, %v2146
      %vm2148 = vweird.f32 %v2142
      %vm2149 = vweird.f32 %v2143
      %vm2150 = vmor %vm2148, %vm2149
      %v2151 = vsel %vm2150, %v2143, %v2147
      %v2152 = vand.u32 2147483647, %v2142
      %vm2153 = vcmp.eq.f32.partialorder %v2152, 8.507059e+37
      %v2154 = vand.u32 %v2142, 2147483648
      %v2155 = vor.u32 1.1754944e-38, %v2154
      %v2156 = vsel %vm2153, %v2155, %v2151
      %v2157 = vmul.f32 1.0, %v2156
      %v2158 = vmul.f32 %v2137, %v1838
      %v2159 = vmul.f32 %v2118, %v2138
      %v2160 = vadd.f32 %v2158, %v2159
      %v2161 = vtanh.pop %v2160
      %v2162 = vmul.f32 %v2157, %v2161
      %v2163 = vpack.c.bf16 %v2162, %v2162
      %s2164 = scalar_lea.vmem %s84, %s1842
      %v2165 = vld [vmem:[%s2164] sm:$0xff]
      %2166 = vset.pattern.permute.xlu0 0
      %2167 = vperm.xlu0 %2166, %v2165
      %v2168 = vpop.permute.xlu0 %2167
      %vm2169 = vcmp.ne.s32.totalorder %v2168, 0
      %vm2170 = vmpackc.low %vm2169, %vm2169
      %v2171 = vsel %vm2170, %v2163, %v1837
      %v2172 = vsel %vm2169, %v2160, %v1838
      %v2173 = vsel %vm2169, %v2162, 0.0
      %s2174 = scalar_lea.vmem [#allocation3], %s1842
      %2175 = vst [vmem:[%s2174] sm:$0xff] %v2173
      %s2176 = sadd.s32 %s506, 40
      %s2177 = sshra.s32 %s2176, 3
      %s2178 = sand.u32 %s2176, 7
      %s2179 = smul.u32 %s2177, 4
      %s2180 = smul.addr %s2179, 8
      %s2181 = scalar_lea.vmem [#allocation2], %s2180
      %v2182 = vld [vmem:[%s2181] sm:$0xff]
      %v2183 = vld [vmem:[%s2181 + $0x8] sm:$0xff]
      %v2184 = vld [vmem:[%s2181 + $0x10] sm:$0xff]
      %v2185 = vld [vmem:[%s2181 + $0x18] sm:$0xff]
      %v2186 = vld [vmem:[#allocation6] sm:$0xff]
      %v2187 = vld [vmem:[#allocation6 + $0x8] sm:$0xff]
      %v2188 = vld [vmem:[#allocation6 + $0x10] sm:$0xff]
      %v2189 = vld [vmem:[#allocation6 + $0x18] sm:$0xff]
      %v2190 = vld [vmem:[#allocation6 + $0x20] sm:$0xff]
      %v2191 = vld [vmem:[#allocation6 + $0x28] sm:$0xff]
      %v2192 = vld [vmem:[#allocation6 + $0x30] sm:$0xff]
      %v2193 = vld [vmem:[#allocation6 + $0x38] sm:$0xff]
      %v2194 = vld [vmem:[#allocation6 + $0x40] sm:$0xff]
      %v2195 = vld [vmem:[#allocation6 + $0x48] sm:$0xff]
      %v2196 = vld [vmem:[#allocation6 + $0x50] sm:$0xff]
      %v2197 = vld [vmem:[#allocation6 + $0x58] sm:$0xff]
      %v2198 = vld [vmem:[#allocation6 + $0x60] sm:$0xff]
      %v2199 = vld [vmem:[#allocation6 + $0x68] sm:$0xff]
      %v2200 = vld [vmem:[#allocation6 + $0x70] sm:$0xff]
      %v2201 = vld [vmem:[#allocation6 + $0x78] sm:$0xff]
      %v2202 = vld [vmem:[#allocation6 + $0x80] sm:$0xff]
      %v2203 = vld [vmem:[#allocation6 + $0x88] sm:$0xff]
      %v2204 = vld [vmem:[#allocation6 + $0x90] sm:$0xff]
      %v2205 = vld [vmem:[#allocation6 + $0x98] sm:$0xff]
      %v2206 = vld [vmem:[#allocation6 + $0xa0] sm:$0xff]
      %v2207 = vld [vmem:[#allocation6 + $0xa8] sm:$0xff]
      %v2208 = vld [vmem:[#allocation6 + $0xb0] sm:$0xff]
      %v2209 = vld [vmem:[#allocation6 + $0xb8] sm:$0xff]
      %v2210 = vld [vmem:[#allocation6 + $0xc0] sm:$0xff]
      %v2211 = vld [vmem:[#allocation6 + $0xc8] sm:$0xff]
      %v2212 = vld [vmem:[#allocation6 + $0xd0] sm:$0xff]
      %v2213 = vld [vmem:[#allocation6 + $0xd8] sm:$0xff]
      %v2214 = vld [vmem:[#allocation6 + $0xe0] sm:$0xff]
      %v2215 = vld [vmem:[#allocation6 + $0xe8] sm:$0xff]
      %v2216 = vld [vmem:[#allocation6 + $0xf0] sm:$0xff]
      %v2217 = vld [vmem:[#allocation6 + $0xf8] sm:$0xff]
      %v2250 = vunpack.c.l.b16 %v2186
      %v2251 = vunpack.c.h.b16 %v2186
      %v2252 = vunpack.c.l.b16 %v2187
      %v2253 = vunpack.c.h.b16 %v2187
      %v2254 = vunpack.c.l.b16 %v2188
      %v2255 = vunpack.c.h.b16 %v2188
      %v2256 = vunpack.c.l.b16 %v2189
      %v2257 = vunpack.c.h.b16 %v2189
      %v2258 = vunpack.c.l.b16 %v2190
      %v2259 = vunpack.c.h.b16 %v2190
      %v2260 = vunpack.c.l.b16 %v2191
      %v2261 = vunpack.c.h.b16 %v2191
      %v2262 = vunpack.c.l.b16 %v2192
      %v2263 = vunpack.c.h.b16 %v2192
      %v2264 = vunpack.c.l.b16 %v2193
      %v2265 = vunpack.c.h.b16 %v2193
      %v2266 = vunpack.c.l.b16 %v2194
      %v2267 = vunpack.c.h.b16 %v2194
      %v2268 = vunpack.c.l.b16 %v2195
      %v2269 = vunpack.c.h.b16 %v2195
      %v2270 = vunpack.c.l.b16 %v2196
      %v2271 = vunpack.c.h.b16 %v2196
      %v2272 = vunpack.c.l.b16 %v2197
      %v2273 = vunpack.c.h.b16 %v2197
      %v2274 = vunpack.c.l.b16 %v2198
      %v2275 = vunpack.c.h.b16 %v2198
      %v2276 = vunpack.c.l.b16 %v2199
      %v2277 = vunpack.c.h.b16 %v2199
      %v2278 = vunpack.c.l.b16 %v2200
      %v2279 = vunpack.c.h.b16 %v2200
      %v2280 = vunpack.c.l.b16 %v2201
      %v2281 = vunpack.c.h.b16 %v2201
      %v2282 = vunpack.c.l.b16 %v2202
      %v2283 = vunpack.c.h.b16 %v2202
      %v2284 = vunpack.c.l.b16 %v2203
      %v2285 = vunpack.c.h.b16 %v2203
      %v2286 = vunpack.c.l.b16 %v2204
      %v2287 = vunpack.c.h.b16 %v2204
      %v2288 = vunpack.c.l.b16 %v2205
      %v2289 = vunpack.c.h.b16 %v2205
      %v2290 = vunpack.c.l.b16 %v2206
      %v2291 = vunpack.c.h.b16 %v2206
      %v2292 = vunpack.c.l.b16 %v2207
      %v2293 = vunpack.c.h.b16 %v2207
      %v2294 = vunpack.c.l.b16 %v2208
      %v2295 = vunpack.c.h.b16 %v2208
      %v2296 = vunpack.c.l.b16 %v2209
      %v2297 = vunpack.c.h.b16 %v2209
      %v2298 = vunpack.c.l.b16 %v2210
      %v2299 = vunpack.c.h.b16 %v2210
      %v2300 = vunpack.c.l.b16 %v2211
      %v2301 = vunpack.c.h.b16 %v2211
      %v2302 = vunpack.c.l.b16 %v2212
      %v2303 = vunpack.c.h.b16 %v2212
      %v2304 = vunpack.c.l.b16 %v2213
      %v2305 = vunpack.c.h.b16 %v2213
      %v2306 = vunpack.c.l.b16 %v2214
      %v2307 = vunpack.c.h.b16 %v2214
      %v2308 = vunpack.c.l.b16 %v2215
      %v2309 = vunpack.c.h.b16 %v2215
      %v2310 = vunpack.c.l.b16 %v2216
      %v2311 = vunpack.c.h.b16 %v2216
      %v2312 = vunpack.c.l.b16 %v2217
      %v2313 = vunpack.c.h.b16 %v2217
      %v2314 = vpack.c.b16 %v2254, %v2250
      %v2315 = vpack.c.b16 %v2255, %v2251
      %v2316 = vpack.c.b16 %v2256, %v2252
      %v2317 = vpack.c.b16 %v2257, %v2253
      %v2318 = vpack.c.b16 %v2262, %v2258
      %v2319 = vpack.c.b16 %v2263, %v2259
      %v2320 = vpack.c.b16 %v2264, %v2260
      %v2321 = vpack.c.b16 %v2265, %v2261
      %v2322 = vpack.c.b16 %v2270, %v2266
      %v2323 = vpack.c.b16 %v2271, %v2267
      %v2324 = vpack.c.b16 %v2272, %v2268
      %v2325 = vpack.c.b16 %v2273, %v2269
      %v2326 = vpack.c.b16 %v2278, %v2274
      %v2327 = vpack.c.b16 %v2279, %v2275
      %v2328 = vpack.c.b16 %v2280, %v2276
      %v2329 = vpack.c.b16 %v2281, %v2277
      %v2330 = vpack.c.b16 %v2286, %v2282
      %v2331 = vpack.c.b16 %v2287, %v2283
      %v2332 = vpack.c.b16 %v2288, %v2284
      %v2333 = vpack.c.b16 %v2289, %v2285
      %v2334 = vpack.c.b16 %v2294, %v2290
      %v2335 = vpack.c.b16 %v2295, %v2291
      %v2336 = vpack.c.b16 %v2296, %v2292
      %v2337 = vpack.c.b16 %v2297, %v2293
      %v2338 = vpack.c.b16 %v2302, %v2298
      %v2339 = vpack.c.b16 %v2303, %v2299
      %v2340 = vpack.c.b16 %v2304, %v2300
      %v2341 = vpack.c.b16 %v2305, %v2301
      %v2342 = vpack.c.b16 %v2310, %v2306
      %v2343 = vpack.c.b16 %v2311, %v2307
      %v2344 = vpack.c.b16 %v2312, %v2308
      %v2345 = vpack.c.b16 %v2313, %v2309
      %2378 = vmatpush.bf16.msra.mxu0 %v2342
      %2379 = vmatpush.bf16.msra.mxu0 %v2338
      %2380 = vmatpush.bf16.msra.mxu0 %v2334
      %2381 = vmatpush.bf16.msra.mxu0 %v2330
      %2382 = vmatpush.bf16.msra.mxu0 %v2326
      %2383 = vmatpush.bf16.msra.mxu0 %v2322
      %2384 = vmatpush.bf16.msra.mxu0 %v2318
      %2385 = vmatpush.bf16.msra.mxu0 %v2314
      %2386 = vmatmul.bf16.gmra.mxu0 %v2171
      %v2387 = vpop.f32.mrf.mxu0
      %v2388 = vadd.f32 0.0, %v2387
      %v2389 = vpop.f32.mrf.mxu0
      %2390 = vdwg.mxu0
      %2391 = vmatpush.bf16.msra.mxu0 %v2343
      %2392 = vmatpush.bf16.msra.mxu0 %v2339
      %2393 = vmatpush.bf16.msra.mxu0 %v2335
      %2394 = vmatpush.bf16.msra.mxu0 %v2331
      %2395 = vmatpush.bf16.msra.mxu0 %v2327
      %2396 = vmatpush.bf16.msra.mxu0 %v2323
      %2397 = vmatpush.bf16.msra.mxu0 %v2319
      %2398 = vmatpush.bf16.msra.mxu0 %v2315
      %2399 = vmatmul.bf16.gmra.mxu0 %v2171
      %v2400 = vpop.f32.mrf.mxu0
      %v2401 = vadd.f32 0.0, %v2400
      %v2402 = vpop.f32.mrf.mxu0
      %2403 = vdwg.mxu0
      %2404 = vmatpush.bf16.msra.mxu0 %v2344
      %2405 = vmatpush.bf16.msra.mxu0 %v2340
      %2406 = vmatpush.bf16.msra.mxu0 %v2336
      %2407 = vmatpush.bf16.msra.mxu0 %v2332
      %2408 = vmatpush.bf16.msra.mxu0 %v2328
      %2409 = vmatpush.bf16.msra.mxu0 %v2324
      %2410 = vmatpush.bf16.msra.mxu0 %v2320
      %2411 = vmatpush.bf16.msra.mxu0 %v2316
      %2412 = vmatmul.bf16.gmra.mxu0 %v2171
      %v2413 = vpop.f32.mrf.mxu0
      %v2414 = vadd.f32 0.0, %v2413
      %v2415 = vpop.f32.mrf.mxu0
      %2416 = vdwg.mxu0
      %2417 = vmatpush.bf16.msra.mxu0 %v2345
      %2418 = vmatpush.bf16.msra.mxu0 %v2341
      %2419 = vmatpush.bf16.msra.mxu0 %v2337
      %2420 = vmatpush.bf16.msra.mxu0 %v2333
      %2421 = vmatpush.bf16.msra.mxu0 %v2329
      %2422 = vmatpush.bf16.msra.mxu0 %v2325
      %2423 = vmatpush.bf16.msra.mxu0 %v2321
      %2424 = vmatpush.bf16.msra.mxu0 %v2317
      %2425 = vmatmul.bf16.gmra.mxu0 %v2171
      %v2426 = vpop.f32.mrf.mxu0
      %v2427 = vadd.f32 0.0, %v2426
      %v2428 = vpop.f32.mrf.mxu0
      %2429 = vdwg.mxu0
      %v2430 = vadd.f32 %v2182, %v2388
      %v2431 = vadd.f32 %v2183, %v2401
      %v2432 = vadd.f32 %v2184, %v2414
      %v2433 = vadd.f32 %v2185, %v2427
      %v2434 = vxor.u32 %v2430, 2147483648
      %v2435 = vmul.f32 %v2434, 1.442695
      %v2436 = vpow.pop %v2435
      %v2437 = vadd.f32 %v2436, 1.0
      %v2438 = vrcp.pop %v2437
      %v2439 = vmul.f32 %v2437, %v2438
      %v2440 = vsub.f32 1.0, %v2439
      %v2441 = vmul.f32 %v2438, %v2440
      %v2442 = vadd.f32 %v2438, %v2441
      %vm2443 = vweird.f32 %v2437
      %vm2444 = vweird.f32 %v2438
      %vm2445 = vmor %vm2443, %vm2444
      %v2446 = vsel %vm2445, %v2438, %v2442
      %v2447 = vand.u32 2147483647, %v2437
      %vm2448 = vcmp.eq.f32.partialorder %v2447, 8.507059e+37
      %v2449 = vand.u32 %v2437, 2147483648
      %v2450 = vor.u32 1.1754944e-38, %v2449
      %v2451 = vsel %vm2448, %v2450, %v2446
      %v2452 = vmul.f32 1.0, %v2451
      %v2453 = vxor.u32 %v2431, 2147483648
      %v2454 = vmul.f32 %v2453, 1.442695
      %v2455 = vpow.pop %v2454
      %v2456 = vadd.f32 %v2455, 1.0
      %v2457 = vrcp.pop %v2456
      %v2458 = vmul.f32 %v2456, %v2457
      %v2459 = vsub.f32 1.0, %v2458
      %v2460 = vmul.f32 %v2457, %v2459
      %v2461 = vadd.f32 %v2457, %v2460
      %vm2462 = vweird.f32 %v2456
      %vm2463 = vweird.f32 %v2457
      %vm2464 = vmor %vm2462, %vm2463
      %v2465 = vsel %vm2464, %v2457, %v2461
      %v2466 = vand.u32 2147483647, %v2456
      %vm2467 = vcmp.eq.f32.partialorder %v2466, 8.507059e+37
      %v2468 = vand.u32 %v2456, 2147483648
      %v2469 = vor.u32 1.1754944e-38, %v2468
      %v2470 = vsel %vm2467, %v2469, %v2465
      %v2471 = vmul.f32 1.0, %v2470
      %v2472 = vtanh.pop %v2432
      %v2473 = vxor.u32 %v2433, 2147483648
      %v2474 = vmul.f32 %v2473, 1.442695
      %v2475 = vpow.pop %v2474
      %v2476 = vadd.f32 %v2475, 1.0
      %v2477 = vrcp.pop %v2476
      %v2478 = vmul.f32 %v2476, %v2477
      %v2479 = vsub.f32 1.0, %v2478
      %v2480 = vmul.f32 %v2477, %v2479
      %v2481 = vadd.f32 %v2477, %v2480
      %vm2482 = vweird.f32 %v2476
      %vm2483 = vweird.f32 %v2477
      %vm2484 = vmor %vm2482, %vm2483
      %v2485 = vsel %vm2484, %v2477, %v2481
      %v2486 = vand.u32 2147483647, %v2476
      %vm2487 = vcmp.eq.f32.partialorder %v2486, 8.507059e+37
      %v2488 = vand.u32 %v2476, 2147483648
      %v2489 = vor.u32 1.1754944e-38, %v2488
      %v2490 = vsel %vm2487, %v2489, %v2485
      %v2491 = vmul.f32 1.0, %v2490
      %v2492 = vmul.f32 %v2471, %v2172
      %v2493 = vmul.f32 %v2452, %v2472
      %v2494 = vadd.f32 %v2492, %v2493
      %v2495 = vtanh.pop %v2494
      %v2496 = vmul.f32 %v2491, %v2495
      %v2497 = vpack.c.bf16 %v2496, %v2496
      %s2498 = scalar_lea.vmem %s84, %s2176
      %v2499 = vld [vmem:[%s2498] sm:$0xff]
      %2500 = vset.pattern.permute.xlu0 0
      %2501 = vperm.xlu0 %2500, %v2499
      %v2502 = vpop.permute.xlu0 %2501
      %vm2503 = vcmp.ne.s32.totalorder %v2502, 0
      %vm2504 = vmpackc.low %vm2503, %vm2503
      %v2505 = vsel %vm2504, %v2497, %v2171
      %v2506 = vsel %vm2503, %v2494, %v2172
      %v2507 = vsel %vm2503, %v2496, 0.0
      %s2508 = scalar_lea.vmem [#allocation3], %s2176
      %2509 = vst [vmem:[%s2508] sm:$0xff] %v2507
      %s2510 = sadd.s32 %s506, 48
      %s2511 = sshra.s32 %s2510, 3
      %s2512 = sand.u32 %s2510, 7
      %s2513 = smul.u32 %s2511, 4
      %s2514 = smul.addr %s2513, 8
      %s2515 = scalar_lea.vmem [#allocation2], %s2514
      %v2516 = vld [vmem:[%s2515] sm:$0xff]
      %v2517 = vld [vmem:[%s2515 + $0x8] sm:$0xff]
      %v2518 = vld [vmem:[%s2515 + $0x10] sm:$0xff]
      %v2519 = vld [vmem:[%s2515 + $0x18] sm:$0xff]
      %v2520 = vld [vmem:[#allocation6] sm:$0xff]
      %v2521 = vld [vmem:[#allocation6 + $0x8] sm:$0xff]
      %v2522 = vld [vmem:[#allocation6 + $0x10] sm:$0xff]
      %v2523 = vld [vmem:[#allocation6 + $0x18] sm:$0xff]
      %v2524 = vld [vmem:[#allocation6 + $0x20] sm:$0xff]
      %v2525 = vld [vmem:[#allocation6 + $0x28] sm:$0xff]
      %v2526 = vld [vmem:[#allocation6 + $0x30] sm:$0xff]
      %v2527 = vld [vmem:[#allocation6 + $0x38] sm:$0xff]
      %v2528 = vld [vmem:[#allocation6 + $0x40] sm:$0xff]
      %v2529 = vld [vmem:[#allocation6 + $0x48] sm:$0xff]
      %v2530 = vld [vmem:[#allocation6 + $0x50] sm:$0xff]
      %v2531 = vld [vmem:[#allocation6 + $0x58] sm:$0xff]
      %v2532 = vld [vmem:[#allocation6 + $0x60] sm:$0xff]
      %v2533 = vld [vmem:[#allocation6 + $0x68] sm:$0xff]
      %v2534 = vld [vmem:[#allocation6 + $0x70] sm:$0xff]
      %v2535 = vld [vmem:[#allocation6 + $0x78] sm:$0xff]
      %v2536 = vld [vmem:[#allocation6 + $0x80] sm:$0xff]
      %v2537 = vld [vmem:[#allocation6 + $0x88] sm:$0xff]
      %v2538 = vld [vmem:[#allocation6 + $0x90] sm:$0xff]
      %v2539 = vld [vmem:[#allocation6 + $0x98] sm:$0xff]
      %v2540 = vld [vmem:[#allocation6 + $0xa0] sm:$0xff]
      %v2541 = vld [vmem:[#allocation6 + $0xa8] sm:$0xff]
      %v2542 = vld [vmem:[#allocation6 + $0xb0] sm:$0xff]
      %v2543 = vld [vmem:[#allocation6 + $0xb8] sm:$0xff]
      %v2544 = vld [vmem:[#allocation6 + $0xc0] sm:$0xff]
      %v2545 = vld [vmem:[#allocation6 + $0xc8] sm:$0xff]
      %v2546 = vld [vmem:[#allocation6 + $0xd0] sm:$0xff]
      %v2547 = vld [vmem:[#allocation6 + $0xd8] sm:$0xff]
      %v2548 = vld [vmem:[#allocation6 + $0xe0] sm:$0xff]
      %v2549 = vld [vmem:[#allocation6 + $0xe8] sm:$0xff]
      %v2550 = vld [vmem:[#allocation6 + $0xf0] sm:$0xff]
      %v2551 = vld [vmem:[#allocation6 + $0xf8] sm:$0xff]
      %v2584 = vunpack.c.l.b16 %v2520
      %v2585 = vunpack.c.h.b16 %v2520
      %v2586 = vunpack.c.l.b16 %v2521
      %v2587 = vunpack.c.h.b16 %v2521
      %v2588 = vunpack.c.l.b16 %v2522
      %v2589 = vunpack.c.h.b16 %v2522
      %v2590 = vunpack.c.l.b16 %v2523
      %v2591 = vunpack.c.h.b16 %v2523
      %v2592 = vunpack.c.l.b16 %v2524
      %v2593 = vunpack.c.h.b16 %v2524
      %v2594 = vunpack.c.l.b16 %v2525
      %v2595 = vunpack.c.h.b16 %v2525
      %v2596 = vunpack.c.l.b16 %v2526
      %v2597 = vunpack.c.h.b16 %v2526
      %v2598 = vunpack.c.l.b16 %v2527
      %v2599 = vunpack.c.h.b16 %v2527
      %v2600 = vunpack.c.l.b16 %v2528
      %v2601 = vunpack.c.h.b16 %v2528
      %v2602 = vunpack.c.l.b16 %v2529
      %v2603 = vunpack.c.h.b16 %v2529
      %v2604 = vunpack.c.l.b16 %v2530
      %v2605 = vunpack.c.h.b16 %v2530
      %v2606 = vunpack.c.l.b16 %v2531
      %v2607 = vunpack.c.h.b16 %v2531
      %v2608 = vunpack.c.l.b16 %v2532
      %v2609 = vunpack.c.h.b16 %v2532
      %v2610 = vunpack.c.l.b16 %v2533
      %v2611 = vunpack.c.h.b16 %v2533
      %v2612 = vunpack.c.l.b16 %v2534
      %v2613 = vunpack.c.h.b16 %v2534
      %v2614 = vunpack.c.l.b16 %v2535
      %v2615 = vunpack.c.h.b16 %v2535
      %v2616 = vunpack.c.l.b16 %v2536
      %v2617 = vunpack.c.h.b16 %v2536
      %v2618 = vunpack.c.l.b16 %v2537
      %v2619 = vunpack.c.h.b16 %v2537
      %v2620 = vunpack.c.l.b16 %v2538
      %v2621 = vunpack.c.h.b16 %v2538
      %v2622 = vunpack.c.l.b16 %v2539
      %v2623 = vunpack.c.h.b16 %v2539
      %v2624 = vunpack.c.l.b16 %v2540
      %v2625 = vunpack.c.h.b16 %v2540
      %v2626 = vunpack.c.l.b16 %v2541
      %v2627 = vunpack.c.h.b16 %v2541
      %v2628 = vunpack.c.l.b16 %v2542
      %v2629 = vunpack.c.h.b16 %v2542
      %v2630 = vunpack.c.l.b16 %v2543
      %v2631 = vunpack.c.h.b16 %v2543
      %v2632 = vunpack.c.l.b16 %v2544
      %v2633 = vunpack.c.h.b16 %v2544
      %v2634 = vunpack.c.l.b16 %v2545
      %v2635 = vunpack.c.h.b16 %v2545
      %v2636 = vunpack.c.l.b16 %v2546
      %v2637 = vunpack.c.h.b16 %v2546
      %v2638 = vunpack.c.l.b16 %v2547
      %v2639 = vunpack.c.h.b16 %v2547
      %v2640 = vunpack.c.l.b16 %v2548
      %v2641 = vunpack.c.h.b16 %v2548
      %v2642 = vunpack.c.l.b16 %v2549
      %v2643 = vunpack.c.h.b16 %v2549
      %v2644 = vunpack.c.l.b16 %v2550
      %v2645 = vunpack.c.h.b16 %v2550
      %v2646 = vunpack.c.l.b16 %v2551
      %v2647 = vunpack.c.h.b16 %v2551
      %v2648 = vpack.c.b16 %v2588, %v2584
      %v2649 = vpack.c.b16 %v2589, %v2585
      %v2650 = vpack.c.b16 %v2590, %v2586
      %v2651 = vpack.c.b16 %v2591, %v2587
      %v2652 = vpack.c.b16 %v2596, %v2592
      %v2653 = vpack.c.b16 %v2597, %v2593
      %v2654 = vpack.c.b16 %v2598, %v2594
      %v2655 = vpack.c.b16 %v2599, %v2595
      %v2656 = vpack.c.b16 %v2604, %v2600
      %v2657 = vpack.c.b16 %v2605, %v2601
      %v2658 = vpack.c.b16 %v2606, %v2602
      %v2659 = vpack.c.b16 %v2607, %v2603
      %v2660 = vpack.c.b16 %v2612, %v2608
      %v2661 = vpack.c.b16 %v2613, %v2609
      %v2662 = vpack.c.b16 %v2614, %v2610
      %v2663 = vpack.c.b16 %v2615, %v2611
      %v2664 = vpack.c.b16 %v2620, %v2616
      %v2665 = vpack.c.b16 %v2621, %v2617
      %v2666 = vpack.c.b16 %v2622, %v2618
      %v2667 = vpack.c.b16 %v2623, %v2619
      %v2668 = vpack.c.b16 %v2628, %v2624
      %v2669 = vpack.c.b16 %v2629, %v2625
      %v2670 = vpack.c.b16 %v2630, %v2626
      %v2671 = vpack.c.b16 %v2631, %v2627
      %v2672 = vpack.c.b16 %v2636, %v2632
      %v2673 = vpack.c.b16 %v2637, %v2633
      %v2674 = vpack.c.b16 %v2638, %v2634
      %v2675 = vpack.c.b16 %v2639, %v2635
      %v2676 = vpack.c.b16 %v2644, %v2640
      %v2677 = vpack.c.b16 %v2645, %v2641
      %v2678 = vpack.c.b16 %v2646, %v2642
      %v2679 = vpack.c.b16 %v2647, %v2643
      %2712 = vmatpush.bf16.msra.mxu0 %v2676
      %2713 = vmatpush.bf16.msra.mxu0 %v2672
      %2714 = vmatpush.bf16.msra.mxu0 %v2668
      %2715 = vmatpush.bf16.msra.mxu0 %v2664
      %2716 = vmatpush.bf16.msra.mxu0 %v2660
      %2717 = vmatpush.bf16.msra.mxu0 %v2656
      %2718 = vmatpush.bf16.msra.mxu0 %v2652
      %2719 = vmatpush.bf16.msra.mxu0 %v2648
      %2720 = vmatmul.bf16.gmra.mxu0 %v2505
      %v2721 = vpop.f32.mrf.mxu0
      %v2722 = vadd.f32 0.0, %v2721
      %v2723 = vpop.f32.mrf.mxu0
      %2724 = vdwg.mxu0
      %2725 = vmatpush.bf16.msra.mxu0 %v2677
      %2726 = vmatpush.bf16.msra.mxu0 %v2673
      %2727 = vmatpush.bf16.msra.mxu0 %v2669
      %2728 = vmatpush.bf16.msra.mxu0 %v2665
      %2729 = vmatpush.bf16.msra.mxu0 %v2661
      %2730 = vmatpush.bf16.msra.mxu0 %v2657
      %2731 = vmatpush.bf16.msra.mxu0 %v2653
      %2732 = vmatpush.bf16.msra.mxu0 %v2649
      %2733 = vmatmul.bf16.gmra.mxu0 %v2505
      %v2734 = vpop.f32.mrf.mxu0
      %v2735 = vadd.f32 0.0, %v2734
      %v2736 = vpop.f32.mrf.mxu0
      %2737 = vdwg.mxu0
      %2738 = vmatpush.bf16.msra.mxu0 %v2678
      %2739 = vmatpush.bf16.msra.mxu0 %v2674
      %2740 = vmatpush.bf16.msra.mxu0 %v2670
      %2741 = vmatpush.bf16.msra.mxu0 %v2666
      %2742 = vmatpush.bf16.msra.mxu0 %v2662
      %2743 = vmatpush.bf16.msra.mxu0 %v2658
      %2744 = vmatpush.bf16.msra.mxu0 %v2654
      %2745 = vmatpush.bf16.msra.mxu0 %v2650
      %2746 = vmatmul.bf16.gmra.mxu0 %v2505
      %v2747 = vpop.f32.mrf.mxu0
      %v2748 = vadd.f32 0.0, %v2747
      %v2749 = vpop.f32.mrf.mxu0
      %2750 = vdwg.mxu0
      %2751 = vmatpush.bf16.msra.mxu0 %v2679
      %2752 = vmatpush.bf16.msra.mxu0 %v2675
      %2753 = vmatpush.bf16.msra.mxu0 %v2671
      %2754 = vmatpush.bf16.msra.mxu0 %v2667
      %2755 = vmatpush.bf16.msra.mxu0 %v2663
      %2756 = vmatpush.bf16.msra.mxu0 %v2659
      %2757 = vmatpush.bf16.msra.mxu0 %v2655
      %2758 = vmatpush.bf16.msra.mxu0 %v2651
      %2759 = vmatmul.bf16.gmra.mxu0 %v2505
      %v2760 = vpop.f32.mrf.mxu0
      %v2761 = vadd.f32 0.0, %v2760
      %v2762 = vpop.f32.mrf.mxu0
      %2763 = vdwg.mxu0
      %v2764 = vadd.f32 %v2516, %v2722
      %v2765 = vadd.f32 %v2517, %v2735
      %v2766 = vadd.f32 %v2518, %v2748
      %v2767 = vadd.f32 %v2519, %v2761
      %v2768 = vxor.u32 %v2764, 2147483648
      %v2769 = vmul.f32 %v2768, 1.442695
      %v2770 = vpow.pop %v2769
      %v2771 = vadd.f32 %v2770, 1.0
      %v2772 = vrcp.pop %v2771
      %v2773 = vmul.f32 %v2771, %v2772
      %v2774 = vsub.f32 1.0, %v2773
      %v2775 = vmul.f32 %v2772, %v2774
      %v2776 = vadd.f32 %v2772, %v2775
      %vm2777 = vweird.f32 %v2771
      %vm2778 = vweird.f32 %v2772
      %vm2779 = vmor %vm2777, %vm2778
      %v2780 = vsel %vm2779, %v2772, %v2776
      %v2781 = vand.u32 2147483647, %v2771
      %vm2782 = vcmp.eq.f32.partialorder %v2781, 8.507059e+37
      %v2783 = vand.u32 %v2771, 2147483648
      %v2784 = vor.u32 1.1754944e-38, %v2783
      %v2785 = vsel %vm2782, %v2784, %v2780
      %v2786 = vmul.f32 1.0, %v2785
      %v2787 = vxor.u32 %v2765, 2147483648
      %v2788 = vmul.f32 %v2787, 1.442695
      %v2789 = vpow.pop %v2788
      %v2790 = vadd.f32 %v2789, 1.0
      %v2791 = vrcp.pop %v2790
      %v2792 = vmul.f32 %v2790, %v2791
      %v2793 = vsub.f32 1.0, %v2792
      %v2794 = vmul.f32 %v2791, %v2793
      %v2795 = vadd.f32 %v2791, %v2794
      %vm2796 = vweird.f32 %v2790
      %vm2797 = vweird.f32 %v2791
      %vm2798 = vmor %vm2796, %vm2797
      %v2799 = vsel %vm2798, %v2791, %v2795
      %v2800 = vand.u32 2147483647, %v2790
      %vm2801 = vcmp.eq.f32.partialorder %v2800, 8.507059e+37
      %v2802 = vand.u32 %v2790, 2147483648
      %v2803 = vor.u32 1.1754944e-38, %v2802
      %v2804 = vsel %vm2801, %v2803, %v2799
      %v2805 = vmul.f32 1.0, %v2804
      %v2806 = vtanh.pop %v2766
      %v2807 = vxor.u32 %v2767, 2147483648
      %v2808 = vmul.f32 %v2807, 1.442695
      %v2809 = vpow.pop %v2808
      %v2810 = vadd.f32 %v2809, 1.0
      %v2811 = vrcp.pop %v2810
      %v2812 = vmul.f32 %v2810, %v2811
      %v2813 = vsub.f32 1.0, %v2812
      %v2814 = vmul.f32 %v2811, %v2813
      %v2815 = vadd.f32 %v2811, %v2814
      %vm2816 = vweird.f32 %v2810
      %vm2817 = vweird.f32 %v2811
      %vm2818 = vmor %vm2816, %vm2817
      %v2819 = vsel %vm2818, %v2811, %v2815
      %v2820 = vand.u32 2147483647, %v2810
      %vm2821 = vcmp.eq.f32.partialorder %v2820, 8.507059e+37
      %v2822 = vand.u32 %v2810, 2147483648
      %v2823 = vor.u32 1.1754944e-38, %v2822
      %v2824 = vsel %vm2821, %v2823, %v2819
      %v2825 = vmul.f32 1.0, %v2824
      %v2826 = vmul.f32 %v2805, %v2506
      %v2827 = vmul.f32 %v2786, %v2806
      %v2828 = vadd.f32 %v2826, %v2827
      %v2829 = vtanh.pop %v2828
      %v2830 = vmul.f32 %v2825, %v2829
      %v2831 = vpack.c.bf16 %v2830, %v2830
      %s2832 = scalar_lea.vmem %s84, %s2510
      %v2833 = vld [vmem:[%s2832] sm:$0xff]
      %2834 = vset.pattern.permute.xlu0 0
      %2835 = vperm.xlu0 %2834, %v2833
      %v2836 = vpop.permute.xlu0 %2835
      %vm2837 = vcmp.ne.s32.totalorder %v2836, 0
      %vm2838 = vmpackc.low %vm2837, %vm2837
      %v2839 = vsel %vm2838, %v2831, %v2505
      %v2840 = vsel %vm2837, %v2828, %v2506
      %v2841 = vsel %vm2837, %v2830, 0.0
      %s2842 = scalar_lea.vmem [#allocation3], %s2510
      %2843 = vst [vmem:[%s2842] sm:$0xff] %v2841
      %s2844 = sadd.s32 %s506, 56
      %s2845 = sshra.s32 %s2844, 3
      %s2846 = sand.u32 %s2844, 7
      %s2847 = smul.u32 %s2845, 4
      %s2848 = smul.addr %s2847, 8
      %s2849 = scalar_lea.vmem [#allocation2], %s2848
      %v2850 = vld [vmem:[%s2849] sm:$0xff]
      %v2851 = vld [vmem:[%s2849 + $0x8] sm:$0xff]
      %v2852 = vld [vmem:[%s2849 + $0x10] sm:$0xff]
      %v2853 = vld [vmem:[%s2849 + $0x18] sm:$0xff]
      %v2854 = vld [vmem:[#allocation6] sm:$0xff]
      %v2855 = vld [vmem:[#allocation6 + $0x8] sm:$0xff]
      %v2856 = vld [vmem:[#allocation6 + $0x10] sm:$0xff]
      %v2857 = vld [vmem:[#allocation6 + $0x18] sm:$0xff]
      %v2858 = vld [vmem:[#allocation6 + $0x20] sm:$0xff]
      %v2859 = vld [vmem:[#allocation6 + $0x28] sm:$0xff]
      %v2860 = vld [vmem:[#allocation6 + $0x30] sm:$0xff]
      %v2861 = vld [vmem:[#allocation6 + $0x38] sm:$0xff]
      %v2862 = vld [vmem:[#allocation6 + $0x40] sm:$0xff]
      %v2863 = vld [vmem:[#allocation6 + $0x48] sm:$0xff]
      %v2864 = vld [vmem:[#allocation6 + $0x50] sm:$0xff]
      %v2865 = vld [vmem:[#allocation6 + $0x58] sm:$0xff]
      %v2866 = vld [vmem:[#allocation6 + $0x60] sm:$0xff]
      %v2867 = vld [vmem:[#allocation6 + $0x68] sm:$0xff]
      %v2868 = vld [vmem:[#allocation6 + $0x70] sm:$0xff]
      %v2869 = vld [vmem:[#allocation6 + $0x78] sm:$0xff]
      %v2870 = vld [vmem:[#allocation6 + $0x80] sm:$0xff]
      %v2871 = vld [vmem:[#allocation6 + $0x88] sm:$0xff]
      %v2872 = vld [vmem:[#allocation6 + $0x90] sm:$0xff]
      %v2873 = vld [vmem:[#allocation6 + $0x98] sm:$0xff]
      %v2874 = vld [vmem:[#allocation6 + $0xa0] sm:$0xff]
      %v2875 = vld [vmem:[#allocation6 + $0xa8] sm:$0xff]
      %v2876 = vld [vmem:[#allocation6 + $0xb0] sm:$0xff]
      %v2877 = vld [vmem:[#allocation6 + $0xb8] sm:$0xff]
      %v2878 = vld [vmem:[#allocation6 + $0xc0] sm:$0xff]
      %v2879 = vld [vmem:[#allocation6 + $0xc8] sm:$0xff]
      %v2880 = vld [vmem:[#allocation6 + $0xd0] sm:$0xff]
      %v2881 = vld [vmem:[#allocation6 + $0xd8] sm:$0xff]
      %v2882 = vld [vmem:[#allocation6 + $0xe0] sm:$0xff]
      %v2883 = vld [vmem:[#allocation6 + $0xe8] sm:$0xff]
      %v2884 = vld [vmem:[#allocation6 + $0xf0] sm:$0xff]
      %v2885 = vld [vmem:[#allocation6 + $0xf8] sm:$0xff]
      %v2918 = vunpack.c.l.b16 %v2854
      %v2919 = vunpack.c.h.b16 %v2854
      %v2920 = vunpack.c.l.b16 %v2855
      %v2921 = vunpack.c.h.b16 %v2855
      %v2922 = vunpack.c.l.b16 %v2856
      %v2923 = vunpack.c.h.b16 %v2856
      %v2924 = vunpack.c.l.b16 %v2857
      %v2925 = vunpack.c.h.b16 %v2857
      %v2926 = vunpack.c.l.b16 %v2858
      %v2927 = vunpack.c.h.b16 %v2858
      %v2928 = vunpack.c.l.b16 %v2859
      %v2929 = vunpack.c.h.b16 %v2859
      %v2930 = vunpack.c.l.b16 %v2860
      %v2931 = vunpack.c.h.b16 %v2860
      %v2932 = vunpack.c.l.b16 %v2861
      %v2933 = vunpack.c.h.b16 %v2861
      %v2934 = vunpack.c.l.b16 %v2862
      %v2935 = vunpack.c.h.b16 %v2862
      %v2936 = vunpack.c.l.b16 %v2863
      %v2937 = vunpack.c.h.b16 %v2863
      %v2938 = vunpack.c.l.b16 %v2864
      %v2939 = vunpack.c.h.b16 %v2864
      %v2940 = vunpack.c.l.b16 %v2865
      %v2941 = vunpack.c.h.b16 %v2865
      %v2942 = vunpack.c.l.b16 %v2866
      %v2943 = vunpack.c.h.b16 %v2866
      %v2944 = vunpack.c.l.b16 %v2867
      %v2945 = vunpack.c.h.b16 %v2867
      %v2946 = vunpack.c.l.b16 %v2868
      %v2947 = vunpack.c.h.b16 %v2868
      %v2948 = vunpack.c.l.b16 %v2869
      %v2949 = vunpack.c.h.b16 %v2869
      %v2950 = vunpack.c.l.b16 %v2870
      %v2951 = vunpack.c.h.b16 %v2870
      %v2952 = vunpack.c.l.b16 %v2871
      %v2953 = vunpack.c.h.b16 %v2871
      %v2954 = vunpack.c.l.b16 %v2872
      %v2955 = vunpack.c.h.b16 %v2872
      %v2956 = vunpack.c.l.b16 %v2873
      %v2957 = vunpack.c.h.b16 %v2873
      %v2958 = vunpack.c.l.b16 %v2874
      %v2959 = vunpack.c.h.b16 %v2874
      %v2960 = vunpack.c.l.b16 %v2875
      %v2961 = vunpack.c.h.b16 %v2875
      %v2962 = vunpack.c.l.b16 %v2876
      %v2963 = vunpack.c.h.b16 %v2876
      %v2964 = vunpack.c.l.b16 %v2877
      %v2965 = vunpack.c.h.b16 %v2877
      %v2966 = vunpack.c.l.b16 %v2878
      %v2967 = vunpack.c.h.b16 %v2878
      %v2968 = vunpack.c.l.b16 %v2879
      %v2969 = vunpack.c.h.b16 %v2879
      %v2970 = vunpack.c.l.b16 %v2880
      %v2971 = vunpack.c.h.b16 %v2880
      %v2972 = vunpack.c.l.b16 %v2881
      %v2973 = vunpack.c.h.b16 %v2881
      %v2974 = vunpack.c.l.b16 %v2882
      %v2975 = vunpack.c.h.b16 %v2882
      %v2976 = vunpack.c.l.b16 %v2883
      %v2977 = vunpack.c.h.b16 %v2883
      %v2978 = vunpack.c.l.b16 %v2884
      %v2979 = vunpack.c.h.b16 %v2884
      %v2980 = vunpack.c.l.b16 %v2885
      %v2981 = vunpack.c.h.b16 %v2885
      %v2982 = vpack.c.b16 %v2922, %v2918
      %v2983 = vpack.c.b16 %v2923, %v2919
      %v2984 = vpack.c.b16 %v2924, %v2920
      %v2985 = vpack.c.b16 %v2925, %v2921
      %v2986 = vpack.c.b16 %v2930, %v2926
      %v2987 = vpack.c.b16 %v2931, %v2927
      %v2988 = vpack.c.b16 %v2932, %v2928
      %v2989 = vpack.c.b16 %v2933, %v2929
      %v2990 = vpack.c.b16 %v2938, %v2934
      %v2991 = vpack.c.b16 %v2939, %v2935
      %v2992 = vpack.c.b16 %v2940, %v2936
      %v2993 = vpack.c.b16 %v2941, %v2937
      %v2994 = vpack.c.b16 %v2946, %v2942
      %v2995 = vpack.c.b16 %v2947, %v2943
      %v2996 = vpack.c.b16 %v2948, %v2944
      %v2997 = vpack.c.b16 %v2949, %v2945
      %v2998 = vpack.c.b16 %v2954, %v2950
      %v2999 = vpack.c.b16 %v2955, %v2951
      %v3000 = vpack.c.b16 %v2956, %v2952
      %v3001 = vpack.c.b16 %v2957, %v2953
      %v3002 = vpack.c.b16 %v2962, %v2958
      %v3003 = vpack.c.b16 %v2963, %v2959
      %v3004 = vpack.c.b16 %v2964, %v2960
      %v3005 = vpack.c.b16 %v2965, %v2961
      %v3006 = vpack.c.b16 %v2970, %v2966
      %v3007 = vpack.c.b16 %v2971, %v2967
      %v3008 = vpack.c.b16 %v2972, %v2968
      %v3009 = vpack.c.b16 %v2973, %v2969
      %v3010 = vpack.c.b16 %v2978, %v2974
      %v3011 = vpack.c.b16 %v2979, %v2975
      %v3012 = vpack.c.b16 %v2980, %v2976
      %v3013 = vpack.c.b16 %v2981, %v2977
      %3046 = vmatpush.bf16.msra.mxu0 %v3010
      %3047 = vmatpush.bf16.msra.mxu0 %v3006
      %3048 = vmatpush.bf16.msra.mxu0 %v3002
      %3049 = vmatpush.bf16.msra.mxu0 %v2998
      %3050 = vmatpush.bf16.msra.mxu0 %v2994
      %3051 = vmatpush.bf16.msra.mxu0 %v2990
      %3052 = vmatpush.bf16.msra.mxu0 %v2986
      %3053 = vmatpush.bf16.msra.mxu0 %v2982
      %3054 = vmatmul.bf16.gmra.mxu0 %v2839
      %v3055 = vpop.f32.mrf.mxu0
      %v3056 = vadd.f32 0.0, %v3055
      %v3057 = vpop.f32.mrf.mxu0
      %3058 = vdwg.mxu0
      %3059 = vmatpush.bf16.msra.mxu0 %v3011
      %3060 = vmatpush.bf16.msra.mxu0 %v3007
      %3061 = vmatpush.bf16.msra.mxu0 %v3003
      %3062 = vmatpush.bf16.msra.mxu0 %v2999
      %3063 = vmatpush.bf16.msra.mxu0 %v2995
      %3064 = vmatpush.bf16.msra.mxu0 %v2991
      %3065 = vmatpush.bf16.msra.mxu0 %v2987
      %3066 = vmatpush.bf16.msra.mxu0 %v2983
      %3067 = vmatmul.bf16.gmra.mxu0 %v2839
      %v3068 = vpop.f32.mrf.mxu0
      %v3069 = vadd.f32 0.0, %v3068
      %v3070 = vpop.f32.mrf.mxu0
      %3071 = vdwg.mxu0
      %3072 = vmatpush.bf16.msra.mxu0 %v3012
      %3073 = vmatpush.bf16.msra.mxu0 %v3008
      %3074 = vmatpush.bf16.msra.mxu0 %v3004
      %3075 = vmatpush.bf16.msra.mxu0 %v3000
      %3076 = vmatpush.bf16.msra.mxu0 %v2996
      %3077 = vmatpush.bf16.msra.mxu0 %v2992
      %3078 = vmatpush.bf16.msra.mxu0 %v2988
      %3079 = vmatpush.bf16.msra.mxu0 %v2984
      %3080 = vmatmul.bf16.gmra.mxu0 %v2839
      %v3081 = vpop.f32.mrf.mxu0
      %v3082 = vadd.f32 0.0, %v3081
      %v3083 = vpop.f32.mrf.mxu0
      %3084 = vdwg.mxu0
      %3085 = vmatpush.bf16.msra.mxu0 %v3013
      %3086 = vmatpush.bf16.msra.mxu0 %v3009
      %3087 = vmatpush.bf16.msra.mxu0 %v3005
      %3088 = vmatpush.bf16.msra.mxu0 %v3001
      %3089 = vmatpush.bf16.msra.mxu0 %v2997
      %3090 = vmatpush.bf16.msra.mxu0 %v2993
      %3091 = vmatpush.bf16.msra.mxu0 %v2989
      %3092 = vmatpush.bf16.msra.mxu0 %v2985
      %3093 = vmatmul.bf16.gmra.mxu0 %v2839
      %v3094 = vpop.f32.mrf.mxu0
      %v3095 = vadd.f32 0.0, %v3094
      %v3096 = vpop.f32.mrf.mxu0
      %3097 = vdwg.mxu0
      %v3098 = vadd.f32 %v2850, %v3056
      %v3099 = vadd.f32 %v2851, %v3069
      %v3100 = vadd.f32 %v2852, %v3082
      %v3101 = vadd.f32 %v2853, %v3095
      %v3102 = vxor.u32 %v3098, 2147483648
      %v3103 = vmul.f32 %v3102, 1.442695
      %v3104 = vpow.pop %v3103
      %v3105 = vadd.f32 %v3104, 1.0
      %v3106 = vrcp.pop %v3105
      %v3107 = vmul.f32 %v3105, %v3106
      %v3108 = vsub.f32 1.0, %v3107
      %v3109 = vmul.f32 %v3106, %v3108
      %v3110 = vadd.f32 %v3106, %v3109
      %vm3111 = vweird.f32 %v3105
      %vm3112 = vweird.f32 %v3106
      %vm3113 = vmor %vm3111, %vm3112
      %v3114 = vsel %vm3113, %v3106, %v3110
      %v3115 = vand.u32 2147483647, %v3105
      %vm3116 = vcmp.eq.f32.partialorder %v3115, 8.507059e+37
      %v3117 = vand.u32 %v3105, 2147483648
      %v3118 = vor.u32 1.1754944e-38, %v3117
      %v3119 = vsel %vm3116, %v3118, %v3114
      %v3120 = vmul.f32 1.0, %v3119
      %v3121 = vxor.u32 %v3099, 2147483648
      %v3122 = vmul.f32 %v3121, 1.442695
      %v3123 = vpow.pop %v3122
      %v3124 = vadd.f32 %v3123, 1.0
      %v3125 = vrcp.pop %v3124
      %v3126 = vmul.f32 %v3124, %v3125
      %v3127 = vsub.f32 1.0, %v3126
      %v3128 = vmul.f32 %v3125, %v3127
      %v3129 = vadd.f32 %v3125, %v3128
      %vm3130 = vweird.f32 %v3124
      %vm3131 = vweird.f32 %v3125
      %vm3132 = vmor %vm3130, %vm3131
      %v3133 = vsel %vm3132, %v3125, %v3129
      %v3134 = vand.u32 2147483647, %v3124
      %vm3135 = vcmp.eq.f32.partialorder %v3134, 8.507059e+37
      %v3136 = vand.u32 %v3124, 2147483648
      %v3137 = vor.u32 1.1754944e-38, %v3136
      %v3138 = vsel %vm3135, %v3137, %v3133
      %v3139 = vmul.f32 1.0, %v3138
      %v3140 = vtanh.pop %v3100
      %v3141 = vxor.u32 %v3101, 2147483648
      %v3142 = vmul.f32 %v3141, 1.442695
      %v3143 = vpow.pop %v3142
      %v3144 = vadd.f32 %v3143, 1.0
      %v3145 = vrcp.pop %v3144
      %v3146 = vmul.f32 %v3144, %v3145
      %v3147 = vsub.f32 1.0, %v3146
      %v3148 = vmul.f32 %v3145, %v3147
      %v3149 = vadd.f32 %v3145, %v3148
      %vm3150 = vweird.f32 %v3144
      %vm3151 = vweird.f32 %v3145
      %vm3152 = vmor %vm3150, %vm3151
      %v3153 = vsel %vm3152, %v3145, %v3149
      %v3154 = vand.u32 2147483647, %v3144
      %vm3155 = vcmp.eq.f32.partialorder %v3154, 8.507059e+37
      %v3156 = vand.u32 %v3144, 2147483648
      %v3157 = vor.u32 1.1754944e-38, %v3156
      %v3158 = vsel %vm3155, %v3157, %v3153
      %v3159 = vmul.f32 1.0, %v3158
      %v3160 = vmul.f32 %v3139, %v2840
      %v3161 = vmul.f32 %v3120, %v3140
      %v3162 = vadd.f32 %v3160, %v3161
      %v3163 = vtanh.pop %v3162
      %v3164 = vmul.f32 %v3159, %v3163
      %v3165 = vpack.c.bf16 %v3164, %v3164
      %s3166 = scalar_lea.vmem %s84, %s2844
      %v3167 = vld [vmem:[%s3166] sm:$0xff]
      %3168 = vset.pattern.permute.xlu0 0
      %3169 = vperm.xlu0 %3168, %v3167
      %v3170 = vpop.permute.xlu0 %3169
      %vm3171 = vcmp.ne.s32.totalorder %v3170, 0
      %vm3172 = vmpackc.low %vm3171, %vm3171
      %v3173 = vsel %vm3172, %v3165, %v2839
      %v3174 = vsel %vm3171, %v3162, %v2840
      %v3175 = vsel %vm3171, %v3164, 0.0
      %s3176 = scalar_lea.vmem [#allocation3], %s2844
      %3177 = vst [vmem:[%s3176] sm:$0xff] %v3175
    $region42: #{tpu_custom_call.1} parent=1 // loop_footer
      %s503 = sadd.s32 1, %s499
    $region43: #{tpu_custom_call.1} parent=1 // loop_footer_branch
      %498 = sbr.rel target = $region39
    $region44: #{tpu_custom_call.1} parent=1 // loop_exit
      _
    %v3178 = vunpack.c.l.bf16 %v504
    %3179 = vst [vmem:[#allocation4] sm:$0xff] %v3178
    %3180 = vst [vmem:[#allocation5] sm:$0xff] %v505
    %v3181 = vld [vmem:[#allocation3] sm:$0xff]
    %v3182 = vld [vmem:[#allocation3 + $0x8] sm:$0xff]
    %v3183 = vld [vmem:[#allocation3 + $0x10] sm:$0xff]
    %v3184 = vld [vmem:[#allocation3 + $0x18] sm:$0xff]
    %v3185 = vld [vmem:[#allocation3 + $0x20] sm:$0xff]
    %v3186 = vld [vmem:[#allocation3 + $0x28] sm:$0xff]
    %v3187 = vld [vmem:[#allocation3 + $0x30] sm:$0xff]
    %v3188 = vld [vmem:[#allocation3 + $0x38] sm:$0xff]
    %v3189 = vld [vmem:[#allocation3 + $0x40] sm:$0xff]
    %v3190 = vld [vmem:[#allocation3 + $0x48] sm:$0xff]
    %v3191 = vld [vmem:[#allocation3 + $0x50] sm:$0xff]
    %v3192 = vld [vmem:[#allocation3 + $0x58] sm:$0xff]
    %v3193 = vld [vmem:[#allocation3 + $0x60] sm:$0xff]
    %v3194 = vld [vmem:[#allocation3 + $0x68] sm:$0xff]
    %v3195 = vld [vmem:[#allocation3 + $0x70] sm:$0xff]
    %v3196 = vld [vmem:[#allocation3 + $0x78] sm:$0xff]
    %v3197 = vpack.c.bf16 %v3182, %v3181
    %v3198 = vpack.c.bf16 %v3184, %v3183
    %v3199 = vpack.c.bf16 %v3186, %v3185
    %v3200 = vpack.c.bf16 %v3188, %v3187
    %v3201 = vpack.c.bf16 %v3190, %v3189
    %v3202 = vpack.c.bf16 %v3192, %v3191
    %v3203 = vpack.c.bf16 %v3194, %v3193
    %v3204 = vpack.c.bf16 %v3196, %v3195
    %v3205 = vld [vmem:[%s5] sm:$0xf]
    %v3206 = vld [vmem:[%s5 + $0x4] sm:$0xf]
    %v3207 = vld [vmem:[%s5 + $0x8] sm:$0xf]
    %v3208 = vld [vmem:[%s5 + $0xc] sm:$0xf]
    %v3209 = vld [vmem:[%s5 + $0x10] sm:$0xf]
    %v3210 = vld [vmem:[%s5 + $0x14] sm:$0xf]
    %v3211 = vld [vmem:[%s5 + $0x18] sm:$0xf]
    %v3212 = vld [vmem:[%s5 + $0x1c] sm:$0xf]
    %v3213 = vld [vmem:[%s5 + $0x20] sm:$0xf]
    %v3214 = vld [vmem:[%s5 + $0x24] sm:$0xf]
    %v3215 = vld [vmem:[%s5 + $0x28] sm:$0xf]
    %v3216 = vld [vmem:[%s5 + $0x2c] sm:$0xf]
    %v3217 = vld [vmem:[%s5 + $0x30] sm:$0xf]
    %v3218 = vld [vmem:[%s5 + $0x34] sm:$0xf]
    %v3219 = vld [vmem:[%s5 + $0x38] sm:$0xf]
    %v3220 = vld [vmem:[%s5 + $0x3c] sm:$0xf]
    %v3221 = vld [vmem:[%s6] sm:$0x1]
    %v3223 = vperm.slane %v3221, 0
    %v3241 = vunpack.c.l.b16 %v3205
    %v3242 = vunpack.c.l.b16 %v3206
    %v3243 = vunpack.c.l.b16 %v3207
    %v3244 = vunpack.c.l.b16 %v3208
    %v3245 = vunpack.c.l.b16 %v3209
    %v3246 = vunpack.c.l.b16 %v3210
    %v3247 = vunpack.c.l.b16 %v3211
    %v3248 = vunpack.c.l.b16 %v3212
    %v3249 = vunpack.c.l.b16 %v3213
    %v3250 = vunpack.c.l.b16 %v3214
    %v3251 = vunpack.c.l.b16 %v3215
    %v3252 = vunpack.c.l.b16 %v3216
    %v3253 = vunpack.c.l.b16 %v3217
    %v3254 = vunpack.c.l.b16 %v3218
    %v3255 = vunpack.c.l.b16 %v3219
    %v3256 = vunpack.c.l.b16 %v3220
    %v3257 = vpack.c.b16 %v3242, %v3241
    %v3258 = vpack.c.b16 %v3244, %v3243
    %v3259 = vpack.c.b16 %v3246, %v3245
    %v3260 = vpack.c.b16 %v3248, %v3247
    %v3261 = vpack.c.b16 %v3250, %v3249
    %v3262 = vpack.c.b16 %v3252, %v3251
    %v3263 = vpack.c.b16 %v3254, %v3253
    %v3264 = vpack.c.b16 %v3256, %v3255
    %3273 = vmatpush.bf16.msra.mxu0 %v3264
    %3274 = vmatpush.bf16.msra.mxu0 %v3263
    %3275 = vmatpush.bf16.msra.mxu0 %v3262
    %3276 = vmatpush.bf16.msra.mxu0 %v3261
    %3277 = vmatpush.bf16.msra.mxu0 %v3260
    %3278 = vmatpush.bf16.msra.mxu0 %v3259
    %3279 = vmatpush.bf16.msra.mxu0 %v3258
    %3280 = vmatpush.bf16.msra.mxu0 %v3257
    %3281 = vmatmul.bf16.gmra.mxu0 %v3197
    %v3282 = vpop.f32.mrf.mxu0
    %v3283 = vadd.f32 %v3223, %v3282
    %v3284 = vpop.f32.mrf.mxu0
    %v3285 = vadd.f32 %v3223, %v3284
    %3286 = vmatmul.bf16.gmra.mxu0 %v3198
    %v3287 = vpop.f32.mrf.mxu0
    %v3288 = vadd.f32 %v3223, %v3287
    %v3289 = vpop.f32.mrf.mxu0
    %v3290 = vadd.f32 %v3223, %v3289
    %3291 = vmatmul.bf16.gmra.mxu0 %v3199
    %v3292 = vpop.f32.mrf.mxu0
    %v3293 = vadd.f32 %v3223, %v3292
    %v3294 = vpop.f32.mrf.mxu0
    %v3295 = vadd.f32 %v3223, %v3294
    %3296 = vmatmul.bf16.gmra.mxu0 %v3200
    %v3297 = vpop.f32.mrf.mxu0
    %v3298 = vadd.f32 %v3223, %v3297
    %v3299 = vpop.f32.mrf.mxu0
    %v3300 = vadd.f32 %v3223, %v3299
    %3301 = vmatmul.bf16.gmra.mxu0 %v3201
    %v3302 = vpop.f32.mrf.mxu0
    %v3303 = vadd.f32 %v3223, %v3302
    %v3304 = vpop.f32.mrf.mxu0
    %v3305 = vadd.f32 %v3223, %v3304
    %3306 = vmatmul.bf16.gmra.mxu0 %v3202
    %v3307 = vpop.f32.mrf.mxu0
    %v3308 = vadd.f32 %v3223, %v3307
    %v3309 = vpop.f32.mrf.mxu0
    %v3310 = vadd.f32 %v3223, %v3309
    %3311 = vmatmul.bf16.gmra.mxu0 %v3203
    %v3312 = vpop.f32.mrf.mxu0
    %v3313 = vadd.f32 %v3223, %v3312
    %v3314 = vpop.f32.mrf.mxu0
    %v3315 = vadd.f32 %v3223, %v3314
    %3316 = vmatmul.bf16.gmra.mxu0 %v3204
    %v3317 = vpop.f32.mrf.mxu0
    %v3318 = vadd.f32 %v3223, %v3317
    %v3319 = vpop.f32.mrf.mxu0
    %v3320 = vadd.f32 %v3223, %v3319
    %3321 = vdwg.mxu0
    %3322 = vst [vmem:[#allocation9] sm:$0xff] %v3283
    %3323 = vst [vmem:[#allocation9 + $0x8] sm:$0xff] %v3285
    %3324 = vst [vmem:[#allocation9 + $0x10] sm:$0xff] %v3288
    %3325 = vst [vmem:[#allocation9 + $0x18] sm:$0xff] %v3290
    %3326 = vst [vmem:[#allocation9 + $0x20] sm:$0xff] %v3293
    %3327 = vst [vmem:[#allocation9 + $0x28] sm:$0xff] %v3295
    %3328 = vst [vmem:[#allocation9 + $0x30] sm:$0xff] %v3298
    %3329 = vst [vmem:[#allocation9 + $0x38] sm:$0xff] %v3300
    %3330 = vst [vmem:[#allocation9 + $0x40] sm:$0xff] %v3303
    %3331 = vst [vmem:[#allocation9 + $0x48] sm:$0xff] %v3305
    %3332 = vst [vmem:[#allocation9 + $0x50] sm:$0xff] %v3308
    %3333 = vst [vmem:[#allocation9 + $0x58] sm:$0xff] %v3310
    %3334 = vst [vmem:[#allocation9 + $0x60] sm:$0xff] %v3313
    %3335 = vst [vmem:[#allocation9 + $0x68] sm:$0xff] %v3315
    %3336 = vst [vmem:[#allocation9 + $0x70] sm:$0xff] %v3318
    %3337 = vst [vmem:[#allocation9 + $0x78] sm:$0xff] %v3320
    // Predicated region
    $region45: #{tpu_custom_call.1} parent=1 // pred_check
      _
    $region46: #{tpu_custom_call.1} parent=1 // pred_check_branch
      %3339 = sbr.rel (0) target = $region48
    $region47: #{tpu_custom_call.1} parent=1 // pred_region
      %s3340 = sadd.s32 0, 0
      %s3341 = smul.u32 16, %s3340
      %3343 = vsyncadd [#allocation8], 0
      %s3344 = smul.addr %s3341, 8
      %s3345 = scalar_lea.hbm %s7, %s3344
      %s3346 = sshll.u32 [#allocation9], 4
      %s3347 = int_to_ptr.vmem [resolvable:$true] %s3346
      %s3348 = sshll.u32 %s3345, 4
      %s3349 = int_to_ptr.hbm [resolvable:$true] %s3348
      %3354 = dma.vmem_to_hbm [thread:$0]  %s3347, 2048, %s3349, [#allocation8], 128, 128, 8
    $region48: #{tpu_custom_call.1} parent=1 // pred_fallthru
      _
    // Predicated region
    $region49: #{tpu_custom_call.1} parent=1 // pred_check
      _
    $region50: #{tpu_custom_call.1} parent=1 // pred_check_branch
      %3356 = sbr.rel (0) target = $region52
    $region51: #{tpu_custom_call.1} parent=1 // pred_region
      %3358 = dma.done [#allocation8], 2048
    $region52: #{tpu_custom_call.1} parent=1 // pred_fallthru
      _
    %3359 = vsyncpa [#allocation7], 1
    %3360 = vsyncpa [#allocation8], 1

</llo_original>
